<compile_context>
chip_gen: v7x
topology: tpu7x:2x2x1
jax: 0.10.0
libtpu: 0.0.40
codegen_flags: <defaults>
</compile_context>

<pallas_src>
import functools
import math

import jax
import jax.numpy as jnp
import numpy as np
from jax import lax
from jax.experimental import pallas as pl
from jax.experimental.pallas import tpu as pltpu

MATMUL_DTYPE = jnp.bfloat16   # MXU operand dtype; accumulation is always f32
LN_EPS = 1e-6
NEG_INF = -1e9
FF_CHUNK = 512                # d_ff chunk width (multiple of 128)


# ----------------------------------------------------------------------------
# In-kernel helpers (operate on values / refs)
# ----------------------------------------------------------------------------
def _mm(x, w, b=None):
    """x: (M, K) f32; w: (K, N); b: (1, N) f32 or None -> (M, N) f32."""
    y = jnp.dot(x.astype(w.dtype), w, preferred_element_type=jnp.float32)
    if b is not None:
        y = y + b
    return y


def _layernorm(x, alpha, bias, denom):
    """SamLynnEvans Norm: alpha * (x - mean) / (std + eps) + bias, torch unbiased std.
    Division replaced by an EUP reciprocal multiply."""
    mean = jnp.mean(x, axis=-1, keepdims=True)
    diff = x - mean
    var = jnp.sum(diff * diff, axis=-1, keepdims=True) * (1.0 / denom)
    inv = pl.reciprocal(jnp.sqrt(var) + LN_EPS, approx=True)
    return alpha * (diff * inv) + bias


def _mha(q, k, v, addmask, wo, bo, heads):
    """Multi-head attention over flattened (B*S) rows.

    q: (Mq, D) f32, k/v: (Mk, D) f32,
    addmask: (Mq, Mk) f32 additive mask (0 attend / -1e9 masked; cross-batch entries
             are already -1e9, so no per-batch loop or batched reshapes are needed),
    wo: (D, D), bo: (1, D) -> (Mq, D) f32.
    """
    D = q.shape[-1]
    dk = D // heads
    scale = 1.0 / math.sqrt(dk)
    mdt = wo.dtype

    ctx_heads = []
    for h in range(heads):                       # short static head loop (H=4)
        cs = slice(h * dk, (h + 1) * dk)
        qh = q[:, cs].astype(mdt)                # (Mq, dk)
        kh = k[:, cs].astype(mdt)                # (Mk, dk)
        s = lax.dot_general(qh, kh, (((1,), (1,)), ((), ())),
                            preferred_element_type=jnp.float32) * scale   # (Mq, Mk)
        s = s + addmask                          # additive mask (precomputed in glue)
        s = s - jnp.max(s, axis=-1, keepdims=True)
        e = jnp.exp(s)                           # f32 softmax
        p = e * pl.reciprocal(jnp.sum(e, axis=-1, keepdims=True), approx=True)
        ctx_heads.append(jnp.dot(p.astype(mdt), v[:, cs].astype(mdt),
                                 preferred_element_type=jnp.float32))     # (Mq, dk)
    concat = jnp.concatenate(ctx_heads, axis=-1)                          # (Mq, D)
    return _mm(concat, wo, bo)                   # single hoisted output projection


def _ffn(x2, w1s, b1s, w2s, bff2, dff, chunk):
    """Feed-forward max(x2@W1+b1, 0)@W2 + b2, chunked along d_ff so the (M, d_ff)
    hidden never materializes (bounds vreg live ranges; interleaves FF1/FF2 MXU work).

    w1s: (1, D, dff) ref block, b1s: (1, 1, dff) ref block, w2s: (1, dff, D) ref block,
    bff2: (1, D) value.
    """
    M, D = x2.shape
    n_chunks = dff // chunk
    xm = x2.astype(MATMUL_DTYPE)

    def body(c, acc):
        off = pl.multiple_of(c * chunk, chunk)
        w1 = w1s[0, :, pl.ds(off, chunk)]                      # (D, chunk) bf16
        b1 = b1s[0, :, pl.ds(off, chunk)]                      # (1, chunk) f32
        h = jnp.maximum(jnp.dot(xm, w1, preferred_element_type=jnp.float32) + b1, 0.0)
        w2 = w2s[0, pl.ds(off, chunk), :]                      # (chunk, D) bf16
        return acc + jnp.dot(h.astype(MATMUL_DTYPE), w2,
                             preferred_element_type=jnp.float32)

    acc0 = jnp.zeros((M, D), jnp.float32) + bff2
    return lax.fori_loop(0, n_chunks, body, acc0, unroll=True)


# ----------------------------------------------------------------------------
# Fully fused TransformerVAE forward kernel: grid=(2*N,)
#   steps 0..N-1       : encoder layers (step N-1 also: final enc Norm + VAE bottleneck)
#   steps N..2N-1      : decoder layers (last step also: final dec Norm + vocab proj)
# ----------------------------------------------------------------------------
def _fused_vae_transformer_kernel(
        x_src_ref, x_trg_ref, enc_add_ref, dec_self_ref, dec_cross_ref, eps_ref,
        # encoder per-layer stacks
        e_wqkv, e_wo, e_wff1, e_bff1, e_wff2, e_small,
        # decoder per-layer stacks
        d_wqkv1, d_wo1, d_wq2, d_wkv2, d_wo2, d_wff1, d_bff1, d_wff2, d_small,
        # globals (DMA'd once, stay resident)
        e_fnab, d_fnab, wml, bml, wl2e, bl2e, wout, bout,
        o_ref,
        enc_vmem, dec_vmem, ze_vmem,
        *, n_enc, batch, heads, latent, denom, dff, ff_chunk):
    l = pl.program_id(0)

    @pl.when(l == 0)
    def _():
        enc_vmem[...] = x_src_ref[...]

    # ---------------- encoder layer (steps 0..n_enc-1) ----------------
    @pl.when(l < n_enc)
    def _():
        x = enc_vmem[...]                        # (B*Ss, D) f32
        D = x.shape[-1]
        addmask = enc_add_ref[...]               # (B*Ss, B*Ss) additive
        sm = e_small[0]                          # packed per-layer small params
        n1a, n1b = sm[0:1, :D], sm[1:2, :D]
        n2a, n2b = sm[2:3, :D], sm[3:4, :D]
        bqkv, bo, bff2 = sm[4:5, :3 * D], sm[5:6, :D], sm[6:7, :D]

        # self-attention sublayer
        x2 = _layernorm(x, n1a, n1b, denom)
        qkv = _mm(x2, e_wqkv[0], bqkv)           # fused Q/K/V projection
        q, k, v = qkv[:, :D], qkv[:, D:2 * D], qkv[:, 2 * D:]
        x = x + _mha(q, k, v, addmask, e_wo[0], bo, heads)

        # feed-forward sublayer (chunked along d_ff)
        x2 = _layernorm(x, n2a, n2b, denom)
        x = x + _ffn(x2, e_wff1, e_bff1, e_wff2, bff2, dff, ff_chunk)
        enc_vmem[...] = x

    # -------- final encoder Norm + fused VAE bottleneck (step n_enc-1) --------
    @pl.when(l == n_enc - 1)
    def _():
        x = enc_vmem[...]
        M, D = x.shape
        Ss = M // batch
        fn = e_fnab[...]
        e_out = _layernorm(x, fn[0:1, :], fn[1:2, :], denom)     # final encoder Norm
        # per-batch sequence means -> one (B, D) tensor, single fused matmuls
        em = jnp.concatenate(
            [jnp.mean(e_out[b * Ss:(b + 1) * Ss, :], axis=0, keepdims=True)
             for b in range(batch)], axis=0)                     # (B, D)
        y = _mm(em, wml[...], bml[...])                          # (B, 2L) fused mu|logvar (f32)
        mu, logvar = y[:, :latent], y[:, latent:]
        z = eps_ref[...] * jnp.exp(0.5 * logvar) + mu            # reparameterize
        ze = _mm(z, wl2e[...], bl2e[...])                        # (B, D) latent_to_e
        for b in range(batch):                                   # broadcast over sequence
            ze_vmem[b * Ss:(b + 1) * Ss, :] = jnp.broadcast_to(ze[b:b + 1, :], (Ss, D))
        dec_vmem[...] = x_trg_ref[...]                           # prime decoder activations

    # ---------------- decoder layer (steps n_enc..2*n_enc-1) ----------------
    @pl.when(l >= n_enc)
    def _():
        x = dec_vmem[...]                        # (B*St, D) f32
        D = x.shape[-1]
        ze = ze_vmem[...]                        # (B*Ss, D) z_e_outputs (VMEM-resident)
        tmask = dec_self_ref[...]                # (B*St, B*St) additive
        cmask = dec_cross_ref[...]               # (B*St, B*Ss) additive
        sm = d_small[0]
        n1a, n1b = sm[0:1, :D], sm[1:2, :D]
        n2a, n2b = sm[2:3, :D], sm[3:4, :D]
        n3a, n3b = sm[4:5, :D], sm[5:6, :D]
        bqkv1, bo1 = sm[6:7, :3 * D], sm[7:8, :D]
        bq2, bkv2, bo2 = sm[8:9, :D], sm[9:10, :2 * D], sm[10:11, :D]
        bff2 = sm[11:12, :D]

        # masked self-attention
        x2 = _layernorm(x, n1a, n1b, denom)
        qkv = _mm(x2, d_wqkv1[0], bqkv1)
        q, k, v = qkv[:, :D], qkv[:, D:2 * D], qkv[:, 2 * D:]
        x = x + _mha(q, k, v, tmask, d_wo1[0], bo1, heads)

        # cross-attention over z_e_outputs
        x2 = _layernorm(x, n2a, n2b, denom)
        q = _mm(x2, d_wq2[0], bq2)
        kv = _mm(ze, d_wkv2[0], bkv2)            # fused K/V projection of z_e
        k, v = kv[:, :D], kv[:, D:]
        x = x + _mha(q, k, v, cmask, d_wo2[0], bo2, heads)

        # feed-forward
        x2 = _layernorm(x, n3a, n3b, denom)
        x = x + _ffn(x2, d_wff1, d_bff1, d_wff2, bff2, dff, ff_chunk)
        dec_vmem[...] = x

    # ---------- final decoder Norm + vocab projection (last step) ----------
    @pl.when(l == pl.num_programs(0) - 1)
    def _():
        x = dec_vmem[...]
        fn = d_fnab[...]
        d_norm = _layernorm(x, fn[0:1, :], fn[1:2, :], denom)
        o_ref[...] = _mm(d_norm, wout[...], bout[...])           # lane-dense padded logits


# ----------------------------------------------------------------------------
# pallas_call wrapper
# ----------------------------------------------------------------------------
def _full_spec(shape):
    nd = len(shape)
    return pl.BlockSpec(shape, lambda l, _nd=nd: (0,) * _nd)


def _enc_layer_spec(shape, n_enc):
    nd = len(shape)
    return pl.BlockSpec((1,) + shape,
                        lambda l, _nd=nd, _n=n_enc: (jnp.minimum(l, _n - 1),) + (0,) * _nd)


def _dec_layer_spec(shape, n_enc):
    nd = len(shape)
    return pl.BlockSpec((1,) + shape,
                        lambda l, _nd=nd, _n=n_enc: (jnp.maximum(l - _n, 0),) + (0,) * _nd)


def fused_transformer_vae(kp, cfg, x_src, x_trg, enc_add, dec_self_add, dec_cross_add, eps):
    Ms, D = x_src.shape
    Mt = x_trg.shape[0]
    B = eps.shape[0]
    N, heads, dff, L = cfg["N"], cfg["heads"], cfg["d_ff"], cfg["latent_size"]
    e, dd, vv = kp["enc"], kp["dec"], kp["vae"]
    Vp = dd["wout"].shape[-1]
    ff_chunk = dff if dff <= FF_CHUNK else FF_CHUNK
    assert dff % ff_chunk == 0

    kernel = functools.partial(
        _fused_vae_transformer_kernel,
        n_enc=N, batch=B, heads=heads, latent=L,
        denom=float(D - 1), dff=dff, ff_chunk=ff_chunk)

    enc_rows = e["small"].shape[1]
    dec_rows = dd["small"].shape[1]

    in_specs = [
        _full_spec((Ms, D)),                            # x_src
        _full_spec((Mt, D)),                            # x_trg
        _full_spec((Ms, Ms)),                           # encoder self-attn additive mask
        _full_spec((Mt, Mt)),                           # decoder self-attn additive mask
        _full_spec((Mt, Ms)),                           # decoder cross-attn additive mask
        _full_spec((B, L)),                             # eps (reparameterization noise)
        # encoder per-layer stacks
        _enc_layer_spec((D, 3 * D), N), _enc_layer_spec((D, D), N),
        _enc_layer_spec((D, dff), N), _enc_layer_spec((1, dff), N),
        _enc_layer_spec((dff, D), N), _enc_layer_spec((enc_rows, 128), N),
        # decoder per-layer stacks
        _dec_layer_spec((D, 3 * D), N), _dec_layer_spec((D, D), N),
        _dec_layer_spec((D, D), N), _dec_layer_spec((D, 2 * D), N),
        _dec_layer_spec((D, D), N),
        _dec_layer_spec((D, dff), N), _dec_layer_spec((1, dff), N),
        _dec_layer_spec((dff, D), N), _dec_layer_spec((dec_rows, 128), N),
        # globals
        _full_spec((2, D)), _full_spec((2, D)),         # final enc / dec norms
        _full_spec((D, 2 * L)), _full_spec((1, 2 * L)), # fused mu|logvar (f32)
        _full_spec((L, D)), _full_spec((1, D)),         # latent_to_e (f32)
        _full_spec((D, Vp)), _full_spec((1, Vp)),       # padded vocab projection
    ]

    return pl.pallas_call(
        kernel,
        grid=(2 * N,),
        in_specs=in_specs,
        out_specs=pl.BlockSpec((Mt, Vp), lambda l: (0, 0)),
        out_shape=jax.ShapeDtypeStruct((Mt, Vp), jnp.float32),
        scratch_shapes=[pltpu.VMEM((Ms, D), jnp.float32),   # encoder activations
                        pltpu.VMEM((Mt, D), jnp.float32),   # decoder activations
                        pltpu.VMEM((Ms, D), jnp.float32)],  # z_e_outputs
        compiler_params=pltpu.CompilerParams(
            dimension_semantics=("arbitrary",),
            vmem_limit_bytes=32 * 1024 * 1024),
    )(x_src, x_trg, enc_add, dec_self_add, dec_cross_add, eps,
      e["wqkv"], e["wo"], e["wff1"], e["bff1"], e["wff2"], e["small"],
      dd["wqkv1"], dd["wo1"], dd["wq2"], dd["wkv2"], dd["wo2"],
      dd["wff1"], dd["bff1"], dd["wff2"], dd["small"],
      e["fnab"], dd["fnab"],
      vv["wml"], vv["bml"], vv["wl2e"], vv["bl2e"],
      dd["wout"], dd["bout"])


# ----------------------------------------------------------------------------
# Model glue (plain JAX orchestration around the single fused Pallas kernel)
# ----------------------------------------------------------------------------
def _block_diag_add_mask(mask, Sq):
    """mask: (B, 1 or Sq, Sk), nonzero = attend.  Returns a (B*Sq, B*Sk) ADDITIVE f32
    mask (0 attend / -1e9 masked) with cross-batch entries masked, so in-kernel
    attention over flattened rows needs no per-batch loop or batched reshapes."""
    B = mask.shape[0]
    Sk = mask.shape[-1]
    m = jnp.broadcast_to(mask != 0, (B, Sq, Sk))
    same_batch = jnp.eye(B, dtype=bool)[:, None, :, None]            # (B, 1, B, 1)
    big = jnp.logical_and(same_batch, m[:, :, None, :])              # (B, Sq, B, Sk)
    return jnp.where(big, 0.0, NEG_INF).astype(jnp.float32).reshape(B * Sq, B * Sk)


def positional_encoding_table(max_len, d_model):
    # Exact reproduction of the tutorial PositionalEncoder table construction.
    pe = np.zeros((max_len, d_model), dtype=np.float32)
    for pos in range(max_len):
        for i in range(0, d_model, 2):
            pe[pos, i] = math.sin(pos / (10000 ** ((2 * i) / d_model)))
            if i + 1 < d_model:
                pe[pos, i + 1] = math.cos(pos / (10000 ** ((2 * (i + 1)) / d_model)))
    return jnp.asarray(pe)


def transformer_vae_forward(kp, cfg, src, trg, src_mask, trg_mask, eps, pe):
    d = cfg["d_model"]
    V = cfg["trg_vocab"]
    B, Ss = src.shape
    _, St = trg.shape

    # additive block-diagonal masks computed once in glue (no in-kernel compare/select)
    enc_add = _block_diag_add_mask(src_mask, Ss)       # (B*Ss, B*Ss)
    dec_self_add = _block_diag_add_mask(trg_mask, St)  # (B*St, B*St)
    dec_cross_add = _block_diag_add_mask(src_mask, St) # (B*St, B*Ss)

    # TODO(synk): token-embedding gather is data-dependent; stays in plain JAX glue.
    x_src = (jnp.take(kp["enc_embed"], src, axis=0) * math.sqrt(d)
             + pe[None, :Ss, :]).reshape(B * Ss, d)
    x_trg = (jnp.take(kp["dec_embed"], trg, axis=0) * math.sqrt(d)
             + pe[None, :St, :]).reshape(B * St, d)

    logits_p = fused_transformer_vae(kp, cfg, x_src, x_trg,
                                     enc_add, dec_self_add, dec_cross_add, eps)
    return logits_p.reshape(B, St, -1)[:, :, :V]


# ----------------------------------------------------------------------------
# Parameter init (PyTorch layout) and one-time kernel-ready preparation
# ----------------------------------------------------------------------------
def make_params(key, cfg):
    keys = iter(jax.random.split(key, 256))

    def lin(in_f, out_f):
        bound = 1.0 / math.sqrt(in_f)
        w = jax.random.uniform(next(keys), (out_f, in_f), jnp.float32, -bound, bound)
        b = jax.random.uniform(next(keys), (out_f,), jnp.float32, -bound, bound)
        return {"w": w, "b": b}

    def norm(d):
        return {"alpha": jnp.ones((d,), jnp.float32), "bias": jnp.zeros((d,), jnp.float32)}

    def mha(d):
        return {"q": lin(d, d), "k": lin(d, d), "v": lin(d, d), "o": lin(d, d)}

    def ff(d, dff):
        return {"l1": lin(d, dff), "l2": lin(dff, d)}

    d, dff = cfg["d_model"], cfg["d_ff"]
    return {
        "enc_embed": jax.random.normal(next(keys), (cfg["src_vocab"], d), jnp.float32),
        "dec_embed": jax.random.normal(next(keys), (cfg["trg_vocab"], d), jnp.float32),
        "enc_layers": [
            {"norm1": norm(d), "norm2": norm(d), "attn": mha(d), "ff": ff(d, dff)}
            for _ in range(cfg["N"])
        ],
        "dec_layers": [
            {"norm1": norm(d), "norm2": norm(d), "norm3": norm(d),
             "attn1": mha(d), "attn2": mha(d), "ff": ff(d, dff)}
            for _ in range(cfg["N"])
        ],
        "enc_norm": norm(d),
        "dec_norm": norm(d),
        "mu": lin(d, cfg["latent_size"]),
        "logvar": lin(d, cfg["latent_size"]),
        "latent_to_e": lin(cfg["latent_size"], d),
        "out": lin(d, cfg["trg_vocab"]),
    }


def _round_up(x, m):
    return ((x + m - 1) // m) * m


def _pack_rows(vectors, n_rows, width=128):
    """Pack a list of small 1-D params into a lane-padded (n_rows, 128) f32 block."""
    out = jnp.zeros((n_rows, width), jnp.float32)
    for r, v in enumerate(vectors):
        v = jnp.asarray(v, jnp.float32).reshape(-1)
        assert v.shape[0] <= width
        out = out.at[r, :v.shape[0]].set(v)
    return out


def prepare_params(params, cfg):
    """One-time conversion of PyTorch-layout params into kernel-ready tensors:
    transposed (in, out) bf16 matmul weights, fused QKV / KV / mu|logvar, per-layer
    stacking along a leading layer axis, all tiny per-layer params packed into one
    (N, rows, 128) block per stack, and a lane-dense padded vocab projection."""
    d, dff, L = cfg["d_model"], cfg["d_ff"], cfg["latent_size"]
    V = cfg["trg_vocab"]
    Vp = _round_up(V, 128)

    def wt(lin):   # bf16 (in, out) for MXU operands
        return jnp.transpose(lin["w"]).astype(MATMUL_DTYPE)

    def wtf(lin):  # f32 (in, out) for the VAE weights (numerical parity)
        return jnp.transpose(lin["w"]).astype(jnp.float32)

    def bt(lin):
        return lin["b"].reshape(1, -1).astype(jnp.float32)

    stack = functools.partial(jnp.stack, axis=0)

    el = params["enc_layers"]
    enc = {
        "wqkv": stack([jnp.concatenate([wt(l["attn"]["q"]), wt(l["attn"]["k"]),
                                        wt(l["attn"]["v"])], axis=1) for l in el]),
        "wo":   stack([wt(l["attn"]["o"]) for l in el]),
        "wff1": stack([wt(l["ff"]["l1"]) for l in el]),
        "bff1": stack([bt(l["ff"]["l1"]) for l in el]),
        "wff2": stack([wt(l["ff"]["l2"]) for l in el]),
        # rows: 0 n1a, 1 n1b, 2 n2a, 3 n2b, 4 bqkv, 5 bo, 6 bff2
        "small": stack([_pack_rows(
            [l["norm1"]["alpha"], l["norm1"]["bias"],
             l["norm2"]["alpha"], l["norm2"]["bias"],
             jnp.concatenate([l["attn"]["q"]["b"], l["attn"]["k"]["b"],
                              l["attn"]["v"]["b"]]),
             l["attn"]["o"]["b"], l["ff"]["l2"]["b"]], 8) for l in el]),
        "fnab": jnp.stack([params["enc_norm"]["alpha"],
                           params["enc_norm"]["bias"]], axis=0).astype(jnp.float32),
    }

    dl = params["dec_layers"]
    dec = {
        "wqkv1": stack([jnp.concatenate([wt(l["attn1"]["q"]), wt(l["attn1"]["k"]),
                                         wt(l["attn1"]["v"])], axis=1) for l in dl]),
        "wo1":   stack([wt(l["attn1"]["o"]) for l in dl]),
        "wq2":   stack([wt(l["attn2"]["q"]) for l in dl]),
        "wkv2":  stack([jnp.concatenate([wt(l["attn2"]["k"]),
                                         wt(l["attn2"]["v"])], axis=1) for l in dl]),
        "wo2":   stack([wt(l["attn2"]["o"]) for l in dl]),
        "wff1":  stack([wt(l["ff"]["l1"]) for l in dl]),
        "bff1":  stack([bt(l["ff"]["l1"]) for l in dl]),
        "wff2":  stack([wt(l["ff"]["l2"]) for l in dl]),
        # rows: 0 n1a,1 n1b,2 n2a,3 n2b,4 n3a,5 n3b,6 bqkv1,7 bo1,8 bq2,9 bkv2,10 bo2,11 bff2
        "small": stack([_pack_rows(
            [l["norm1"]["alpha"], l["norm1"]["bias"],
             l["norm2"]["alpha"], l["norm2"]["bias"],
             l["norm3"]["alpha"], l["norm3"]["bias"],
             jnp.concatenate([l["attn1"]["q"]["b"], l["attn1"]["k"]["b"],
                              l["attn1"]["v"]["b"]]),
             l["attn1"]["o"]["b"],
             l["attn2"]["q"]["b"],
             jnp.concatenate([l["attn2"]["k"]["b"], l["attn2"]["v"]["b"]]),
             l["attn2"]["o"]["b"],
             l["ff"]["l2"]["b"]], 16) for l in dl]),
        "fnab": jnp.stack([params["dec_norm"]["alpha"],
                           params["dec_norm"]["bias"]], axis=0).astype(jnp.float32),
        "wout": jnp.zeros((d, Vp), MATMUL_DTYPE).at[:, :V].set(wt(params["out"])),
        "bout": jnp.zeros((1, Vp), jnp.float32).at[:, :V].set(bt(params["out"])),
    }

    vae = {
        "wml": jnp.concatenate([wtf(params["mu"]), wtf(params["logvar"])], axis=1),
        "bml": jnp.concatenate([bt(params["mu"]), bt(params["logvar"])], axis=1),
        "wl2e": wtf(params["latent_to_e"]),
        "bl2e": bt(params["latent_to_e"]),
    }

    return {"enc_embed": params["enc_embed"].astype(jnp.float32),
            "dec_embed": params["dec_embed"].astype(jnp.float32),
            "enc": enc, "dec": dec, "vae": vae}


# ----------------------------------------------------------------------------
if __name__ == "__main__":
    cfg = dict(
        src_vocab=50, trg_vocab=50,
        d_model=32, N=2, heads=4, dropout=0.0,   # dropout=0 -> identity (eval semantics)
        latent_size=16, e_outputs_length=8,
        d_ff=2048,                               # FeedForward default d_ff
    )
    B, S_SRC, S_TRG = 2, 8, 8

    root = jax.random.PRNGKey(0)
    k_param, k_src, k_trg, k_eps = jax.random.split(root, 4)

    params = make_params(k_param, cfg)
    kp = prepare_params(params, cfg)             # one-time transpose / fuse / pack / cast
    pe = positional_encoding_table(max(S_SRC, S_TRG), cfg["d_model"])

    src = jax.random.randint(k_src, (B, S_SRC), 0, cfg["src_vocab"], dtype=jnp.int32)
    trg = jax.random.randint(k_trg, (B, S_TRG), 0, cfg["trg_vocab"], dtype=jnp.int32)
    src_mask = jnp.ones((B, 1, S_SRC), jnp.float32)
    trg_mask = jnp.broadcast_to(
        jnp.tril(jnp.ones((S_TRG, S_TRG), jnp.float32))[None, :, :], (B, S_TRG, S_TRG))
    # TODO(synk): torch.randn_like noise is supplied externally (deterministic here).
    eps = jax.random.normal(k_eps, (B, cfg["latent_size"]), jnp.float32)

    @jax.jit
    def forward(kp, src, trg, src_mask, trg_mask, eps, pe):
        return transformer_vae_forward(kp, cfg, src, trg, src_mask, trg_mask, eps, pe)

    out = forward(kp, src, trg, src_mask, trg_mask, eps, pe)
    out = jax.block_until_ready(out)
    assert out.shape == (B, S_TRG, cfg["trg_vocab"]), out.shape
    assert bool(jnp.all(jnp.isfinite(out)))
    print("KERNEL_OK")
</pallas_src>

<mosaic_0001>
module attributes {stable_mosaic.version = 11 : i64} {
  func.func @_fused_vae_transformer_kernel(%arg0: i32, %arg1: memref<16x32xf32, #tpu.memory_space<vmem>>, %arg2: memref<16x32xf32, #tpu.memory_space<vmem>>, %arg3: memref<16x16xf32, #tpu.memory_space<vmem>>, %arg4: memref<16x16xf32, #tpu.memory_space<vmem>>, %arg5: memref<16x16xf32, #tpu.memory_space<vmem>>, %arg6: memref<2x16xf32, #tpu.memory_space<vmem>>, %arg7: memref<1x32x96xbf16, #tpu.memory_space<vmem>>, %arg8: memref<1x32x32xbf16, #tpu.memory_space<vmem>>, %arg9: memref<1x32x2048xbf16, #tpu.memory_space<vmem>>, %arg10: memref<1x1x2048xf32, #tpu.memory_space<vmem>>, %arg11: memref<1x2048x32xbf16, #tpu.memory_space<vmem>>, %arg12: memref<1x8x128xf32, #tpu.memory_space<vmem>>, %arg13: memref<1x32x96xbf16, #tpu.memory_space<vmem>>, %arg14: memref<1x32x32xbf16, #tpu.memory_space<vmem>>, %arg15: memref<1x32x32xbf16, #tpu.memory_space<vmem>>, %arg16: memref<1x32x64xbf16, #tpu.memory_space<vmem>>, %arg17: memref<1x32x32xbf16, #tpu.memory_space<vmem>>, %arg18: memref<1x32x2048xbf16, #tpu.memory_space<vmem>>, %arg19: memref<1x1x2048xf32, #tpu.memory_space<vmem>>, %arg20: memref<1x2048x32xbf16, #tpu.memory_space<vmem>>, %arg21: memref<1x16x128xf32, #tpu.memory_space<vmem>>, %arg22: memref<2x32xf32, #tpu.memory_space<vmem>>, %arg23: memref<2x32xf32, #tpu.memory_space<vmem>>, %arg24: memref<32x32xf32, #tpu.memory_space<vmem>>, %arg25: memref<1x32xf32, #tpu.memory_space<vmem>>, %arg26: memref<16x32xf32, #tpu.memory_space<vmem>>, %arg27: memref<1x32xf32, #tpu.memory_space<vmem>>, %arg28: memref<32x128xbf16, #tpu.memory_space<vmem>>, %arg29: memref<1x128xf32, #tpu.memory_space<vmem>>, %arg30: memref<16x128xf32, #tpu.memory_space<vmem>>, %arg31: memref<16x32xf32, #tpu.memory_space<vmem>>, %arg32: memref<16x32xf32, #tpu.memory_space<vmem>>, %arg33: memref<16x32xf32, #tpu.memory_space<vmem>>) attributes {dimension_semantics = [#tpu.dimension_semantics<arbitrary>], iteration_bounds = array<i64: 4>, scalar_prefetch = 0 : i64, scratch_operands = 3 : i64, tpu.core_type = #tpu.core_type<tc>, window_params = [{pipeline_mode = #tpu.pipeline_mode<synchronous>, transform_indices = @transform_0, window_bounds = array<i64: 16, 32>}, {pipeline_mode = #tpu.pipeline_mode<synchronous>, transform_indices = @transform_1, window_bounds = array<i64: 16, 32>}, {pipeline_mode = #tpu.pipeline_mode<synchronous>, transform_indices = @transform_2, window_bounds = array<i64: 16, 16>}, {pipeline_mode = #tpu.pipeline_mode<synchronous>, transform_indices = @transform_3, window_bounds = array<i64: 16, 16>}, {pipeline_mode = #tpu.pipeline_mode<synchronous>, transform_indices = @transform_4, window_bounds = array<i64: 16, 16>}, {pipeline_mode = #tpu.pipeline_mode<synchronous>, transform_indices = @transform_5, window_bounds = array<i64: 2, 16>}, {transform_indices = @transform_6, window_bounds = array<i64: 1, 32, 96>}, {transform_indices = @transform_7, window_bounds = array<i64: 1, 32, 32>}, {transform_indices = @transform_8, window_bounds = array<i64: 1, 32, 2048>}, {transform_indices = @transform_9, window_bounds = array<i64: 1, 1, 2048>}, {transform_indices = @transform_10, window_bounds = array<i64: 1, 2048, 32>}, {transform_indices = @transform_11, window_bounds = array<i64: 1, 8, 128>}, {transform_indices = @transform_12, window_bounds = array<i64: 1, 32, 96>}, {transform_indices = @transform_13, window_bounds = array<i64: 1, 32, 32>}, {transform_indices = @transform_14, window_bounds = array<i64: 1, 32, 32>}, {transform_indices = @transform_15, window_bounds = array<i64: 1, 32, 64>}, {transform_indices = @transform_16, window_bounds = array<i64: 1, 32, 32>}, {transform_indices = @transform_17, window_bounds = array<i64: 1, 32, 2048>}, {transform_indices = @transform_18, window_bounds = array<i64: 1, 1, 2048>}, {transform_indices = @transform_19, window_bounds = array<i64: 1, 2048, 32>}, {transform_indices = @transform_20, window_bounds = array<i64: 1, 16, 128>}, {pipeline_mode = #tpu.pipeline_mode<synchronous>, transform_indices = @transform_21, window_bounds = array<i64: 2, 32>}, {pipeline_mode = #tpu.pipeline_mode<synchronous>, transform_indices = @transform_22, window_bounds = array<i64: 2, 32>}, {pipeline_mode = #tpu.pipeline_mode<synchronous>, transform_indices = @transform_23, window_bounds = array<i64: 32, 32>}, {pipeline_mode = #tpu.pipeline_mode<synchronous>, transform_indices = @transform_24, window_bounds = array<i64: 1, 32>}, {pipeline_mode = #tpu.pipeline_mode<synchronous>, transform_indices = @transform_25, window_bounds = array<i64: 16, 32>}, {pipeline_mode = #tpu.pipeline_mode<synchronous>, transform_indices = @transform_26, window_bounds = array<i64: 1, 32>}, {pipeline_mode = #tpu.pipeline_mode<synchronous>, transform_indices = @transform_27, window_bounds = array<i64: 32, 128>}, {pipeline_mode = #tpu.pipeline_mode<synchronous>, transform_indices = @transform_28, window_bounds = array<i64: 1, 128>}, {pipeline_mode = #tpu.pipeline_mode<synchronous>, transform_indices = @transform_29, window_bounds = array<i64: 16, 128>}]} {
    %c0_i32 = arith.constant 0 : i32
    %0 = arith.cmpi eq, %arg0, %c0_i32 : i32
    %1 = arith.extui %0 : i1 to i32
    %c0_i32_0 = arith.constant 0 : i32
    %2 = arith.cmpi ne, %1, %c0_i32_0 : i32
    scf.if %2 {
      %c0 = arith.constant 0 : index
      %c0_6 = arith.constant 0 : index
      %15 = vector.load %arg1[%c0, %c0_6] : memref<16x32xf32, #tpu.memory_space<vmem>>, vector<16x32xf32>
      %c0_7 = arith.constant 0 : index
      %c0_8 = arith.constant 0 : index
      %16 = vector.load %arg31[%c0_7, %c0_8] : memref<16x32xf32, #tpu.memory_space<vmem>>, vector<16x32xf32>
      tpu.vector_store %arg31[%c0_7, %c0_8], %15 {strides = array<i32>} : memref<16x32xf32, #tpu.memory_space<vmem>>, vector<16x32xf32>,
    } else {
    }
    %c2_i32 = arith.constant 2 : i32
    %3 = arith.cmpi slt, %arg0, %c2_i32 : i32
    %4 = arith.extui %3 : i1 to i32
    %c0_i32_1 = arith.constant 0 : i32
    %5 = arith.cmpi ne, %4, %c0_i32_1 : i32
    scf.if %5 {
      %c0 = arith.constant 0 : index
      %c0_6 = arith.constant 0 : index
      %15 = vector.load %arg31[%c0, %c0_6] : memref<16x32xf32, #tpu.memory_space<vmem>>, vector<16x32xf32>
      %c0_7 = arith.constant 0 : index
      %c0_8 = arith.constant 0 : index
      %16 = vector.load %arg3[%c0_7, %c0_8] : memref<16x16xf32, #tpu.memory_space<vmem>>, vector<16x16xf32>
      %c0_9 = arith.constant 0 : index
      %c0_10 = arith.constant 0 : index
      %c0_11 = arith.constant 0 : index
      %17 = vector.load %arg12[%c0_9, %c0_10, %c0_11] : memref<1x8x128xf32, #tpu.memory_space<vmem>>, vector<1x8x128xf32>
      %18 = vector.shape_cast %17 : vector<1x8x128xf32> to vector<8x128xf32>
      %19 = vector.extract_strided_slice %18 {offsets = [0, 0], sizes = [1, 32], strides = [1, 1]} : vector<8x128xf32> to vector<1x32xf32>
      %20 = vector.extract_strided_slice %18 {offsets = [1, 0], sizes = [1, 32], strides = [1, 1]} : vector<8x128xf32> to vector<1x32xf32>
      %21 = vector.extract_strided_slice %18 {offsets = [2, 0], sizes = [1, 32], strides = [1, 1]} : vector<8x128xf32> to vector<1x32xf32>
      %22 = vector.extract_strided_slice %18 {offsets = [3, 0], sizes = [1, 32], strides = [1, 1]} : vector<8x128xf32> to vector<1x32xf32>
      %23 = vector.extract_strided_slice %18 {offsets = [4, 0], sizes = [1, 96], strides = [1, 1]} : vector<8x128xf32> to vector<1x96xf32>
      %24 = vector.extract_strided_slice %18 {offsets = [5, 0], sizes = [1, 32], strides = [1, 1]} : vector<8x128xf32> to vector<1x32xf32>
      %25 = vector.extract_strided_slice %18 {offsets = [6, 0], sizes = [1, 32], strides = [1, 1]} : vector<8x128xf32> to vector<1x32xf32>
      %cst = arith.constant dense<0.000000e+00> : vector<16xf32>
      %26 = vector.multi_reduction <add>, %15, %cst [1] : vector<16x32xf32> to vector<16xf32>
      %27 = vector.shape_cast %26 : vector<16xf32> to vector<16x1xf32>
      %cst_12 = arith.constant 3.200000e+01 : f32
      %28 = vector.broadcast %cst_12 : f32 to vector<16x1xf32>
      %29 = arith.divf %27, %28 : vector<16x1xf32>
      %30 = vector.broadcast %29 : vector<16x1xf32> to vector<16x32xf32>
      %31 = arith.subf %15, %30 : vector<16x32xf32>
      %32 = arith.mulf %31, %31 : vector<16x32xf32>
      %cst_13 = arith.constant dense<0.000000e+00> : vector<16xf32>
      %33 = vector.multi_reduction <add>, %32, %cst_13 [1] : vector<16x32xf32> to vector<16xf32>
      %34 = vector.shape_cast %33 : vector<16xf32> to vector<16x1xf32>
      %cst_14 = arith.constant 0.0322580636 : f32
      %35 = vector.broadcast %cst_14 : f32 to vector<16x1xf32>
      %36 = arith.mulf %34, %35 : vector<16x1xf32>
      %37 = math.sqrt %36 : vector<16x1xf32>
      %cst_15 = arith.constant 9.99999997E-7 : f32
      %38 = vector.broadcast %cst_15 : f32 to vector<16x1xf32>
      %39 = arith.addf %37, %38 : vector<16x1xf32>
      %40 = tpu.reciprocal %39 {approx = true} : vector<16x1xf32> -> vector<16x1xf32>
      %41 = vector.broadcast %40 : vector<16x1xf32> to vector<16x32xf32>
      %42 = arith.mulf %31, %41 : vector<16x32xf32>
      %43 = vector.broadcast %19 : vector<1x32xf32> to vector<16x32xf32>
      %44 = arith.mulf %43, %42 : vector<16x32xf32>
      %45 = vector.broadcast %20 : vector<1x32xf32> to vector<16x32xf32>
      %46 = arith.addf %44, %45 : vector<16x32xf32>
      %c0_16 = arith.constant 0 : index
      %c0_17 = arith.constant 0 : index
      %c0_18 = arith.constant 0 : index
      %47 = vector.load %arg7[%c0_16, %c0_17, %c0_18] : memref<1x32x96xbf16, #tpu.memory_space<vmem>>, vector<1x32x96xbf16>
      %48 = vector.shape_cast %47 : vector<1x32x96xbf16> to vector<32x96xbf16>
      %49 = arith.truncf %46 : vector<16x32xf32> to vector<16x32xbf16>
      %cst_19 = arith.constant dense<0.000000e+00> : vector<16x96xf32>
      %50 = tpu.matmul %49, %48, %cst_19 {dimension_numbers = #tpu.dot_dimension_numbers<[1], [0], [0], [1], [0, 0, 1, 1], [], []>} : vector<16x32xbf16>, vector<32x96xbf16>, vector<16x96xf32> -> vector<16x96xf32>
      %51 = vector.broadcast %23 : vector<1x96xf32> to vector<16x96xf32>
      %52 = arith.addf %50, %51 : vector<16x96xf32>
      %53 = vector.extract_strided_slice %52 {offsets = [0, 0], sizes = [16, 32], strides = [1, 1]} : vector<16x96xf32> to vector<16x32xf32>
      %54 = vector.extract_strided_slice %52 {offsets = [0, 32], sizes = [16, 32], strides = [1, 1]} : vector<16x96xf32> to vector<16x32xf32>
      %55 = vector.extract_strided_slice %52 {offsets = [0, 64], sizes = [16, 32], strides = [1, 1]} : vector<16x96xf32> to vector<16x32xf32>
      %c0_20 = arith.constant 0 : index
      %c0_21 = arith.constant 0 : index
      %c0_22 = arith.constant 0 : index
      %56 = vector.load %arg8[%c0_20, %c0_21, %c0_22] : memref<1x32x32xbf16, #tpu.memory_space<vmem>>, vector<1x32x32xbf16>
      %57 = vector.shape_cast %56 : vector<1x32x32xbf16> to vector<32x32xbf16>
      %58 = vector.extract_strided_slice %53 {offsets = [0, 0], sizes = [16, 8], strides = [1, 1]} : vector<16x32xf32> to vector<16x8xf32>
      %59 = arith.truncf %58 : vector<16x8xf32> to vector<16x8xbf16>
      %60 = vector.extract_strided_slice %54 {offsets = [0, 0], sizes = [16, 8], strides = [1, 1]} : vector<16x32xf32> to vector<16x8xf32>
      %61 = arith.truncf %60 : vector<16x8xf32> to vector<16x8xbf16>
      %cst_23 = arith.constant dense<0.000000e+00> : vector<16x16xf32>
      %62 = tpu.matmul %59, %61, %cst_23 {dimension_numbers = #tpu.dot_dimension_numbers<[1], [1], [0], [0], [0, 0, 1, 0], [], []>} : vector<16x8xbf16>, vector<16x8xbf16>, vector<16x16xf32> -> vector<16x16xf32>
      %cst_24 = arith.constant 0.353553385 : f32
      %63 = vector.broadcast %cst_24 : f32 to vector<16x16xf32>
      %64 = arith.mulf %62, %63 : vector<16x16xf32>
      %65 = arith.addf %64, %16 : vector<16x16xf32>
      %cst_25 = arith.constant dense<0xFF800000> : vector<16xf32>
      %66 = vector.multi_reduction <maximumf>, %65, %cst_25 [1] : vector<16x16xf32> to vector<16xf32>
      %67 = vector.shape_cast %66 : vector<16xf32> to vector<16x1xf32>
      %68 = vector.broadcast %67 : vector<16x1xf32> to vector<16x16xf32>
      %69 = arith.subf %65, %68 : vector<16x16xf32>
      %70 = math.exp %69 : vector<16x16xf32>
      %cst_26 = arith.constant dense<0.000000e+00> : vector<16xf32>
      %71 = vector.multi_reduction <add>, %70, %cst_26 [1] : vector<16x16xf32> to vector<16xf32>
      %72 = vector.shape_cast %71 : vector<16xf32> to vector<16x1xf32>
      %73 = tpu.reciprocal %72 {approx = true} : vector<16x1xf32> -> vector<16x1xf32>
      %74 = vector.broadcast %73 : vector<16x1xf32> to vector<16x16xf32>
      %75 = arith.mulf %70, %74 : vector<16x16xf32>
      %76 = arith.truncf %75 : vector<16x16xf32> to vector<16x16xbf16>
      %77 = vector.extract_strided_slice %55 {offsets = [0, 0], sizes = [16, 8], strides = [1, 1]} : vector<16x32xf32> to vector<16x8xf32>
      %78 = arith.truncf %77 : vector<16x8xf32> to vector<16x8xbf16>
      %cst_27 = arith.constant dense<0.000000e+00> : vector<16x8xf32>
      %79 = tpu.matmul %76, %78, %cst_27 {dimension_numbers = #tpu.dot_dimension_numbers<[1], [0], [0], [1], [0, 0, 1, 1], [], []>} : vector<16x16xbf16>, vector<16x8xbf16>, vector<16x8xf32> -> vector<16x8xf32>
      %80 = vector.extract_strided_slice %53 {offsets = [0, 8], sizes = [16, 8], strides = [1, 1]} : vector<16x32xf32> to vector<16x8xf32>
      %81 = arith.truncf %80 : vector<16x8xf32> to vector<16x8xbf16>
      %82 = vector.extract_strided_slice %54 {offsets = [0, 8], sizes = [16, 8], strides = [1, 1]} : vector<16x32xf32> to vector<16x8xf32>
      %83 = arith.truncf %82 : vector<16x8xf32> to vector<16x8xbf16>
      %cst_28 = arith.constant dense<0.000000e+00> : vector<16x16xf32>
      %84 = tpu.matmul %81, %83, %cst_28 {dimension_numbers = #tpu.dot_dimension_numbers<[1], [1], [0], [0], [0, 0, 1, 0], [], []>} : vector<16x8xbf16>, vector<16x8xbf16>, vector<16x16xf32> -> vector<16x16xf32>
      %cst_29 = arith.constant 0.353553385 : f32
      %85 = vector.broadcast %cst_29 : f32 to vector<16x16xf32>
      %86 = arith.mulf %84, %85 : vector<16x16xf32>
      %87 = arith.addf %86, %16 : vector<16x16xf32>
      %cst_30 = arith.constant dense<0xFF800000> : vector<16xf32>
      %88 = vector.multi_reduction <maximumf>, %87, %cst_30 [1] : vector<16x16xf32> to vector<16xf32>
      %89 = vector.shape_cast %88 : vector<16xf32> to vector<16x1xf32>
      %90 = vector.broadcast %89 : vector<16x1xf32> to vector<16x16xf32>
      %91 = arith.subf %87, %90 : vector<16x16xf32>
      %92 = math.exp %91 : vector<16x16xf32>
      %cst_31 = arith.constant dense<0.000000e+00> : vector<16xf32>
      %93 = vector.multi_reduction <add>, %92, %cst_31 [1] : vector<16x16xf32> to vector<16xf32>
      %94 = vector.shape_cast %93 : vector<16xf32> to vector<16x1xf32>
      %95 = tpu.reciprocal %94 {approx = true} : vector<16x1xf32> -> vector<16x1xf32>
      %96 = vector.broadcast %95 : vector<16x1xf32> to vector<16x16xf32>
      %97 = arith.mulf %92, %96 : vector<16x16xf32>
      %98 = arith.truncf %97 : vector<16x16xf32> to vector<16x16xbf16>
      %99 = vector.extract_strided_slice %55 {offsets = [0, 8], sizes = [16, 8], strides = [1, 1]} : vector<16x32xf32> to vector<16x8xf32>
      %100 = arith.truncf %99 : vector<16x8xf32> to vector<16x8xbf16>
      %cst_32 = arith.constant dense<0.000000e+00> : vector<16x8xf32>
      %101 = tpu.matmul %98, %100, %cst_32 {dimension_numbers = #tpu.dot_dimension_numbers<[1], [0], [0], [1], [0, 0, 1, 1], [], []>} : vector<16x16xbf16>, vector<16x8xbf16>, vector<16x8xf32> -> vector<16x8xf32>
      %102 = vector.extract_strided_slice %53 {offsets = [0, 16], sizes = [16, 8], strides = [1, 1]} : vector<16x32xf32> to vector<16x8xf32>
      %103 = arith.truncf %102 : vector<16x8xf32> to vector<16x8xbf16>
      %104 = vector.extract_strided_slice %54 {offsets = [0, 16], sizes = [16, 8], strides = [1, 1]} : vector<16x32xf32> to vector<16x8xf32>
      %105 = arith.truncf %104 : vector<16x8xf32> to vector<16x8xbf16>
      %cst_33 = arith.constant dense<0.000000e+00> : vector<16x16xf32>
      %106 = tpu.matmul %103, %105, %cst_33 {dimension_numbers = #tpu.dot_dimension_numbers<[1], [1], [0], [0], [0, 0, 1, 0], [], []>} : vector<16x8xbf16>, vector<16x8xbf16>, vector<16x16xf32> -> vector<16x16xf32>
      %cst_34 = arith.constant 0.353553385 : f32
      %107 = vector.broadcast %cst_34 : f32 to vector<16x16xf32>
      %108 = arith.mulf %106, %107 : vector<16x16xf32>
      %109 = arith.addf %108, %16 : vector<16x16xf32>
      %cst_35 = arith.constant dense<0xFF800000> : vector<16xf32>
      %110 = vector.multi_reduction <maximumf>, %109, %cst_35 [1] : vector<16x16xf32> to vector<16xf32>
      %111 = vector.shape_cast %110 : vector<16xf32> to vector<16x1xf32>
      %112 = vector.broadcast %111 : vector<16x1xf32> to vector<16x16xf32>
      %113 = arith.subf %109, %112 : vector<16x16xf32>
      %114 = math.exp %113 : vector<16x16xf32>
      %cst_36 = arith.constant dense<0.000000e+00> : vector<16xf32>
      %115 = vector.multi_reduction <add>, %114, %cst_36 [1] : vector<16x16xf32> to vector<16xf32>
      %116 = vector.shape_cast %115 : vector<16xf32> to vector<16x1xf32>
      %117 = tpu.reciprocal %116 {approx = true} : vector<16x1xf32> -> vector<16x1xf32>
      %118 = vector.broadcast %117 : vector<16x1xf32> to vector<16x16xf32>
      %119 = arith.mulf %114, %118 : vector<16x16xf32>
      %120 = arith.truncf %119 : vector<16x16xf32> to vector<16x16xbf16>
      %121 = vector.extract_strided_slice %55 {offsets = [0, 16], sizes = [16, 8], strides = [1, 1]} : vector<16x32xf32> to vector<16x8xf32>
      %122 = arith.truncf %121 : vector<16x8xf32> to vector<16x8xbf16>
      %cst_37 = arith.constant dense<0.000000e+00> : vector<16x8xf32>
      %123 = tpu.matmul %120, %122, %cst_37 {dimension_numbers = #tpu.dot_dimension_numbers<[1], [0], [0], [1], [0, 0, 1, 1], [], []>} : vector<16x16xbf16>, vector<16x8xbf16>, vector<16x8xf32> -> vector<16x8xf32>
      %124 = vector.extract_strided_slice %53 {offsets = [0, 24], sizes = [16, 8], strides = [1, 1]} : vector<16x32xf32> to vector<16x8xf32>
      %125 = arith.truncf %124 : vector<16x8xf32> to vector<16x8xbf16>
      %126 = vector.extract_strided_slice %54 {offsets = [0, 24], sizes = [16, 8], strides = [1, 1]} : vector<16x32xf32> to vector<16x8xf32>
      %127 = arith.truncf %126 : vector<16x8xf32> to vector<16x8xbf16>
      %cst_38 = arith.constant dense<0.000000e+00> : vector<16x16xf32>
      %128 = tpu.matmul %125, %127, %cst_38 {dimension_numbers = #tpu.dot_dimension_numbers<[1], [1], [0], [0], [0, 0, 1, 0], [], []>} : vector<16x8xbf16>, vector<16x8xbf16>, vector<16x16xf32> -> vector<16x16xf32>
      %cst_39 = arith.constant 0.353553385 : f32
      %129 = vector.broadcast %cst_39 : f32 to vector<16x16xf32>
      %130 = arith.mulf %128, %129 : vector<16x16xf32>
      %131 = arith.addf %130, %16 : vector<16x16xf32>
      %cst_40 = arith.constant dense<0xFF800000> : vector<16xf32>
      %132 = vector.multi_reduction <maximumf>, %131, %cst_40 [1] : vector<16x16xf32> to vector<16xf32>
      %133 = vector.shape_cast %132 : vector<16xf32> to vector<16x1xf32>
      %134 = vector.broadcast %133 : vector<16x1xf32> to vector<16x16xf32>
      %135 = arith.subf %131, %134 : vector<16x16xf32>
      %136 = math.exp %135 : vector<16x16xf32>
      %cst_41 = arith.constant dense<0.000000e+00> : vector<16xf32>
      %137 = vector.multi_reduction <add>, %136, %cst_41 [1] : vector<16x16xf32> to vector<16xf32>
      %138 = vector.shape_cast %137 : vector<16xf32> to vector<16x1xf32>
      %139 = tpu.reciprocal %138 {approx = true} : vector<16x1xf32> -> vector<16x1xf32>
      %140 = vector.broadcast %139 : vector<16x1xf32> to vector<16x16xf32>
      %141 = arith.mulf %136, %140 : vector<16x16xf32>
      %142 = arith.truncf %141 : vector<16x16xf32> to vector<16x16xbf16>
      %143 = vector.extract_strided_slice %55 {offsets = [0, 24], sizes = [16, 8], strides = [1, 1]} : vector<16x32xf32> to vector<16x8xf32>
      %144 = arith.truncf %143 : vector<16x8xf32> to vector<16x8xbf16>
      %cst_42 = arith.constant dense<0.000000e+00> : vector<16x8xf32>
      %145 = tpu.matmul %142, %144, %cst_42 {dimension_numbers = #tpu.dot_dimension_numbers<[1], [0], [0], [1], [0, 0, 1, 1], [], []>} : vector<16x16xbf16>, vector<16x8xbf16>, vector<16x8xf32> -> vector<16x8xf32>
      %146 = tpu.concatenate %79, %101, %123, %145 in 1 : vector<16x8xf32>, vector<16x8xf32>, vector<16x8xf32>, vector<16x8xf32> -> vector<16x32xf32>
      %147 = arith.truncf %146 : vector<16x32xf32> to vector<16x32xbf16>
      %cst_43 = arith.constant dense<0.000000e+00> : vector<16x32xf32>
      %148 = tpu.matmul %147, %57, %cst_43 {dimension_numbers = #tpu.dot_dimension_numbers<[1], [0], [0], [1], [0, 0, 1, 1], [], []>} : vector<16x32xbf16>, vector<32x32xbf16>, vector<16x32xf32> -> vector<16x32xf32>
      %149 = vector.broadcast %24 : vector<1x32xf32> to vector<16x32xf32>
      %150 = arith.addf %148, %149 : vector<16x32xf32>
      %151 = arith.addf %15, %150 : vector<16x32xf32>
      %cst_44 = arith.constant dense<0.000000e+00> : vector<16xf32>
      %152 = vector.multi_reduction <add>, %151, %cst_44 [1] : vector<16x32xf32> to vector<16xf32>
      %153 = vector.shape_cast %152 : vector<16xf32> to vector<16x1xf32>
      %cst_45 = arith.constant 3.200000e+01 : f32
      %154 = vector.broadcast %cst_45 : f32 to vector<16x1xf32>
      %155 = arith.divf %153, %154 : vector<16x1xf32>
      %156 = vector.broadcast %155 : vector<16x1xf32> to vector<16x32xf32>
      %157 = arith.subf %151, %156 : vector<16x32xf32>
      %158 = arith.mulf %157, %157 : vector<16x32xf32>
      %cst_46 = arith.constant dense<0.000000e+00> : vector<16xf32>
      %159 = vector.multi_reduction <add>, %158, %cst_46 [1] : vector<16x32xf32> to vector<16xf32>
      %160 = vector.shape_cast %159 : vector<16xf32> to vector<16x1xf32>
      %cst_47 = arith.constant 0.0322580636 : f32
      %161 = vector.broadcast %cst_47 : f32 to vector<16x1xf32>
      %162 = arith.mulf %160, %161 : vector<16x1xf32>
      %163 = math.sqrt %162 : vector<16x1xf32>
      %cst_48 = arith.constant 9.99999997E-7 : f32
      %164 = vector.broadcast %cst_48 : f32 to vector<16x1xf32>
      %165 = arith.addf %163, %164 : vector<16x1xf32>
      %166 = tpu.reciprocal %165 {approx = true} : vector<16x1xf32> -> vector<16x1xf32>
      %167 = vector.broadcast %166 : vector<16x1xf32> to vector<16x32xf32>
      %168 = arith.mulf %157, %167 : vector<16x32xf32>
      %169 = vector.broadcast %21 : vector<1x32xf32> to vector<16x32xf32>
      %170 = arith.mulf %169, %168 : vector<16x32xf32>
      %171 = vector.broadcast %22 : vector<1x32xf32> to vector<16x32xf32>
      %172 = arith.addf %170, %171 : vector<16x32xf32>
      %173 = arith.truncf %172 : vector<16x32xf32> to vector<16x32xbf16>
      %cst_49 = arith.constant 0.000000e+00 : f32
      %174 = vector.broadcast %cst_49 : f32 to vector<16x32xf32>
      %175 = vector.broadcast %25 : vector<1x32xf32> to vector<16x32xf32>
      %176 = arith.addf %174, %175 : vector<16x32xf32>
      %c0_i32_50 = arith.constant 0 : i32
      %c512_i32 = arith.constant 512 : i32
      %177 = arith.muli %c0_i32_50, %c512_i32 : i32
      %178 = tpu.assume_multiple %177, 512 : i32
      %c0_51 = arith.constant 0 : index
      %c0_52 = arith.constant 0 : index
      %179 = arith.index_cast %178 : i32 to index
      %180 = vector.load %arg9[%c0_51, %c0_52, %179] : memref<1x32x2048xbf16, #tpu.memory_space<vmem>>, vector<1x32x512xbf16>
      %181 = vector.shape_cast %180 : vector<1x32x512xbf16> to vector<32x512xbf16>
      %c0_53 = arith.constant 0 : index
      %c0_54 = arith.constant 0 : index
      %182 = arith.index_cast %178 : i32 to index
      %183 = vector.load %arg10[%c0_53, %c0_54, %182] : memref<1x1x2048xf32, #tpu.memory_space<vmem>>, vector<1x1x512xf32>
      %184 = vector.shape_cast %183 : vector<1x1x512xf32> to vector<1x512xf32>
      %cst_55 = arith.constant dense<0.000000e+00> : vector<16x512xf32>
      %185 = tpu.matmul %173, %181, %cst_55 {dimension_numbers = #tpu.dot_dimension_numbers<[1], [0], [0], [1], [0, 0, 1, 1], [], []>} : vector<16x32xbf16>, vector<32x512xbf16>, vector<16x512xf32> -> vector<16x512xf32>
      %186 = vector.broadcast %184 : vector<1x512xf32> to vector<16x512xf32>
      %187 = arith.addf %185, %186 : vector<16x512xf32>
      %cst_56 = arith.constant 0.000000e+00 : f32
      %188 = vector.broadcast %cst_56 : f32 to vector<16x512xf32>
      %189 = arith.maximumf %187, %188 : vector<16x512xf32>
      %c0_57 = arith.constant 0 : index
      %190 = arith.index_cast %178 : i32 to index
      %c0_58 = arith.constant 0 : index
      %191 = vector.load %arg11[%c0_57, %190, %c0_58] : memref<1x2048x32xbf16, #tpu.memory_space<vmem>>, vector<1x512x32xbf16>
      %192 = vector.shape_cast %191 : vector<1x512x32xbf16> to vector<512x32xbf16>
      %193 = arith.truncf %189 : vector<16x512xf32> to vector<16x512xbf16>
      %cst_59 = arith.constant dense<0.000000e+00> : vector<16x32xf32>
      %194 = tpu.matmul %193, %192, %cst_59 {dimension_numbers = #tpu.dot_dimension_numbers<[1], [0], [0], [1], [0, 0, 1, 1], [], []>} : vector<16x512xbf16>, vector<512x32xbf16>, vector<16x32xf32> -> vector<16x32xf32>
      %195 = arith.addf %176, %194 : vector<16x32xf32>
      %c1_i32_60 = arith.constant 1 : i32
      %c512_i32_61 = arith.constant 512 : i32
      %196 = arith.muli %c1_i32_60, %c512_i32_61 : i32
      %197 = tpu.assume_multiple %196, 512 : i32
      %c0_62 = arith.constant 0 : index
      %c0_63 = arith.constant 0 : index
      %198 = arith.index_cast %197 : i32 to index
      %199 = vector.load %arg9[%c0_62, %c0_63, %198] : memref<1x32x2048xbf16, #tpu.memory_space<vmem>>, vector<1x32x512xbf16>
      %200 = vector.shape_cast %199 : vector<1x32x512xbf16> to vector<32x512xbf16>
      %c0_64 = arith.constant 0 : index
      %c0_65 = arith.constant 0 : index
      %201 = arith.index_cast %197 : i32 to index
      %202 = vector.load %arg10[%c0_64, %c0_65, %201] : memref<1x1x2048xf32, #tpu.memory_space<vmem>>, vector<1x1x512xf32>
      %203 = vector.shape_cast %202 : vector<1x1x512xf32> to vector<1x512xf32>
      %cst_66 = arith.constant dense<0.000000e+00> : vector<16x512xf32>
      %204 = tpu.matmul %173, %200, %cst_66 {dimension_numbers = #tpu.dot_dimension_numbers<[1], [0], [0], [1], [0, 0, 1, 1], [], []>} : vector<16x32xbf16>, vector<32x512xbf16>, vector<16x512xf32> -> vector<16x512xf32>
      %205 = vector.broadcast %203 : vector<1x512xf32> to vector<16x512xf32>
      %206 = arith.addf %204, %205 : vector<16x512xf32>
      %cst_67 = arith.constant 0.000000e+00 : f32
      %207 = vector.broadcast %cst_67 : f32 to vector<16x512xf32>
      %208 = arith.maximumf %206, %207 : vector<16x512xf32>
      %c0_68 = arith.constant 0 : index
      %209 = arith.index_cast %197 : i32 to index
      %c0_69 = arith.constant 0 : index
      %210 = vector.load %arg11[%c0_68, %209, %c0_69] : memref<1x2048x32xbf16, #tpu.memory_space<vmem>>, vector<1x512x32xbf16>
      %211 = vector.shape_cast %210 : vector<1x512x32xbf16> to vector<512x32xbf16>
      %212 = arith.truncf %208 : vector<16x512xf32> to vector<16x512xbf16>
      %cst_70 = arith.constant dense<0.000000e+00> : vector<16x32xf32>
      %213 = tpu.matmul %212, %211, %cst_70 {dimension_numbers = #tpu.dot_dimension_numbers<[1], [0], [0], [1], [0, 0, 1, 1], [], []>} : vector<16x512xbf16>, vector<512x32xbf16>, vector<16x32xf32> -> vector<16x32xf32>
      %214 = arith.addf %195, %213 : vector<16x32xf32>
      %c2_i32_71 = arith.constant 2 : i32
      %c512_i32_72 = arith.constant 512 : i32
      %215 = arith.muli %c2_i32_71, %c512_i32_72 : i32
      %216 = tpu.assume_multiple %215, 512 : i32
      %c0_73 = arith.constant 0 : index
      %c0_74 = arith.constant 0 : index
      %217 = arith.index_cast %216 : i32 to index
      %218 = vector.load %arg9[%c0_73, %c0_74, %217] : memref<1x32x2048xbf16, #tpu.memory_space<vmem>>, vector<1x32x512xbf16>
      %219 = vector.shape_cast %218 : vector<1x32x512xbf16> to vector<32x512xbf16>
      %c0_75 = arith.constant 0 : index
      %c0_76 = arith.constant 0 : index
      %220 = arith.index_cast %216 : i32 to index
      %221 = vector.load %arg10[%c0_75, %c0_76, %220] : memref<1x1x2048xf32, #tpu.memory_space<vmem>>, vector<1x1x512xf32>
      %222 = vector.shape_cast %221 : vector<1x1x512xf32> to vector<1x512xf32>
      %cst_77 = arith.constant dense<0.000000e+00> : vector<16x512xf32>
      %223 = tpu.matmul %173, %219, %cst_77 {dimension_numbers = #tpu.dot_dimension_numbers<[1], [0], [0], [1], [0, 0, 1, 1], [], []>} : vector<16x32xbf16>, vector<32x512xbf16>, vector<16x512xf32> -> vector<16x512xf32>
      %224 = vector.broadcast %222 : vector<1x512xf32> to vector<16x512xf32>
      %225 = arith.addf %223, %224 : vector<16x512xf32>
      %cst_78 = arith.constant 0.000000e+00 : f32
      %226 = vector.broadcast %cst_78 : f32 to vector<16x512xf32>
      %227 = arith.maximumf %225, %226 : vector<16x512xf32>
      %c0_79 = arith.constant 0 : index
      %228 = arith.index_cast %216 : i32 to index
      %c0_80 = arith.constant 0 : index
      %229 = vector.load %arg11[%c0_79, %228, %c0_80] : memref<1x2048x32xbf16, #tpu.memory_space<vmem>>, vector<1x512x32xbf16>
      %230 = vector.shape_cast %229 : vector<1x512x32xbf16> to vector<512x32xbf16>
      %231 = arith.truncf %227 : vector<16x512xf32> to vector<16x512xbf16>
      %cst_81 = arith.constant dense<0.000000e+00> : vector<16x32xf32>
      %232 = tpu.matmul %231, %230, %cst_81 {dimension_numbers = #tpu.dot_dimension_numbers<[1], [0], [0], [1], [0, 0, 1, 1], [], []>} : vector<16x512xbf16>, vector<512x32xbf16>, vector<16x32xf32> -> vector<16x32xf32>
      %233 = arith.addf %214, %232 : vector<16x32xf32>
      %c3_i32_82 = arith.constant 3 : i32
      %c512_i32_83 = arith.constant 512 : i32
      %234 = arith.muli %c3_i32_82, %c512_i32_83 : i32
      %235 = tpu.assume_multiple %234, 512 : i32
      %c0_84 = arith.constant 0 : index
      %c0_85 = arith.constant 0 : index
      %236 = arith.index_cast %235 : i32 to index
      %237 = vector.load %arg9[%c0_84, %c0_85, %236] : memref<1x32x2048xbf16, #tpu.memory_space<vmem>>, vector<1x32x512xbf16>
      %238 = vector.shape_cast %237 : vector<1x32x512xbf16> to vector<32x512xbf16>
      %c0_86 = arith.constant 0 : index
      %c0_87 = arith.constant 0 : index
      %239 = arith.index_cast %235 : i32 to index
      %240 = vector.load %arg10[%c0_86, %c0_87, %239] : memref<1x1x2048xf32, #tpu.memory_space<vmem>>, vector<1x1x512xf32>
      %241 = vector.shape_cast %240 : vector<1x1x512xf32> to vector<1x512xf32>
      %cst_88 = arith.constant dense<0.000000e+00> : vector<16x512xf32>
      %242 = tpu.matmul %173, %238, %cst_88 {dimension_numbers = #tpu.dot_dimension_numbers<[1], [0], [0], [1], [0, 0, 1, 1], [], []>} : vector<16x32xbf16>, vector<32x512xbf16>, vector<16x512xf32> -> vector<16x512xf32>
      %243 = vector.broadcast %241 : vector<1x512xf32> to vector<16x512xf32>
      %244 = arith.addf %242, %243 : vector<16x512xf32>
      %cst_89 = arith.constant 0.000000e+00 : f32
      %245 = vector.broadcast %cst_89 : f32 to vector<16x512xf32>
      %246 = arith.maximumf %244, %245 : vector<16x512xf32>
      %c0_90 = arith.constant 0 : index
      %247 = arith.index_cast %235 : i32 to index
      %c0_91 = arith.constant 0 : index
      %248 = vector.load %arg11[%c0_90, %247, %c0_91] : memref<1x2048x32xbf16, #tpu.memory_space<vmem>>, vector<1x512x32xbf16>
      %249 = vector.shape_cast %248 : vector<1x512x32xbf16> to vector<512x32xbf16>
      %250 = arith.truncf %246 : vector<16x512xf32> to vector<16x512xbf16>
      %cst_92 = arith.constant dense<0.000000e+00> : vector<16x32xf32>
      %251 = tpu.matmul %250, %249, %cst_92 {dimension_numbers = #tpu.dot_dimension_numbers<[1], [0], [0], [1], [0, 0, 1, 1], [], []>} : vector<16x512xbf16>, vector<512x32xbf16>, vector<16x32xf32> -> vector<16x32xf32>
      %252 = arith.addf %233, %251 : vector<16x32xf32>
      %c4_i32 = arith.constant 4 : i32
      %253 = arith.addf %151, %252 : vector<16x32xf32>
      %c0_93 = arith.constant 0 : index
      %c0_94 = arith.constant 0 : index
      %254 = vector.load %arg31[%c0_93, %c0_94] : memref<16x32xf32, #tpu.memory_space<vmem>>, vector<16x32xf32>
      tpu.vector_store %arg31[%c0_93, %c0_94], %253 {strides = array<i32>} : memref<16x32xf32, #tpu.memory_space<vmem>>, vector<16x32xf32>,
    } else {
    }
    %c1_i32 = arith.constant 1 : i32
    %6 = arith.cmpi eq, %arg0, %c1_i32 : i32
    %7 = arith.extui %6 : i1 to i32
    %c0_i32_2 = arith.constant 0 : i32
    %8 = arith.cmpi ne, %7, %c0_i32_2 : i32
    scf.if %8 {
      %c0 = arith.constant 0 : index
      %c0_6 = arith.constant 0 : index
      %15 = vector.load %arg31[%c0, %c0_6] : memref<16x32xf32, #tpu.memory_space<vmem>>, vector<16x32xf32>
      %c0_7 = arith.constant 0 : index
      %c0_8 = arith.constant 0 : index
      %16 = vector.load %arg22[%c0_7, %c0_8] : memref<2x32xf32, #tpu.memory_space<vmem>>, vector<2x32xf32>
      %17 = vector.extract_strided_slice %16 {offsets = [0, 0], sizes = [1, 32], strides = [1, 1]} : vector<2x32xf32> to vector<1x32xf32>
      %18 = vector.extract_strided_slice %16 {offsets = [1, 0], sizes = [1, 32], strides = [1, 1]} : vector<2x32xf32> to vector<1x32xf32>
      %cst = arith.constant dense<0.000000e+00> : vector<16xf32>
      %19 = vector.multi_reduction <add>, %15, %cst [1] : vector<16x32xf32> to vector<16xf32>
      %20 = vector.shape_cast %19 : vector<16xf32> to vector<16x1xf32>
      %cst_9 = arith.constant 3.200000e+01 : f32
      %21 = vector.broadcast %cst_9 : f32 to vector<16x1xf32>
      %22 = arith.divf %20, %21 : vector<16x1xf32>
      %23 = vector.broadcast %22 : vector<16x1xf32> to vector<16x32xf32>
      %24 = arith.subf %15, %23 : vector<16x32xf32>
      %25 = arith.mulf %24, %24 : vector<16x32xf32>
      %cst_10 = arith.constant dense<0.000000e+00> : vector<16xf32>
      %26 = vector.multi_reduction <add>, %25, %cst_10 [1] : vector<16x32xf32> to vector<16xf32>
      %27 = vector.shape_cast %26 : vector<16xf32> to vector<16x1xf32>
      %cst_11 = arith.constant 0.0322580636 : f32
      %28 = vector.broadcast %cst_11 : f32 to vector<16x1xf32>
      %29 = arith.mulf %27, %28 : vector<16x1xf32>
      %30 = math.sqrt %29 : vector<16x1xf32>
      %cst_12 = arith.constant 9.99999997E-7 : f32
      %31 = vector.broadcast %cst_12 : f32 to vector<16x1xf32>
      %32 = arith.addf %30, %31 : vector<16x1xf32>
      %33 = tpu.reciprocal %32 {approx = true} : vector<16x1xf32> -> vector<16x1xf32>
      %34 = vector.broadcast %33 : vector<16x1xf32> to vector<16x32xf32>
      %35 = arith.mulf %24, %34 : vector<16x32xf32>
      %36 = vector.broadcast %17 : vector<1x32xf32> to vector<16x32xf32>
      %37 = arith.mulf %36, %35 : vector<16x32xf32>
      %38 = vector.broadcast %18 : vector<1x32xf32> to vector<16x32xf32>
      %39 = arith.addf %37, %38 : vector<16x32xf32>
      %40 = vector.extract_strided_slice %39 {offsets = [0, 0], sizes = [8, 32], strides = [1, 1]} : vector<16x32xf32> to vector<8x32xf32>
      %cst_13 = arith.constant dense<0.000000e+00> : vector<32xf32>
      %41 = vector.multi_reduction <add>, %40, %cst_13 [0] : vector<8x32xf32> to vector<32xf32>
      %42 = vector.shape_cast %41 : vector<32xf32> to vector<1x32xf32>
      %cst_14 = arith.constant 8.000000e+00 : f32
      %43 = vector.broadcast %cst_14 : f32 to vector<1x32xf32>
      %44 = arith.divf %42, %43 : vector<1x32xf32>
      %45 = vector.extract_strided_slice %39 {offsets = [8, 0], sizes = [8, 32], strides = [1, 1]} : vector<16x32xf32> to vector<8x32xf32>
      %cst_15 = arith.constant dense<0.000000e+00> : vector<32xf32>
      %46 = vector.multi_reduction <add>, %45, %cst_15 [0] : vector<8x32xf32> to vector<32xf32>
      %47 = vector.shape_cast %46 : vector<32xf32> to vector<1x32xf32>
      %cst_16 = arith.constant 8.000000e+00 : f32
      %48 = vector.broadcast %cst_16 : f32 to vector<1x32xf32>
      %49 = arith.divf %47, %48 : vector<1x32xf32>
      %50 = tpu.concatenate %44, %49 in 0 : vector<1x32xf32>, vector<1x32xf32> -> vector<2x32xf32>
      %c0_17 = arith.constant 0 : index
      %c0_18 = arith.constant 0 : index
      %51 = vector.load %arg24[%c0_17, %c0_18] : memref<32x32xf32, #tpu.memory_space<vmem>>, vector<32x32xf32>
      %c0_19 = arith.constant 0 : index
      %c0_20 = arith.constant 0 : index
      %52 = vector.load %arg25[%c0_19, %c0_20] : memref<1x32xf32, #tpu.memory_space<vmem>>, vector<1x32xf32>
      %cst_21 = arith.constant dense<0.000000e+00> : vector<2x32xf32>
      %53 = tpu.matmul %50, %51, %cst_21 {dimension_numbers = #tpu.dot_dimension_numbers<[1], [0], [0], [1], [0, 0, 1, 1], [], []>} : vector<2x32xf32>, vector<32x32xf32>, vector<2x32xf32> -> vector<2x32xf32>
      %54 = vector.broadcast %52 : vector<1x32xf32> to vector<2x32xf32>
      %55 = arith.addf %53, %54 : vector<2x32xf32>
      %56 = vector.extract_strided_slice %55 {offsets = [0, 0], sizes = [2, 16], strides = [1, 1]} : vector<2x32xf32> to vector<2x16xf32>
      %57 = vector.extract_strided_slice %55 {offsets = [0, 16], sizes = [2, 16], strides = [1, 1]} : vector<2x32xf32> to vector<2x16xf32>
      %c0_22 = arith.constant 0 : index
      %c0_23 = arith.constant 0 : index
      %58 = vector.load %arg6[%c0_22, %c0_23] : memref<2x16xf32, #tpu.memory_space<vmem>>, vector<2x16xf32>
      %cst_24 = arith.constant 5.000000e-01 : f32
      %59 = vector.broadcast %cst_24 : f32 to vector<2x16xf32>
      %60 = arith.mulf %59, %57 : vector<2x16xf32>
      %61 = math.exp %60 : vector<2x16xf32>
      %62 = arith.mulf %58, %61 : vector<2x16xf32>
      %63 = arith.addf %62, %56 : vector<2x16xf32>
      %c0_25 = arith.constant 0 : index
      %c0_26 = arith.constant 0 : index
      %64 = vector.load %arg26[%c0_25, %c0_26] : memref<16x32xf32, #tpu.memory_space<vmem>>, vector<16x32xf32>
      %c0_27 = arith.constant 0 : index
      %c0_28 = arith.constant 0 : index
      %65 = vector.load %arg27[%c0_27, %c0_28] : memref<1x32xf32, #tpu.memory_space<vmem>>, vector<1x32xf32>
      %cst_29 = arith.constant dense<0.000000e+00> : vector<2x32xf32>
      %66 = tpu.matmul %63, %64, %cst_29 {dimension_numbers = #tpu.dot_dimension_numbers<[1], [0], [0], [1], [0, 0, 1, 1], [], []>} : vector<2x16xf32>, vector<16x32xf32>, vector<2x32xf32> -> vector<2x32xf32>
      %67 = vector.broadcast %65 : vector<1x32xf32> to vector<2x32xf32>
      %68 = arith.addf %66, %67 : vector<2x32xf32>
      %69 = vector.extract_strided_slice %68 {offsets = [0, 0], sizes = [1, 32], strides = [1, 1]} : vector<2x32xf32> to vector<1x32xf32>
      %70 = vector.shape_cast %69 : vector<1x32xf32> to vector<1x32xf32>
      %71 = vector.broadcast %70 : vector<1x32xf32> to vector<8x32xf32>
      %c0_30 = arith.constant 0 : index
      %c0_31 = arith.constant 0 : index
      %72 = vector.load %arg33[%c0_30, %c0_31] : memref<16x32xf32, #tpu.memory_space<vmem>>, vector<8x32xf32>
      tpu.vector_store %arg33[%c0_30, %c0_31], %71 {strides = array<i32>} : memref<16x32xf32, #tpu.memory_space<vmem>>, vector<8x32xf32>,
      %73 = vector.extract_strided_slice %68 {offsets = [1, 0], sizes = [1, 32], strides = [1, 1]} : vector<2x32xf32> to vector<1x32xf32>
      %74 = vector.shape_cast %73 : vector<1x32xf32> to vector<1x32xf32>
      %75 = vector.broadcast %74 : vector<1x32xf32> to vector<8x32xf32>
      %c8 = arith.constant 8 : index
      %c0_32 = arith.constant 0 : index
      %76 = vector.load %arg33[%c8, %c0_32] : memref<16x32xf32, #tpu.memory_space<vmem>>, vector<8x32xf32>
      tpu.vector_store %arg33[%c8, %c0_32], %75 {strides = array<i32>} : memref<16x32xf32, #tpu.memory_space<vmem>>, vector<8x32xf32>,
      %c0_33 = arith.constant 0 : index
      %c0_34 = arith.constant 0 : index
      %77 = vector.load %arg2[%c0_33, %c0_34] : memref<16x32xf32, #tpu.memory_space<vmem>>, vector<16x32xf32>
      %c0_35 = arith.constant 0 : index
      %c0_36 = arith.constant 0 : index
      %78 = vector.load %arg32[%c0_35, %c0_36] : memref<16x32xf32, #tpu.memory_space<vmem>>, vector<16x32xf32>
      tpu.vector_store %arg32[%c0_35, %c0_36], %77 {strides = array<i32>} : memref<16x32xf32, #tpu.memory_space<vmem>>, vector<16x32xf32>,
    } else {
    }
    %c2_i32_3 = arith.constant 2 : i32
    %9 = arith.cmpi sge, %arg0, %c2_i32_3 : i32
    %10 = arith.extui %9 : i1 to i32
    %c0_i32_4 = arith.constant 0 : i32
    %11 = arith.cmpi ne, %10, %c0_i32_4 : i32
    scf.if %11 {
      %c0 = arith.constant 0 : index
      %c0_6 = arith.constant 0 : index
      %15 = vector.load %arg32[%c0, %c0_6] : memref<16x32xf32, #tpu.memory_space<vmem>>, vector<16x32xf32>
      %c0_7 = arith.constant 0 : index
      %c0_8 = arith.constant 0 : index
      %16 = vector.load %arg33[%c0_7, %c0_8] : memref<16x32xf32, #tpu.memory_space<vmem>>, vector<16x32xf32>
      %c0_9 = arith.constant 0 : index
      %c0_10 = arith.constant 0 : index
      %17 = vector.load %arg4[%c0_9, %c0_10] : memref<16x16xf32, #tpu.memory_space<vmem>>, vector<16x16xf32>
      %c0_11 = arith.constant 0 : index
      %c0_12 = arith.constant 0 : index
      %18 = vector.load %arg5[%c0_11, %c0_12] : memref<16x16xf32, #tpu.memory_space<vmem>>, vector<16x16xf32>
      %c0_13 = arith.constant 0 : index
      %c0_14 = arith.constant 0 : index
      %c0_15 = arith.constant 0 : index
      %19 = vector.load %arg21[%c0_13, %c0_14, %c0_15] : memref<1x16x128xf32, #tpu.memory_space<vmem>>, vector<1x16x128xf32>
      %20 = vector.shape_cast %19 : vector<1x16x128xf32> to vector<16x128xf32>
      %21 = vector.extract_strided_slice %20 {offsets = [0, 0], sizes = [1, 32], strides = [1, 1]} : vector<16x128xf32> to vector<1x32xf32>
      %22 = vector.extract_strided_slice %20 {offsets = [1, 0], sizes = [1, 32], strides = [1, 1]} : vector<16x128xf32> to vector<1x32xf32>
      %23 = vector.extract_strided_slice %20 {offsets = [2, 0], sizes = [1, 32], strides = [1, 1]} : vector<16x128xf32> to vector<1x32xf32>
      %24 = vector.extract_strided_slice %20 {offsets = [3, 0], sizes = [1, 32], strides = [1, 1]} : vector<16x128xf32> to vector<1x32xf32>
      %25 = vector.extract_strided_slice %20 {offsets = [4, 0], sizes = [1, 32], strides = [1, 1]} : vector<16x128xf32> to vector<1x32xf32>
      %26 = vector.extract_strided_slice %20 {offsets = [5, 0], sizes = [1, 32], strides = [1, 1]} : vector<16x128xf32> to vector<1x32xf32>
      %27 = vector.extract_strided_slice %20 {offsets = [6, 0], sizes = [1, 96], strides = [1, 1]} : vector<16x128xf32> to vector<1x96xf32>
      %28 = vector.extract_strided_slice %20 {offsets = [7, 0], sizes = [1, 32], strides = [1, 1]} : vector<16x128xf32> to vector<1x32xf32>
      %29 = vector.extract_strided_slice %20 {offsets = [8, 0], sizes = [1, 32], strides = [1, 1]} : vector<16x128xf32> to vector<1x32xf32>
      %30 = vector.extract_strided_slice %20 {offsets = [9, 0], sizes = [1, 64], strides = [1, 1]} : vector<16x128xf32> to vector<1x64xf32>
      %31 = vector.extract_strided_slice %20 {offsets = [10, 0], sizes = [1, 32], strides = [1, 1]} : vector<16x128xf32> to vector<1x32xf32>
      %32 = vector.extract_strided_slice %20 {offsets = [11, 0], sizes = [1, 32], strides = [1, 1]} : vector<16x128xf32> to vector<1x32xf32>
      %cst = arith.constant dense<0.000000e+00> : vector<16xf32>
      %33 = vector.multi_reduction <add>, %15, %cst [1] : vector<16x32xf32> to vector<16xf32>
      %34 = vector.shape_cast %33 : vector<16xf32> to vector<16x1xf32>
      %cst_16 = arith.constant 3.200000e+01 : f32
      %35 = vector.broadcast %cst_16 : f32 to vector<16x1xf32>
      %36 = arith.divf %34, %35 : vector<16x1xf32>
      %37 = vector.broadcast %36 : vector<16x1xf32> to vector<16x32xf32>
      %38 = arith.subf %15, %37 : vector<16x32xf32>
      %39 = arith.mulf %38, %38 : vector<16x32xf32>
      %cst_17 = arith.constant dense<0.000000e+00> : vector<16xf32>
      %40 = vector.multi_reduction <add>, %39, %cst_17 [1] : vector<16x32xf32> to vector<16xf32>
      %41 = vector.shape_cast %40 : vector<16xf32> to vector<16x1xf32>
      %cst_18 = arith.constant 0.0322580636 : f32
      %42 = vector.broadcast %cst_18 : f32 to vector<16x1xf32>
      %43 = arith.mulf %41, %42 : vector<16x1xf32>
      %44 = math.sqrt %43 : vector<16x1xf32>
      %cst_19 = arith.constant 9.99999997E-7 : f32
      %45 = vector.broadcast %cst_19 : f32 to vector<16x1xf32>
      %46 = arith.addf %44, %45 : vector<16x1xf32>
      %47 = tpu.reciprocal %46 {approx = true} : vector<16x1xf32> -> vector<16x1xf32>
      %48 = vector.broadcast %47 : vector<16x1xf32> to vector<16x32xf32>
      %49 = arith.mulf %38, %48 : vector<16x32xf32>
      %50 = vector.broadcast %21 : vector<1x32xf32> to vector<16x32xf32>
      %51 = arith.mulf %50, %49 : vector<16x32xf32>
      %52 = vector.broadcast %22 : vector<1x32xf32> to vector<16x32xf32>
      %53 = arith.addf %51, %52 : vector<16x32xf32>
      %c0_20 = arith.constant 0 : index
      %c0_21 = arith.constant 0 : index
      %c0_22 = arith.constant 0 : index
      %54 = vector.load %arg13[%c0_20, %c0_21, %c0_22] : memref<1x32x96xbf16, #tpu.memory_space<vmem>>, vector<1x32x96xbf16>
      %55 = vector.shape_cast %54 : vector<1x32x96xbf16> to vector<32x96xbf16>
      %56 = arith.truncf %53 : vector<16x32xf32> to vector<16x32xbf16>
      %cst_23 = arith.constant dense<0.000000e+00> : vector<16x96xf32>
      %57 = tpu.matmul %56, %55, %cst_23 {dimension_numbers = #tpu.dot_dimension_numbers<[1], [0], [0], [1], [0, 0, 1, 1], [], []>} : vector<16x32xbf16>, vector<32x96xbf16>, vector<16x96xf32> -> vector<16x96xf32>
      %58 = vector.broadcast %27 : vector<1x96xf32> to vector<16x96xf32>
      %59 = arith.addf %57, %58 : vector<16x96xf32>
      %60 = vector.extract_strided_slice %59 {offsets = [0, 0], sizes = [16, 32], strides = [1, 1]} : vector<16x96xf32> to vector<16x32xf32>
      %61 = vector.extract_strided_slice %59 {offsets = [0, 32], sizes = [16, 32], strides = [1, 1]} : vector<16x96xf32> to vector<16x32xf32>
      %62 = vector.extract_strided_slice %59 {offsets = [0, 64], sizes = [16, 32], strides = [1, 1]} : vector<16x96xf32> to vector<16x32xf32>
      %c0_24 = arith.constant 0 : index
      %c0_25 = arith.constant 0 : index
      %c0_26 = arith.constant 0 : index
      %63 = vector.load %arg14[%c0_24, %c0_25, %c0_26] : memref<1x32x32xbf16, #tpu.memory_space<vmem>>, vector<1x32x32xbf16>
      %64 = vector.shape_cast %63 : vector<1x32x32xbf16> to vector<32x32xbf16>
      %65 = vector.extract_strided_slice %60 {offsets = [0, 0], sizes = [16, 8], strides = [1, 1]} : vector<16x32xf32> to vector<16x8xf32>
      %66 = arith.truncf %65 : vector<16x8xf32> to vector<16x8xbf16>
      %67 = vector.extract_strided_slice %61 {offsets = [0, 0], sizes = [16, 8], strides = [1, 1]} : vector<16x32xf32> to vector<16x8xf32>
      %68 = arith.truncf %67 : vector<16x8xf32> to vector<16x8xbf16>
      %cst_27 = arith.constant dense<0.000000e+00> : vector<16x16xf32>
      %69 = tpu.matmul %66, %68, %cst_27 {dimension_numbers = #tpu.dot_dimension_numbers<[1], [1], [0], [0], [0, 0, 1, 0], [], []>} : vector<16x8xbf16>, vector<16x8xbf16>, vector<16x16xf32> -> vector<16x16xf32>
      %cst_28 = arith.constant 0.353553385 : f32
      %70 = vector.broadcast %cst_28 : f32 to vector<16x16xf32>
      %71 = arith.mulf %69, %70 : vector<16x16xf32>
      %72 = arith.addf %71, %17 : vector<16x16xf32>
      %cst_29 = arith.constant dense<0xFF800000> : vector<16xf32>
      %73 = vector.multi_reduction <maximumf>, %72, %cst_29 [1] : vector<16x16xf32> to vector<16xf32>
      %74 = vector.shape_cast %73 : vector<16xf32> to vector<16x1xf32>
      %75 = vector.broadcast %74 : vector<16x1xf32> to vector<16x16xf32>
      %76 = arith.subf %72, %75 : vector<16x16xf32>
      %77 = math.exp %76 : vector<16x16xf32>
      %cst_30 = arith.constant dense<0.000000e+00> : vector<16xf32>
      %78 = vector.multi_reduction <add>, %77, %cst_30 [1] : vector<16x16xf32> to vector<16xf32>
      %79 = vector.shape_cast %78 : vector<16xf32> to vector<16x1xf32>
      %80 = tpu.reciprocal %79 {approx = true} : vector<16x1xf32> -> vector<16x1xf32>
      %81 = vector.broadcast %80 : vector<16x1xf32> to vector<16x16xf32>
      %82 = arith.mulf %77, %81 : vector<16x16xf32>
      %83 = arith.truncf %82 : vector<16x16xf32> to vector<16x16xbf16>
      %84 = vector.extract_strided_slice %62 {offsets = [0, 0], sizes = [16, 8], strides = [1, 1]} : vector<16x32xf32> to vector<16x8xf32>
      %85 = arith.truncf %84 : vector<16x8xf32> to vector<16x8xbf16>
      %cst_31 = arith.constant dense<0.000000e+00> : vector<16x8xf32>
      %86 = tpu.matmul %83, %85, %cst_31 {dimension_numbers = #tpu.dot_dimension_numbers<[1], [0], [0], [1], [0, 0, 1, 1], [], []>} : vector<16x16xbf16>, vector<16x8xbf16>, vector<16x8xf32> -> vector<16x8xf32>
      %87 = vector.extract_strided_slice %60 {offsets = [0, 8], sizes = [16, 8], strides = [1, 1]} : vector<16x32xf32> to vector<16x8xf32>
      %88 = arith.truncf %87 : vector<16x8xf32> to vector<16x8xbf16>
      %89 = vector.extract_strided_slice %61 {offsets = [0, 8], sizes = [16, 8], strides = [1, 1]} : vector<16x32xf32> to vector<16x8xf32>
      %90 = arith.truncf %89 : vector<16x8xf32> to vector<16x8xbf16>
      %cst_32 = arith.constant dense<0.000000e+00> : vector<16x16xf32>
      %91 = tpu.matmul %88, %90, %cst_32 {dimension_numbers = #tpu.dot_dimension_numbers<[1], [1], [0], [0], [0, 0, 1, 0], [], []>} : vector<16x8xbf16>, vector<16x8xbf16>, vector<16x16xf32> -> vector<16x16xf32>
      %cst_33 = arith.constant 0.353553385 : f32
      %92 = vector.broadcast %cst_33 : f32 to vector<16x16xf32>
      %93 = arith.mulf %91, %92 : vector<16x16xf32>
      %94 = arith.addf %93, %17 : vector<16x16xf32>
      %cst_34 = arith.constant dense<0xFF800000> : vector<16xf32>
      %95 = vector.multi_reduction <maximumf>, %94, %cst_34 [1] : vector<16x16xf32> to vector<16xf32>
      %96 = vector.shape_cast %95 : vector<16xf32> to vector<16x1xf32>
      %97 = vector.broadcast %96 : vector<16x1xf32> to vector<16x16xf32>
      %98 = arith.subf %94, %97 : vector<16x16xf32>
      %99 = math.exp %98 : vector<16x16xf32>
      %cst_35 = arith.constant dense<0.000000e+00> : vector<16xf32>
      %100 = vector.multi_reduction <add>, %99, %cst_35 [1] : vector<16x16xf32> to vector<16xf32>
      %101 = vector.shape_cast %100 : vector<16xf32> to vector<16x1xf32>
      %102 = tpu.reciprocal %101 {approx = true} : vector<16x1xf32> -> vector<16x1xf32>
      %103 = vector.broadcast %102 : vector<16x1xf32> to vector<16x16xf32>
      %104 = arith.mulf %99, %103 : vector<16x16xf32>
      %105 = arith.truncf %104 : vector<16x16xf32> to vector<16x16xbf16>
      %106 = vector.extract_strided_slice %62 {offsets = [0, 8], sizes = [16, 8], strides = [1, 1]} : vector<16x32xf32> to vector<16x8xf32>
      %107 = arith.truncf %106 : vector<16x8xf32> to vector<16x8xbf16>
      %cst_36 = arith.constant dense<0.000000e+00> : vector<16x8xf32>
      %108 = tpu.matmul %105, %107, %cst_36 {dimension_numbers = #tpu.dot_dimension_numbers<[1], [0], [0], [1], [0, 0, 1, 1], [], []>} : vector<16x16xbf16>, vector<16x8xbf16>, vector<16x8xf32> -> vector<16x8xf32>
      %109 = vector.extract_strided_slice %60 {offsets = [0, 16], sizes = [16, 8], strides = [1, 1]} : vector<16x32xf32> to vector<16x8xf32>
      %110 = arith.truncf %109 : vector<16x8xf32> to vector<16x8xbf16>
      %111 = vector.extract_strided_slice %61 {offsets = [0, 16], sizes = [16, 8], strides = [1, 1]} : vector<16x32xf32> to vector<16x8xf32>
      %112 = arith.truncf %111 : vector<16x8xf32> to vector<16x8xbf16>
      %cst_37 = arith.constant dense<0.000000e+00> : vector<16x16xf32>
      %113 = tpu.matmul %110, %112, %cst_37 {dimension_numbers = #tpu.dot_dimension_numbers<[1], [1], [0], [0], [0, 0, 1, 0], [], []>} : vector<16x8xbf16>, vector<16x8xbf16>, vector<16x16xf32> -> vector<16x16xf32>
      %cst_38 = arith.constant 0.353553385 : f32
      %114 = vector.broadcast %cst_38 : f32 to vector<16x16xf32>
      %115 = arith.mulf %113, %114 : vector<16x16xf32>
      %116 = arith.addf %115, %17 : vector<16x16xf32>
      %cst_39 = arith.constant dense<0xFF800000> : vector<16xf32>
      %117 = vector.multi_reduction <maximumf>, %116, %cst_39 [1] : vector<16x16xf32> to vector<16xf32>
      %118 = vector.shape_cast %117 : vector<16xf32> to vector<16x1xf32>
      %119 = vector.broadcast %118 : vector<16x1xf32> to vector<16x16xf32>
      %120 = arith.subf %116, %119 : vector<16x16xf32>
      %121 = math.exp %120 : vector<16x16xf32>
      %cst_40 = arith.constant dense<0.000000e+00> : vector<16xf32>
      %122 = vector.multi_reduction <add>, %121, %cst_40 [1] : vector<16x16xf32> to vector<16xf32>
      %123 = vector.shape_cast %122 : vector<16xf32> to vector<16x1xf32>
      %124 = tpu.reciprocal %123 {approx = true} : vector<16x1xf32> -> vector<16x1xf32>
      %125 = vector.broadcast %124 : vector<16x1xf32> to vector<16x16xf32>
      %126 = arith.mulf %121, %125 : vector<16x16xf32>
      %127 = arith.truncf %126 : vector<16x16xf32> to vector<16x16xbf16>
      %128 = vector.extract_strided_slice %62 {offsets = [0, 16], sizes = [16, 8], strides = [1, 1]} : vector<16x32xf32> to vector<16x8xf32>
      %129 = arith.truncf %128 : vector<16x8xf32> to vector<16x8xbf16>
      %cst_41 = arith.constant dense<0.000000e+00> : vector<16x8xf32>
      %130 = tpu.matmul %127, %129, %cst_41 {dimension_numbers = #tpu.dot_dimension_numbers<[1], [0], [0], [1], [0, 0, 1, 1], [], []>} : vector<16x16xbf16>, vector<16x8xbf16>, vector<16x8xf32> -> vector<16x8xf32>
      %131 = vector.extract_strided_slice %60 {offsets = [0, 24], sizes = [16, 8], strides = [1, 1]} : vector<16x32xf32> to vector<16x8xf32>
      %132 = arith.truncf %131 : vector<16x8xf32> to vector<16x8xbf16>
      %133 = vector.extract_strided_slice %61 {offsets = [0, 24], sizes = [16, 8], strides = [1, 1]} : vector<16x32xf32> to vector<16x8xf32>
      %134 = arith.truncf %133 : vector<16x8xf32> to vector<16x8xbf16>
      %cst_42 = arith.constant dense<0.000000e+00> : vector<16x16xf32>
      %135 = tpu.matmul %132, %134, %cst_42 {dimension_numbers = #tpu.dot_dimension_numbers<[1], [1], [0], [0], [0, 0, 1, 0], [], []>} : vector<16x8xbf16>, vector<16x8xbf16>, vector<16x16xf32> -> vector<16x16xf32>
      %cst_43 = arith.constant 0.353553385 : f32
      %136 = vector.broadcast %cst_43 : f32 to vector<16x16xf32>
      %137 = arith.mulf %135, %136 : vector<16x16xf32>
      %138 = arith.addf %137, %17 : vector<16x16xf32>
      %cst_44 = arith.constant dense<0xFF800000> : vector<16xf32>
      %139 = vector.multi_reduction <maximumf>, %138, %cst_44 [1] : vector<16x16xf32> to vector<16xf32>
      %140 = vector.shape_cast %139 : vector<16xf32> to vector<16x1xf32>
      %141 = vector.broadcast %140 : vector<16x1xf32> to vector<16x16xf32>
      %142 = arith.subf %138, %141 : vector<16x16xf32>
      %143 = math.exp %142 : vector<16x16xf32>
      %cst_45 = arith.constant dense<0.000000e+00> : vector<16xf32>
      %144 = vector.multi_reduction <add>, %143, %cst_45 [1] : vector<16x16xf32> to vector<16xf32>
      %145 = vector.shape_cast %144 : vector<16xf32> to vector<16x1xf32>
      %146 = tpu.reciprocal %145 {approx = true} : vector<16x1xf32> -> vector<16x1xf32>
      %147 = vector.broadcast %146 : vector<16x1xf32> to vector<16x16xf32>
      %148 = arith.mulf %143, %147 : vector<16x16xf32>
      %149 = arith.truncf %148 : vector<16x16xf32> to vector<16x16xbf16>
      %150 = vector.extract_strided_slice %62 {offsets = [0, 24], sizes = [16, 8], strides = [1, 1]} : vector<16x32xf32> to vector<16x8xf32>
      %151 = arith.truncf %150 : vector<16x8xf32> to vector<16x8xbf16>
      %cst_46 = arith.constant dense<0.000000e+00> : vector<16x8xf32>
      %152 = tpu.matmul %149, %151, %cst_46 {dimension_numbers = #tpu.dot_dimension_numbers<[1], [0], [0], [1], [0, 0, 1, 1], [], []>} : vector<16x16xbf16>, vector<16x8xbf16>, vector<16x8xf32> -> vector<16x8xf32>
      %153 = tpu.concatenate %86, %108, %130, %152 in 1 : vector<16x8xf32>, vector<16x8xf32>, vector<16x8xf32>, vector<16x8xf32> -> vector<16x32xf32>
      %154 = arith.truncf %153 : vector<16x32xf32> to vector<16x32xbf16>
      %cst_47 = arith.constant dense<0.000000e+00> : vector<16x32xf32>
      %155 = tpu.matmul %154, %64, %cst_47 {dimension_numbers = #tpu.dot_dimension_numbers<[1], [0], [0], [1], [0, 0, 1, 1], [], []>} : vector<16x32xbf16>, vector<32x32xbf16>, vector<16x32xf32> -> vector<16x32xf32>
      %156 = vector.broadcast %28 : vector<1x32xf32> to vector<16x32xf32>
      %157 = arith.addf %155, %156 : vector<16x32xf32>
      %158 = arith.addf %15, %157 : vector<16x32xf32>
      %cst_48 = arith.constant dense<0.000000e+00> : vector<16xf32>
      %159 = vector.multi_reduction <add>, %158, %cst_48 [1] : vector<16x32xf32> to vector<16xf32>
      %160 = vector.shape_cast %159 : vector<16xf32> to vector<16x1xf32>
      %cst_49 = arith.constant 3.200000e+01 : f32
      %161 = vector.broadcast %cst_49 : f32 to vector<16x1xf32>
      %162 = arith.divf %160, %161 : vector<16x1xf32>
      %163 = vector.broadcast %162 : vector<16x1xf32> to vector<16x32xf32>
      %164 = arith.subf %158, %163 : vector<16x32xf32>
      %165 = arith.mulf %164, %164 : vector<16x32xf32>
      %cst_50 = arith.constant dense<0.000000e+00> : vector<16xf32>
      %166 = vector.multi_reduction <add>, %165, %cst_50 [1] : vector<16x32xf32> to vector<16xf32>
      %167 = vector.shape_cast %166 : vector<16xf32> to vector<16x1xf32>
      %cst_51 = arith.constant 0.0322580636 : f32
      %168 = vector.broadcast %cst_51 : f32 to vector<16x1xf32>
      %169 = arith.mulf %167, %168 : vector<16x1xf32>
      %170 = math.sqrt %169 : vector<16x1xf32>
      %cst_52 = arith.constant 9.99999997E-7 : f32
      %171 = vector.broadcast %cst_52 : f32 to vector<16x1xf32>
      %172 = arith.addf %170, %171 : vector<16x1xf32>
      %173 = tpu.reciprocal %172 {approx = true} : vector<16x1xf32> -> vector<16x1xf32>
      %174 = vector.broadcast %173 : vector<16x1xf32> to vector<16x32xf32>
      %175 = arith.mulf %164, %174 : vector<16x32xf32>
      %176 = vector.broadcast %23 : vector<1x32xf32> to vector<16x32xf32>
      %177 = arith.mulf %176, %175 : vector<16x32xf32>
      %178 = vector.broadcast %24 : vector<1x32xf32> to vector<16x32xf32>
      %179 = arith.addf %177, %178 : vector<16x32xf32>
      %c0_53 = arith.constant 0 : index
      %c0_54 = arith.constant 0 : index
      %c0_55 = arith.constant 0 : index
      %180 = vector.load %arg15[%c0_53, %c0_54, %c0_55] : memref<1x32x32xbf16, #tpu.memory_space<vmem>>, vector<1x32x32xbf16>
      %181 = vector.shape_cast %180 : vector<1x32x32xbf16> to vector<32x32xbf16>
      %182 = arith.truncf %179 : vector<16x32xf32> to vector<16x32xbf16>
      %cst_56 = arith.constant dense<0.000000e+00> : vector<16x32xf32>
      %183 = tpu.matmul %182, %181, %cst_56 {dimension_numbers = #tpu.dot_dimension_numbers<[1], [0], [0], [1], [0, 0, 1, 1], [], []>} : vector<16x32xbf16>, vector<32x32xbf16>, vector<16x32xf32> -> vector<16x32xf32>
      %184 = vector.broadcast %29 : vector<1x32xf32> to vector<16x32xf32>
      %185 = arith.addf %183, %184 : vector<16x32xf32>
      %c0_57 = arith.constant 0 : index
      %c0_58 = arith.constant 0 : index
      %c0_59 = arith.constant 0 : index
      %186 = vector.load %arg16[%c0_57, %c0_58, %c0_59] : memref<1x32x64xbf16, #tpu.memory_space<vmem>>, vector<1x32x64xbf16>
      %187 = vector.shape_cast %186 : vector<1x32x64xbf16> to vector<32x64xbf16>
      %188 = arith.truncf %16 : vector<16x32xf32> to vector<16x32xbf16>
      %cst_60 = arith.constant dense<0.000000e+00> : vector<16x64xf32>
      %189 = tpu.matmul %188, %187, %cst_60 {dimension_numbers = #tpu.dot_dimension_numbers<[1], [0], [0], [1], [0, 0, 1, 1], [], []>} : vector<16x32xbf16>, vector<32x64xbf16>, vector<16x64xf32> -> vector<16x64xf32>
      %190 = vector.broadcast %30 : vector<1x64xf32> to vector<16x64xf32>
      %191 = arith.addf %189, %190 : vector<16x64xf32>
      %192 = vector.extract_strided_slice %191 {offsets = [0, 0], sizes = [16, 32], strides = [1, 1]} : vector<16x64xf32> to vector<16x32xf32>
      %193 = vector.extract_strided_slice %191 {offsets = [0, 32], sizes = [16, 32], strides = [1, 1]} : vector<16x64xf32> to vector<16x32xf32>
      %c0_61 = arith.constant 0 : index
      %c0_62 = arith.constant 0 : index
      %c0_63 = arith.constant 0 : index
      %194 = vector.load %arg17[%c0_61, %c0_62, %c0_63] : memref<1x32x32xbf16, #tpu.memory_space<vmem>>, vector<1x32x32xbf16>
      %195 = vector.shape_cast %194 : vector<1x32x32xbf16> to vector<32x32xbf16>
      %196 = vector.extract_strided_slice %185 {offsets = [0, 0], sizes = [16, 8], strides = [1, 1]} : vector<16x32xf32> to vector<16x8xf32>
      %197 = arith.truncf %196 : vector<16x8xf32> to vector<16x8xbf16>
      %198 = vector.extract_strided_slice %192 {offsets = [0, 0], sizes = [16, 8], strides = [1, 1]} : vector<16x32xf32> to vector<16x8xf32>
      %199 = arith.truncf %198 : vector<16x8xf32> to vector<16x8xbf16>
      %cst_64 = arith.constant dense<0.000000e+00> : vector<16x16xf32>
      %200 = tpu.matmul %197, %199, %cst_64 {dimension_numbers = #tpu.dot_dimension_numbers<[1], [1], [0], [0], [0, 0, 1, 0], [], []>} : vector<16x8xbf16>, vector<16x8xbf16>, vector<16x16xf32> -> vector<16x16xf32>
      %cst_65 = arith.constant 0.353553385 : f32
      %201 = vector.broadcast %cst_65 : f32 to vector<16x16xf32>
      %202 = arith.mulf %200, %201 : vector<16x16xf32>
      %203 = arith.addf %202, %18 : vector<16x16xf32>
      %cst_66 = arith.constant dense<0xFF800000> : vector<16xf32>
      %204 = vector.multi_reduction <maximumf>, %203, %cst_66 [1] : vector<16x16xf32> to vector<16xf32>
      %205 = vector.shape_cast %204 : vector<16xf32> to vector<16x1xf32>
      %206 = vector.broadcast %205 : vector<16x1xf32> to vector<16x16xf32>
      %207 = arith.subf %203, %206 : vector<16x16xf32>
      %208 = math.exp %207 : vector<16x16xf32>
      %cst_67 = arith.constant dense<0.000000e+00> : vector<16xf32>
      %209 = vector.multi_reduction <add>, %208, %cst_67 [1] : vector<16x16xf32> to vector<16xf32>
      %210 = vector.shape_cast %209 : vector<16xf32> to vector<16x1xf32>
      %211 = tpu.reciprocal %210 {approx = true} : vector<16x1xf32> -> vector<16x1xf32>
      %212 = vector.broadcast %211 : vector<16x1xf32> to vector<16x16xf32>
      %213 = arith.mulf %208, %212 : vector<16x16xf32>
      %214 = arith.truncf %213 : vector<16x16xf32> to vector<16x16xbf16>
      %215 = vector.extract_strided_slice %193 {offsets = [0, 0], sizes = [16, 8], strides = [1, 1]} : vector<16x32xf32> to vector<16x8xf32>
      %216 = arith.truncf %215 : vector<16x8xf32> to vector<16x8xbf16>
      %cst_68 = arith.constant dense<0.000000e+00> : vector<16x8xf32>
      %217 = tpu.matmul %214, %216, %cst_68 {dimension_numbers = #tpu.dot_dimension_numbers<[1], [0], [0], [1], [0, 0, 1, 1], [], []>} : vector<16x16xbf16>, vector<16x8xbf16>, vector<16x8xf32> -> vector<16x8xf32>
      %218 = vector.extract_strided_slice %185 {offsets = [0, 8], sizes = [16, 8], strides = [1, 1]} : vector<16x32xf32> to vector<16x8xf32>
      %219 = arith.truncf %218 : vector<16x8xf32> to vector<16x8xbf16>
      %220 = vector.extract_strided_slice %192 {offsets = [0, 8], sizes = [16, 8], strides = [1, 1]} : vector<16x32xf32> to vector<16x8xf32>
      %221 = arith.truncf %220 : vector<16x8xf32> to vector<16x8xbf16>
      %cst_69 = arith.constant dense<0.000000e+00> : vector<16x16xf32>
      %222 = tpu.matmul %219, %221, %cst_69 {dimension_numbers = #tpu.dot_dimension_numbers<[1], [1], [0], [0], [0, 0, 1, 0], [], []>} : vector<16x8xbf16>, vector<16x8xbf16>, vector<16x16xf32> -> vector<16x16xf32>
      %cst_70 = arith.constant 0.353553385 : f32
      %223 = vector.broadcast %cst_70 : f32 to vector<16x16xf32>
      %224 = arith.mulf %222, %223 : vector<16x16xf32>
      %225 = arith.addf %224, %18 : vector<16x16xf32>
      %cst_71 = arith.constant dense<0xFF800000> : vector<16xf32>
      %226 = vector.multi_reduction <maximumf>, %225, %cst_71 [1] : vector<16x16xf32> to vector<16xf32>
      %227 = vector.shape_cast %226 : vector<16xf32> to vector<16x1xf32>
      %228 = vector.broadcast %227 : vector<16x1xf32> to vector<16x16xf32>
      %229 = arith.subf %225, %228 : vector<16x16xf32>
      %230 = math.exp %229 : vector<16x16xf32>
      %cst_72 = arith.constant dense<0.000000e+00> : vector<16xf32>
      %231 = vector.multi_reduction <add>, %230, %cst_72 [1] : vector<16x16xf32> to vector<16xf32>
      %232 = vector.shape_cast %231 : vector<16xf32> to vector<16x1xf32>
      %233 = tpu.reciprocal %232 {approx = true} : vector<16x1xf32> -> vector<16x1xf32>
      %234 = vector.broadcast %233 : vector<16x1xf32> to vector<16x16xf32>
      %235 = arith.mulf %230, %234 : vector<16x16xf32>
      %236 = arith.truncf %235 : vector<16x16xf32> to vector<16x16xbf16>
      %237 = vector.extract_strided_slice %193 {offsets = [0, 8], sizes = [16, 8], strides = [1, 1]} : vector<16x32xf32> to vector<16x8xf32>
      %238 = arith.truncf %237 : vector<16x8xf32> to vector<16x8xbf16>
      %cst_73 = arith.constant dense<0.000000e+00> : vector<16x8xf32>
      %239 = tpu.matmul %236, %238, %cst_73 {dimension_numbers = #tpu.dot_dimension_numbers<[1], [0], [0], [1], [0, 0, 1, 1], [], []>} : vector<16x16xbf16>, vector<16x8xbf16>, vector<16x8xf32> -> vector<16x8xf32>
      %240 = vector.extract_strided_slice %185 {offsets = [0, 16], sizes = [16, 8], strides = [1, 1]} : vector<16x32xf32> to vector<16x8xf32>
      %241 = arith.truncf %240 : vector<16x8xf32> to vector<16x8xbf16>
      %242 = vector.extract_strided_slice %192 {offsets = [0, 16], sizes = [16, 8], strides = [1, 1]} : vector<16x32xf32> to vector<16x8xf32>
      %243 = arith.truncf %242 : vector<16x8xf32> to vector<16x8xbf16>
      %cst_74 = arith.constant dense<0.000000e+00> : vector<16x16xf32>
      %244 = tpu.matmul %241, %243, %cst_74 {dimension_numbers = #tpu.dot_dimension_numbers<[1], [1], [0], [0], [0, 0, 1, 0], [], []>} : vector<16x8xbf16>, vector<16x8xbf16>, vector<16x16xf32> -> vector<16x16xf32>
      %cst_75 = arith.constant 0.353553385 : f32
      %245 = vector.broadcast %cst_75 : f32 to vector<16x16xf32>
      %246 = arith.mulf %244, %245 : vector<16x16xf32>
      %247 = arith.addf %246, %18 : vector<16x16xf32>
      %cst_76 = arith.constant dense<0xFF800000> : vector<16xf32>
      %248 = vector.multi_reduction <maximumf>, %247, %cst_76 [1] : vector<16x16xf32> to vector<16xf32>
      %249 = vector.shape_cast %248 : vector<16xf32> to vector<16x1xf32>
      %250 = vector.broadcast %249 : vector<16x1xf32> to vector<16x16xf32>
      %251 = arith.subf %247, %250 : vector<16x16xf32>
      %252 = math.exp %251 : vector<16x16xf32>
      %cst_77 = arith.constant dense<0.000000e+00> : vector<16xf32>
      %253 = vector.multi_reduction <add>, %252, %cst_77 [1] : vector<16x16xf32> to vector<16xf32>
      %254 = vector.shape_cast %253 : vector<16xf32> to vector<16x1xf32>
      %255 = tpu.reciprocal %254 {approx = true} : vector<16x1xf32> -> vector<16x1xf32>
      %256 = vector.broadcast %255 : vector<16x1xf32> to vector<16x16xf32>
      %257 = arith.mulf %252, %256 : vector<16x16xf32>
      %258 = arith.truncf %257 : vector<16x16xf32> to vector<16x16xbf16>
      %259 = vector.extract_strided_slice %193 {offsets = [0, 16], sizes = [16, 8], strides = [1, 1]} : vector<16x32xf32> to vector<16x8xf32>
      %260 = arith.truncf %259 : vector<16x8xf32> to vector<16x8xbf16>
      %cst_78 = arith.constant dense<0.000000e+00> : vector<16x8xf32>
      %261 = tpu.matmul %258, %260, %cst_78 {dimension_numbers = #tpu.dot_dimension_numbers<[1], [0], [0], [1], [0, 0, 1, 1], [], []>} : vector<16x16xbf16>, vector<16x8xbf16>, vector<16x8xf32> -> vector<16x8xf32>
      %262 = vector.extract_strided_slice %185 {offsets = [0, 24], sizes = [16, 8], strides = [1, 1]} : vector<16x32xf32> to vector<16x8xf32>
      %263 = arith.truncf %262 : vector<16x8xf32> to vector<16x8xbf16>
      %264 = vector.extract_strided_slice %192 {offsets = [0, 24], sizes = [16, 8], strides = [1, 1]} : vector<16x32xf32> to vector<16x8xf32>
      %265 = arith.truncf %264 : vector<16x8xf32> to vector<16x8xbf16>
      %cst_79 = arith.constant dense<0.000000e+00> : vector<16x16xf32>
      %266 = tpu.matmul %263, %265, %cst_79 {dimension_numbers = #tpu.dot_dimension_numbers<[1], [1], [0], [0], [0, 0, 1, 0], [], []>} : vector<16x8xbf16>, vector<16x8xbf16>, vector<16x16xf32> -> vector<16x16xf32>
      %cst_80 = arith.constant 0.353553385 : f32
      %267 = vector.broadcast %cst_80 : f32 to vector<16x16xf32>
      %268 = arith.mulf %266, %267 : vector<16x16xf32>
      %269 = arith.addf %268, %18 : vector<16x16xf32>
      %cst_81 = arith.constant dense<0xFF800000> : vector<16xf32>
      %270 = vector.multi_reduction <maximumf>, %269, %cst_81 [1] : vector<16x16xf32> to vector<16xf32>
      %271 = vector.shape_cast %270 : vector<16xf32> to vector<16x1xf32>
      %272 = vector.broadcast %271 : vector<16x1xf32> to vector<16x16xf32>
      %273 = arith.subf %269, %272 : vector<16x16xf32>
      %274 = math.exp %273 : vector<16x16xf32>
      %cst_82 = arith.constant dense<0.000000e+00> : vector<16xf32>
      %275 = vector.multi_reduction <add>, %274, %cst_82 [1] : vector<16x16xf32> to vector<16xf32>
      %276 = vector.shape_cast %275 : vector<16xf32> to vector<16x1xf32>
      %277 = tpu.reciprocal %276 {approx = true} : vector<16x1xf32> -> vector<16x1xf32>
      %278 = vector.broadcast %277 : vector<16x1xf32> to vector<16x16xf32>
      %279 = arith.mulf %274, %278 : vector<16x16xf32>
      %280 = arith.truncf %279 : vector<16x16xf32> to vector<16x16xbf16>
      %281 = vector.extract_strided_slice %193 {offsets = [0, 24], sizes = [16, 8], strides = [1, 1]} : vector<16x32xf32> to vector<16x8xf32>
      %282 = arith.truncf %281 : vector<16x8xf32> to vector<16x8xbf16>
      %cst_83 = arith.constant dense<0.000000e+00> : vector<16x8xf32>
      %283 = tpu.matmul %280, %282, %cst_83 {dimension_numbers = #tpu.dot_dimension_numbers<[1], [0], [0], [1], [0, 0, 1, 1], [], []>} : vector<16x16xbf16>, vector<16x8xbf16>, vector<16x8xf32> -> vector<16x8xf32>
      %284 = tpu.concatenate %217, %239, %261, %283 in 1 : vector<16x8xf32>, vector<16x8xf32>, vector<16x8xf32>, vector<16x8xf32> -> vector<16x32xf32>
      %285 = arith.truncf %284 : vector<16x32xf32> to vector<16x32xbf16>
      %cst_84 = arith.constant dense<0.000000e+00> : vector<16x32xf32>
      %286 = tpu.matmul %285, %195, %cst_84 {dimension_numbers = #tpu.dot_dimension_numbers<[1], [0], [0], [1], [0, 0, 1, 1], [], []>} : vector<16x32xbf16>, vector<32x32xbf16>, vector<16x32xf32> -> vector<16x32xf32>
      %287 = vector.broadcast %31 : vector<1x32xf32> to vector<16x32xf32>
      %288 = arith.addf %286, %287 : vector<16x32xf32>
      %289 = arith.addf %158, %288 : vector<16x32xf32>
      %cst_85 = arith.constant dense<0.000000e+00> : vector<16xf32>
      %290 = vector.multi_reduction <add>, %289, %cst_85 [1] : vector<16x32xf32> to vector<16xf32>
      %291 = vector.shape_cast %290 : vector<16xf32> to vector<16x1xf32>
      %cst_86 = arith.constant 3.200000e+01 : f32
      %292 = vector.broadcast %cst_86 : f32 to vector<16x1xf32>
      %293 = arith.divf %291, %292 : vector<16x1xf32>
      %294 = vector.broadcast %293 : vector<16x1xf32> to vector<16x32xf32>
      %295 = arith.subf %289, %294 : vector<16x32xf32>
      %296 = arith.mulf %295, %295 : vector<16x32xf32>
      %cst_87 = arith.constant dense<0.000000e+00> : vector<16xf32>
      %297 = vector.multi_reduction <add>, %296, %cst_87 [1] : vector<16x32xf32> to vector<16xf32>
      %298 = vector.shape_cast %297 : vector<16xf32> to vector<16x1xf32>
      %cst_88 = arith.constant 0.0322580636 : f32
      %299 = vector.broadcast %cst_88 : f32 to vector<16x1xf32>
      %300 = arith.mulf %298, %299 : vector<16x1xf32>
      %301 = math.sqrt %300 : vector<16x1xf32>
      %cst_89 = arith.constant 9.99999997E-7 : f32
      %302 = vector.broadcast %cst_89 : f32 to vector<16x1xf32>
      %303 = arith.addf %301, %302 : vector<16x1xf32>
      %304 = tpu.reciprocal %303 {approx = true} : vector<16x1xf32> -> vector<16x1xf32>
      %305 = vector.broadcast %304 : vector<16x1xf32> to vector<16x32xf32>
      %306 = arith.mulf %295, %305 : vector<16x32xf32>
      %307 = vector.broadcast %25 : vector<1x32xf32> to vector<16x32xf32>
      %308 = arith.mulf %307, %306 : vector<16x32xf32>
      %309 = vector.broadcast %26 : vector<1x32xf32> to vector<16x32xf32>
      %310 = arith.addf %308, %309 : vector<16x32xf32>
      %311 = arith.truncf %310 : vector<16x32xf32> to vector<16x32xbf16>
      %cst_90 = arith.constant 0.000000e+00 : f32
      %312 = vector.broadcast %cst_90 : f32 to vector<16x32xf32>
      %313 = vector.broadcast %32 : vector<1x32xf32> to vector<16x32xf32>
      %314 = arith.addf %312, %313 : vector<16x32xf32>
      %c0_i32_91 = arith.constant 0 : i32
      %c512_i32 = arith.constant 512 : i32
      %315 = arith.muli %c0_i32_91, %c512_i32 : i32
      %316 = tpu.assume_multiple %315, 512 : i32
      %c0_92 = arith.constant 0 : index
      %c0_93 = arith.constant 0 : index
      %317 = arith.index_cast %316 : i32 to index
      %318 = vector.load %arg18[%c0_92, %c0_93, %317] : memref<1x32x2048xbf16, #tpu.memory_space<vmem>>, vector<1x32x512xbf16>
      %319 = vector.shape_cast %318 : vector<1x32x512xbf16> to vector<32x512xbf16>
      %c0_94 = arith.constant 0 : index
      %c0_95 = arith.constant 0 : index
      %320 = arith.index_cast %316 : i32 to index
      %321 = vector.load %arg19[%c0_94, %c0_95, %320] : memref<1x1x2048xf32, #tpu.memory_space<vmem>>, vector<1x1x512xf32>
      %322 = vector.shape_cast %321 : vector<1x1x512xf32> to vector<1x512xf32>
      %cst_96 = arith.constant dense<0.000000e+00> : vector<16x512xf32>
      %323 = tpu.matmul %311, %319, %cst_96 {dimension_numbers = #tpu.dot_dimension_numbers<[1], [0], [0], [1], [0, 0, 1, 1], [], []>} : vector<16x32xbf16>, vector<32x512xbf16>, vector<16x512xf32> -> vector<16x512xf32>
      %324 = vector.broadcast %322 : vector<1x512xf32> to vector<16x512xf32>
      %325 = arith.addf %323, %324 : vector<16x512xf32>
      %cst_97 = arith.constant 0.000000e+00 : f32
      %326 = vector.broadcast %cst_97 : f32 to vector<16x512xf32>
      %327 = arith.maximumf %325, %326 : vector<16x512xf32>
      %c0_98 = arith.constant 0 : index
      %328 = arith.index_cast %316 : i32 to index
      %c0_99 = arith.constant 0 : index
      %329 = vector.load %arg20[%c0_98, %328, %c0_99] : memref<1x2048x32xbf16, #tpu.memory_space<vmem>>, vector<1x512x32xbf16>
      %330 = vector.shape_cast %329 : vector<1x512x32xbf16> to vector<512x32xbf16>
      %331 = arith.truncf %327 : vector<16x512xf32> to vector<16x512xbf16>
      %cst_100 = arith.constant dense<0.000000e+00> : vector<16x32xf32>
      %332 = tpu.matmul %331, %330, %cst_100 {dimension_numbers = #tpu.dot_dimension_numbers<[1], [0], [0], [1], [0, 0, 1, 1], [], []>} : vector<16x512xbf16>, vector<512x32xbf16>, vector<16x32xf32> -> vector<16x32xf32>
      %333 = arith.addf %314, %332 : vector<16x32xf32>
      %c1_i32_101 = arith.constant 1 : i32
      %c512_i32_102 = arith.constant 512 : i32
      %334 = arith.muli %c1_i32_101, %c512_i32_102 : i32
      %335 = tpu.assume_multiple %334, 512 : i32
      %c0_103 = arith.constant 0 : index
      %c0_104 = arith.constant 0 : index
      %336 = arith.index_cast %335 : i32 to index
      %337 = vector.load %arg18[%c0_103, %c0_104, %336] : memref<1x32x2048xbf16, #tpu.memory_space<vmem>>, vector<1x32x512xbf16>
      %338 = vector.shape_cast %337 : vector<1x32x512xbf16> to vector<32x512xbf16>
      %c0_105 = arith.constant 0 : index
      %c0_106 = arith.constant 0 : index
      %339 = arith.index_cast %335 : i32 to index
      %340 = vector.load %arg19[%c0_105, %c0_106, %339] : memref<1x1x2048xf32, #tpu.memory_space<vmem>>, vector<1x1x512xf32>
      %341 = vector.shape_cast %340 : vector<1x1x512xf32> to vector<1x512xf32>
      %cst_107 = arith.constant dense<0.000000e+00> : vector<16x512xf32>
      %342 = tpu.matmul %311, %338, %cst_107 {dimension_numbers = #tpu.dot_dimension_numbers<[1], [0], [0], [1], [0, 0, 1, 1], [], []>} : vector<16x32xbf16>, vector<32x512xbf16>, vector<16x512xf32> -> vector<16x512xf32>
      %343 = vector.broadcast %341 : vector<1x512xf32> to vector<16x512xf32>
      %344 = arith.addf %342, %343 : vector<16x512xf32>
      %cst_108 = arith.constant 0.000000e+00 : f32
      %345 = vector.broadcast %cst_108 : f32 to vector<16x512xf32>
      %346 = arith.maximumf %344, %345 : vector<16x512xf32>
      %c0_109 = arith.constant 0 : index
      %347 = arith.index_cast %335 : i32 to index
      %c0_110 = arith.constant 0 : index
      %348 = vector.load %arg20[%c0_109, %347, %c0_110] : memref<1x2048x32xbf16, #tpu.memory_space<vmem>>, vector<1x512x32xbf16>
      %349 = vector.shape_cast %348 : vector<1x512x32xbf16> to vector<512x32xbf16>
      %350 = arith.truncf %346 : vector<16x512xf32> to vector<16x512xbf16>
      %cst_111 = arith.constant dense<0.000000e+00> : vector<16x32xf32>
      %351 = tpu.matmul %350, %349, %cst_111 {dimension_numbers = #tpu.dot_dimension_numbers<[1], [0], [0], [1], [0, 0, 1, 1], [], []>} : vector<16x512xbf16>, vector<512x32xbf16>, vector<16x32xf32> -> vector<16x32xf32>
      %352 = arith.addf %333, %351 : vector<16x32xf32>
      %c2_i32_112 = arith.constant 2 : i32
      %c512_i32_113 = arith.constant 512 : i32
      %353 = arith.muli %c2_i32_112, %c512_i32_113 : i32
      %354 = tpu.assume_multiple %353, 512 : i32
      %c0_114 = arith.constant 0 : index
      %c0_115 = arith.constant 0 : index
      %355 = arith.index_cast %354 : i32 to index
      %356 = vector.load %arg18[%c0_114, %c0_115, %355] : memref<1x32x2048xbf16, #tpu.memory_space<vmem>>, vector<1x32x512xbf16>
      %357 = vector.shape_cast %356 : vector<1x32x512xbf16> to vector<32x512xbf16>
      %c0_116 = arith.constant 0 : index
      %c0_117 = arith.constant 0 : index
      %358 = arith.index_cast %354 : i32 to index
      %359 = vector.load %arg19[%c0_116, %c0_117, %358] : memref<1x1x2048xf32, #tpu.memory_space<vmem>>, vector<1x1x512xf32>
      %360 = vector.shape_cast %359 : vector<1x1x512xf32> to vector<1x512xf32>
      %cst_118 = arith.constant dense<0.000000e+00> : vector<16x512xf32>
      %361 = tpu.matmul %311, %357, %cst_118 {dimension_numbers = #tpu.dot_dimension_numbers<[1], [0], [0], [1], [0, 0, 1, 1], [], []>} : vector<16x32xbf16>, vector<32x512xbf16>, vector<16x512xf32> -> vector<16x512xf32>
      %362 = vector.broadcast %360 : vector<1x512xf32> to vector<16x512xf32>
      %363 = arith.addf %361, %362 : vector<16x512xf32>
      %cst_119 = arith.constant 0.000000e+00 : f32
      %364 = vector.broadcast %cst_119 : f32 to vector<16x512xf32>
      %365 = arith.maximumf %363, %364 : vector<16x512xf32>
      %c0_120 = arith.constant 0 : index
      %366 = arith.index_cast %354 : i32 to index
      %c0_121 = arith.constant 0 : index
      %367 = vector.load %arg20[%c0_120, %366, %c0_121] : memref<1x2048x32xbf16, #tpu.memory_space<vmem>>, vector<1x512x32xbf16>
      %368 = vector.shape_cast %367 : vector<1x512x32xbf16> to vector<512x32xbf16>
      %369 = arith.truncf %365 : vector<16x512xf32> to vector<16x512xbf16>
      %cst_122 = arith.constant dense<0.000000e+00> : vector<16x32xf32>
      %370 = tpu.matmul %369, %368, %cst_122 {dimension_numbers = #tpu.dot_dimension_numbers<[1], [0], [0], [1], [0, 0, 1, 1], [], []>} : vector<16x512xbf16>, vector<512x32xbf16>, vector<16x32xf32> -> vector<16x32xf32>
      %371 = arith.addf %352, %370 : vector<16x32xf32>
      %c3_i32_123 = arith.constant 3 : i32
      %c512_i32_124 = arith.constant 512 : i32
      %372 = arith.muli %c3_i32_123, %c512_i32_124 : i32
      %373 = tpu.assume_multiple %372, 512 : i32
      %c0_125 = arith.constant 0 : index
      %c0_126 = arith.constant 0 : index
      %374 = arith.index_cast %373 : i32 to index
      %375 = vector.load %arg18[%c0_125, %c0_126, %374] : memref<1x32x2048xbf16, #tpu.memory_space<vmem>>, vector<1x32x512xbf16>
      %376 = vector.shape_cast %375 : vector<1x32x512xbf16> to vector<32x512xbf16>
      %c0_127 = arith.constant 0 : index
      %c0_128 = arith.constant 0 : index
      %377 = arith.index_cast %373 : i32 to index
      %378 = vector.load %arg19[%c0_127, %c0_128, %377] : memref<1x1x2048xf32, #tpu.memory_space<vmem>>, vector<1x1x512xf32>
      %379 = vector.shape_cast %378 : vector<1x1x512xf32> to vector<1x512xf32>
      %cst_129 = arith.constant dense<0.000000e+00> : vector<16x512xf32>
      %380 = tpu.matmul %311, %376, %cst_129 {dimension_numbers = #tpu.dot_dimension_numbers<[1], [0], [0], [1], [0, 0, 1, 1], [], []>} : vector<16x32xbf16>, vector<32x512xbf16>, vector<16x512xf32> -> vector<16x512xf32>
      %381 = vector.broadcast %379 : vector<1x512xf32> to vector<16x512xf32>
      %382 = arith.addf %380, %381 : vector<16x512xf32>
      %cst_130 = arith.constant 0.000000e+00 : f32
      %383 = vector.broadcast %cst_130 : f32 to vector<16x512xf32>
      %384 = arith.maximumf %382, %383 : vector<16x512xf32>
      %c0_131 = arith.constant 0 : index
      %385 = arith.index_cast %373 : i32 to index
      %c0_132 = arith.constant 0 : index
      %386 = vector.load %arg20[%c0_131, %385, %c0_132] : memref<1x2048x32xbf16, #tpu.memory_space<vmem>>, vector<1x512x32xbf16>
      %387 = vector.shape_cast %386 : vector<1x512x32xbf16> to vector<512x32xbf16>
      %388 = arith.truncf %384 : vector<16x512xf32> to vector<16x512xbf16>
      %cst_133 = arith.constant dense<0.000000e+00> : vector<16x32xf32>
      %389 = tpu.matmul %388, %387, %cst_133 {dimension_numbers = #tpu.dot_dimension_numbers<[1], [0], [0], [1], [0, 0, 1, 1], [], []>} : vector<16x512xbf16>, vector<512x32xbf16>, vector<16x32xf32> -> vector<16x32xf32>
      %390 = arith.addf %371, %389 : vector<16x32xf32>
      %c4_i32 = arith.constant 4 : i32
      %391 = arith.addf %289, %390 : vector<16x32xf32>
      %c0_134 = arith.constant 0 : index
      %c0_135 = arith.constant 0 : index
      %392 = vector.load %arg32[%c0_134, %c0_135] : memref<16x32xf32, #tpu.memory_space<vmem>>, vector<16x32xf32>
      tpu.vector_store %arg32[%c0_134, %c0_135], %391 {strides = array<i32>} : memref<16x32xf32, #tpu.memory_space<vmem>>, vector<16x32xf32>,
    } else {
    }
    %c3_i32 = arith.constant 3 : i32
    %12 = arith.cmpi eq, %arg0, %c3_i32 : i32
    %13 = arith.extui %12 : i1 to i32
    %c0_i32_5 = arith.constant 0 : i32
    %14 = arith.cmpi ne, %13, %c0_i32_5 : i32
    scf.if %14 {
      %c0 = arith.constant 0 : index
      %c0_6 = arith.constant 0 : index
      %15 = vector.load %arg32[%c0, %c0_6] : memref<16x32xf32, #tpu.memory_space<vmem>>, vector<16x32xf32>
      %c0_7 = arith.constant 0 : index
      %c0_8 = arith.constant 0 : index
      %16 = vector.load %arg23[%c0_7, %c0_8] : memref<2x32xf32, #tpu.memory_space<vmem>>, vector<2x32xf32>
      %17 = vector.extract_strided_slice %16 {offsets = [0, 0], sizes = [1, 32], strides = [1, 1]} : vector<2x32xf32> to vector<1x32xf32>
      %18 = vector.extract_strided_slice %16 {offsets = [1, 0], sizes = [1, 32], strides = [1, 1]} : vector<2x32xf32> to vector<1x32xf32>
      %cst = arith.constant dense<0.000000e+00> : vector<16xf32>
      %19 = vector.multi_reduction <add>, %15, %cst [1] : vector<16x32xf32> to vector<16xf32>
      %20 = vector.shape_cast %19 : vector<16xf32> to vector<16x1xf32>
      %cst_9 = arith.constant 3.200000e+01 : f32
      %21 = vector.broadcast %cst_9 : f32 to vector<16x1xf32>
      %22 = arith.divf %20, %21 : vector<16x1xf32>
      %23 = vector.broadcast %22 : vector<16x1xf32> to vector<16x32xf32>
      %24 = arith.subf %15, %23 : vector<16x32xf32>
      %25 = arith.mulf %24, %24 : vector<16x32xf32>
      %cst_10 = arith.constant dense<0.000000e+00> : vector<16xf32>
      %26 = vector.multi_reduction <add>, %25, %cst_10 [1] : vector<16x32xf32> to vector<16xf32>
      %27 = vector.shape_cast %26 : vector<16xf32> to vector<16x1xf32>
      %cst_11 = arith.constant 0.0322580636 : f32
      %28 = vector.broadcast %cst_11 : f32 to vector<16x1xf32>
      %29 = arith.mulf %27, %28 : vector<16x1xf32>
      %30 = math.sqrt %29 : vector<16x1xf32>
      %cst_12 = arith.constant 9.99999997E-7 : f32
      %31 = vector.broadcast %cst_12 : f32 to vector<16x1xf32>
      %32 = arith.addf %30, %31 : vector<16x1xf32>
      %33 = tpu.reciprocal %32 {approx = true} : vector<16x1xf32> -> vector<16x1xf32>
      %34 = vector.broadcast %33 : vector<16x1xf32> to vector<16x32xf32>
      %35 = arith.mulf %24, %34 : vector<16x32xf32>
      %36 = vector.broadcast %17 : vector<1x32xf32> to vector<16x32xf32>
      %37 = arith.mulf %36, %35 : vector<16x32xf32>
      %38 = vector.broadcast %18 : vector<1x32xf32> to vector<16x32xf32>
      %39 = arith.addf %37, %38 : vector<16x32xf32>
      %c0_13 = arith.constant 0 : index
      %c0_14 = arith.constant 0 : index
      %40 = vector.load %arg28[%c0_13, %c0_14] : memref<32x128xbf16, #tpu.memory_space<vmem>>, vector<32x128xbf16>
      %c0_15 = arith.constant 0 : index
      %c0_16 = arith.constant 0 : index
      %41 = vector.load %arg29[%c0_15, %c0_16] : memref<1x128xf32, #tpu.memory_space<vmem>>, vector<1x128xf32>
      %42 = arith.truncf %39 : vector<16x32xf32> to vector<16x32xbf16>
      %cst_17 = arith.constant dense<0.000000e+00> : vector<16x128xf32>
      %43 = tpu.matmul %42, %40, %cst_17 {dimension_numbers = #tpu.dot_dimension_numbers<[1], [0], [0], [1], [0, 0, 1, 1], [], []>} : vector<16x32xbf16>, vector<32x128xbf16>, vector<16x128xf32> -> vector<16x128xf32>
      %44 = vector.broadcast %41 : vector<1x128xf32> to vector<16x128xf32>
      %45 = arith.addf %43, %44 : vector<16x128xf32>
      %c0_18 = arith.constant 0 : index
      %c0_19 = arith.constant 0 : index
      %46 = vector.load %arg30[%c0_18, %c0_19] : memref<16x128xf32, #tpu.memory_space<vmem>>, vector<16x128xf32>
      tpu.vector_store %arg30[%c0_18, %c0_19], %45 {strides = array<i32>} : memref<16x128xf32, #tpu.memory_space<vmem>>, vector<16x128xf32>,
    } else {
    }
    return
  }
  func.func @transform_0(%arg0: i32) -> (i32, i32) {
    %c0_i32 = arith.constant 0 : i32
    %c0_i32_0 = arith.constant 0 : i32
    %c0_i32_1 = arith.constant 0 : i32
    return %c0_i32, %c0_i32_0 : i32, i32
  }
  func.func @transform_1(%arg0: i32) -> (i32, i32) {
    %c0_i32 = arith.constant 0 : i32
    %c0_i32_0 = arith.constant 0 : i32
    %c0_i32_1 = arith.constant 0 : i32
    return %c0_i32, %c0_i32_0 : i32, i32
  }
  func.func @transform_2(%arg0: i32) -> (i32, i32) {
    %c0_i32 = arith.constant 0 : i32
    %c0_i32_0 = arith.constant 0 : i32
    %c0_i32_1 = arith.constant 0 : i32
    return %c0_i32, %c0_i32_0 : i32, i32
  }
  func.func @transform_3(%arg0: i32) -> (i32, i32) {
    %c0_i32 = arith.constant 0 : i32
    %c0_i32_0 = arith.constant 0 : i32
    %c0_i32_1 = arith.constant 0 : i32
    return %c0_i32, %c0_i32_0 : i32, i32
  }
  func.func @transform_4(%arg0: i32) -> (i32, i32) {
    %c0_i32 = arith.constant 0 : i32
    %c0_i32_0 = arith.constant 0 : i32
    %c0_i32_1 = arith.constant 0 : i32
    return %c0_i32, %c0_i32_0 : i32, i32
  }
  func.func @transform_5(%arg0: i32) -> (i32, i32) {
    %c0_i32 = arith.constant 0 : i32
    %c0_i32_0 = arith.constant 0 : i32
    %c0_i32_1 = arith.constant 0 : i32
    return %c0_i32, %c0_i32_0 : i32, i32
  }
  func.func @transform_6(%arg0: i32) -> (i32, i32, i32) {
    %c1_i32 = arith.constant 1 : i32
    %0 = arith.minsi %arg0, %c1_i32 : i32
    %c0_i32 = arith.constant 0 : i32
    %c0_i32_0 = arith.constant 0 : i32
    %c0_i32_1 = arith.constant 0 : i32
    return %0, %c0_i32, %c0_i32_0 : i32, i32, i32
  }
  func.func @transform_7(%arg0: i32) -> (i32, i32, i32) {
    %c1_i32 = arith.constant 1 : i32
    %0 = arith.minsi %arg0, %c1_i32 : i32
    %c0_i32 = arith.constant 0 : i32
    %c0_i32_0 = arith.constant 0 : i32
    %c0_i32_1 = arith.constant 0 : i32
    return %0, %c0_i32, %c0_i32_0 : i32, i32, i32
  }
  func.func @transform_8(%arg0: i32) -> (i32, i32, i32) {
    %c1_i32 = arith.constant 1 : i32
    %0 = arith.minsi %arg0, %c1_i32 : i32
    %c0_i32 = arith.constant 0 : i32
    %c0_i32_0 = arith.constant 0 : i32
    %c0_i32_1 = arith.constant 0 : i32
    return %0, %c0_i32, %c0_i32_0 : i32, i32, i32
  }
  func.func @transform_9(%arg0: i32) -> (i32, i32, i32) {
    %c1_i32 = arith.constant 1 : i32
    %0 = arith.minsi %arg0, %c1_i32 : i32
    %c0_i32 = arith.constant 0 : i32
    %c0_i32_0 = arith.constant 0 : i32
    %c0_i32_1 = arith.constant 0 : i32
    return %0, %c0_i32, %c0_i32_0 : i32, i32, i32
  }
  func.func @transform_10(%arg0: i32) -> (i32, i32, i32) {
    %c1_i32 = arith.constant 1 : i32
    %0 = arith.minsi %arg0, %c1_i32 : i32
    %c0_i32 = arith.constant 0 : i32
    %c0_i32_0 = arith.constant 0 : i32
    %c0_i32_1 = arith.constant 0 : i32
    return %0, %c0_i32, %c0_i32_0 : i32, i32, i32
  }
  func.func @transform_11(%arg0: i32) -> (i32, i32, i32) {
    %c1_i32 = arith.constant 1 : i32
    %0 = arith.minsi %arg0, %c1_i32 : i32
    %c0_i32 = arith.constant 0 : i32
    %c0_i32_0 = arith.constant 0 : i32
    %c0_i32_1 = arith.constant 0 : i32
    return %0, %c0_i32, %c0_i32_0 : i32, i32, i32
  }
  func.func @transform_12(%arg0: i32) -> (i32, i32, i32) {
    %c2_i32 = arith.constant 2 : i32
    %0 = arith.subi %arg0, %c2_i32 : i32
    %c0_i32 = arith.constant 0 : i32
    %1 = arith.maxsi %0, %c0_i32 : i32
    %c0_i32_0 = arith.constant 0 : i32
    %c0_i32_1 = arith.constant 0 : i32
    %c0_i32_2 = arith.constant 0 : i32
    return %1, %c0_i32_0, %c0_i32_1 : i32, i32, i32
  }
  func.func @transform_13(%arg0: i32) -> (i32, i32, i32) {
    %c2_i32 = arith.constant 2 : i32
    %0 = arith.subi %arg0, %c2_i32 : i32
    %c0_i32 = arith.constant 0 : i32
    %1 = arith.maxsi %0, %c0_i32 : i32
    %c0_i32_0 = arith.constant 0 : i32
    %c0_i32_1 = arith.constant 0 : i32
    %c0_i32_2 = arith.constant 0 : i32
    return %1, %c0_i32_0, %c0_i32_1 : i32, i32, i32
  }
  func.func @transform_14(%arg0: i32) -> (i32, i32, i32) {
    %c2_i32 = arith.constant 2 : i32
    %0 = arith.subi %arg0, %c2_i32 : i32
    %c0_i32 = arith.constant 0 : i32
    %1 = arith.maxsi %0, %c0_i32 : i32
    %c0_i32_0 = arith.constant 0 : i32
    %c0_i32_1 = arith.constant 0 : i32
    %c0_i32_2 = arith.constant 0 : i32
    return %1, %c0_i32_0, %c0_i32_1 : i32, i32, i32
  }
  func.func @transform_15(%arg0: i32) -> (i32, i32, i32) {
    %c2_i32 = arith.constant 2 : i32
    %0 = arith.subi %arg0, %c2_i32 : i32
    %c0_i32 = arith.constant 0 : i32
    %1 = arith.maxsi %0, %c0_i32 : i32
    %c0_i32_0 = arith.constant 0 : i32
    %c0_i32_1 = arith.constant 0 : i32
    %c0_i32_2 = arith.constant 0 : i32
    return %1, %c0_i32_0, %c0_i32_1 : i32, i32, i32
  }
  func.func @transform_16(%arg0: i32) -> (i32, i32, i32) {
    %c2_i32 = arith.constant 2 : i32
    %0 = arith.subi %arg0, %c2_i32 : i32
    %c0_i32 = arith.constant 0 : i32
    %1 = arith.maxsi %0, %c0_i32 : i32
    %c0_i32_0 = arith.constant 0 : i32
    %c0_i32_1 = arith.constant 0 : i32
    %c0_i32_2 = arith.constant 0 : i32
    return %1, %c0_i32_0, %c0_i32_1 : i32, i32, i32
  }
  func.func @transform_17(%arg0: i32) -> (i32, i32, i32) {
    %c2_i32 = arith.constant 2 : i32
    %0 = arith.subi %arg0, %c2_i32 : i32
    %c0_i32 = arith.constant 0 : i32
    %1 = arith.maxsi %0, %c0_i32 : i32
    %c0_i32_0 = arith.constant 0 : i32
    %c0_i32_1 = arith.constant 0 : i32
    %c0_i32_2 = arith.constant 0 : i32
    return %1, %c0_i32_0, %c0_i32_1 : i32, i32, i32
  }
  func.func @transform_18(%arg0: i32) -> (i32, i32, i32) {
    %c2_i32 = arith.constant 2 : i32
    %0 = arith.subi %arg0, %c2_i32 : i32
    %c0_i32 = arith.constant 0 : i32
    %1 = arith.maxsi %0, %c0_i32 : i32
    %c0_i32_0 = arith.constant 0 : i32
    %c0_i32_1 = arith.constant 0 : i32
    %c0_i32_2 = arith.constant 0 : i32
    return %1, %c0_i32_0, %c0_i32_1 : i32, i32, i32
  }
  func.func @transform_19(%arg0: i32) -> (i32, i32, i32) {
    %c2_i32 = arith.constant 2 : i32
    %0 = arith.subi %arg0, %c2_i32 : i32
    %c0_i32 = arith.constant 0 : i32
    %1 = arith.maxsi %0, %c0_i32 : i32
    %c0_i32_0 = arith.constant 0 : i32
    %c0_i32_1 = arith.constant 0 : i32
    %c0_i32_2 = arith.constant 0 : i32
    return %1, %c0_i32_0, %c0_i32_1 : i32, i32, i32
  }
  func.func @transform_20(%arg0: i32) -> (i32, i32, i32) {
    %c2_i32 = arith.constant 2 : i32
    %0 = arith.subi %arg0, %c2_i32 : i32
    %c0_i32 = arith.constant 0 : i32
    %1 = arith.maxsi %0, %c0_i32 : i32
    %c0_i32_0 = arith.constant 0 : i32
    %c0_i32_1 = arith.constant 0 : i32
    %c0_i32_2 = arith.constant 0 : i32
    return %1, %c0_i32_0, %c0_i32_1 : i32, i32, i32
  }
  func.func @transform_21(%arg0: i32) -> (i32, i32) {
    %c0_i32 = arith.constant 0 : i32
    %c0_i32_0 = arith.constant 0 : i32
    %c0_i32_1 = arith.constant 0 : i32
    return %c0_i32, %c0_i32_0 : i32, i32
  }
  func.func @transform_22(%arg0: i32) -> (i32, i32) {
    %c0_i32 = arith.constant 0 : i32
    %c0_i32_0 = arith.constant 0 : i32
    %c0_i32_1 = arith.constant 0 : i32
    return %c0_i32, %c0_i32_0 : i32, i32
  }
  func.func @transform_23(%arg0: i32) -> (i32, i32) {
    %c0_i32 = arith.constant 0 : i32
    %c0_i32_0 = arith.constant 0 : i32
    %c0_i32_1 = arith.constant 0 : i32
    return %c0_i32, %c0_i32_0 : i32, i32
  }
  func.func @transform_24(%arg0: i32) -> (i32, i32) {
    %c0_i32 = arith.constant 0 : i32
    %c0_i32_0 = arith.constant 0 : i32
    %c0_i32_1 = arith.constant 0 : i32
    return %c0_i32, %c0_i32_0 : i32, i32
  }
  func.func @transform_25(%arg0: i32) -> (i32, i32) {
    %c0_i32 = arith.constant 0 : i32
    %c0_i32_0 = arith.constant 0 : i32
    %c0_i32_1 = arith.constant 0 : i32
    return %c0_i32, %c0_i32_0 : i32, i32
  }
  func.func @transform_26(%arg0: i32) -> (i32, i32) {
    %c0_i32 = arith.constant 0 : i32
    %c0_i32_0 = arith.constant 0 : i32
    %c0_i32_1 = arith.constant 0 : i32
    return %c0_i32, %c0_i32_0 : i32, i32
  }
  func.func @transform_27(%arg0: i32) -> (i32, i32) {
    %c0_i32 = arith.constant 0 : i32
    %c0_i32_0 = arith.constant 0 : i32
    %c0_i32_1 = arith.constant 0 : i32
    return %c0_i32, %c0_i32_0 : i32, i32
  }
  func.func @transform_28(%arg0: i32) -> (i32, i32) {
    %c0_i32 = arith.constant 0 : i32
    %c0_i32_0 = arith.constant 0 : i32
    %c0_i32_1 = arith.constant 0 : i32
    return %c0_i32, %c0_i32_0 : i32, i32
  }
  func.func @transform_29(%arg0: i32) -> (i32, i32) {
    %c0_i32 = arith.constant 0 : i32
    %c0_i32_0 = arith.constant 0 : i32
    %c0_i32_1 = arith.constant 0 : i32
    return %c0_i32, %c0_i32_0 : i32, i32
  }
}

</mosaic_0001>

<llo_original>
// kernel: forward.1
$region0: #{forward.1}
  #allocation0 [shape = 'u32[]', space=smem, size = 0x4, offset = 0x4, fixed_abs, tag = 'smem constant byte address 0x4 - core index']
  #allocation1 [shape = 'u32[144,128]{1,0:T(1,128)}', space=vmem, size = 0x12000, scoped, tag = 'internal scratch']
  #allocation2 [shape = 'f32[16,32]{1,0:T(8,128)}', space=vmem, size = 0x2000, scoped, tag = 'scratch operand']
  #allocation3 [shape = 'f32[16,32]{1,0:T(8,128)}', space=vmem, size = 0x2000, scoped, tag = 'scratch operand']
  #allocation4 [shape = 'f32[16,32]{1,0:T(8,128)}', space=vmem, size = 0x2000, scoped, tag = 'scratch operand']
  %s0 = inlined_call_operand.smem [shape: u32[30], index: -1, kind: input, shape index: {}]
  %s1 = sld [smem:[%s0]]
  %s2 = scalar_lea.smem %s0, 1
  %s3 = sld [smem:[%s2]]
  %s4 = scalar_lea.smem %s0, 2
  %s5 = sld [smem:[%s4]]
  %s6 = scalar_lea.smem %s0, 3
  %s7 = sld [smem:[%s6]]
  %s8 = scalar_lea.smem %s0, 4
  %s9 = sld [smem:[%s8]]
  %s10 = scalar_lea.smem %s0, 5
  %s11 = sld [smem:[%s10]]
  %s12 = scalar_lea.smem %s0, 6
  %s13 = sld [smem:[%s12]]
  %s14 = scalar_lea.smem %s0, 7
  %s15 = sld [smem:[%s14]]
  %s16 = scalar_lea.smem %s0, 8
  %s17 = sld [smem:[%s16]]
  %s18 = scalar_lea.smem %s0, 9
  %s19 = sld [smem:[%s18]]
  %s20 = scalar_lea.smem %s0, 10
  %s21 = sld [smem:[%s20]]
  %s22 = scalar_lea.smem %s0, 11
  %s23 = sld [smem:[%s22]]
  %s24 = scalar_lea.smem %s0, 12
  %s25 = sld [smem:[%s24]]
  %s26 = scalar_lea.smem %s0, 13
  %s27 = sld [smem:[%s26]]
  %s28 = scalar_lea.smem %s0, 14
  %s29 = sld [smem:[%s28]]
  %s30 = scalar_lea.smem %s0, 15
  %s31 = sld [smem:[%s30]]
  %s32 = scalar_lea.smem %s0, 16
  %s33 = sld [smem:[%s32]]
  %s34 = scalar_lea.smem %s0, 17
  %s35 = sld [smem:[%s34]]
  %s36 = scalar_lea.smem %s0, 18
  %s37 = sld [smem:[%s36]]
  %s38 = scalar_lea.smem %s0, 19
  %s39 = sld [smem:[%s38]]
  %s40 = scalar_lea.smem %s0, 20
  %s41 = sld [smem:[%s40]]
  %s42 = scalar_lea.smem %s0, 21
  %s43 = sld [smem:[%s42]]
  %s44 = scalar_lea.smem %s0, 22
  %s45 = sld [smem:[%s44]]
  %s46 = scalar_lea.smem %s0, 23
  %s47 = sld [smem:[%s46]]
  %s48 = scalar_lea.smem %s0, 24
  %s49 = sld [smem:[%s48]]
  %s50 = scalar_lea.smem %s0, 25
  %s51 = sld [smem:[%s50]]
  %s52 = scalar_lea.smem %s0, 26
  %s53 = sld [smem:[%s52]]
  %s54 = scalar_lea.smem %s0, 27
  %s55 = sld [smem:[%s54]]
  %s56 = scalar_lea.smem %s0, 28
  %s57 = sld [smem:[%s56]]
  %s58 = scalar_lea.smem %s0, 29
  %s59 = sld [smem:[%s58]]
  %s60 = sld [smem:[#allocation0]]
  $region169: #{forward.1} parent=0
    _
  %s62 = ssub.s32 1, %s60
  %s63 = scalar_select 0, %s62, %s60
  $region1: #{forward.1} parent=0
    #allocation5 [shape = 'u8[8192]{0}', space=vmem, size = 0x2000, scoped, tag = 'output window, operand 0, single buffered']
    #allocation6 [shape = 's32[2]{0}', space=sflag, size = 0x8, scoped, tag = 'scoped memory for forward.1']
    %64 = vsyncpa [#allocation6], 0
    loop: start=0, step=1, limit=6
    $region2: #{forward.1} parent=1 // loop_pre_header
      _
    $region3: #{forward.1} parent=1 // loop_header
      %s66 = sphi 0, %s70
      %p67 = scmp.ge.s32.totalorder %s66, 6
      %s74 = sphi 0, %s74
      %s76 = sphi 0, %s74
      %s77 = sphi 0, %s76
      %s91 = sphi 0, %s77
      %s95 = sphi 0, %s95
      %s97 = sphi 0, %s95
      %s98 = sphi 0, %s97
      %s112 = sphi 0, %s98
      %s116 = sphi 0, %s116
      %s118 = sphi 0, %s116
      %s119 = sphi 0, %s118
      %s133 = sphi 0, %s119
      %s137 = sphi 0, %s137
      %s139 = sphi 0, %s137
      %s140 = sphi 0, %s139
      %s154 = sphi 0, %s140
      %s158 = sphi 0, %s158
      %s160 = sphi 0, %s158
      %s161 = sphi 0, %s160
      %s175 = sphi 0, %s161
      %s179 = sphi 0, %s179
      %s181 = sphi 0, %s179
      %s182 = sphi 0, %s181
      %s196 = sphi 0, %s182
      %s206 = sphi 0, %s208
      %s209 = sphi 0, %s206
      %s210 = sphi 0, %s209
      %s226 = sphi 0, %s210
      %s236 = sphi 0, %s238
      %s239 = sphi 0, %s236
      %s240 = sphi 0, %s239
      %s256 = sphi 0, %s240
      %s266 = sphi 0, %s268
      %s269 = sphi 0, %s266
      %s270 = sphi 0, %s269
      %s286 = sphi 0, %s270
      %s296 = sphi 0, %s298
      %s299 = sphi 0, %s296
      %s300 = sphi 0, %s299
      %s316 = sphi 0, %s300
      %s326 = sphi 0, %s328
      %s329 = sphi 0, %s326
      %s330 = sphi 0, %s329
      %s346 = sphi 0, %s330
      %s356 = sphi 0, %s358
      %s359 = sphi 0, %s356
      %s360 = sphi 0, %s359
      %s376 = sphi 0, %s360
      %s388 = sphi 0, %s390
      %s391 = sphi 0, %s388
      %s392 = sphi 0, %s391
      %s408 = sphi 0, %s392
      %s420 = sphi 0, %s422
      %s423 = sphi 0, %s420
      %s424 = sphi 0, %s423
      %s440 = sphi 0, %s424
      %s452 = sphi 0, %s454
      %s455 = sphi 0, %s452
      %s456 = sphi 0, %s455
      %s472 = sphi 0, %s456
      %s484 = sphi 0, %s486
      %s487 = sphi 0, %s484
      %s488 = sphi 0, %s487
      %s504 = sphi 0, %s488
      %s516 = sphi 0, %s518
      %s519 = sphi 0, %s516
      %s520 = sphi 0, %s519
      %s536 = sphi 0, %s520
      %s548 = sphi 0, %s550
      %s551 = sphi 0, %s548
      %s552 = sphi 0, %s551
      %s568 = sphi 0, %s552
      %s580 = sphi 0, %s582
      %s583 = sphi 0, %s580
      %s584 = sphi 0, %s583
      %s600 = sphi 0, %s584
      %s612 = sphi 0, %s614
      %s615 = sphi 0, %s612
      %s616 = sphi 0, %s615
      %s632 = sphi 0, %s616
      %s644 = sphi 0, %s646
      %s647 = sphi 0, %s644
      %s648 = sphi 0, %s647
      %s664 = sphi 0, %s648
      %s668 = sphi 0, %s668
      %s670 = sphi 0, %s668
      %s671 = sphi 0, %s670
      %s685 = sphi 0, %s671
      %s689 = sphi 0, %s689
      %s691 = sphi 0, %s689
      %s692 = sphi 0, %s691
      %s706 = sphi 0, %s692
      %s710 = sphi 0, %s710
      %s712 = sphi 0, %s710
      %s713 = sphi 0, %s712
      %s727 = sphi 0, %s713
      %s731 = sphi 0, %s731
      %s733 = sphi 0, %s731
      %s734 = sphi 0, %s733
      %s748 = sphi 0, %s734
      %s752 = sphi 0, %s752
      %s754 = sphi 0, %s752
      %s755 = sphi 0, %s754
      %s769 = sphi 0, %s755
      %s773 = sphi 0, %s773
      %s775 = sphi 0, %s773
      %s776 = sphi 0, %s775
      %s790 = sphi 0, %s776
      %s794 = sphi 0, %s794
      %s796 = sphi 0, %s794
      %s797 = sphi 0, %s796
      %s811 = sphi 0, %s797
      %s815 = sphi 0, %s815
      %s817 = sphi 0, %s815
      %s818 = sphi 0, %s817
      %s832 = sphi 0, %s818
      %s836 = sphi 0, %s836
      %s838 = sphi 0, %s836
      %s839 = sphi 0, %s838
      %s853 = sphi 0, %s839
    $region4: #{forward.1} parent=1 // loop_header_branch
      %69 = sbr.rel (%p67) target = $region8
    $region5: #{forward.1} parent=1 // loop_body
      %s71 = ssub.s32 %s66, 1
      %s72 = ssub.s32 %s66, 2
      %s73 = sadd.s32 %s66, 1
      %s75 = sadd.s32 %s74, 1
      %p78 = scmp.eq.s32.totalorder %s66, 3
      %p79 = scmp.ne.s32.totalorder %s74, %s76
      %p80 = scmp.eq.s32.totalorder %s66, 0
      %p81 = por %p79, %p80
      %p82 = scmp.ne.s32.totalorder %s74, %s76
      %p83 = scmp.eq.s32.totalorder %s71, 3
      %p84 = por %p82, %p83
      %p85 = scmp.ne.s32.totalorder %s76, %s77
      %p86 = scmp.eq.s32.totalorder %s71, 0
      %p87 = por %p85, %p86
      %p88 = scmp.ne.s32.totalorder %s76, %s77
      %p89 = scmp.eq.s32.totalorder %s72, 3
      %p90 = por %p88, %p89
      %p92 = scmp.ne.s32.totalorder %s77, %s91
      %p93 = scmp.eq.s32.totalorder %s72, 0
      %p94 = por %p92, %p93
      %s96 = sadd.s32 %s95, 1
      %p99 = scmp.eq.s32.totalorder %s66, 3
      %p100 = scmp.ne.s32.totalorder %s95, %s97
      %p101 = scmp.eq.s32.totalorder %s66, 0
      %p102 = por %p100, %p101
      %p103 = scmp.ne.s32.totalorder %s95, %s97
      %p104 = scmp.eq.s32.totalorder %s71, 3
      %p105 = por %p103, %p104
      %p106 = scmp.ne.s32.totalorder %s97, %s98
      %p107 = scmp.eq.s32.totalorder %s71, 0
      %p108 = por %p106, %p107
      %p109 = scmp.ne.s32.totalorder %s97, %s98
      %p110 = scmp.eq.s32.totalorder %s72, 3
      %p111 = por %p109, %p110
      %p113 = scmp.ne.s32.totalorder %s98, %s112
      %p114 = scmp.eq.s32.totalorder %s72, 0
      %p115 = por %p113, %p114
      %s117 = sadd.s32 %s116, 1
      %p120 = scmp.eq.s32.totalorder %s66, 3
      %p121 = scmp.ne.s32.totalorder %s116, %s118
      %p122 = scmp.eq.s32.totalorder %s66, 0
      %p123 = por %p121, %p122
      %p124 = scmp.ne.s32.totalorder %s116, %s118
      %p125 = scmp.eq.s32.totalorder %s71, 3
      %p126 = por %p124, %p125
      %p127 = scmp.ne.s32.totalorder %s118, %s119
      %p128 = scmp.eq.s32.totalorder %s71, 0
      %p129 = por %p127, %p128
      %p130 = scmp.ne.s32.totalorder %s118, %s119
      %p131 = scmp.eq.s32.totalorder %s72, 3
      %p132 = por %p130, %p131
      %p134 = scmp.ne.s32.totalorder %s119, %s133
      %p135 = scmp.eq.s32.totalorder %s72, 0
      %p136 = por %p134, %p135
      %s138 = sadd.s32 %s137, 1
      %p141 = scmp.eq.s32.totalorder %s66, 3
      %p142 = scmp.ne.s32.totalorder %s137, %s139
      %p143 = scmp.eq.s32.totalorder %s66, 0
      %p144 = por %p142, %p143
      %p145 = scmp.ne.s32.totalorder %s137, %s139
      %p146 = scmp.eq.s32.totalorder %s71, 3
      %p147 = por %p145, %p146
      %p148 = scmp.ne.s32.totalorder %s139, %s140
      %p149 = scmp.eq.s32.totalorder %s71, 0
      %p150 = por %p148, %p149
      %p151 = scmp.ne.s32.totalorder %s139, %s140
      %p152 = scmp.eq.s32.totalorder %s72, 3
      %p153 = por %p151, %p152
      %p155 = scmp.ne.s32.totalorder %s140, %s154
      %p156 = scmp.eq.s32.totalorder %s72, 0
      %p157 = por %p155, %p156
      %s159 = sadd.s32 %s158, 1
      %p162 = scmp.eq.s32.totalorder %s66, 3
      %p163 = scmp.ne.s32.totalorder %s158, %s160
      %p164 = scmp.eq.s32.totalorder %s66, 0
      %p165 = por %p163, %p164
      %p166 = scmp.ne.s32.totalorder %s158, %s160
      %p167 = scmp.eq.s32.totalorder %s71, 3
      %p168 = por %p166, %p167
      %p169 = scmp.ne.s32.totalorder %s160, %s161
      %p170 = scmp.eq.s32.totalorder %s71, 0
      %p171 = por %p169, %p170
      %p172 = scmp.ne.s32.totalorder %s160, %s161
      %p173 = scmp.eq.s32.totalorder %s72, 3
      %p174 = por %p172, %p173
      %p176 = scmp.ne.s32.totalorder %s161, %s175
      %p177 = scmp.eq.s32.totalorder %s72, 0
      %p178 = por %p176, %p177
      %s180 = sadd.s32 %s179, 1
      %p183 = scmp.eq.s32.totalorder %s66, 3
      %p184 = scmp.ne.s32.totalorder %s179, %s181
      %p185 = scmp.eq.s32.totalorder %s66, 0
      %p186 = por %p184, %p185
      %p187 = scmp.ne.s32.totalorder %s179, %s181
      %p188 = scmp.eq.s32.totalorder %s71, 3
      %p189 = por %p187, %p188
      %p190 = scmp.ne.s32.totalorder %s181, %s182
      %p191 = scmp.eq.s32.totalorder %s71, 0
      %p192 = por %p190, %p191
      %p193 = scmp.ne.s32.totalorder %s181, %s182
      %p194 = scmp.eq.s32.totalorder %s72, 3
      %p195 = por %p193, %p194
      %p197 = scmp.ne.s32.totalorder %s182, %s196
      %p198 = scmp.eq.s32.totalorder %s72, 0
      %p199 = por %p197, %p198
      %p200 = scmp.lt.s32.totalorder %s66, 1
      %s201 = scalar_select %p200, %s66, 1
      %p202 = scmp.lt.s32.totalorder %s73, 1
      %s203 = scalar_select %p202, %s73, 1
      %s204 = ssub.s32 %s201, %s203
      %p205 = scmp.eq.s32.totalorder %s204, 0
      %s207 = sadd.s32 %s206, 1
      %s208 = scalar_select %p205, %s206, %s207
      %p211 = pneg %p205
      %p212 = scmp.eq.s32.totalorder %s66, 3
      %p213 = por %p211, %p212
      %p214 = scmp.ne.s32.totalorder %s206, %s209
      %p215 = scmp.eq.s32.totalorder %s66, 0
      %p216 = por %p214, %p215
      %p217 = scmp.ne.s32.totalorder %s206, %s209
      %p218 = scmp.eq.s32.totalorder %s71, 3
      %p219 = por %p217, %p218
      %p220 = scmp.ne.s32.totalorder %s209, %s210
      %p221 = scmp.eq.s32.totalorder %s71, 0
      %p222 = por %p220, %p221
      %p223 = scmp.ne.s32.totalorder %s209, %s210
      %p224 = scmp.eq.s32.totalorder %s72, 3
      %p225 = por %p223, %p224
      %p227 = scmp.ne.s32.totalorder %s210, %s226
      %p228 = scmp.eq.s32.totalorder %s72, 0
      %p229 = por %p227, %p228
      %p230 = scmp.lt.s32.totalorder %s66, 1
      %s231 = scalar_select %p230, %s66, 1
      %p232 = scmp.lt.s32.totalorder %s73, 1
      %s233 = scalar_select %p232, %s73, 1
      %s234 = ssub.s32 %s231, %s233
      %p235 = scmp.eq.s32.totalorder %s234, 0
      %s237 = sadd.s32 %s236, 1
      %s238 = scalar_select %p235, %s236, %s237
      %p241 = pneg %p235
      %p242 = scmp.eq.s32.totalorder %s66, 3
      %p243 = por %p241, %p242
      %p244 = scmp.ne.s32.totalorder %s236, %s239
      %p245 = scmp.eq.s32.totalorder %s66, 0
      %p246 = por %p244, %p245
      %p247 = scmp.ne.s32.totalorder %s236, %s239
      %p248 = scmp.eq.s32.totalorder %s71, 3
      %p249 = por %p247, %p248
      %p250 = scmp.ne.s32.totalorder %s239, %s240
      %p251 = scmp.eq.s32.totalorder %s71, 0
      %p252 = por %p250, %p251
      %p253 = scmp.ne.s32.totalorder %s239, %s240
      %p254 = scmp.eq.s32.totalorder %s72, 3
      %p255 = por %p253, %p254
      %p257 = scmp.ne.s32.totalorder %s240, %s256
      %p258 = scmp.eq.s32.totalorder %s72, 0
      %p259 = por %p257, %p258
      %p260 = scmp.lt.s32.totalorder %s66, 1
      %s261 = scalar_select %p260, %s66, 1
      %p262 = scmp.lt.s32.totalorder %s73, 1
      %s263 = scalar_select %p262, %s73, 1
      %s264 = ssub.s32 %s261, %s263
      %p265 = scmp.eq.s32.totalorder %s264, 0
      %s267 = sadd.s32 %s266, 1
      %s268 = scalar_select %p265, %s266, %s267
      %p271 = pneg %p265
      %p272 = scmp.eq.s32.totalorder %s66, 3
      %p273 = por %p271, %p272
      %p274 = scmp.ne.s32.totalorder %s266, %s269
      %p275 = scmp.eq.s32.totalorder %s66, 0
      %p276 = por %p274, %p275
      %p277 = scmp.ne.s32.totalorder %s266, %s269
      %p278 = scmp.eq.s32.totalorder %s71, 3
      %p279 = por %p277, %p278
      %p280 = scmp.ne.s32.totalorder %s269, %s270
      %p281 = scmp.eq.s32.totalorder %s71, 0
      %p282 = por %p280, %p281
      %p283 = scmp.ne.s32.totalorder %s269, %s270
      %p284 = scmp.eq.s32.totalorder %s72, 3
      %p285 = por %p283, %p284
      %p287 = scmp.ne.s32.totalorder %s270, %s286
      %p288 = scmp.eq.s32.totalorder %s72, 0
      %p289 = por %p287, %p288
      %p290 = scmp.lt.s32.totalorder %s66, 1
      %s291 = scalar_select %p290, %s66, 1
      %p292 = scmp.lt.s32.totalorder %s73, 1
      %s293 = scalar_select %p292, %s73, 1
      %s294 = ssub.s32 %s291, %s293
      %p295 = scmp.eq.s32.totalorder %s294, 0
      %s297 = sadd.s32 %s296, 1
      %s298 = scalar_select %p295, %s296, %s297
      %p301 = pneg %p295
      %p302 = scmp.eq.s32.totalorder %s66, 3
      %p303 = por %p301, %p302
      %p304 = scmp.ne.s32.totalorder %s296, %s299
      %p305 = scmp.eq.s32.totalorder %s66, 0
      %p306 = por %p304, %p305
      %p307 = scmp.ne.s32.totalorder %s296, %s299
      %p308 = scmp.eq.s32.totalorder %s71, 3
      %p309 = por %p307, %p308
      %p310 = scmp.ne.s32.totalorder %s299, %s300
      %p311 = scmp.eq.s32.totalorder %s71, 0
      %p312 = por %p310, %p311
      %p313 = scmp.ne.s32.totalorder %s299, %s300
      %p314 = scmp.eq.s32.totalorder %s72, 3
      %p315 = por %p313, %p314
      %p317 = scmp.ne.s32.totalorder %s300, %s316
      %p318 = scmp.eq.s32.totalorder %s72, 0
      %p319 = por %p317, %p318
      %p320 = scmp.lt.s32.totalorder %s66, 1
      %s321 = scalar_select %p320, %s66, 1
      %p322 = scmp.lt.s32.totalorder %s73, 1
      %s323 = scalar_select %p322, %s73, 1
      %s324 = ssub.s32 %s321, %s323
      %p325 = scmp.eq.s32.totalorder %s324, 0
      %s327 = sadd.s32 %s326, 1
      %s328 = scalar_select %p325, %s326, %s327
      %p331 = pneg %p325
      %p332 = scmp.eq.s32.totalorder %s66, 3
      %p333 = por %p331, %p332
      %p334 = scmp.ne.s32.totalorder %s326, %s329
      %p335 = scmp.eq.s32.totalorder %s66, 0
      %p336 = por %p334, %p335
      %p337 = scmp.ne.s32.totalorder %s326, %s329
      %p338 = scmp.eq.s32.totalorder %s71, 3
      %p339 = por %p337, %p338
      %p340 = scmp.ne.s32.totalorder %s329, %s330
      %p341 = scmp.eq.s32.totalorder %s71, 0
      %p342 = por %p340, %p341
      %p343 = scmp.ne.s32.totalorder %s329, %s330
      %p344 = scmp.eq.s32.totalorder %s72, 3
      %p345 = por %p343, %p344
      %p347 = scmp.ne.s32.totalorder %s330, %s346
      %p348 = scmp.eq.s32.totalorder %s72, 0
      %p349 = por %p347, %p348
      %p350 = scmp.lt.s32.totalorder %s66, 1
      %s351 = scalar_select %p350, %s66, 1
      %p352 = scmp.lt.s32.totalorder %s73, 1
      %s353 = scalar_select %p352, %s73, 1
      %s354 = ssub.s32 %s351, %s353
      %p355 = scmp.eq.s32.totalorder %s354, 0
      %s357 = sadd.s32 %s356, 1
      %s358 = scalar_select %p355, %s356, %s357
      %p361 = pneg %p355
      %p362 = scmp.eq.s32.totalorder %s66, 3
      %p363 = por %p361, %p362
      %p364 = scmp.ne.s32.totalorder %s356, %s359
      %p365 = scmp.eq.s32.totalorder %s66, 0
      %p366 = por %p364, %p365
      %p367 = scmp.ne.s32.totalorder %s356, %s359
      %p368 = scmp.eq.s32.totalorder %s71, 3
      %p369 = por %p367, %p368
      %p370 = scmp.ne.s32.totalorder %s359, %s360
      %p371 = scmp.eq.s32.totalorder %s71, 0
      %p372 = por %p370, %p371
      %p373 = scmp.ne.s32.totalorder %s359, %s360
      %p374 = scmp.eq.s32.totalorder %s72, 3
      %p375 = por %p373, %p374
      %p377 = scmp.ne.s32.totalorder %s360, %s376
      %p378 = scmp.eq.s32.totalorder %s72, 0
      %p379 = por %p377, %p378
      %s380 = ssub.s32 %s66, 2
      %p381 = scmp.gt.s32.totalorder %s380, 0
      %s382 = scalar_select %p381, %s380, 0
      %s383 = ssub.s32 %s73, 2
      %p384 = scmp.gt.s32.totalorder %s383, 0
      %s385 = scalar_select %p384, %s383, 0
      %s386 = ssub.s32 %s382, %s385
      %p387 = scmp.eq.s32.totalorder %s386, 0
      %s389 = sadd.s32 %s388, 1
      %s390 = scalar_select %p387, %s388, %s389
      %p393 = pneg %p387
      %p394 = scmp.eq.s32.totalorder %s66, 3
      %p395 = por %p393, %p394
      %p396 = scmp.ne.s32.totalorder %s388, %s391
      %p397 = scmp.eq.s32.totalorder %s66, 0
      %p398 = por %p396, %p397
      %p399 = scmp.ne.s32.totalorder %s388, %s391
      %p400 = scmp.eq.s32.totalorder %s71, 3
      %p401 = por %p399, %p400
      %p402 = scmp.ne.s32.totalorder %s391, %s392
      %p403 = scmp.eq.s32.totalorder %s71, 0
      %p404 = por %p402, %p403
      %p405 = scmp.ne.s32.totalorder %s391, %s392
      %p406 = scmp.eq.s32.totalorder %s72, 3
      %p407 = por %p405, %p406
      %p409 = scmp.ne.s32.totalorder %s392, %s408
      %p410 = scmp.eq.s32.totalorder %s72, 0
      %p411 = por %p409, %p410
      %s412 = ssub.s32 %s66, 2
      %p413 = scmp.gt.s32.totalorder %s412, 0
      %s414 = scalar_select %p413, %s412, 0
      %s415 = ssub.s32 %s73, 2
      %p416 = scmp.gt.s32.totalorder %s415, 0
      %s417 = scalar_select %p416, %s415, 0
      %s418 = ssub.s32 %s414, %s417
      %p419 = scmp.eq.s32.totalorder %s418, 0
      %s421 = sadd.s32 %s420, 1
      %s422 = scalar_select %p419, %s420, %s421
      %p425 = pneg %p419
      %p426 = scmp.eq.s32.totalorder %s66, 3
      %p427 = por %p425, %p426
      %p428 = scmp.ne.s32.totalorder %s420, %s423
      %p429 = scmp.eq.s32.totalorder %s66, 0
      %p430 = por %p428, %p429
      %p431 = scmp.ne.s32.totalorder %s420, %s423
      %p432 = scmp.eq.s32.totalorder %s71, 3
      %p433 = por %p431, %p432
      %p434 = scmp.ne.s32.totalorder %s423, %s424
      %p435 = scmp.eq.s32.totalorder %s71, 0
      %p436 = por %p434, %p435
      %p437 = scmp.ne.s32.totalorder %s423, %s424
      %p438 = scmp.eq.s32.totalorder %s72, 3
      %p439 = por %p437, %p438
      %p441 = scmp.ne.s32.totalorder %s424, %s440
      %p442 = scmp.eq.s32.totalorder %s72, 0
      %p443 = por %p441, %p442
      %s444 = ssub.s32 %s66, 2
      %p445 = scmp.gt.s32.totalorder %s444, 0
      %s446 = scalar_select %p445, %s444, 0
      %s447 = ssub.s32 %s73, 2
      %p448 = scmp.gt.s32.totalorder %s447, 0
      %s449 = scalar_select %p448, %s447, 0
      %s450 = ssub.s32 %s446, %s449
      %p451 = scmp.eq.s32.totalorder %s450, 0
      %s453 = sadd.s32 %s452, 1
      %s454 = scalar_select %p451, %s452, %s453
      %p457 = pneg %p451
      %p458 = scmp.eq.s32.totalorder %s66, 3
      %p459 = por %p457, %p458
      %p460 = scmp.ne.s32.totalorder %s452, %s455
      %p461 = scmp.eq.s32.totalorder %s66, 0
      %p462 = por %p460, %p461
      %p463 = scmp.ne.s32.totalorder %s452, %s455
      %p464 = scmp.eq.s32.totalorder %s71, 3
      %p465 = por %p463, %p464
      %p466 = scmp.ne.s32.totalorder %s455, %s456
      %p467 = scmp.eq.s32.totalorder %s71, 0
      %p468 = por %p466, %p467
      %p469 = scmp.ne.s32.totalorder %s455, %s456
      %p470 = scmp.eq.s32.totalorder %s72, 3
      %p471 = por %p469, %p470
      %p473 = scmp.ne.s32.totalorder %s456, %s472
      %p474 = scmp.eq.s32.totalorder %s72, 0
      %p475 = por %p473, %p474
      %s476 = ssub.s32 %s66, 2
      %p477 = scmp.gt.s32.totalorder %s476, 0
      %s478 = scalar_select %p477, %s476, 0
      %s479 = ssub.s32 %s73, 2
      %p480 = scmp.gt.s32.totalorder %s479, 0
      %s481 = scalar_select %p480, %s479, 0
      %s482 = ssub.s32 %s478, %s481
      %p483 = scmp.eq.s32.totalorder %s482, 0
      %s485 = sadd.s32 %s484, 1
      %s486 = scalar_select %p483, %s484, %s485
      %p489 = pneg %p483
      %p490 = scmp.eq.s32.totalorder %s66, 3
      %p491 = por %p489, %p490
      %p492 = scmp.ne.s32.totalorder %s484, %s487
      %p493 = scmp.eq.s32.totalorder %s66, 0
      %p494 = por %p492, %p493
      %p495 = scmp.ne.s32.totalorder %s484, %s487
      %p496 = scmp.eq.s32.totalorder %s71, 3
      %p497 = por %p495, %p496
      %p498 = scmp.ne.s32.totalorder %s487, %s488
      %p499 = scmp.eq.s32.totalorder %s71, 0
      %p500 = por %p498, %p499
      %p501 = scmp.ne.s32.totalorder %s487, %s488
      %p502 = scmp.eq.s32.totalorder %s72, 3
      %p503 = por %p501, %p502
      %p505 = scmp.ne.s32.totalorder %s488, %s504
      %p506 = scmp.eq.s32.totalorder %s72, 0
      %p507 = por %p505, %p506
      %s508 = ssub.s32 %s66, 2
      %p509 = scmp.gt.s32.totalorder %s508, 0
      %s510 = scalar_select %p509, %s508, 0
      %s511 = ssub.s32 %s73, 2
      %p512 = scmp.gt.s32.totalorder %s511, 0
      %s513 = scalar_select %p512, %s511, 0
      %s514 = ssub.s32 %s510, %s513
      %p515 = scmp.eq.s32.totalorder %s514, 0
      %s517 = sadd.s32 %s516, 1
      %s518 = scalar_select %p515, %s516, %s517
      %p521 = pneg %p515
      %p522 = scmp.eq.s32.totalorder %s66, 3
      %p523 = por %p521, %p522
      %p524 = scmp.ne.s32.totalorder %s516, %s519
      %p525 = scmp.eq.s32.totalorder %s66, 0
      %p526 = por %p524, %p525
      %p527 = scmp.ne.s32.totalorder %s516, %s519
      %p528 = scmp.eq.s32.totalorder %s71, 3
      %p529 = por %p527, %p528
      %p530 = scmp.ne.s32.totalorder %s519, %s520
      %p531 = scmp.eq.s32.totalorder %s71, 0
      %p532 = por %p530, %p531
      %p533 = scmp.ne.s32.totalorder %s519, %s520
      %p534 = scmp.eq.s32.totalorder %s72, 3
      %p535 = por %p533, %p534
      %p537 = scmp.ne.s32.totalorder %s520, %s536
      %p538 = scmp.eq.s32.totalorder %s72, 0
      %p539 = por %p537, %p538
      %s540 = ssub.s32 %s66, 2
      %p541 = scmp.gt.s32.totalorder %s540, 0
      %s542 = scalar_select %p541, %s540, 0
      %s543 = ssub.s32 %s73, 2
      %p544 = scmp.gt.s32.totalorder %s543, 0
      %s545 = scalar_select %p544, %s543, 0
      %s546 = ssub.s32 %s542, %s545
      %p547 = scmp.eq.s32.totalorder %s546, 0
      %s549 = sadd.s32 %s548, 1
      %s550 = scalar_select %p547, %s548, %s549
      %p553 = pneg %p547
      %p554 = scmp.eq.s32.totalorder %s66, 3
      %p555 = por %p553, %p554
      %p556 = scmp.ne.s32.totalorder %s548, %s551
      %p557 = scmp.eq.s32.totalorder %s66, 0
      %p558 = por %p556, %p557
      %p559 = scmp.ne.s32.totalorder %s548, %s551
      %p560 = scmp.eq.s32.totalorder %s71, 3
      %p561 = por %p559, %p560
      %p562 = scmp.ne.s32.totalorder %s551, %s552
      %p563 = scmp.eq.s32.totalorder %s71, 0
      %p564 = por %p562, %p563
      %p565 = scmp.ne.s32.totalorder %s551, %s552
      %p566 = scmp.eq.s32.totalorder %s72, 3
      %p567 = por %p565, %p566
      %p569 = scmp.ne.s32.totalorder %s552, %s568
      %p570 = scmp.eq.s32.totalorder %s72, 0
      %p571 = por %p569, %p570
      %s572 = ssub.s32 %s66, 2
      %p573 = scmp.gt.s32.totalorder %s572, 0
      %s574 = scalar_select %p573, %s572, 0
      %s575 = ssub.s32 %s73, 2
      %p576 = scmp.gt.s32.totalorder %s575, 0
      %s577 = scalar_select %p576, %s575, 0
      %s578 = ssub.s32 %s574, %s577
      %p579 = scmp.eq.s32.totalorder %s578, 0
      %s581 = sadd.s32 %s580, 1
      %s582 = scalar_select %p579, %s580, %s581
      %p585 = pneg %p579
      %p586 = scmp.eq.s32.totalorder %s66, 3
      %p587 = por %p585, %p586
      %p588 = scmp.ne.s32.totalorder %s580, %s583
      %p589 = scmp.eq.s32.totalorder %s66, 0
      %p590 = por %p588, %p589
      %p591 = scmp.ne.s32.totalorder %s580, %s583
      %p592 = scmp.eq.s32.totalorder %s71, 3
      %p593 = por %p591, %p592
      %p594 = scmp.ne.s32.totalorder %s583, %s584
      %p595 = scmp.eq.s32.totalorder %s71, 0
      %p596 = por %p594, %p595
      %p597 = scmp.ne.s32.totalorder %s583, %s584
      %p598 = scmp.eq.s32.totalorder %s72, 3
      %p599 = por %p597, %p598
      %p601 = scmp.ne.s32.totalorder %s584, %s600
      %p602 = scmp.eq.s32.totalorder %s72, 0
      %p603 = por %p601, %p602
      %s604 = ssub.s32 %s66, 2
      %p605 = scmp.gt.s32.totalorder %s604, 0
      %s606 = scalar_select %p605, %s604, 0
      %s607 = ssub.s32 %s73, 2
      %p608 = scmp.gt.s32.totalorder %s607, 0
      %s609 = scalar_select %p608, %s607, 0
      %s610 = ssub.s32 %s606, %s609
      %p611 = scmp.eq.s32.totalorder %s610, 0
      %s613 = sadd.s32 %s612, 1
      %s614 = scalar_select %p611, %s612, %s613
      %p617 = pneg %p611
      %p618 = scmp.eq.s32.totalorder %s66, 3
      %p619 = por %p617, %p618
      %p620 = scmp.ne.s32.totalorder %s612, %s615
      %p621 = scmp.eq.s32.totalorder %s66, 0
      %p622 = por %p620, %p621
      %p623 = scmp.ne.s32.totalorder %s612, %s615
      %p624 = scmp.eq.s32.totalorder %s71, 3
      %p625 = por %p623, %p624
      %p626 = scmp.ne.s32.totalorder %s615, %s616
      %p627 = scmp.eq.s32.totalorder %s71, 0
      %p628 = por %p626, %p627
      %p629 = scmp.ne.s32.totalorder %s615, %s616
      %p630 = scmp.eq.s32.totalorder %s72, 3
      %p631 = por %p629, %p630
      %p633 = scmp.ne.s32.totalorder %s616, %s632
      %p634 = scmp.eq.s32.totalorder %s72, 0
      %p635 = por %p633, %p634
      %s636 = ssub.s32 %s66, 2
      %p637 = scmp.gt.s32.totalorder %s636, 0
      %s638 = scalar_select %p637, %s636, 0
      %s639 = ssub.s32 %s73, 2
      %p640 = scmp.gt.s32.totalorder %s639, 0
      %s641 = scalar_select %p640, %s639, 0
      %s642 = ssub.s32 %s638, %s641
      %p643 = scmp.eq.s32.totalorder %s642, 0
      %s645 = sadd.s32 %s644, 1
      %s646 = scalar_select %p643, %s644, %s645
      %p649 = pneg %p643
      %p650 = scmp.eq.s32.totalorder %s66, 3
      %p651 = por %p649, %p650
      %p652 = scmp.ne.s32.totalorder %s644, %s647
      %p653 = scmp.eq.s32.totalorder %s66, 0
      %p654 = por %p652, %p653
      %p655 = scmp.ne.s32.totalorder %s644, %s647
      %p656 = scmp.eq.s32.totalorder %s71, 3
      %p657 = por %p655, %p656
      %p658 = scmp.ne.s32.totalorder %s647, %s648
      %p659 = scmp.eq.s32.totalorder %s71, 0
      %p660 = por %p658, %p659
      %p661 = scmp.ne.s32.totalorder %s647, %s648
      %p662 = scmp.eq.s32.totalorder %s72, 3
      %p663 = por %p661, %p662
      %p665 = scmp.ne.s32.totalorder %s648, %s664
      %p666 = scmp.eq.s32.totalorder %s72, 0
      %p667 = por %p665, %p666
      %s669 = sadd.s32 %s668, 1
      %p672 = scmp.eq.s32.totalorder %s66, 3
      %p673 = scmp.ne.s32.totalorder %s668, %s670
      %p674 = scmp.eq.s32.totalorder %s66, 0
      %p675 = por %p673, %p674
      %p676 = scmp.ne.s32.totalorder %s668, %s670
      %p677 = scmp.eq.s32.totalorder %s71, 3
      %p678 = por %p676, %p677
      %p679 = scmp.ne.s32.totalorder %s670, %s671
      %p680 = scmp.eq.s32.totalorder %s71, 0
      %p681 = por %p679, %p680
      %p682 = scmp.ne.s32.totalorder %s670, %s671
      %p683 = scmp.eq.s32.totalorder %s72, 3
      %p684 = por %p682, %p683
      %p686 = scmp.ne.s32.totalorder %s671, %s685
      %p687 = scmp.eq.s32.totalorder %s72, 0
      %p688 = por %p686, %p687
      %s690 = sadd.s32 %s689, 1
      %p693 = scmp.eq.s32.totalorder %s66, 3
      %p694 = scmp.ne.s32.totalorder %s689, %s691
      %p695 = scmp.eq.s32.totalorder %s66, 0
      %p696 = por %p694, %p695
      %p697 = scmp.ne.s32.totalorder %s689, %s691
      %p698 = scmp.eq.s32.totalorder %s71, 3
      %p699 = por %p697, %p698
      %p700 = scmp.ne.s32.totalorder %s691, %s692
      %p701 = scmp.eq.s32.totalorder %s71, 0
      %p702 = por %p700, %p701
      %p703 = scmp.ne.s32.totalorder %s691, %s692
      %p704 = scmp.eq.s32.totalorder %s72, 3
      %p705 = por %p703, %p704
      %p707 = scmp.ne.s32.totalorder %s692, %s706
      %p708 = scmp.eq.s32.totalorder %s72, 0
      %p709 = por %p707, %p708
      %s711 = sadd.s32 %s710, 1
      %p714 = scmp.eq.s32.totalorder %s66, 3
      %p715 = scmp.ne.s32.totalorder %s710, %s712
      %p716 = scmp.eq.s32.totalorder %s66, 0
      %p717 = por %p715, %p716
      %p718 = scmp.ne.s32.totalorder %s710, %s712
      %p719 = scmp.eq.s32.totalorder %s71, 3
      %p720 = por %p718, %p719
      %p721 = scmp.ne.s32.totalorder %s712, %s713
      %p722 = scmp.eq.s32.totalorder %s71, 0
      %p723 = por %p721, %p722
      %p724 = scmp.ne.s32.totalorder %s712, %s713
      %p725 = scmp.eq.s32.totalorder %s72, 3
      %p726 = por %p724, %p725
      %p728 = scmp.ne.s32.totalorder %s713, %s727
      %p729 = scmp.eq.s32.totalorder %s72, 0
      %p730 = por %p728, %p729
      %s732 = sadd.s32 %s731, 1
      %p735 = scmp.eq.s32.totalorder %s66, 3
      %p736 = scmp.ne.s32.totalorder %s731, %s733
      %p737 = scmp.eq.s32.totalorder %s66, 0
      %p738 = por %p736, %p737
      %p739 = scmp.ne.s32.totalorder %s731, %s733
      %p740 = scmp.eq.s32.totalorder %s71, 3
      %p741 = por %p739, %p740
      %p742 = scmp.ne.s32.totalorder %s733, %s734
      %p743 = scmp.eq.s32.totalorder %s71, 0
      %p744 = por %p742, %p743
      %p745 = scmp.ne.s32.totalorder %s733, %s734
      %p746 = scmp.eq.s32.totalorder %s72, 3
      %p747 = por %p745, %p746
      %p749 = scmp.ne.s32.totalorder %s734, %s748
      %p750 = scmp.eq.s32.totalorder %s72, 0
      %p751 = por %p749, %p750
      %s753 = sadd.s32 %s752, 1
      %p756 = scmp.eq.s32.totalorder %s66, 3
      %p757 = scmp.ne.s32.totalorder %s752, %s754
      %p758 = scmp.eq.s32.totalorder %s66, 0
      %p759 = por %p757, %p758
      %p760 = scmp.ne.s32.totalorder %s752, %s754
      %p761 = scmp.eq.s32.totalorder %s71, 3
      %p762 = por %p760, %p761
      %p763 = scmp.ne.s32.totalorder %s754, %s755
      %p764 = scmp.eq.s32.totalorder %s71, 0
      %p765 = por %p763, %p764
      %p766 = scmp.ne.s32.totalorder %s754, %s755
      %p767 = scmp.eq.s32.totalorder %s72, 3
      %p768 = por %p766, %p767
      %p770 = scmp.ne.s32.totalorder %s755, %s769
      %p771 = scmp.eq.s32.totalorder %s72, 0
      %p772 = por %p770, %p771
      %s774 = sadd.s32 %s773, 1
      %p777 = scmp.eq.s32.totalorder %s66, 3
      %p778 = scmp.ne.s32.totalorder %s773, %s775
      %p779 = scmp.eq.s32.totalorder %s66, 0
      %p780 = por %p778, %p779
      %p781 = scmp.ne.s32.totalorder %s773, %s775
      %p782 = scmp.eq.s32.totalorder %s71, 3
      %p783 = por %p781, %p782
      %p784 = scmp.ne.s32.totalorder %s775, %s776
      %p785 = scmp.eq.s32.totalorder %s71, 0
      %p786 = por %p784, %p785
      %p787 = scmp.ne.s32.totalorder %s775, %s776
      %p788 = scmp.eq.s32.totalorder %s72, 3
      %p789 = por %p787, %p788
      %p791 = scmp.ne.s32.totalorder %s776, %s790
      %p792 = scmp.eq.s32.totalorder %s72, 0
      %p793 = por %p791, %p792
      %s795 = sadd.s32 %s794, 1
      %p798 = scmp.eq.s32.totalorder %s66, 3
      %p799 = scmp.ne.s32.totalorder %s794, %s796
      %p800 = scmp.eq.s32.totalorder %s66, 0
      %p801 = por %p799, %p800
      %p802 = scmp.ne.s32.totalorder %s794, %s796
      %p803 = scmp.eq.s32.totalorder %s71, 3
      %p804 = por %p802, %p803
      %p805 = scmp.ne.s32.totalorder %s796, %s797
      %p806 = scmp.eq.s32.totalorder %s71, 0
      %p807 = por %p805, %p806
      %p808 = scmp.ne.s32.totalorder %s796, %s797
      %p809 = scmp.eq.s32.totalorder %s72, 3
      %p810 = por %p808, %p809
      %p812 = scmp.ne.s32.totalorder %s797, %s811
      %p813 = scmp.eq.s32.totalorder %s72, 0
      %p814 = por %p812, %p813
      %s816 = sadd.s32 %s815, 1
      %p819 = scmp.eq.s32.totalorder %s66, 3
      %p820 = scmp.ne.s32.totalorder %s815, %s817
      %p821 = scmp.eq.s32.totalorder %s66, 0
      %p822 = por %p820, %p821
      %p823 = scmp.ne.s32.totalorder %s815, %s817
      %p824 = scmp.eq.s32.totalorder %s71, 3
      %p825 = por %p823, %p824
      %p826 = scmp.ne.s32.totalorder %s817, %s818
      %p827 = scmp.eq.s32.totalorder %s71, 0
      %p828 = por %p826, %p827
      %p829 = scmp.ne.s32.totalorder %s817, %s818
      %p830 = scmp.eq.s32.totalorder %s72, 3
      %p831 = por %p829, %p830
      %p833 = scmp.ne.s32.totalorder %s818, %s832
      %p834 = scmp.eq.s32.totalorder %s72, 0
      %p835 = por %p833, %p834
      %s837 = sadd.s32 %s836, 1
      %p840 = scmp.eq.s32.totalorder %s66, 3
      %p841 = scmp.ne.s32.totalorder %s836, %s838
      %p842 = scmp.eq.s32.totalorder %s66, 0
      %p843 = por %p841, %p842
      %p844 = scmp.ne.s32.totalorder %s836, %s838
      %p845 = scmp.eq.s32.totalorder %s71, 3
      %p846 = por %p844, %p845
      %p847 = scmp.ne.s32.totalorder %s838, %s839
      %p848 = scmp.eq.s32.totalorder %s71, 0
      %p849 = por %p847, %p848
      %p850 = scmp.ne.s32.totalorder %s838, %s839
      %p851 = scmp.eq.s32.totalorder %s72, 3
      %p852 = por %p850, %p851
      %p854 = scmp.ne.s32.totalorder %s839, %s853
      %p855 = scmp.eq.s32.totalorder %s72, 0
      %p856 = por %p854, %p855
      %p857 = scmp.le.s32.totalorder 1, %s66
      %p858 = scmp.lt.s32.totalorder %s66, 5
      %p859 = pnand %p857, %p858
      %p860 = pneg %p859
      // Predicated region
      $region9: #{forward.1} parent=5 // pred_check
        _
      $region10: #{forward.1} parent=5 // pred_check_branch
        %862 = sbr.rel (%p859) target = $region12
      $region11: #{forward.1} parent=5 // pred_region
        %s863 = ssub.s32 %s66, 1
        // Predicated region
        $region13: #{forward.1} parent=11 // pred_check
          %p864 = pneg %p87
        $region14: #{forward.1} parent=11 // pred_check_branch
          %866 = sbr.rel (%p864) target = $region16
        $region15: #{forward.1} parent=11 // pred_region
          _
        $region16: #{forward.1} parent=11 // pred_fallthru
          _
        // Predicated region
        $region17: #{forward.1} parent=11 // pred_check
          %p867 = pneg %p108
        $region18: #{forward.1} parent=11 // pred_check_branch
          %869 = sbr.rel (%p867) target = $region20
        $region19: #{forward.1} parent=11 // pred_region
          _
        $region20: #{forward.1} parent=11 // pred_fallthru
          _
        // Predicated region
        $region21: #{forward.1} parent=11 // pred_check
          %p870 = pneg %p129
        $region22: #{forward.1} parent=11 // pred_check_branch
          %872 = sbr.rel (%p870) target = $region24
        $region23: #{forward.1} parent=11 // pred_region
          _
        $region24: #{forward.1} parent=11 // pred_fallthru
          _
        // Predicated region
        $region25: #{forward.1} parent=11 // pred_check
          %p873 = pneg %p150
        $region26: #{forward.1} parent=11 // pred_check_branch
          %875 = sbr.rel (%p873) target = $region28
        $region27: #{forward.1} parent=11 // pred_region
          _
        $region28: #{forward.1} parent=11 // pred_fallthru
          _
        // Predicated region
        $region29: #{forward.1} parent=11 // pred_check
          %p876 = pneg %p171
        $region30: #{forward.1} parent=11 // pred_check_branch
          %878 = sbr.rel (%p876) target = $region32
        $region31: #{forward.1} parent=11 // pred_region
          _
        $region32: #{forward.1} parent=11 // pred_fallthru
          _
        // Predicated region
        $region33: #{forward.1} parent=11 // pred_check
          %p879 = pneg %p192
        $region34: #{forward.1} parent=11 // pred_check_branch
          %881 = sbr.rel (%p879) target = $region36
        $region35: #{forward.1} parent=11 // pred_region
          _
        $region36: #{forward.1} parent=11 // pred_fallthru
          _
        // Predicated region
        $region37: #{forward.1} parent=11 // pred_check
          %p882 = pneg %p681
        $region38: #{forward.1} parent=11 // pred_check_branch
          %884 = sbr.rel (%p882) target = $region40
        $region39: #{forward.1} parent=11 // pred_region
          _
        $region40: #{forward.1} parent=11 // pred_fallthru
          _
        // Predicated region
        $region41: #{forward.1} parent=11 // pred_check
          %p885 = pneg %p702
        $region42: #{forward.1} parent=11 // pred_check_branch
          %887 = sbr.rel (%p885) target = $region44
        $region43: #{forward.1} parent=11 // pred_region
          _
        $region44: #{forward.1} parent=11 // pred_fallthru
          _
        // Predicated region
        $region45: #{forward.1} parent=11 // pred_check
          %p888 = pneg %p723
        $region46: #{forward.1} parent=11 // pred_check_branch
          %890 = sbr.rel (%p888) target = $region48
        $region47: #{forward.1} parent=11 // pred_region
          _
        $region48: #{forward.1} parent=11 // pred_fallthru
          _
        // Predicated region
        $region49: #{forward.1} parent=11 // pred_check
          %p891 = pneg %p744
        $region50: #{forward.1} parent=11 // pred_check_branch
          %893 = sbr.rel (%p891) target = $region52
        $region51: #{forward.1} parent=11 // pred_region
          _
        $region52: #{forward.1} parent=11 // pred_fallthru
          _
        // Predicated region
        $region53: #{forward.1} parent=11 // pred_check
          %p894 = pneg %p765
        $region54: #{forward.1} parent=11 // pred_check_branch
          %896 = sbr.rel (%p894) target = $region56
        $region55: #{forward.1} parent=11 // pred_region
          _
        $region56: #{forward.1} parent=11 // pred_fallthru
          _
        // Predicated region
        $region57: #{forward.1} parent=11 // pred_check
          %p897 = pneg %p786
        $region58: #{forward.1} parent=11 // pred_check_branch
          %899 = sbr.rel (%p897) target = $region60
        $region59: #{forward.1} parent=11 // pred_region
          _
        $region60: #{forward.1} parent=11 // pred_fallthru
          _
        // Predicated region
        $region61: #{forward.1} parent=11 // pred_check
          %p900 = pneg %p807
        $region62: #{forward.1} parent=11 // pred_check_branch
          %902 = sbr.rel (%p900) target = $region64
        $region63: #{forward.1} parent=11 // pred_region
          _
        $region64: #{forward.1} parent=11 // pred_fallthru
          _
        // Predicated region
        $region65: #{forward.1} parent=11 // pred_check
          %p903 = pneg %p828
        $region66: #{forward.1} parent=11 // pred_check_branch
          %905 = sbr.rel (%p903) target = $region68
        $region67: #{forward.1} parent=11 // pred_region
          _
        $region68: #{forward.1} parent=11 // pred_fallthru
          _
      $region12: #{forward.1} parent=5 // pred_fallthru
        _
      %p906 = scmp.lt.s32.totalorder %s66, 4
      // Predicated region
      $region69: #{forward.1} parent=5 // pred_check
        %p907 = pneg %p906
      $region70: #{forward.1} parent=5 // pred_check_branch
        %909 = sbr.rel (%p907) target = $region72
      $region71: #{forward.1} parent=5 // pred_region
        // Predicated region
        $region73: #{forward.1} parent=71 // pred_check
          %p910 = pneg %p216
        $region74: #{forward.1} parent=71 // pred_check_branch
          %912 = sbr.rel (%p910) target = $region76
        $region75: #{forward.1} parent=71 // pred_region
          %p913 = scmp.lt.s32.totalorder %s66, 1
          %s914 = scalar_select %p913, %s66, 1
          %p915 = scmp.lt.s32.totalorder %s914, 1
          %s916 = scalar_select %p915, %s914, 1
          %s917 = smul.addr %s916, 4
          %s918 = smul.addr %s917, 4
          %s919 = scalar_lea.vmem %s13, %s918
          %p920 = scmp.lt.s32.totalorder %s66, 1
          %s921 = scalar_select %p920, %s66, 1
        $region76: #{forward.1} parent=71 // pred_fallthru
          _
        // Predicated region
        $region77: #{forward.1} parent=71 // pred_check
          %p922 = pneg %p246
        $region78: #{forward.1} parent=71 // pred_check_branch
          %924 = sbr.rel (%p922) target = $region80
        $region79: #{forward.1} parent=71 // pred_region
          %p925 = scmp.lt.s32.totalorder %s66, 1
          %s926 = scalar_select %p925, %s66, 1
          %p927 = scmp.lt.s32.totalorder %s926, 1
          %s928 = scalar_select %p927, %s926, 1
          %s929 = smul.addr %s928, 4
          %s930 = smul.addr %s929, 4
          %s931 = scalar_lea.vmem %s15, %s930
          %p932 = scmp.lt.s32.totalorder %s66, 1
          %s933 = scalar_select %p932, %s66, 1
        $region80: #{forward.1} parent=71 // pred_fallthru
          _
        // Predicated region
        $region81: #{forward.1} parent=71 // pred_check
          %p934 = pneg %p276
        $region82: #{forward.1} parent=71 // pred_check_branch
          %936 = sbr.rel (%p934) target = $region84
        $region83: #{forward.1} parent=71 // pred_region
          %p937 = scmp.lt.s32.totalorder %s66, 1
          %s938 = scalar_select %p937, %s66, 1
          %p939 = scmp.lt.s32.totalorder %s938, 1
          %s940 = scalar_select %p939, %s938, 1
          %s941 = smul.addr %s940, 64
          %s942 = smul.addr %s941, 4
          %s943 = scalar_lea.vmem %s17, %s942
          %p944 = scmp.lt.s32.totalorder %s66, 1
          %s945 = scalar_select %p944, %s66, 1
        $region84: #{forward.1} parent=71 // pred_fallthru
          _
        // Predicated region
        $region85: #{forward.1} parent=71 // pred_check
          %p946 = pneg %p306
        $region86: #{forward.1} parent=71 // pred_check_branch
          %948 = sbr.rel (%p946) target = $region88
        $region87: #{forward.1} parent=71 // pred_region
          %p949 = scmp.lt.s32.totalorder %s66, 1
          %s950 = scalar_select %p949, %s66, 1
          %p951 = scmp.lt.s32.totalorder %s950, 1
          %s952 = scalar_select %p951, %s950, 1
          %s953 = smul.addr %s952, 16
          %s954 = scalar_lea.vmem %s19, %s953
          %p955 = scmp.lt.s32.totalorder %s66, 1
          %s956 = scalar_select %p955, %s66, 1
        $region88: #{forward.1} parent=71 // pred_fallthru
          _
        // Predicated region
        $region89: #{forward.1} parent=71 // pred_check
          %p957 = pneg %p336
        $region90: #{forward.1} parent=71 // pred_check_branch
          %959 = sbr.rel (%p957) target = $region92
        $region91: #{forward.1} parent=71 // pred_region
          %p960 = scmp.lt.s32.totalorder %s66, 1
          %s961 = scalar_select %p960, %s66, 1
          %p962 = scmp.lt.s32.totalorder %s961, 1
          %s963 = scalar_select %p962, %s961, 1
          %s964 = smul.addr %s963, 256
          %s965 = smul.addr %s964, 4
          %s966 = scalar_lea.vmem %s21, %s965
          %p967 = scmp.lt.s32.totalorder %s66, 1
          %s968 = scalar_select %p967, %s66, 1
        $region92: #{forward.1} parent=71 // pred_fallthru
          _
        // Predicated region
        $region93: #{forward.1} parent=71 // pred_check
          %p969 = pneg %p366
        $region94: #{forward.1} parent=71 // pred_check_branch
          %971 = sbr.rel (%p969) target = $region96
        $region95: #{forward.1} parent=71 // pred_region
          %p972 = scmp.lt.s32.totalorder %s66, 1
          %s973 = scalar_select %p972, %s66, 1
          %p974 = scmp.lt.s32.totalorder %s973, 1
          %s975 = scalar_select %p974, %s973, 1
          %s976 = smul.addr %s975, 8
          %s977 = scalar_lea.vmem %s23, %s976
          %p978 = scmp.lt.s32.totalorder %s66, 1
          %s979 = scalar_select %p978, %s66, 1
        $region96: #{forward.1} parent=71 // pred_fallthru
          _
        // Predicated region
        $region97: #{forward.1} parent=71 // pred_check
          %p980 = pneg %p398
        $region98: #{forward.1} parent=71 // pred_check_branch
          %982 = sbr.rel (%p980) target = $region100
        $region99: #{forward.1} parent=71 // pred_region
          %s983 = ssub.s32 %s66, 2
          %p984 = scmp.gt.s32.totalorder %s983, 0
          %s985 = scalar_select %p984, %s983, 0
          %p986 = scmp.lt.s32.totalorder %s985, 1
          %s987 = scalar_select %p986, %s985, 1
          %s988 = smul.addr %s987, 4
          %s989 = smul.addr %s988, 4
          %s990 = scalar_lea.vmem %s25, %s989
          %s991 = ssub.s32 %s66, 2
          %p992 = scmp.gt.s32.totalorder %s991, 0
          %s993 = scalar_select %p992, %s991, 0
        $region100: #{forward.1} parent=71 // pred_fallthru
          _
        // Predicated region
        $region101: #{forward.1} parent=71 // pred_check
          %p994 = pneg %p430
        $region102: #{forward.1} parent=71 // pred_check_branch
          %996 = sbr.rel (%p994) target = $region104
        $region103: #{forward.1} parent=71 // pred_region
          %s997 = ssub.s32 %s66, 2
          %p998 = scmp.gt.s32.totalorder %s997, 0
          %s999 = scalar_select %p998, %s997, 0
          %p1000 = scmp.lt.s32.totalorder %s999, 1
          %s1001 = scalar_select %p1000, %s999, 1
          %s1002 = smul.addr %s1001, 4
          %s1003 = smul.addr %s1002, 4
          %s1004 = scalar_lea.vmem %s27, %s1003
          %s1005 = ssub.s32 %s66, 2
          %p1006 = scmp.gt.s32.totalorder %s1005, 0
          %s1007 = scalar_select %p1006, %s1005, 0
        $region104: #{forward.1} parent=71 // pred_fallthru
          _
        // Predicated region
        $region105: #{forward.1} parent=71 // pred_check
          %p1008 = pneg %p462
        $region106: #{forward.1} parent=71 // pred_check_branch
          %1010 = sbr.rel (%p1008) target = $region108
        $region107: #{forward.1} parent=71 // pred_region
          %s1011 = ssub.s32 %s66, 2
          %p1012 = scmp.gt.s32.totalorder %s1011, 0
          %s1013 = scalar_select %p1012, %s1011, 0
          %p1014 = scmp.lt.s32.totalorder %s1013, 1
          %s1015 = scalar_select %p1014, %s1013, 1
          %s1016 = smul.addr %s1015, 4
          %s1017 = smul.addr %s1016, 4
          %s1018 = scalar_lea.vmem %s29, %s1017
          %s1019 = ssub.s32 %s66, 2
          %p1020 = scmp.gt.s32.totalorder %s1019, 0
          %s1021 = scalar_select %p1020, %s1019, 0
        $region108: #{forward.1} parent=71 // pred_fallthru
          _
        // Predicated region
        $region109: #{forward.1} parent=71 // pred_check
          %p1022 = pneg %p494
        $region110: #{forward.1} parent=71 // pred_check_branch
          %1024 = sbr.rel (%p1022) target = $region112
        $region111: #{forward.1} parent=71 // pred_region
          %s1025 = ssub.s32 %s66, 2
          %p1026 = scmp.gt.s32.totalorder %s1025, 0
          %s1027 = scalar_select %p1026, %s1025, 0
          %p1028 = scmp.lt.s32.totalorder %s1027, 1
          %s1029 = scalar_select %p1028, %s1027, 1
          %s1030 = smul.addr %s1029, 4
          %s1031 = smul.addr %s1030, 4
          %s1032 = scalar_lea.vmem %s31, %s1031
          %s1033 = ssub.s32 %s66, 2
          %p1034 = scmp.gt.s32.totalorder %s1033, 0
          %s1035 = scalar_select %p1034, %s1033, 0
        $region112: #{forward.1} parent=71 // pred_fallthru
          _
        // Predicated region
        $region113: #{forward.1} parent=71 // pred_check
          %p1036 = pneg %p526
        $region114: #{forward.1} parent=71 // pred_check_branch
          %1038 = sbr.rel (%p1036) target = $region116
        $region115: #{forward.1} parent=71 // pred_region
          %s1039 = ssub.s32 %s66, 2
          %p1040 = scmp.gt.s32.totalorder %s1039, 0
          %s1041 = scalar_select %p1040, %s1039, 0
          %p1042 = scmp.lt.s32.totalorder %s1041, 1
          %s1043 = scalar_select %p1042, %s1041, 1
          %s1044 = smul.addr %s1043, 4
          %s1045 = smul.addr %s1044, 4
          %s1046 = scalar_lea.vmem %s33, %s1045
          %s1047 = ssub.s32 %s66, 2
          %p1048 = scmp.gt.s32.totalorder %s1047, 0
          %s1049 = scalar_select %p1048, %s1047, 0
        $region116: #{forward.1} parent=71 // pred_fallthru
          _
        // Predicated region
        $region117: #{forward.1} parent=71 // pred_check
          %p1050 = pneg %p558
        $region118: #{forward.1} parent=71 // pred_check_branch
          %1052 = sbr.rel (%p1050) target = $region120
        $region119: #{forward.1} parent=71 // pred_region
          %s1053 = ssub.s32 %s66, 2
          %p1054 = scmp.gt.s32.totalorder %s1053, 0
          %s1055 = scalar_select %p1054, %s1053, 0
          %p1056 = scmp.lt.s32.totalorder %s1055, 1
          %s1057 = scalar_select %p1056, %s1055, 1
          %s1058 = smul.addr %s1057, 64
          %s1059 = smul.addr %s1058, 4
          %s1060 = scalar_lea.vmem %s35, %s1059
          %s1061 = ssub.s32 %s66, 2
          %p1062 = scmp.gt.s32.totalorder %s1061, 0
          %s1063 = scalar_select %p1062, %s1061, 0
        $region120: #{forward.1} parent=71 // pred_fallthru
          _
        // Predicated region
        $region121: #{forward.1} parent=71 // pred_check
          %p1064 = pneg %p590
        $region122: #{forward.1} parent=71 // pred_check_branch
          %1066 = sbr.rel (%p1064) target = $region124
        $region123: #{forward.1} parent=71 // pred_region
          %s1067 = ssub.s32 %s66, 2
          %p1068 = scmp.gt.s32.totalorder %s1067, 0
          %s1069 = scalar_select %p1068, %s1067, 0
          %p1070 = scmp.lt.s32.totalorder %s1069, 1
          %s1071 = scalar_select %p1070, %s1069, 1
          %s1072 = smul.addr %s1071, 16
          %s1073 = scalar_lea.vmem %s37, %s1072
          %s1074 = ssub.s32 %s66, 2
          %p1075 = scmp.gt.s32.totalorder %s1074, 0
          %s1076 = scalar_select %p1075, %s1074, 0
        $region124: #{forward.1} parent=71 // pred_fallthru
          _
        // Predicated region
        $region125: #{forward.1} parent=71 // pred_check
          %p1077 = pneg %p622
        $region126: #{forward.1} parent=71 // pred_check_branch
          %1079 = sbr.rel (%p1077) target = $region128
        $region127: #{forward.1} parent=71 // pred_region
          %s1080 = ssub.s32 %s66, 2
          %p1081 = scmp.gt.s32.totalorder %s1080, 0
          %s1082 = scalar_select %p1081, %s1080, 0
          %p1083 = scmp.lt.s32.totalorder %s1082, 1
          %s1084 = scalar_select %p1083, %s1082, 1
          %s1085 = smul.addr %s1084, 256
          %s1086 = smul.addr %s1085, 4
          %s1087 = scalar_lea.vmem %s39, %s1086
          %s1088 = ssub.s32 %s66, 2
          %p1089 = scmp.gt.s32.totalorder %s1088, 0
          %s1090 = scalar_select %p1089, %s1088, 0
        $region128: #{forward.1} parent=71 // pred_fallthru
          _
        // Predicated region
        $region129: #{forward.1} parent=71 // pred_check
          %p1091 = pneg %p654
        $region130: #{forward.1} parent=71 // pred_check_branch
          %1093 = sbr.rel (%p1091) target = $region132
        $region131: #{forward.1} parent=71 // pred_region
          %s1094 = ssub.s32 %s66, 2
          %p1095 = scmp.gt.s32.totalorder %s1094, 0
          %s1096 = scalar_select %p1095, %s1094, 0
          %p1097 = scmp.lt.s32.totalorder %s1096, 1
          %s1098 = scalar_select %p1097, %s1096, 1
          %s1099 = smul.addr %s1098, 2
          %s1100 = smul.addr %s1099, 8
          %s1101 = scalar_lea.vmem %s41, %s1100
          %s1102 = ssub.s32 %s66, 2
          %p1103 = scmp.gt.s32.totalorder %s1102, 0
          %s1104 = scalar_select %p1103, %s1102, 0
        $region132: #{forward.1} parent=71 // pred_fallthru
          _
      $region72: #{forward.1} parent=5 // pred_fallthru
        _
      %p1105 = scmp.le.s32.totalorder 1, %s66
      %p1106 = scmp.lt.s32.totalorder %s66, 5
      %p1107 = pnand %p1105, %p1106
      %p1108 = pneg %p1107
      // Predicated region
      $region133: #{forward.1} parent=5 // pred_check
        _
      $region134: #{forward.1} parent=5 // pred_check_branch
        %1110 = sbr.rel (%p1107) target = $region136
      $region135: #{forward.1} parent=5 // pred_region
        %s1111 = ssub.s32 %s66, 1
        %p1112 = pneg %p87
        %p1113 = pneg %p84
        %p1114 = pneg %p108
        %p1115 = pneg %p105
        %p1116 = pneg %p129
        %p1117 = pneg %p126
        %p1118 = pneg %p150
        %p1119 = pneg %p147
        %p1120 = pneg %p171
        %p1121 = pneg %p168
        %p1122 = pneg %p192
        %p1123 = pneg %p189
        %p1124 = scmp.lt.s32.totalorder %s71, 1
        %s1125 = scalar_select %p1124, %s71, 1
        %p1126 = scmp.lt.s32.totalorder %s1125, 1
        %s1127 = scalar_select %p1126, %s1125, 1
        %s1128 = smul.addr %s1127, 4
        %s1129 = smul.addr %s1128, 4
        %s1130 = scalar_lea.vmem %s13, %s1129
        %p1131 = pneg %p222
        %p1132 = pneg %p219
        %p1133 = scmp.lt.s32.totalorder %s71, 1
        %s1134 = scalar_select %p1133, %s71, 1
        %p1135 = scmp.lt.s32.totalorder %s1134, 1
        %s1136 = scalar_select %p1135, %s1134, 1
        %s1137 = smul.addr %s1136, 4
        %s1138 = smul.addr %s1137, 4
        %s1139 = scalar_lea.vmem %s15, %s1138
        %p1140 = pneg %p252
        %p1141 = pneg %p249
        %p1142 = scmp.lt.s32.totalorder %s71, 1
        %s1143 = scalar_select %p1142, %s71, 1
        %p1144 = scmp.lt.s32.totalorder %s1143, 1
        %s1145 = scalar_select %p1144, %s1143, 1
        %s1146 = smul.addr %s1145, 64
        %s1147 = smul.addr %s1146, 4
        %s1148 = scalar_lea.vmem %s17, %s1147
        %p1149 = pneg %p282
        %p1150 = pneg %p279
        %p1151 = scmp.lt.s32.totalorder %s71, 1
        %s1152 = scalar_select %p1151, %s71, 1
        %p1153 = scmp.lt.s32.totalorder %s1152, 1
        %s1154 = scalar_select %p1153, %s1152, 1
        %s1155 = smul.addr %s1154, 16
        %s1156 = scalar_lea.vmem %s19, %s1155
        %p1157 = pneg %p312
        %p1158 = pneg %p309
        %p1159 = scmp.lt.s32.totalorder %s71, 1
        %s1160 = scalar_select %p1159, %s71, 1
        %p1161 = scmp.lt.s32.totalorder %s1160, 1
        %s1162 = scalar_select %p1161, %s1160, 1
        %s1163 = smul.addr %s1162, 256
        %s1164 = smul.addr %s1163, 4
        %s1165 = scalar_lea.vmem %s21, %s1164
        %p1166 = pneg %p342
        %p1167 = pneg %p339
        %p1168 = scmp.lt.s32.totalorder %s71, 1
        %s1169 = scalar_select %p1168, %s71, 1
        %p1170 = scmp.lt.s32.totalorder %s1169, 1
        %s1171 = scalar_select %p1170, %s1169, 1
        %s1172 = smul.addr %s1171, 8
        %s1173 = scalar_lea.vmem %s23, %s1172
        %p1174 = pneg %p372
        %p1175 = pneg %p369
        %s1176 = ssub.s32 %s71, 2
        %p1177 = scmp.gt.s32.totalorder %s1176, 0
        %s1178 = scalar_select %p1177, %s1176, 0
        %p1179 = scmp.lt.s32.totalorder %s1178, 1
        %s1180 = scalar_select %p1179, %s1178, 1
        %s1181 = smul.addr %s1180, 4
        %s1182 = smul.addr %s1181, 4
        %s1183 = scalar_lea.vmem %s25, %s1182
        %p1184 = pneg %p404
        %p1185 = pneg %p401
        %s1186 = ssub.s32 %s71, 2
        %p1187 = scmp.gt.s32.totalorder %s1186, 0
        %s1188 = scalar_select %p1187, %s1186, 0
        %p1189 = scmp.lt.s32.totalorder %s1188, 1
        %s1190 = scalar_select %p1189, %s1188, 1
        %s1191 = smul.addr %s1190, 4
        %s1192 = smul.addr %s1191, 4
        %s1193 = scalar_lea.vmem %s27, %s1192
        %p1194 = pneg %p436
        %p1195 = pneg %p433
        %s1196 = ssub.s32 %s71, 2
        %p1197 = scmp.gt.s32.totalorder %s1196, 0
        %s1198 = scalar_select %p1197, %s1196, 0
        %p1199 = scmp.lt.s32.totalorder %s1198, 1
        %s1200 = scalar_select %p1199, %s1198, 1
        %s1201 = smul.addr %s1200, 4
        %s1202 = smul.addr %s1201, 4
        %s1203 = scalar_lea.vmem %s29, %s1202
        %p1204 = pneg %p468
        %p1205 = pneg %p465
        %s1206 = ssub.s32 %s71, 2
        %p1207 = scmp.gt.s32.totalorder %s1206, 0
        %s1208 = scalar_select %p1207, %s1206, 0
        %p1209 = scmp.lt.s32.totalorder %s1208, 1
        %s1210 = scalar_select %p1209, %s1208, 1
        %s1211 = smul.addr %s1210, 4
        %s1212 = smul.addr %s1211, 4
        %s1213 = scalar_lea.vmem %s31, %s1212
        %p1214 = pneg %p500
        %p1215 = pneg %p497
        %s1216 = ssub.s32 %s71, 2
        %p1217 = scmp.gt.s32.totalorder %s1216, 0
        %s1218 = scalar_select %p1217, %s1216, 0
        %p1219 = scmp.lt.s32.totalorder %s1218, 1
        %s1220 = scalar_select %p1219, %s1218, 1
        %s1221 = smul.addr %s1220, 4
        %s1222 = smul.addr %s1221, 4
        %s1223 = scalar_lea.vmem %s33, %s1222
        %p1224 = pneg %p532
        %p1225 = pneg %p529
        %s1226 = ssub.s32 %s71, 2
        %p1227 = scmp.gt.s32.totalorder %s1226, 0
        %s1228 = scalar_select %p1227, %s1226, 0
        %p1229 = scmp.lt.s32.totalorder %s1228, 1
        %s1230 = scalar_select %p1229, %s1228, 1
        %s1231 = smul.addr %s1230, 64
        %s1232 = smul.addr %s1231, 4
        %s1233 = scalar_lea.vmem %s35, %s1232
        %p1234 = pneg %p564
        %p1235 = pneg %p561
        %s1236 = ssub.s32 %s71, 2
        %p1237 = scmp.gt.s32.totalorder %s1236, 0
        %s1238 = scalar_select %p1237, %s1236, 0
        %p1239 = scmp.lt.s32.totalorder %s1238, 1
        %s1240 = scalar_select %p1239, %s1238, 1
        %s1241 = smul.addr %s1240, 16
        %s1242 = scalar_lea.vmem %s37, %s1241
        %p1243 = pneg %p596
        %p1244 = pneg %p593
        %s1245 = ssub.s32 %s71, 2
        %p1246 = scmp.gt.s32.totalorder %s1245, 0
        %s1247 = scalar_select %p1246, %s1245, 0
        %p1248 = scmp.lt.s32.totalorder %s1247, 1
        %s1249 = scalar_select %p1248, %s1247, 1
        %s1250 = smul.addr %s1249, 256
        %s1251 = smul.addr %s1250, 4
        %s1252 = scalar_lea.vmem %s39, %s1251
        %p1253 = pneg %p628
        %p1254 = pneg %p625
        %s1255 = ssub.s32 %s71, 2
        %p1256 = scmp.gt.s32.totalorder %s1255, 0
        %s1257 = scalar_select %p1256, %s1255, 0
        %p1258 = scmp.lt.s32.totalorder %s1257, 1
        %s1259 = scalar_select %p1258, %s1257, 1
        %s1260 = smul.addr %s1259, 2
        %s1261 = smul.addr %s1260, 8
        %s1262 = scalar_lea.vmem %s41, %s1261
        %p1263 = pneg %p660
        %p1264 = pneg %p657
        %p1265 = pneg %p681
        %p1266 = pneg %p678
        %p1267 = pneg %p702
        %p1268 = pneg %p699
        %p1269 = pneg %p723
        %p1270 = pneg %p720
        %p1271 = pneg %p744
        %p1272 = pneg %p741
        %p1273 = pneg %p765
        %p1274 = pneg %p762
        %p1275 = pneg %p786
        %p1276 = pneg %p783
        %p1277 = pneg %p807
        %p1278 = pneg %p804
        %p1279 = pneg %p828
        %p1280 = pneg %p825
        %p1281 = pneg %p849
        %p1282 = pneg %p846
        %p1283 = scmp.lt.s32.totalorder %s71, 1
        %s1284 = scalar_select %p1283, %s71, 1
        %p1285 = scmp.lt.s32.totalorder %s1284, 1
        %s1286 = scalar_select %p1285, %s1284, 1
        %s1287 = smul.addr %s1286, 4
        %s1288 = smul.addr %s1287, 4
        %s1289 = scalar_lea.vmem %s13, %s1288
        %p1290 = scmp.lt.s32.totalorder %s71, 1
        %s1291 = scalar_select %p1290, %s71, 1
        %p1292 = scmp.lt.s32.totalorder %s71, 1
        %s1293 = scalar_select %p1292, %s71, 1
        %p1294 = scmp.lt.s32.totalorder %s1293, 1
        %s1295 = scalar_select %p1294, %s1293, 1
        %s1296 = smul.addr %s1295, 4
        %s1297 = smul.addr %s1296, 4
        %s1298 = scalar_lea.vmem %s15, %s1297
        %p1299 = scmp.lt.s32.totalorder %s71, 1
        %s1300 = scalar_select %p1299, %s71, 1
        %p1301 = scmp.lt.s32.totalorder %s71, 1
        %s1302 = scalar_select %p1301, %s71, 1
        %p1303 = scmp.lt.s32.totalorder %s1302, 1
        %s1304 = scalar_select %p1303, %s1302, 1
        %s1305 = smul.addr %s1304, 64
        %s1306 = smul.addr %s1305, 4
        %s1307 = scalar_lea.vmem %s17, %s1306
        %p1308 = scmp.lt.s32.totalorder %s71, 1
        %s1309 = scalar_select %p1308, %s71, 1
        %p1310 = scmp.lt.s32.totalorder %s71, 1
        %s1311 = scalar_select %p1310, %s71, 1
        %p1312 = scmp.lt.s32.totalorder %s1311, 1
        %s1313 = scalar_select %p1312, %s1311, 1
        %s1314 = smul.addr %s1313, 16
        %s1315 = scalar_lea.vmem %s19, %s1314
        %p1316 = scmp.lt.s32.totalorder %s71, 1
        %s1317 = scalar_select %p1316, %s71, 1
        %p1318 = scmp.lt.s32.totalorder %s71, 1
        %s1319 = scalar_select %p1318, %s71, 1
        %p1320 = scmp.lt.s32.totalorder %s1319, 1
        %s1321 = scalar_select %p1320, %s1319, 1
        %s1322 = smul.addr %s1321, 256
        %s1323 = smul.addr %s1322, 4
        %s1324 = scalar_lea.vmem %s21, %s1323
        %p1325 = scmp.lt.s32.totalorder %s71, 1
        %s1326 = scalar_select %p1325, %s71, 1
        %p1327 = scmp.lt.s32.totalorder %s71, 1
        %s1328 = scalar_select %p1327, %s71, 1
        %p1329 = scmp.lt.s32.totalorder %s1328, 1
        %s1330 = scalar_select %p1329, %s1328, 1
        %s1331 = smul.addr %s1330, 8
        %s1332 = scalar_lea.vmem %s23, %s1331
        %p1333 = scmp.lt.s32.totalorder %s71, 1
        %s1334 = scalar_select %p1333, %s71, 1
        %s1335 = ssub.s32 %s71, 2
        %p1336 = scmp.gt.s32.totalorder %s1335, 0
        %s1337 = scalar_select %p1336, %s1335, 0
        %p1338 = scmp.lt.s32.totalorder %s1337, 1
        %s1339 = scalar_select %p1338, %s1337, 1
        %s1340 = smul.addr %s1339, 4
        %s1341 = smul.addr %s1340, 4
        %s1342 = scalar_lea.vmem %s25, %s1341
        %s1343 = ssub.s32 %s71, 2
        %p1344 = scmp.gt.s32.totalorder %s1343, 0
        %s1345 = scalar_select %p1344, %s1343, 0
        %s1346 = ssub.s32 %s71, 2
        %p1347 = scmp.gt.s32.totalorder %s1346, 0
        %s1348 = scalar_select %p1347, %s1346, 0
        %p1349 = scmp.lt.s32.totalorder %s1348, 1
        %s1350 = scalar_select %p1349, %s1348, 1
        %s1351 = smul.addr %s1350, 4
        %s1352 = smul.addr %s1351, 4
        %s1353 = scalar_lea.vmem %s27, %s1352
        %s1354 = ssub.s32 %s71, 2
        %p1355 = scmp.gt.s32.totalorder %s1354, 0
        %s1356 = scalar_select %p1355, %s1354, 0
        %s1357 = ssub.s32 %s71, 2
        %p1358 = scmp.gt.s32.totalorder %s1357, 0
        %s1359 = scalar_select %p1358, %s1357, 0
        %p1360 = scmp.lt.s32.totalorder %s1359, 1
        %s1361 = scalar_select %p1360, %s1359, 1
        %s1362 = smul.addr %s1361, 4
        %s1363 = smul.addr %s1362, 4
        %s1364 = scalar_lea.vmem %s29, %s1363
        %s1365 = ssub.s32 %s71, 2
        %p1366 = scmp.gt.s32.totalorder %s1365, 0
        %s1367 = scalar_select %p1366, %s1365, 0
        %s1368 = ssub.s32 %s71, 2
        %p1369 = scmp.gt.s32.totalorder %s1368, 0
        %s1370 = scalar_select %p1369, %s1368, 0
        %p1371 = scmp.lt.s32.totalorder %s1370, 1
        %s1372 = scalar_select %p1371, %s1370, 1
        %s1373 = smul.addr %s1372, 4
        %s1374 = smul.addr %s1373, 4
        %s1375 = scalar_lea.vmem %s31, %s1374
        %s1376 = ssub.s32 %s71, 2
        %p1377 = scmp.gt.s32.totalorder %s1376, 0
        %s1378 = scalar_select %p1377, %s1376, 0
        %s1379 = ssub.s32 %s71, 2
        %p1380 = scmp.gt.s32.totalorder %s1379, 0
        %s1381 = scalar_select %p1380, %s1379, 0
        %p1382 = scmp.lt.s32.totalorder %s1381, 1
        %s1383 = scalar_select %p1382, %s1381, 1
        %s1384 = smul.addr %s1383, 4
        %s1385 = smul.addr %s1384, 4
        %s1386 = scalar_lea.vmem %s33, %s1385
        %s1387 = ssub.s32 %s71, 2
        %p1388 = scmp.gt.s32.totalorder %s1387, 0
        %s1389 = scalar_select %p1388, %s1387, 0
        %s1390 = ssub.s32 %s71, 2
        %p1391 = scmp.gt.s32.totalorder %s1390, 0
        %s1392 = scalar_select %p1391, %s1390, 0
        %p1393 = scmp.lt.s32.totalorder %s1392, 1
        %s1394 = scalar_select %p1393, %s1392, 1
        %s1395 = smul.addr %s1394, 64
        %s1396 = smul.addr %s1395, 4
        %s1397 = scalar_lea.vmem %s35, %s1396
        %s1398 = ssub.s32 %s71, 2
        %p1399 = scmp.gt.s32.totalorder %s1398, 0
        %s1400 = scalar_select %p1399, %s1398, 0
        %s1401 = ssub.s32 %s71, 2
        %p1402 = scmp.gt.s32.totalorder %s1401, 0
        %s1403 = scalar_select %p1402, %s1401, 0
        %p1404 = scmp.lt.s32.totalorder %s1403, 1
        %s1405 = scalar_select %p1404, %s1403, 1
        %s1406 = smul.addr %s1405, 16
        %s1407 = scalar_lea.vmem %s37, %s1406
        %s1408 = ssub.s32 %s71, 2
        %p1409 = scmp.gt.s32.totalorder %s1408, 0
        %s1410 = scalar_select %p1409, %s1408, 0
        %s1411 = ssub.s32 %s71, 2
        %p1412 = scmp.gt.s32.totalorder %s1411, 0
        %s1413 = scalar_select %p1412, %s1411, 0
        %p1414 = scmp.lt.s32.totalorder %s1413, 1
        %s1415 = scalar_select %p1414, %s1413, 1
        %s1416 = smul.addr %s1415, 256
        %s1417 = smul.addr %s1416, 4
        %s1418 = scalar_lea.vmem %s39, %s1417
        %s1419 = ssub.s32 %s71, 2
        %p1420 = scmp.gt.s32.totalorder %s1419, 0
        %s1421 = scalar_select %p1420, %s1419, 0
        %s1422 = ssub.s32 %s71, 2
        %p1423 = scmp.gt.s32.totalorder %s1422, 0
        %s1424 = scalar_select %p1423, %s1422, 0
        %p1425 = scmp.lt.s32.totalorder %s1424, 1
        %s1426 = scalar_select %p1425, %s1424, 1
        %s1427 = smul.addr %s1426, 2
        %s1428 = smul.addr %s1427, 8
        %s1429 = scalar_lea.vmem %s41, %s1428
        %s1430 = ssub.s32 %s71, 2
        %p1431 = scmp.gt.s32.totalorder %s1430, 0
        %s1432 = scalar_select %p1431, %s1430, 0
        %p1434 = scmp.eq.s32.totalorder %s71, 0
        // Predicated region
        $region137: #{forward.1} parent=135 // pred_check
          %p1435 = pneg %p1434
        $region138: #{forward.1} parent=135 // pred_check_branch
          %1437 = sbr.rel (%p1435) target = $region140
        $region139: #{forward.1} parent=135 // pred_region
          %v1438 = vld [vmem:[%s1] sm:$0xff]
          %v1439 = vld [vmem:[%s1 + $0x8] sm:$0xff]
          %vm1440 = vcmask 261120
          %1441 = vst.msk [vmem:[#allocation2] sm:$0xff] %vm1440, %v1438
          %1442 = vst.msk [vmem:[#allocation2 + $0x8] sm:$0xff] %vm1440, %v1439
        $region140: #{forward.1} parent=135 // pred_fallthru
          _
        %p1443 = scmp.lt.s32.totalorder %s71, 2
        // Predicated region
        $region141: #{forward.1} parent=135 // pred_check
          %p1444 = pneg %p1443
        $region142: #{forward.1} parent=135 // pred_check_branch
          %1446 = sbr.rel (%p1444) target = $region144
        $region143: #{forward.1} parent=135 // pred_region
          %v1447 = vld [vmem:[#allocation2] sm:$0xff]
          %v1448 = vld [vmem:[#allocation2 + $0x8] sm:$0xff]
          %v1449 = vld [vmem:[%s5] sm:$0xff]
          %v1450 = vld [vmem:[%s5 + $0x8] sm:$0xff]
          %v1451 = vld [vmem:[%s1332] sm:$0xff]
          %vm1452 = vcmask 261120
          %v1453 = vsel %vm1452, %v1447, 0.0
          %1454 = vadd.xlane.f32.xlu0 %v1453
          %v1455 = vpop.xlane.xlu0 %1454
          %v1456 = vsel %vm1452, %v1448, 0.0
          %1457 = vadd.xlane.f32.xlu0 %v1456
          %v1458 = vpop.xlane.xlu0 %1457
          %v1459 = vrcp.pop 32.0
          %v1460 = vmul.f32 %v1455, %v1459
          %v1461 = vmul.f32 %v1458, %v1459
          %v1462 = vsub.f32 %v1447, %v1460
          %v1463 = vsub.f32 %v1448, %v1461
          %v1464 = vmul.f32 %v1462, %v1462
          %v1465 = vmul.f32 %v1463, %v1463
          %v1466 = vsel %vm1452, %v1464, 0.0
          %1467 = vadd.xlane.f32.xlu0 %v1466
          %v1468 = vpop.xlane.xlu0 %1467
          %v1469 = vsel %vm1452, %v1465, 0.0
          %1470 = vadd.xlane.f32.xlu0 %v1469
          %v1471 = vpop.xlane.xlu0 %1470
          %v1472 = vmul.f32 %v1468, 0.032258064
          %v1473 = vmul.f32 %v1471, 0.032258064
          %v1474 = vrsqrt.pop %v1472
          %v1475 = vmul.f32 %v1472, %v1474
          %vm1476 = vcmp.eq.f32.partialorder %v1472, inf
          %v1477 = vsel %vm1476, %v1472, %v1475
          %vm1478 = vcmp.eq.f32.partialorder %v1472, 0.0
          %v1479 = vand.u32 %v1472, 2147483648
          %v1480 = vsel %vm1478, %v1479, %v1477
          %v1481 = vrsqrt.pop %v1473
          %v1482 = vmul.f32 %v1473, %v1481
          %vm1483 = vcmp.eq.f32.partialorder %v1473, inf
          %v1484 = vsel %vm1483, %v1473, %v1482
          %vm1485 = vcmp.eq.f32.partialorder %v1473, 0.0
          %v1486 = vand.u32 %v1473, 2147483648
          %v1487 = vsel %vm1485, %v1486, %v1484
          %v1488 = vadd.f32 %v1480, 1e-06
          %v1489 = vadd.f32 %v1487, 1e-06
          %v1490 = vrcp.pop %v1488
          %v1491 = vrcp.pop %v1489
          %v1492 = vmul.f32 %v1462, %v1490
          %v1493 = vmul.f32 %v1463, %v1491
          %v1494 = vlaneseq
          %v1495 = vshrl.u32 %v1494, 7
          %v1496 = vsub.s32 0, %v1495
          %v1497 = vrot.slane %v1451, %v1496
          %v1498 = vmul.f32 %v1497, %v1492
          %v1499 = vmul.f32 %v1497, %v1493
          %v1500 = vlaneseq
          %v1501 = vshrl.u32 %v1500, 7
          %v1502 = vsub.s32 1, %v1501
          %v1503 = vrot.slane %v1451, %v1502
          %v1504 = vadd.f32 %v1498, %v1503
          %v1505 = vadd.f32 %v1499, %v1503
          %v1506 = vld [vmem:[%s1289] sm:$0xf]
          %v1507 = vld [vmem:[%s1289 + $0x4] sm:$0xf]
          %v1508 = vld [vmem:[%s1289 + $0x8] sm:$0xf]
          %v1509 = vld [vmem:[%s1289 + $0xc] sm:$0xf]
          %v1510 = vpack.c.bf16 %v1505, %v1504
          %v1511 = vlaneseq
          %v1512 = vshrl.u32 %v1511, 7
          %v1513 = vsub.s32 4, %v1512
          %v1514 = vrot.slane %v1451, %v1513
          %v1519 = vunpack.c.l.b16 %v1506
          %v1520 = vunpack.c.l.b16 %v1507
          %v1521 = vunpack.c.l.b16 %v1508
          %v1522 = vunpack.c.l.b16 %v1509
          %v1523 = vpack.c.b16 %v1520, %v1519
          %v1524 = vpack.c.b16 %v1522, %v1521
          %v1528 = vsel %vm1452, %v1510, 0
          %1530 = vmatprep.subr.bf16.mxu0 0
          %1531 = vmatpush1.bf16.msra.mxu0 %v1523
          %1532 = vmatprep.subr.bf16.mxu0 0
          %1533 = vmatpush1.bf16.msra.mxu0 %v1524
          %1534 = vmatprep.subr.bf16.mxu0 0
          %1535 = vmatpush1.bf16.msra.mxu0 0
          %1536 = vmatprep.subr.bf16.mxu0 0
          %1537 = vmatpush1.bf16.msra.mxu0 0
          %1538 = vmatprep.subr.bf16.mxu0 0
          %1539 = vmatpush1.bf16.msra.mxu0 0
          %1540 = vmatprep.subr.bf16.mxu0 0
          %1541 = vmatpush1.bf16.msra.mxu0 0
          %1542 = vmatprep.subr.bf16.mxu0 0
          %1543 = vmatpush1.bf16.msra.mxu0 0
          %1544 = vmatprep.subr.bf16.mxu0 0
          %1545 = vmatpush1.bf16.msra.mxu0 0
          %1546 = vmatprep.subr.bf16.mxu0 0
          %1547 = vmatpush1.bf16.msra.mxu0 0
          %1548 = vmatprep.subr.bf16.mxu0 0
          %1549 = vmatpush1.bf16.msra.mxu0 0
          %1550 = vmatprep.subr.bf16.mxu0 0
          %1551 = vmatpush1.bf16.msra.mxu0 0
          %1552 = vmatprep.subr.bf16.mxu0 0
          %1553 = vmatpush1.bf16.msra.mxu0 0
          %1554 = vmatprep.subr.bf16.mxu0 0
          %1555 = vmatpush1.bf16.msra.mxu0 0
          %1556 = vmatprep.subr.bf16.mxu0 0
          %1557 = vmatpush1.bf16.msra.mxu0 0
          %1558 = vmatprep.subr.bf16.mxu0 0
          %1559 = vmatpush1.bf16.msra.mxu0 0
          %1560 = vmatprep.subr.bf16.mxu0 0
          %1561 = vmatpush1.bf16.msra.mxu0 0
          %1562 = vmatprep.mubr.bf16.mxu0 0
          %1563 = vmatmul.mubr.bf16.gmra.mrb[0].mxu0 %v1528
          %v1564 = vpop.f32.mrb[0].mxu0
          %v1565 = vadd.f32 %v1514, %v1564
          %v1566 = vpop.f32.mrb[0].mxu0
          %v1567 = vpop.f32.mrb[0].mxu0
          %v1568 = vadd.f32 %v1514, %v1567
          %v1569 = vpop.f32.mrb[0].mxu0
          %1570 = vdwg.mxu0
          %v1571 = vld [vmem:[%s1298] sm:$0xf]
          %v1572 = vld [vmem:[%s1298 + $0x4] sm:$0xf]
          %v1573 = vld [vmem:[%s1298 + $0x8] sm:$0xf]
          %v1574 = vld [vmem:[%s1298 + $0xc] sm:$0xf]
          %v1575 = vpack.c.bf16 %v1568, %v1565
          %1577 = vrot.lane.b32.xlu0 %v1575, 96
          %v1578 = vpop.permute.xlu0 %1577
          %vm1579 = vcmask 64512
          %v1581 = vsel %vm1579, %v1575, 0
          %v1584 = vsel %vm1579, %v1578, 0
          %1586 = vmatprep.subr.bf16.mxu0 0
          %1587 = vmatpush1.bf16.xpose.msra.mxu0 %v1584
          %1588 = vmatprep.subr.bf16.mxu0 0
          %1589 = vmatpush1.bf16.xpose.msra.mxu0 0
          %1590 = vmatprep.subr.bf16.mxu0 0
          %1591 = vmatpush1.bf16.xpose.msra.mxu0 0
          %1592 = vmatprep.subr.bf16.mxu0 0
          %1593 = vmatpush1.bf16.xpose.msra.mxu0 0
          %1594 = vmatprep.subr.bf16.mxu0 0
          %1595 = vmatpush1.bf16.xpose.msra.mxu0 0
          %1596 = vmatprep.subr.bf16.mxu0 0
          %1597 = vmatpush1.bf16.xpose.msra.mxu0 0
          %1598 = vmatprep.subr.bf16.mxu0 0
          %1599 = vmatpush1.bf16.xpose.msra.mxu0 0
          %1600 = vmatprep.subr.bf16.mxu0 0
          %1601 = vmatpush1.bf16.xpose.msra.mxu0 0
          %1602 = vmatprep.subr.bf16.mxu0 0
          %1603 = vmatpush1.bf16.xpose.msra.mxu0 0
          %1604 = vmatprep.subr.bf16.mxu0 0
          %1605 = vmatpush1.bf16.xpose.msra.mxu0 0
          %1606 = vmatprep.subr.bf16.mxu0 0
          %1607 = vmatpush1.bf16.xpose.msra.mxu0 0
          %1608 = vmatprep.subr.bf16.mxu0 0
          %1609 = vmatpush1.bf16.xpose.msra.mxu0 0
          %1610 = vmatprep.subr.bf16.mxu0 0
          %1611 = vmatpush1.bf16.xpose.msra.mxu0 0
          %1612 = vmatprep.subr.bf16.mxu0 0
          %1613 = vmatpush1.bf16.xpose.msra.mxu0 0
          %1614 = vmatprep.subr.bf16.mxu0 0
          %1615 = vmatpush1.bf16.xpose.msra.mxu0 0
          %1616 = vmatprep.subr.bf16.mxu0 0
          %1617 = vmatpush1.bf16.xpose.msra.mxu0 0
          %1618 = vmatprep.mubr.bf16.mxu0 0
          %1619 = vmatmul.mubr.bf16.gmra.mrb[0].mxu0 %v1581
          %v1620 = vpop.f32.mrb[0].mxu0
          %v1621 = vadd.f32 0.0, %v1620
          %v1622 = vpop.f32.mrb[0].mxu0
          %v1623 = vpop.f32.mrb[0].mxu0
          %v1624 = vadd.f32 0.0, %v1623
          %v1625 = vpop.f32.mrb[0].mxu0
          %1626 = vdwg.mxu0
          %v1627 = vmul.f32 %v1621, 0.35355338
          %v1628 = vmul.f32 %v1624, 0.35355338
          %v1629 = vadd.f32 %v1627, %v1449
          %v1630 = vadd.f32 %v1628, %v1450
          %vm1631 = vcmask 130048
          %v1632 = vsel %vm1631, %v1629, -inf
          %1633 = vmax.xlane.f32.xlu0 %v1632
          %v1634 = vpop.xlane.xlu0 %1633
          %v1635 = vsel %vm1631, %v1630, -inf
          %1636 = vmax.xlane.f32.xlu0 %v1635
          %v1637 = vpop.xlane.xlu0 %1636
          %v1638 = vsub.f32 %v1629, %v1634
          %v1639 = vsub.f32 %v1630, %v1637
          %v1640 = vmul.f32 %v1638, 1.442695
          %v1641 = vpow.pop %v1640
          %v1642 = vmul.f32 %v1639, 1.442695
          %v1643 = vpow.pop %v1642
          %v1644 = vsel %vm1631, %v1641, 0.0
          %1645 = vadd.xlane.f32.xlu0 %v1644
          %v1646 = vpop.xlane.xlu0 %1645
          %v1647 = vsel %vm1631, %v1643, 0.0
          %1648 = vadd.xlane.f32.xlu0 %v1647
          %v1649 = vpop.xlane.xlu0 %1648
          %v1650 = vrcp.pop %v1646
          %v1651 = vrcp.pop %v1649
          %v1652 = vmul.f32 %v1641, %v1650
          %v1653 = vmul.f32 %v1643, %v1651
          %v1654 = vpack.c.bf16 %v1653, %v1652
          %1655 = vrot.lane.b32.xlu0 %v1575, 64
          %v1656 = vpop.permute.xlu0 %1655
          %v1659 = vsel %vm1631, %v1654, 0
          %1661 = vmatprep.subr.bf16.mxu0 0
          %1662 = vmatpush1.bf16.msra.mxu0 %v1656
          %1663 = vmatprep.subr.bf16.mxu0 0
          %1664 = vmatpush1.bf16.msra.mxu0 0
          %1665 = vmatprep.subr.bf16.mxu0 0
          %1666 = vmatpush1.bf16.msra.mxu0 0
          %1667 = vmatprep.subr.bf16.mxu0 0
          %1668 = vmatpush1.bf16.msra.mxu0 0
          %1669 = vmatprep.subr.bf16.mxu0 0
          %1670 = vmatpush1.bf16.msra.mxu0 0
          %1671 = vmatprep.subr.bf16.mxu0 0
          %1672 = vmatpush1.bf16.msra.mxu0 0
          %1673 = vmatprep.subr.bf16.mxu0 0
          %1674 = vmatpush1.bf16.msra.mxu0 0
          %1675 = vmatprep.subr.bf16.mxu0 0
          %1676 = vmatpush1.bf16.msra.mxu0 0
          %1677 = vmatprep.subr.bf16.mxu0 0
          %1678 = vmatpush1.bf16.msra.mxu0 0
          %1679 = vmatprep.subr.bf16.mxu0 0
          %1680 = vmatpush1.bf16.msra.mxu0 0
          %1681 = vmatprep.subr.bf16.mxu0 0
          %1682 = vmatpush1.bf16.msra.mxu0 0
          %1683 = vmatprep.subr.bf16.mxu0 0
          %1684 = vmatpush1.bf16.msra.mxu0 0
          %1685 = vmatprep.subr.bf16.mxu0 0
          %1686 = vmatpush1.bf16.msra.mxu0 0
          %1687 = vmatprep.subr.bf16.mxu0 0
          %1688 = vmatpush1.bf16.msra.mxu0 0
          %1689 = vmatprep.subr.bf16.mxu0 0
          %1690 = vmatpush1.bf16.msra.mxu0 0
          %1691 = vmatprep.subr.bf16.mxu0 0
          %1692 = vmatpush1.bf16.msra.mxu0 0
          %1693 = vmatprep.mubr.bf16.mxu0 0
          %1694 = vmatmul.mubr.bf16.gmra.mrb[0].mxu0 %v1659
          %v1695 = vpop.f32.mrb[0].mxu0
          %v1696 = vadd.f32 0.0, %v1695
          %v1697 = vpop.f32.mrb[0].mxu0
          %v1698 = vpop.f32.mrb[0].mxu0
          %v1699 = vadd.f32 0.0, %v1698
          %v1700 = vpop.f32.mrb[0].mxu0
          %1701 = vdwg.mxu0
          %1702 = vrot.lane.b32.xlu0 %v1575, 120
          %v1703 = vpop.permute.xlu0 %1702
          %1704 = vrot.lane.b32.xlu0 %v1575, 88
          %v1705 = vpop.permute.xlu0 %1704
          %v1707 = vsel %vm1579, %v1703, 0
          %v1710 = vsel %vm1579, %v1705, 0
          %1712 = vmatprep.subr.bf16.mxu0 0
          %1713 = vmatpush1.bf16.xpose.msra.mxu0 %v1710
          %1714 = vmatprep.subr.bf16.mxu0 0
          %1715 = vmatpush1.bf16.xpose.msra.mxu0 0
          %1716 = vmatprep.subr.bf16.mxu0 0
          %1717 = vmatpush1.bf16.xpose.msra.mxu0 0
          %1718 = vmatprep.subr.bf16.mxu0 0
          %1719 = vmatpush1.bf16.xpose.msra.mxu0 0
          %1720 = vmatprep.subr.bf16.mxu0 0
          %1721 = vmatpush1.bf16.xpose.msra.mxu0 0
          %1722 = vmatprep.subr.bf16.mxu0 0
          %1723 = vmatpush1.bf16.xpose.msra.mxu0 0
          %1724 = vmatprep.subr.bf16.mxu0 0
          %1725 = vmatpush1.bf16.xpose.msra.mxu0 0
          %1726 = vmatprep.subr.bf16.mxu0 0
          %1727 = vmatpush1.bf16.xpose.msra.mxu0 0
          %1728 = vmatprep.subr.bf16.mxu0 0
          %1729 = vmatpush1.bf16.xpose.msra.mxu0 0
          %1730 = vmatprep.subr.bf16.mxu0 0
          %1731 = vmatpush1.bf16.xpose.msra.mxu0 0
          %1732 = vmatprep.subr.bf16.mxu0 0
          %1733 = vmatpush1.bf16.xpose.msra.mxu0 0
          %1734 = vmatprep.subr.bf16.mxu0 0
          %1735 = vmatpush1.bf16.xpose.msra.mxu0 0
          %1736 = vmatprep.subr.bf16.mxu0 0
          %1737 = vmatpush1.bf16.xpose.msra.mxu0 0
          %1738 = vmatprep.subr.bf16.mxu0 0
          %1739 = vmatpush1.bf16.xpose.msra.mxu0 0
          %1740 = vmatprep.subr.bf16.mxu0 0
          %1741 = vmatpush1.bf16.xpose.msra.mxu0 0
          %1742 = vmatprep.subr.bf16.mxu0 0
          %1743 = vmatpush1.bf16.xpose.msra.mxu0 0
          %1744 = vmatprep.mubr.bf16.mxu0 0
          %1745 = vmatmul.mubr.bf16.gmra.mrb[0].mxu0 %v1707
          %v1746 = vpop.f32.mrb[0].mxu0
          %v1747 = vadd.f32 0.0, %v1746
          %v1748 = vpop.f32.mrb[0].mxu0
          %v1749 = vpop.f32.mrb[0].mxu0
          %v1750 = vadd.f32 0.0, %v1749
          %v1751 = vpop.f32.mrb[0].mxu0
          %1752 = vdwg.mxu0
          %v1753 = vmul.f32 %v1747, 0.35355338
          %v1754 = vmul.f32 %v1750, 0.35355338
          %v1755 = vadd.f32 %v1753, %v1449
          %v1756 = vadd.f32 %v1754, %v1450
          %v1757 = vsel %vm1631, %v1755, -inf
          %1758 = vmax.xlane.f32.xlu0 %v1757
          %v1759 = vpop.xlane.xlu0 %1758
          %v1760 = vsel %vm1631, %v1756, -inf
          %1761 = vmax.xlane.f32.xlu0 %v1760
          %v1762 = vpop.xlane.xlu0 %1761
          %v1763 = vsub.f32 %v1755, %v1759
          %v1764 = vsub.f32 %v1756, %v1762
          %v1765 = vmul.f32 %v1763, 1.442695
          %v1766 = vpow.pop %v1765
          %v1767 = vmul.f32 %v1764, 1.442695
          %v1768 = vpow.pop %v1767
          %v1769 = vsel %vm1631, %v1766, 0.0
          %1770 = vadd.xlane.f32.xlu0 %v1769
          %v1771 = vpop.xlane.xlu0 %1770
          %v1772 = vsel %vm1631, %v1768, 0.0
          %1773 = vadd.xlane.f32.xlu0 %v1772
          %v1774 = vpop.xlane.xlu0 %1773
          %v1775 = vrcp.pop %v1771
          %v1776 = vrcp.pop %v1774
          %v1777 = vmul.f32 %v1766, %v1775
          %v1778 = vmul.f32 %v1768, %v1776
          %v1779 = vpack.c.bf16 %v1778, %v1777
          %1780 = vrot.lane.b32.xlu0 %v1575, 56
          %v1781 = vpop.permute.xlu0 %1780
          %v1784 = vsel %vm1631, %v1779, 0
          %1786 = vmatprep.subr.bf16.mxu0 0
          %1787 = vmatpush1.bf16.msra.mxu0 %v1781
          %1788 = vmatprep.subr.bf16.mxu0 0
          %1789 = vmatpush1.bf16.msra.mxu0 0
          %1790 = vmatprep.subr.bf16.mxu0 0
          %1791 = vmatpush1.bf16.msra.mxu0 0
          %1792 = vmatprep.subr.bf16.mxu0 0
          %1793 = vmatpush1.bf16.msra.mxu0 0
          %1794 = vmatprep.subr.bf16.mxu0 0
          %1795 = vmatpush1.bf16.msra.mxu0 0
          %1796 = vmatprep.subr.bf16.mxu0 0
          %1797 = vmatpush1.bf16.msra.mxu0 0
          %1798 = vmatprep.subr.bf16.mxu0 0
          %1799 = vmatpush1.bf16.msra.mxu0 0
          %1800 = vmatprep.subr.bf16.mxu0 0
          %1801 = vmatpush1.bf16.msra.mxu0 0
          %1802 = vmatprep.subr.bf16.mxu0 0
          %1803 = vmatpush1.bf16.msra.mxu0 0
          %1804 = vmatprep.subr.bf16.mxu0 0
          %1805 = vmatpush1.bf16.msra.mxu0 0
          %1806 = vmatprep.subr.bf16.mxu0 0
          %1807 = vmatpush1.bf16.msra.mxu0 0
          %1808 = vmatprep.subr.bf16.mxu0 0
          %1809 = vmatpush1.bf16.msra.mxu0 0
          %1810 = vmatprep.subr.bf16.mxu0 0
          %1811 = vmatpush1.bf16.msra.mxu0 0
          %1812 = vmatprep.subr.bf16.mxu0 0
          %1813 = vmatpush1.bf16.msra.mxu0 0
          %1814 = vmatprep.subr.bf16.mxu0 0
          %1815 = vmatpush1.bf16.msra.mxu0 0
          %1816 = vmatprep.subr.bf16.mxu0 0
          %1817 = vmatpush1.bf16.msra.mxu0 0
          %1818 = vmatprep.mubr.bf16.mxu0 0
          %1819 = vmatmul.mubr.bf16.gmra.mrb[0].mxu0 %v1784
          %v1820 = vpop.f32.mrb[0].mxu0
          %v1821 = vadd.f32 0.0, %v1820
          %v1822 = vpop.f32.mrb[0].mxu0
          %v1823 = vpop.f32.mrb[0].mxu0
          %v1824 = vadd.f32 0.0, %v1823
          %v1825 = vpop.f32.mrb[0].mxu0
          %1826 = vdwg.mxu0
          %1827 = vrot.lane.b32.xlu0 %v1575, 112
          %v1828 = vpop.permute.xlu0 %1827
          %1829 = vrot.lane.b32.xlu0 %v1575, 80
          %v1830 = vpop.permute.xlu0 %1829
          %v1832 = vsel %vm1579, %v1828, 0
          %v1835 = vsel %vm1579, %v1830, 0
          %1837 = vmatprep.subr.bf16.mxu0 0
          %1838 = vmatpush1.bf16.xpose.msra.mxu0 %v1835
          %1839 = vmatprep.subr.bf16.mxu0 0
          %1840 = vmatpush1.bf16.xpose.msra.mxu0 0
          %1841 = vmatprep.subr.bf16.mxu0 0
          %1842 = vmatpush1.bf16.xpose.msra.mxu0 0
          %1843 = vmatprep.subr.bf16.mxu0 0
          %1844 = vmatpush1.bf16.xpose.msra.mxu0 0
          %1845 = vmatprep.subr.bf16.mxu0 0
          %1846 = vmatpush1.bf16.xpose.msra.mxu0 0
          %1847 = vmatprep.subr.bf16.mxu0 0
          %1848 = vmatpush1.bf16.xpose.msra.mxu0 0
          %1849 = vmatprep.subr.bf16.mxu0 0
          %1850 = vmatpush1.bf16.xpose.msra.mxu0 0
          %1851 = vmatprep.subr.bf16.mxu0 0
          %1852 = vmatpush1.bf16.xpose.msra.mxu0 0
          %1853 = vmatprep.subr.bf16.mxu0 0
          %1854 = vmatpush1.bf16.xpose.msra.mxu0 0
          %1855 = vmatprep.subr.bf16.mxu0 0
          %1856 = vmatpush1.bf16.xpose.msra.mxu0 0
          %1857 = vmatprep.subr.bf16.mxu0 0
          %1858 = vmatpush1.bf16.xpose.msra.mxu0 0
          %1859 = vmatprep.subr.bf16.mxu0 0
          %1860 = vmatpush1.bf16.xpose.msra.mxu0 0
          %1861 = vmatprep.subr.bf16.mxu0 0
          %1862 = vmatpush1.bf16.xpose.msra.mxu0 0
          %1863 = vmatprep.subr.bf16.mxu0 0
          %1864 = vmatpush1.bf16.xpose.msra.mxu0 0
          %1865 = vmatprep.subr.bf16.mxu0 0
          %1866 = vmatpush1.bf16.xpose.msra.mxu0 0
          %1867 = vmatprep.subr.bf16.mxu0 0
          %1868 = vmatpush1.bf16.xpose.msra.mxu0 0
          %1869 = vmatprep.mubr.bf16.mxu0 0
          %1870 = vmatmul.mubr.bf16.gmra.mrb[0].mxu0 %v1832
          %v1871 = vpop.f32.mrb[0].mxu0
          %v1872 = vadd.f32 0.0, %v1871
          %v1873 = vpop.f32.mrb[0].mxu0
          %v1874 = vpop.f32.mrb[0].mxu0
          %v1875 = vadd.f32 0.0, %v1874
          %v1876 = vpop.f32.mrb[0].mxu0
          %1877 = vdwg.mxu0
          %v1878 = vmul.f32 %v1872, 0.35355338
          %v1879 = vmul.f32 %v1875, 0.35355338
          %v1880 = vadd.f32 %v1878, %v1449
          %v1881 = vadd.f32 %v1879, %v1450
          %v1882 = vsel %vm1631, %v1880, -inf
          %1883 = vmax.xlane.f32.xlu0 %v1882
          %v1884 = vpop.xlane.xlu0 %1883
          %v1885 = vsel %vm1631, %v1881, -inf
          %1886 = vmax.xlane.f32.xlu0 %v1885
          %v1887 = vpop.xlane.xlu0 %1886
          %v1888 = vsub.f32 %v1880, %v1884
          %v1889 = vsub.f32 %v1881, %v1887
          %v1890 = vmul.f32 %v1888, 1.442695
          %v1891 = vpow.pop %v1890
          %v1892 = vmul.f32 %v1889, 1.442695
          %v1893 = vpow.pop %v1892
          %v1894 = vsel %vm1631, %v1891, 0.0
          %1895 = vadd.xlane.f32.xlu0 %v1894
          %v1896 = vpop.xlane.xlu0 %1895
          %v1897 = vsel %vm1631, %v1893, 0.0
          %1898 = vadd.xlane.f32.xlu0 %v1897
          %v1899 = vpop.xlane.xlu0 %1898
          %v1900 = vrcp.pop %v1896
          %v1901 = vrcp.pop %v1899
          %v1902 = vmul.f32 %v1891, %v1900
          %v1903 = vmul.f32 %v1893, %v1901
          %v1904 = vpack.c.bf16 %v1903, %v1902
          %1905 = vrot.lane.b32.xlu0 %v1575, 48
          %v1906 = vpop.permute.xlu0 %1905
          %v1909 = vsel %vm1631, %v1904, 0
          %1911 = vmatprep.subr.bf16.mxu0 0
          %1912 = vmatpush1.bf16.msra.mxu0 %v1906
          %1913 = vmatprep.subr.bf16.mxu0 0
          %1914 = vmatpush1.bf16.msra.mxu0 0
          %1915 = vmatprep.subr.bf16.mxu0 0
          %1916 = vmatpush1.bf16.msra.mxu0 0
          %1917 = vmatprep.subr.bf16.mxu0 0
          %1918 = vmatpush1.bf16.msra.mxu0 0
          %1919 = vmatprep.subr.bf16.mxu0 0
          %1920 = vmatpush1.bf16.msra.mxu0 0
          %1921 = vmatprep.subr.bf16.mxu0 0
          %1922 = vmatpush1.bf16.msra.mxu0 0
          %1923 = vmatprep.subr.bf16.mxu0 0
          %1924 = vmatpush1.bf16.msra.mxu0 0
          %1925 = vmatprep.subr.bf16.mxu0 0
          %1926 = vmatpush1.bf16.msra.mxu0 0
          %1927 = vmatprep.subr.bf16.mxu0 0
          %1928 = vmatpush1.bf16.msra.mxu0 0
          %1929 = vmatprep.subr.bf16.mxu0 0
          %1930 = vmatpush1.bf16.msra.mxu0 0
          %1931 = vmatprep.subr.bf16.mxu0 0
          %1932 = vmatpush1.bf16.msra.mxu0 0
          %1933 = vmatprep.subr.bf16.mxu0 0
          %1934 = vmatpush1.bf16.msra.mxu0 0
          %1935 = vmatprep.subr.bf16.mxu0 0
          %1936 = vmatpush1.bf16.msra.mxu0 0
          %1937 = vmatprep.subr.bf16.mxu0 0
          %1938 = vmatpush1.bf16.msra.mxu0 0
          %1939 = vmatprep.subr.bf16.mxu0 0
          %1940 = vmatpush1.bf16.msra.mxu0 0
          %1941 = vmatprep.subr.bf16.mxu0 0
          %1942 = vmatpush1.bf16.msra.mxu0 0
          %1943 = vmatprep.mubr.bf16.mxu0 0
          %1944 = vmatmul.mubr.bf16.gmra.mrb[0].mxu0 %v1909
          %v1945 = vpop.f32.mrb[0].mxu0
          %v1946 = vadd.f32 0.0, %v1945
          %v1947 = vpop.f32.mrb[0].mxu0
          %v1948 = vpop.f32.mrb[0].mxu0
          %v1949 = vadd.f32 0.0, %v1948
          %v1950 = vpop.f32.mrb[0].mxu0
          %1951 = vdwg.mxu0
          %1952 = vrot.lane.b32.xlu0 %v1575, 104
          %v1953 = vpop.permute.xlu0 %1952
          %1954 = vrot.lane.b32.xlu0 %v1575, 72
          %v1955 = vpop.permute.xlu0 %1954
          %v1957 = vsel %vm1579, %v1953, 0
          %v1960 = vsel %vm1579, %v1955, 0
          %1962 = vmatprep.subr.bf16.mxu0 0
          %1963 = vmatpush1.bf16.xpose.msra.mxu0 %v1960
          %1964 = vmatprep.subr.bf16.mxu0 0
          %1965 = vmatpush1.bf16.xpose.msra.mxu0 0
          %1966 = vmatprep.subr.bf16.mxu0 0
          %1967 = vmatpush1.bf16.xpose.msra.mxu0 0
          %1968 = vmatprep.subr.bf16.mxu0 0
          %1969 = vmatpush1.bf16.xpose.msra.mxu0 0
          %1970 = vmatprep.subr.bf16.mxu0 0
          %1971 = vmatpush1.bf16.xpose.msra.mxu0 0
          %1972 = vmatprep.subr.bf16.mxu0 0
          %1973 = vmatpush1.bf16.xpose.msra.mxu0 0
          %1974 = vmatprep.subr.bf16.mxu0 0
          %1975 = vmatpush1.bf16.xpose.msra.mxu0 0
          %1976 = vmatprep.subr.bf16.mxu0 0
          %1977 = vmatpush1.bf16.xpose.msra.mxu0 0
          %1978 = vmatprep.subr.bf16.mxu0 0
          %1979 = vmatpush1.bf16.xpose.msra.mxu0 0
          %1980 = vmatprep.subr.bf16.mxu0 0
          %1981 = vmatpush1.bf16.xpose.msra.mxu0 0
          %1982 = vmatprep.subr.bf16.mxu0 0
          %1983 = vmatpush1.bf16.xpose.msra.mxu0 0
          %1984 = vmatprep.subr.bf16.mxu0 0
          %1985 = vmatpush1.bf16.xpose.msra.mxu0 0
          %1986 = vmatprep.subr.bf16.mxu0 0
          %1987 = vmatpush1.bf16.xpose.msra.mxu0 0
          %1988 = vmatprep.subr.bf16.mxu0 0
          %1989 = vmatpush1.bf16.xpose.msra.mxu0 0
          %1990 = vmatprep.subr.bf16.mxu0 0
          %1991 = vmatpush1.bf16.xpose.msra.mxu0 0
          %1992 = vmatprep.subr.bf16.mxu0 0
          %1993 = vmatpush1.bf16.xpose.msra.mxu0 0
          %1994 = vmatprep.mubr.bf16.mxu0 0
          %1995 = vmatmul.mubr.bf16.gmra.mrb[0].mxu0 %v1957
          %v1996 = vpop.f32.mrb[0].mxu0
          %v1997 = vadd.f32 0.0, %v1996
          %v1998 = vpop.f32.mrb[0].mxu0
          %v1999 = vpop.f32.mrb[0].mxu0
          %v2000 = vadd.f32 0.0, %v1999
          %v2001 = vpop.f32.mrb[0].mxu0
          %2002 = vdwg.mxu0
          %v2003 = vmul.f32 %v1997, 0.35355338
          %v2004 = vmul.f32 %v2000, 0.35355338
          %v2005 = vadd.f32 %v2003, %v1449
          %v2006 = vadd.f32 %v2004, %v1450
          %v2007 = vsel %vm1631, %v2005, -inf
          %2008 = vmax.xlane.f32.xlu0 %v2007
          %v2009 = vpop.xlane.xlu0 %2008
          %v2010 = vsel %vm1631, %v2006, -inf
          %2011 = vmax.xlane.f32.xlu0 %v2010
          %v2012 = vpop.xlane.xlu0 %2011
          %v2013 = vsub.f32 %v2005, %v2009
          %v2014 = vsub.f32 %v2006, %v2012
          %v2015 = vmul.f32 %v2013, 1.442695
          %v2016 = vpow.pop %v2015
          %v2017 = vmul.f32 %v2014, 1.442695
          %v2018 = vpow.pop %v2017
          %v2019 = vsel %vm1631, %v2016, 0.0
          %2020 = vadd.xlane.f32.xlu0 %v2019
          %v2021 = vpop.xlane.xlu0 %2020
          %v2022 = vsel %vm1631, %v2018, 0.0
          %2023 = vadd.xlane.f32.xlu0 %v2022
          %v2024 = vpop.xlane.xlu0 %2023
          %v2025 = vrcp.pop %v2021
          %v2026 = vrcp.pop %v2024
          %v2027 = vmul.f32 %v2016, %v2025
          %v2028 = vmul.f32 %v2018, %v2026
          %v2029 = vpack.c.bf16 %v2028, %v2027
          %2030 = vrot.lane.b32.xlu0 %v1575, 40
          %v2031 = vpop.permute.xlu0 %2030
          %v2034 = vsel %vm1631, %v2029, 0
          %2036 = vmatprep.subr.bf16.mxu0 0
          %2037 = vmatpush1.bf16.msra.mxu0 %v2031
          %2038 = vmatprep.subr.bf16.mxu0 0
          %2039 = vmatpush1.bf16.msra.mxu0 0
          %2040 = vmatprep.subr.bf16.mxu0 0
          %2041 = vmatpush1.bf16.msra.mxu0 0
          %2042 = vmatprep.subr.bf16.mxu0 0
          %2043 = vmatpush1.bf16.msra.mxu0 0
          %2044 = vmatprep.subr.bf16.mxu0 0
          %2045 = vmatpush1.bf16.msra.mxu0 0
          %2046 = vmatprep.subr.bf16.mxu0 0
          %2047 = vmatpush1.bf16.msra.mxu0 0
          %2048 = vmatprep.subr.bf16.mxu0 0
          %2049 = vmatpush1.bf16.msra.mxu0 0
          %2050 = vmatprep.subr.bf16.mxu0 0
          %2051 = vmatpush1.bf16.msra.mxu0 0
          %2052 = vmatprep.subr.bf16.mxu0 0
          %2053 = vmatpush1.bf16.msra.mxu0 0
          %2054 = vmatprep.subr.bf16.mxu0 0
          %2055 = vmatpush1.bf16.msra.mxu0 0
          %2056 = vmatprep.subr.bf16.mxu0 0
          %2057 = vmatpush1.bf16.msra.mxu0 0
          %2058 = vmatprep.subr.bf16.mxu0 0
          %2059 = vmatpush1.bf16.msra.mxu0 0
          %2060 = vmatprep.subr.bf16.mxu0 0
          %2061 = vmatpush1.bf16.msra.mxu0 0
          %2062 = vmatprep.subr.bf16.mxu0 0
          %2063 = vmatpush1.bf16.msra.mxu0 0
          %2064 = vmatprep.subr.bf16.mxu0 0
          %2065 = vmatpush1.bf16.msra.mxu0 0
          %2066 = vmatprep.subr.bf16.mxu0 0
          %2067 = vmatpush1.bf16.msra.mxu0 0
          %2068 = vmatprep.mubr.bf16.mxu0 0
          %2069 = vmatmul.mubr.bf16.gmra.mrb[0].mxu0 %v2034
          %v2070 = vpop.f32.mrb[0].mxu0
          %v2071 = vadd.f32 0.0, %v2070
          %v2072 = vpop.f32.mrb[0].mxu0
          %v2073 = vpop.f32.mrb[0].mxu0
          %v2074 = vadd.f32 0.0, %v2073
          %v2075 = vpop.f32.mrb[0].mxu0
          %2076 = vdwg.mxu0
          %2079 = vrot.lane.b32.xlu0 %v1821, 8
          %v2080 = vpop.permute.xlu0 %2079
          %2081 = vrot.lane.b32.xlu0 %v1824, 8
          %v2082 = vpop.permute.xlu0 %2081
          %2087 = vrot.lane.b32.xlu0 %v1946, 16
          %v2088 = vpop.permute.xlu0 %2087
          %2089 = vrot.lane.b32.xlu0 %v1949, 16
          %v2090 = vpop.permute.xlu0 %2089
          %2095 = vrot.lane.b32.xlu0 %v2071, 24
          %v2096 = vpop.permute.xlu0 %2095
          %2097 = vrot.lane.b32.xlu0 %v2074, 24
          %v2098 = vpop.permute.xlu0 %2097
          %v2101 = vsel %vm1579, %v1696, %v2080
          %v2102 = vsel %vm1579, %v1699, %v2082
          %v2103 = vsel %vm1631, %v2101, %v2088
          %v2104 = vsel %vm1631, %v2102, %v2090
          %vm2105 = vcmask 195584
          %v2106 = vsel %vm2105, %v2103, %v2096
          %v2107 = vsel %vm2105, %v2104, %v2098
          %v2108 = vpack.c.bf16 %v2107, %v2106
          %v2109 = vlaneseq
          %v2110 = vshrl.u32 %v2109, 7
          %v2111 = vsub.s32 5, %v2110
          %v2112 = vrot.slane %v1451, %v2111
          %v2117 = vunpack.c.l.b16 %v1571
          %v2118 = vunpack.c.l.b16 %v1572
          %v2119 = vunpack.c.l.b16 %v1573
          %v2120 = vunpack.c.l.b16 %v1574
          %v2121 = vpack.c.b16 %v2118, %v2117
          %v2122 = vpack.c.b16 %v2120, %v2119
          %v2126 = vsel %vm1452, %v2108, 0
          %2128 = vmatprep.subr.bf16.mxu0 0
          %2129 = vmatpush1.bf16.msra.mxu0 %v2121
          %2130 = vmatprep.subr.bf16.mxu0 0
          %2131 = vmatpush1.bf16.msra.mxu0 %v2122
          %2132 = vmatprep.subr.bf16.mxu0 0
          %2133 = vmatpush1.bf16.msra.mxu0 0
          %2134 = vmatprep.subr.bf16.mxu0 0
          %2135 = vmatpush1.bf16.msra.mxu0 0
          %2136 = vmatprep.subr.bf16.mxu0 0
          %2137 = vmatpush1.bf16.msra.mxu0 0
          %2138 = vmatprep.subr.bf16.mxu0 0
          %2139 = vmatpush1.bf16.msra.mxu0 0
          %2140 = vmatprep.subr.bf16.mxu0 0
          %2141 = vmatpush1.bf16.msra.mxu0 0
          %2142 = vmatprep.subr.bf16.mxu0 0
          %2143 = vmatpush1.bf16.msra.mxu0 0
          %2144 = vmatprep.subr.bf16.mxu0 0
          %2145 = vmatpush1.bf16.msra.mxu0 0
          %2146 = vmatprep.subr.bf16.mxu0 0
          %2147 = vmatpush1.bf16.msra.mxu0 0
          %2148 = vmatprep.subr.bf16.mxu0 0
          %2149 = vmatpush1.bf16.msra.mxu0 0
          %2150 = vmatprep.subr.bf16.mxu0 0
          %2151 = vmatpush1.bf16.msra.mxu0 0
          %2152 = vmatprep.subr.bf16.mxu0 0
          %2153 = vmatpush1.bf16.msra.mxu0 0
          %2154 = vmatprep.subr.bf16.mxu0 0
          %2155 = vmatpush1.bf16.msra.mxu0 0
          %2156 = vmatprep.subr.bf16.mxu0 0
          %2157 = vmatpush1.bf16.msra.mxu0 0
          %2158 = vmatprep.subr.bf16.mxu0 0
          %2159 = vmatpush1.bf16.msra.mxu0 0
          %2160 = vmatprep.mubr.bf16.mxu0 0
          %2161 = vmatmul.mubr.bf16.gmra.mrb[0].mxu0 %v2126
          %v2162 = vpop.f32.mrb[0].mxu0
          %v2163 = vadd.f32 %v2112, %v2162
          %v2164 = vpop.f32.mrb[0].mxu0
          %v2165 = vpop.f32.mrb[0].mxu0
          %v2166 = vadd.f32 %v2112, %v2165
          %v2167 = vpop.f32.mrb[0].mxu0
          %2168 = vdwg.mxu0
          %v2169 = vadd.f32 %v1447, %v2163
          %v2170 = vadd.f32 %v1448, %v2166
          %v2171 = vsel %vm1452, %v2169, 0.0
          %2172 = vadd.xlane.f32.xlu0 %v2171
          %v2173 = vpop.xlane.xlu0 %2172
          %v2174 = vsel %vm1452, %v2170, 0.0
          %2175 = vadd.xlane.f32.xlu0 %v2174
          %v2176 = vpop.xlane.xlu0 %2175
          %v2177 = vmul.f32 %v2173, %v1459
          %v2178 = vmul.f32 %v2176, %v1459
          %v2179 = vsub.f32 %v2169, %v2177
          %v2180 = vsub.f32 %v2170, %v2178
          %v2181 = vmul.f32 %v2179, %v2179
          %v2182 = vmul.f32 %v2180, %v2180
          %v2183 = vsel %vm1452, %v2181, 0.0
          %2184 = vadd.xlane.f32.xlu0 %v2183
          %v2185 = vpop.xlane.xlu0 %2184
          %v2186 = vsel %vm1452, %v2182, 0.0
          %2187 = vadd.xlane.f32.xlu0 %v2186
          %v2188 = vpop.xlane.xlu0 %2187
          %v2189 = vmul.f32 %v2185, 0.032258064
          %v2190 = vmul.f32 %v2188, 0.032258064
          %v2191 = vrsqrt.pop %v2189
          %v2192 = vmul.f32 %v2189, %v2191
          %vm2193 = vcmp.eq.f32.partialorder %v2189, inf
          %v2194 = vsel %vm2193, %v2189, %v2192
          %vm2195 = vcmp.eq.f32.partialorder %v2189, 0.0
          %v2196 = vand.u32 %v2189, 2147483648
          %v2197 = vsel %vm2195, %v2196, %v2194
          %v2198 = vrsqrt.pop %v2190
          %v2199 = vmul.f32 %v2190, %v2198
          %vm2200 = vcmp.eq.f32.partialorder %v2190, inf
          %v2201 = vsel %vm2200, %v2190, %v2199
          %vm2202 = vcmp.eq.f32.partialorder %v2190, 0.0
          %v2203 = vand.u32 %v2190, 2147483648
          %v2204 = vsel %vm2202, %v2203, %v2201
          %v2205 = vadd.f32 %v2197, 1e-06
          %v2206 = vadd.f32 %v2204, 1e-06
          %v2207 = vrcp.pop %v2205
          %v2208 = vrcp.pop %v2206
          %v2209 = vmul.f32 %v2179, %v2207
          %v2210 = vmul.f32 %v2180, %v2208
          %v2211 = vlaneseq
          %v2212 = vshrl.u32 %v2211, 7
          %v2213 = vsub.s32 2, %v2212
          %v2214 = vrot.slane %v1451, %v2213
          %v2215 = vmul.f32 %v2214, %v2209
          %v2216 = vmul.f32 %v2214, %v2210
          %v2217 = vlaneseq
          %v2218 = vshrl.u32 %v2217, 7
          %v2219 = vsub.s32 3, %v2218
          %v2220 = vrot.slane %v1451, %v2219
          %v2221 = vadd.f32 %v2215, %v2220
          %v2222 = vadd.f32 %v2216, %v2220
          %v2223 = vpack.c.bf16 %v2222, %v2221
          %v2224 = vlaneseq
          %v2225 = vshrl.u32 %v2224, 7
          %v2226 = vsub.s32 6, %v2225
          %v2227 = vrot.slane %v1451, %v2226
          %v2228 = vadd.f32 %v2227, 0.0
          %v2229 = vld [vmem:[%s1307] sm:$0xff]
          %v2230 = vld [vmem:[%s1307 + $0x8] sm:$0xff]
          %v2231 = vld [vmem:[%s1307 + $0x40] sm:$0xff]
          %v2232 = vld [vmem:[%s1307 + $0x48] sm:$0xff]
          %v2233 = vld [vmem:[%s1307 + $0x80] sm:$0xff]
          %v2234 = vld [vmem:[%s1307 + $0x88] sm:$0xff]
          %v2235 = vld [vmem:[%s1307 + $0xc0] sm:$0xff]
          %v2236 = vld [vmem:[%s1307 + $0xc8] sm:$0xff]
          %v2237 = vld [vmem:[%s1315] sm:$0xf]
          %v2239 = vlaneseq
          %v2240 = vshrl.u32 %v2239, 7
          %v2241 = vsub.s32 0, %v2240
          %v2242 = vrot.slane %v2237, %v2241
          %v2243 = vlaneseq
          %v2244 = vshrl.u32 %v2243, 7
          %v2245 = vsub.s32 1, %v2244
          %v2246 = vrot.slane %v2237, %v2245
          %v2247 = vlaneseq
          %v2248 = vshrl.u32 %v2247, 7
          %v2249 = vsub.s32 2, %v2248
          %v2250 = vrot.slane %v2237, %v2249
          %v2251 = vlaneseq
          %v2252 = vshrl.u32 %v2251, 7
          %v2253 = vsub.s32 3, %v2252
          %v2254 = vrot.slane %v2237, %v2253
          %v2267 = vunpack.c.l.b16 %v2229
          %v2268 = vunpack.c.h.b16 %v2229
          %v2269 = vunpack.c.l.b16 %v2230
          %v2270 = vunpack.c.h.b16 %v2230
          %v2271 = vunpack.c.l.b16 %v2231
          %v2272 = vunpack.c.h.b16 %v2231
          %v2273 = vunpack.c.l.b16 %v2232
          %v2274 = vunpack.c.h.b16 %v2232
          %v2275 = vunpack.c.l.b16 %v2233
          %v2276 = vunpack.c.h.b16 %v2233
          %v2277 = vunpack.c.l.b16 %v2234
          %v2278 = vunpack.c.h.b16 %v2234
          %v2279 = vunpack.c.l.b16 %v2235
          %v2280 = vunpack.c.h.b16 %v2235
          %v2281 = vunpack.c.l.b16 %v2236
          %v2282 = vunpack.c.h.b16 %v2236
          %v2283 = vpack.c.b16 %v2271, %v2267
          %v2284 = vpack.c.b16 %v2272, %v2268
          %v2285 = vpack.c.b16 %v2273, %v2269
          %v2286 = vpack.c.b16 %v2274, %v2270
          %v2287 = vpack.c.b16 %v2279, %v2275
          %v2288 = vpack.c.b16 %v2280, %v2276
          %v2289 = vpack.c.b16 %v2281, %v2277
          %v2290 = vpack.c.b16 %v2282, %v2278
          %v2300 = vsel %vm1452, %v2223, 0
          %2302 = vmatprep.subr.bf16.mxu0 %v2284
          %2303 = vmatpush1.bf16.msra.mxu0 %v2283
          %2304 = vmatprep.subr.bf16.mxu0 %v2288
          %2305 = vmatpush1.bf16.msra.mxu0 %v2287
          %2306 = vmatprep.subr.bf16.mxu0 0
          %2307 = vmatpush1.bf16.msra.mxu0 0
          %2308 = vmatprep.subr.bf16.mxu0 0
          %2309 = vmatpush1.bf16.msra.mxu0 0
          %2310 = vmatprep.subr.bf16.mxu0 0
          %2311 = vmatpush1.bf16.msra.mxu0 0
          %2312 = vmatprep.subr.bf16.mxu0 0
          %2313 = vmatpush1.bf16.msra.mxu0 0
          %2314 = vmatprep.subr.bf16.mxu0 0
          %2315 = vmatpush1.bf16.msra.mxu0 0
          %2316 = vmatprep.subr.bf16.mxu0 0
          %2317 = vmatpush1.bf16.msra.mxu0 0
          %2318 = vmatprep.subr.bf16.mxu0 0
          %2319 = vmatpush1.bf16.msra.mxu0 0
          %2320 = vmatprep.subr.bf16.mxu0 0
          %2321 = vmatpush1.bf16.msra.mxu0 0
          %2322 = vmatprep.subr.bf16.mxu0 0
          %2323 = vmatpush1.bf16.msra.mxu0 0
          %2324 = vmatprep.subr.bf16.mxu0 0
          %2325 = vmatpush1.bf16.msra.mxu0 0
          %2326 = vmatprep.subr.bf16.mxu0 0
          %2327 = vmatpush1.bf16.msra.mxu0 0
          %2328 = vmatprep.subr.bf16.mxu0 0
          %2329 = vmatpush1.bf16.msra.mxu0 0
          %2330 = vmatprep.subr.bf16.mxu0 0
          %2331 = vmatpush1.bf16.msra.mxu0 0
          %2332 = vmatprep.subr.bf16.mxu0 0
          %2333 = vmatpush1.bf16.msra.mxu0 0
          %2334 = vmatprep.mubr.bf16.mxu0 0
          %2335 = vmatmul.mubr.bf16.gmra.mrb[0].mxu0 %v2300
          %v2336 = vpop.f32.mrb[0].mxu0
          %v2337 = vadd.f32 %v2242, %v2336
          %v2338 = vpop.f32.mrb[0].mxu0
          %v2339 = vadd.f32 %v2246, %v2338
          %v2340 = vpop.f32.mrb[0].mxu0
          %v2341 = vadd.f32 %v2242, %v2340
          %v2342 = vpop.f32.mrb[0].mxu0
          %v2343 = vadd.f32 %v2246, %v2342
          %2344 = vdwg.mxu0
          %2345 = vmatprep.subr.bf16.mxu0 %v2286
          %2346 = vmatpush1.bf16.msra.mxu0 %v2285
          %2347 = vmatprep.subr.bf16.mxu0 %v2290
          %2348 = vmatpush1.bf16.msra.mxu0 %v2289
          %2349 = vmatprep.subr.bf16.mxu0 0
          %2350 = vmatpush1.bf16.msra.mxu0 0
          %2351 = vmatprep.subr.bf16.mxu0 0
          %2352 = vmatpush1.bf16.msra.mxu0 0
          %2353 = vmatprep.subr.bf16.mxu0 0
          %2354 = vmatpush1.bf16.msra.mxu0 0
          %2355 = vmatprep.subr.bf16.mxu0 0
          %2356 = vmatpush1.bf16.msra.mxu0 0
          %2357 = vmatprep.subr.bf16.mxu0 0
          %2358 = vmatpush1.bf16.msra.mxu0 0
          %2359 = vmatprep.subr.bf16.mxu0 0
          %2360 = vmatpush1.bf16.msra.mxu0 0
          %2361 = vmatprep.subr.bf16.mxu0 0
          %2362 = vmatpush1.bf16.msra.mxu0 0
          %2363 = vmatprep.subr.bf16.mxu0 0
          %2364 = vmatpush1.bf16.msra.mxu0 0
          %2365 = vmatprep.subr.bf16.mxu0 0
          %2366 = vmatpush1.bf16.msra.mxu0 0
          %2367 = vmatprep.subr.bf16.mxu0 0
          %2368 = vmatpush1.bf16.msra.mxu0 0
          %2369 = vmatprep.subr.bf16.mxu0 0
          %2370 = vmatpush1.bf16.msra.mxu0 0
          %2371 = vmatprep.subr.bf16.mxu0 0
          %2372 = vmatpush1.bf16.msra.mxu0 0
          %2373 = vmatprep.subr.bf16.mxu0 0
          %2374 = vmatpush1.bf16.msra.mxu0 0
          %2375 = vmatprep.subr.bf16.mxu0 0
          %2376 = vmatpush1.bf16.msra.mxu0 0
          %2377 = vmatprep.mubr.bf16.mxu0 0
          %2378 = vmatmul.mubr.bf16.gmra.mrb[0].mxu0 %v2300
          %v2379 = vpop.f32.mrb[0].mxu0
          %v2380 = vadd.f32 %v2250, %v2379
          %v2381 = vpop.f32.mrb[0].mxu0
          %v2382 = vadd.f32 %v2254, %v2381
          %v2383 = vpop.f32.mrb[0].mxu0
          %v2384 = vadd.f32 %v2250, %v2383
          %v2385 = vpop.f32.mrb[0].mxu0
          %v2386 = vadd.f32 %v2254, %v2385
          %2387 = vdwg.mxu0
          %v2388 = vmax.f32 %v2337, 0.0
          %v2389 = vmax.f32 %v2339, 0.0
          %v2390 = vmax.f32 %v2380, 0.0
          %v2391 = vmax.f32 %v2382, 0.0
          %v2392 = vmax.f32 %v2341, 0.0
          %v2393 = vmax.f32 %v2343, 0.0
          %v2394 = vmax.f32 %v2384, 0.0
          %v2395 = vmax.f32 %v2386, 0.0
          %v2396 = vld [vmem:[%s1324] sm:$0xf]
          %v2397 = vld [vmem:[%s1324 + $0x4] sm:$0xf]
          %v2398 = vld [vmem:[%s1324 + $0x8] sm:$0xf]
          %v2399 = vld [vmem:[%s1324 + $0xc] sm:$0xf]
          %v2400 = vld [vmem:[%s1324 + $0x10] sm:$0xf]
          %v2401 = vld [vmem:[%s1324 + $0x14] sm:$0xf]
          %v2402 = vld [vmem:[%s1324 + $0x18] sm:$0xf]
          %v2403 = vld [vmem:[%s1324 + $0x1c] sm:$0xf]
          %v2404 = vld [vmem:[%s1324 + $0x20] sm:$0xf]
          %v2405 = vld [vmem:[%s1324 + $0x24] sm:$0xf]
          %v2406 = vld [vmem:[%s1324 + $0x28] sm:$0xf]
          %v2407 = vld [vmem:[%s1324 + $0x2c] sm:$0xf]
          %v2408 = vld [vmem:[%s1324 + $0x30] sm:$0xf]
          %v2409 = vld [vmem:[%s1324 + $0x34] sm:$0xf]
          %v2410 = vld [vmem:[%s1324 + $0x38] sm:$0xf]
          %v2411 = vld [vmem:[%s1324 + $0x3c] sm:$0xf]
          %v2412 = vld [vmem:[%s1324 + $0x40] sm:$0xf]
          %v2413 = vld [vmem:[%s1324 + $0x44] sm:$0xf]
          %v2414 = vld [vmem:[%s1324 + $0x48] sm:$0xf]
          %v2415 = vld [vmem:[%s1324 + $0x4c] sm:$0xf]
          %v2416 = vld [vmem:[%s1324 + $0x50] sm:$0xf]
          %v2417 = vld [vmem:[%s1324 + $0x54] sm:$0xf]
          %v2418 = vld [vmem:[%s1324 + $0x58] sm:$0xf]
          %v2419 = vld [vmem:[%s1324 + $0x5c] sm:$0xf]
          %v2420 = vld [vmem:[%s1324 + $0x60] sm:$0xf]
          %v2421 = vld [vmem:[%s1324 + $0x64] sm:$0xf]
          %v2422 = vld [vmem:[%s1324 + $0x68] sm:$0xf]
          %v2423 = vld [vmem:[%s1324 + $0x6c] sm:$0xf]
          %v2424 = vld [vmem:[%s1324 + $0x70] sm:$0xf]
          %v2425 = vld [vmem:[%s1324 + $0x74] sm:$0xf]
          %v2426 = vld [vmem:[%s1324 + $0x78] sm:$0xf]
          %v2427 = vld [vmem:[%s1324 + $0x7c] sm:$0xf]
          %v2428 = vld [vmem:[%s1324 + $0x80] sm:$0xf]
          %v2429 = vld [vmem:[%s1324 + $0x84] sm:$0xf]
          %v2430 = vld [vmem:[%s1324 + $0x88] sm:$0xf]
          %v2431 = vld [vmem:[%s1324 + $0x8c] sm:$0xf]
          %v2432 = vld [vmem:[%s1324 + $0x90] sm:$0xf]
          %v2433 = vld [vmem:[%s1324 + $0x94] sm:$0xf]
          %v2434 = vld [vmem:[%s1324 + $0x98] sm:$0xf]
          %v2435 = vld [vmem:[%s1324 + $0x9c] sm:$0xf]
          %v2436 = vld [vmem:[%s1324 + $0xa0] sm:$0xf]
          %v2437 = vld [vmem:[%s1324 + $0xa4] sm:$0xf]
          %v2438 = vld [vmem:[%s1324 + $0xa8] sm:$0xf]
          %v2439 = vld [vmem:[%s1324 + $0xac] sm:$0xf]
          %v2440 = vld [vmem:[%s1324 + $0xb0] sm:$0xf]
          %v2441 = vld [vmem:[%s1324 + $0xb4] sm:$0xf]
          %v2442 = vld [vmem:[%s1324 + $0xb8] sm:$0xf]
          %v2443 = vld [vmem:[%s1324 + $0xbc] sm:$0xf]
          %v2444 = vld [vmem:[%s1324 + $0xc0] sm:$0xf]
          %v2445 = vld [vmem:[%s1324 + $0xc4] sm:$0xf]
          %v2446 = vld [vmem:[%s1324 + $0xc8] sm:$0xf]
          %v2447 = vld [vmem:[%s1324 + $0xcc] sm:$0xf]
          %v2448 = vld [vmem:[%s1324 + $0xd0] sm:$0xf]
          %v2449 = vld [vmem:[%s1324 + $0xd4] sm:$0xf]
          %v2450 = vld [vmem:[%s1324 + $0xd8] sm:$0xf]
          %v2451 = vld [vmem:[%s1324 + $0xdc] sm:$0xf]
          %v2452 = vld [vmem:[%s1324 + $0xe0] sm:$0xf]
          %v2453 = vld [vmem:[%s1324 + $0xe4] sm:$0xf]
          %v2454 = vld [vmem:[%s1324 + $0xe8] sm:$0xf]
          %v2455 = vld [vmem:[%s1324 + $0xec] sm:$0xf]
          %v2456 = vld [vmem:[%s1324 + $0xf0] sm:$0xf]
          %v2457 = vld [vmem:[%s1324 + $0xf4] sm:$0xf]
          %v2458 = vld [vmem:[%s1324 + $0xf8] sm:$0xf]
          %v2459 = vld [vmem:[%s1324 + $0xfc] sm:$0xf]
          %v2460 = vpack.c.bf16 %v2392, %v2388
          %v2461 = vpack.c.bf16 %v2393, %v2389
          %v2462 = vpack.c.bf16 %v2394, %v2390
          %v2463 = vpack.c.bf16 %v2395, %v2391
          %v2528 = vunpack.c.l.b16 %v2396
          %v2529 = vunpack.c.l.b16 %v2397
          %v2530 = vunpack.c.l.b16 %v2398
          %v2531 = vunpack.c.l.b16 %v2399
          %v2532 = vunpack.c.l.b16 %v2400
          %v2533 = vunpack.c.l.b16 %v2401
          %v2534 = vunpack.c.l.b16 %v2402
          %v2535 = vunpack.c.l.b16 %v2403
          %v2536 = vunpack.c.l.b16 %v2404
          %v2537 = vunpack.c.l.b16 %v2405
          %v2538 = vunpack.c.l.b16 %v2406
          %v2539 = vunpack.c.l.b16 %v2407
          %v2540 = vunpack.c.l.b16 %v2408
          %v2541 = vunpack.c.l.b16 %v2409
          %v2542 = vunpack.c.l.b16 %v2410
          %v2543 = vunpack.c.l.b16 %v2411
          %v2544 = vunpack.c.l.b16 %v2412
          %v2545 = vunpack.c.l.b16 %v2413
          %v2546 = vunpack.c.l.b16 %v2414
          %v2547 = vunpack.c.l.b16 %v2415
          %v2548 = vunpack.c.l.b16 %v2416
          %v2549 = vunpack.c.l.b16 %v2417
          %v2550 = vunpack.c.l.b16 %v2418
          %v2551 = vunpack.c.l.b16 %v2419
          %v2552 = vunpack.c.l.b16 %v2420
          %v2553 = vunpack.c.l.b16 %v2421
          %v2554 = vunpack.c.l.b16 %v2422
          %v2555 = vunpack.c.l.b16 %v2423
          %v2556 = vunpack.c.l.b16 %v2424
          %v2557 = vunpack.c.l.b16 %v2425
          %v2558 = vunpack.c.l.b16 %v2426
          %v2559 = vunpack.c.l.b16 %v2427
          %v2560 = vunpack.c.l.b16 %v2428
          %v2561 = vunpack.c.l.b16 %v2429
          %v2562 = vunpack.c.l.b16 %v2430
          %v2563 = vunpack.c.l.b16 %v2431
          %v2564 = vunpack.c.l.b16 %v2432
          %v2565 = vunpack.c.l.b16 %v2433
          %v2566 = vunpack.c.l.b16 %v2434
          %v2567 = vunpack.c.l.b16 %v2435
          %v2568 = vunpack.c.l.b16 %v2436
          %v2569 = vunpack.c.l.b16 %v2437
          %v2570 = vunpack.c.l.b16 %v2438
          %v2571 = vunpack.c.l.b16 %v2439
          %v2572 = vunpack.c.l.b16 %v2440
          %v2573 = vunpack.c.l.b16 %v2441
          %v2574 = vunpack.c.l.b16 %v2442
          %v2575 = vunpack.c.l.b16 %v2443
          %v2576 = vunpack.c.l.b16 %v2444
          %v2577 = vunpack.c.l.b16 %v2445
          %v2578 = vunpack.c.l.b16 %v2446
          %v2579 = vunpack.c.l.b16 %v2447
          %v2580 = vunpack.c.l.b16 %v2448
          %v2581 = vunpack.c.l.b16 %v2449
          %v2582 = vunpack.c.l.b16 %v2450
          %v2583 = vunpack.c.l.b16 %v2451
          %v2584 = vunpack.c.l.b16 %v2452
          %v2585 = vunpack.c.l.b16 %v2453
          %v2586 = vunpack.c.l.b16 %v2454
          %v2587 = vunpack.c.l.b16 %v2455
          %v2588 = vunpack.c.l.b16 %v2456
          %v2589 = vunpack.c.l.b16 %v2457
          %v2590 = vunpack.c.l.b16 %v2458
          %v2591 = vunpack.c.l.b16 %v2459
          %v2592 = vpack.c.b16 %v2529, %v2528
          %v2593 = vpack.c.b16 %v2531, %v2530
          %v2594 = vpack.c.b16 %v2533, %v2532
          %v2595 = vpack.c.b16 %v2535, %v2534
          %v2596 = vpack.c.b16 %v2537, %v2536
          %v2597 = vpack.c.b16 %v2539, %v2538
          %v2598 = vpack.c.b16 %v2541, %v2540
          %v2599 = vpack.c.b16 %v2543, %v2542
          %v2600 = vpack.c.b16 %v2545, %v2544
          %v2601 = vpack.c.b16 %v2547, %v2546
          %v2602 = vpack.c.b16 %v2549, %v2548
          %v2603 = vpack.c.b16 %v2551, %v2550
          %v2604 = vpack.c.b16 %v2553, %v2552
          %v2605 = vpack.c.b16 %v2555, %v2554
          %v2606 = vpack.c.b16 %v2557, %v2556
          %v2607 = vpack.c.b16 %v2559, %v2558
          %v2608 = vpack.c.b16 %v2561, %v2560
          %v2609 = vpack.c.b16 %v2563, %v2562
          %v2610 = vpack.c.b16 %v2565, %v2564
          %v2611 = vpack.c.b16 %v2567, %v2566
          %v2612 = vpack.c.b16 %v2569, %v2568
          %v2613 = vpack.c.b16 %v2571, %v2570
          %v2614 = vpack.c.b16 %v2573, %v2572
          %v2615 = vpack.c.b16 %v2575, %v2574
          %v2616 = vpack.c.b16 %v2577, %v2576
          %v2617 = vpack.c.b16 %v2579, %v2578
          %v2618 = vpack.c.b16 %v2581, %v2580
          %v2619 = vpack.c.b16 %v2583, %v2582
          %v2620 = vpack.c.b16 %v2585, %v2584
          %v2621 = vpack.c.b16 %v2587, %v2586
          %v2622 = vpack.c.b16 %v2589, %v2588
          %v2623 = vpack.c.b16 %v2591, %v2590
          %2656 = vmatprep.subr.bf16.mxu0 0
          %2657 = vmatpush1.bf16.msra.mxu0 %v2592
          %2658 = vmatprep.subr.bf16.mxu0 0
          %2659 = vmatpush1.bf16.msra.mxu0 %v2593
          %2660 = vmatprep.subr.bf16.mxu0 0
          %2661 = vmatpush1.bf16.msra.mxu0 %v2594
          %2662 = vmatprep.subr.bf16.mxu0 0
          %2663 = vmatpush1.bf16.msra.mxu0 %v2595
          %2664 = vmatprep.subr.bf16.mxu0 0
          %2665 = vmatpush1.bf16.msra.mxu0 %v2596
          %2666 = vmatprep.subr.bf16.mxu0 0
          %2667 = vmatpush1.bf16.msra.mxu0 %v2597
          %2668 = vmatprep.subr.bf16.mxu0 0
          %2669 = vmatpush1.bf16.msra.mxu0 %v2598
          %2670 = vmatprep.subr.bf16.mxu0 0
          %2671 = vmatpush1.bf16.msra.mxu0 %v2599
          %2672 = vmatprep.subr.bf16.mxu0 0
          %2673 = vmatpush1.bf16.msra.mxu0 %v2600
          %2674 = vmatprep.subr.bf16.mxu0 0
          %2675 = vmatpush1.bf16.msra.mxu0 %v2601
          %2676 = vmatprep.subr.bf16.mxu0 0
          %2677 = vmatpush1.bf16.msra.mxu0 %v2602
          %2678 = vmatprep.subr.bf16.mxu0 0
          %2679 = vmatpush1.bf16.msra.mxu0 %v2603
          %2680 = vmatprep.subr.bf16.mxu0 0
          %2681 = vmatpush1.bf16.msra.mxu0 %v2604
          %2682 = vmatprep.subr.bf16.mxu0 0
          %2683 = vmatpush1.bf16.msra.mxu0 %v2605
          %2684 = vmatprep.subr.bf16.mxu0 0
          %2685 = vmatpush1.bf16.msra.mxu0 %v2606
          %2686 = vmatprep.subr.bf16.mxu0 0
          %2687 = vmatpush1.bf16.msra.mxu0 %v2607
          %2688 = vmatprep.mubr.bf16.mxu0 %v2461
          %2689 = vmatmul.mubr.bf16.gmra.mrb[0].mxu0 %v2460
          %v2690 = vpop.f32.mrb[0].mxu0
          %v2691 = vadd.f32 0.0, %v2690
          %v2692 = vpop.f32.mrb[0].mxu0
          %v2693 = vpop.f32.mrb[0].mxu0
          %v2694 = vadd.f32 0.0, %v2693
          %v2695 = vpop.f32.mrb[0].mxu0
          %2696 = vdwg.mxu0
          %2697 = vmatprep.subr.bf16.mxu0 0
          %2698 = vmatpush1.bf16.msra.mxu0 %v2608
          %2699 = vmatprep.subr.bf16.mxu0 0
          %2700 = vmatpush1.bf16.msra.mxu0 %v2609
          %2701 = vmatprep.subr.bf16.mxu0 0
          %2702 = vmatpush1.bf16.msra.mxu0 %v2610
          %2703 = vmatprep.subr.bf16.mxu0 0
          %2704 = vmatpush1.bf16.msra.mxu0 %v2611
          %2705 = vmatprep.subr.bf16.mxu0 0
          %2706 = vmatpush1.bf16.msra.mxu0 %v2612
          %2707 = vmatprep.subr.bf16.mxu0 0
          %2708 = vmatpush1.bf16.msra.mxu0 %v2613
          %2709 = vmatprep.subr.bf16.mxu0 0
          %2710 = vmatpush1.bf16.msra.mxu0 %v2614
          %2711 = vmatprep.subr.bf16.mxu0 0
          %2712 = vmatpush1.bf16.msra.mxu0 %v2615
          %2713 = vmatprep.subr.bf16.mxu0 0
          %2714 = vmatpush1.bf16.msra.mxu0 %v2616
          %2715 = vmatprep.subr.bf16.mxu0 0
          %2716 = vmatpush1.bf16.msra.mxu0 %v2617
          %2717 = vmatprep.subr.bf16.mxu0 0
          %2718 = vmatpush1.bf16.msra.mxu0 %v2618
          %2719 = vmatprep.subr.bf16.mxu0 0
          %2720 = vmatpush1.bf16.msra.mxu0 %v2619
          %2721 = vmatprep.subr.bf16.mxu0 0
          %2722 = vmatpush1.bf16.msra.mxu0 %v2620
          %2723 = vmatprep.subr.bf16.mxu0 0
          %2724 = vmatpush1.bf16.msra.mxu0 %v2621
          %2725 = vmatprep.subr.bf16.mxu0 0
          %2726 = vmatpush1.bf16.msra.mxu0 %v2622
          %2727 = vmatprep.subr.bf16.mxu0 0
          %2728 = vmatpush1.bf16.msra.mxu0 %v2623
          %2729 = vmatprep.mubr.bf16.mxu0 %v2463
          %2730 = vmatmul.mubr.bf16.gmra.mrb[0].mxu0 %v2462
          %v2731 = vpop.f32.mrb[0].mxu0
          %v2732 = vadd.f32 %v2691, %v2731
          %v2733 = vpop.f32.mrb[0].mxu0
          %v2734 = vpop.f32.mrb[0].mxu0
          %v2735 = vadd.f32 %v2694, %v2734
          %v2736 = vpop.f32.mrb[0].mxu0
          %2737 = vdwg.mxu0
          %v2738 = vadd.f32 %v2228, %v2732
          %v2739 = vadd.f32 %v2228, %v2735
          %s2740 = scalar_lea.vmem %s1307, 16
          %v2741 = vld [vmem:[%s2740] sm:$0xff]
          %v2742 = vld [vmem:[%s2740 + $0x8] sm:$0xff]
          %v2743 = vld [vmem:[%s2740 + $0x40] sm:$0xff]
          %v2744 = vld [vmem:[%s2740 + $0x48] sm:$0xff]
          %v2745 = vld [vmem:[%s2740 + $0x80] sm:$0xff]
          %v2746 = vld [vmem:[%s2740 + $0x88] sm:$0xff]
          %v2747 = vld [vmem:[%s2740 + $0xc0] sm:$0xff]
          %v2748 = vld [vmem:[%s2740 + $0xc8] sm:$0xff]
          %s2749 = scalar_lea.vmem %s1315, 4
          %v2750 = vld [vmem:[%s2749] sm:$0xf]
          %v2752 = vlaneseq
          %v2753 = vshrl.u32 %v2752, 7
          %v2754 = vsub.s32 0, %v2753
          %v2755 = vrot.slane %v2750, %v2754
          %v2756 = vlaneseq
          %v2757 = vshrl.u32 %v2756, 7
          %v2758 = vsub.s32 1, %v2757
          %v2759 = vrot.slane %v2750, %v2758
          %v2760 = vlaneseq
          %v2761 = vshrl.u32 %v2760, 7
          %v2762 = vsub.s32 2, %v2761
          %v2763 = vrot.slane %v2750, %v2762
          %v2764 = vlaneseq
          %v2765 = vshrl.u32 %v2764, 7
          %v2766 = vsub.s32 3, %v2765
          %v2767 = vrot.slane %v2750, %v2766
          %v2780 = vunpack.c.l.b16 %v2741
          %v2781 = vunpack.c.h.b16 %v2741
          %v2782 = vunpack.c.l.b16 %v2742
          %v2783 = vunpack.c.h.b16 %v2742
          %v2784 = vunpack.c.l.b16 %v2743
          %v2785 = vunpack.c.h.b16 %v2743
          %v2786 = vunpack.c.l.b16 %v2744
          %v2787 = vunpack.c.h.b16 %v2744
          %v2788 = vunpack.c.l.b16 %v2745
          %v2789 = vunpack.c.h.b16 %v2745
          %v2790 = vunpack.c.l.b16 %v2746
          %v2791 = vunpack.c.h.b16 %v2746
          %v2792 = vunpack.c.l.b16 %v2747
          %v2793 = vunpack.c.h.b16 %v2747
          %v2794 = vunpack.c.l.b16 %v2748
          %v2795 = vunpack.c.h.b16 %v2748
          %v2796 = vpack.c.b16 %v2784, %v2780
          %v2797 = vpack.c.b16 %v2785, %v2781
          %v2798 = vpack.c.b16 %v2786, %v2782
          %v2799 = vpack.c.b16 %v2787, %v2783
          %v2800 = vpack.c.b16 %v2792, %v2788
          %v2801 = vpack.c.b16 %v2793, %v2789
          %v2802 = vpack.c.b16 %v2794, %v2790
          %v2803 = vpack.c.b16 %v2795, %v2791
          %2812 = vmatprep.subr.bf16.mxu0 %v2797
          %2813 = vmatpush1.bf16.msra.mxu0 %v2796
          %2814 = vmatprep.subr.bf16.mxu0 %v2801
          %2815 = vmatpush1.bf16.msra.mxu0 %v2800
          %2816 = vmatprep.subr.bf16.mxu0 0
          %2817 = vmatpush1.bf16.msra.mxu0 0
          %2818 = vmatprep.subr.bf16.mxu0 0
          %2819 = vmatpush1.bf16.msra.mxu0 0
          %2820 = vmatprep.subr.bf16.mxu0 0
          %2821 = vmatpush1.bf16.msra.mxu0 0
          %2822 = vmatprep.subr.bf16.mxu0 0
          %2823 = vmatpush1.bf16.msra.mxu0 0
          %2824 = vmatprep.subr.bf16.mxu0 0
          %2825 = vmatpush1.bf16.msra.mxu0 0
          %2826 = vmatprep.subr.bf16.mxu0 0
          %2827 = vmatpush1.bf16.msra.mxu0 0
          %2828 = vmatprep.subr.bf16.mxu0 0
          %2829 = vmatpush1.bf16.msra.mxu0 0
          %2830 = vmatprep.subr.bf16.mxu0 0
          %2831 = vmatpush1.bf16.msra.mxu0 0
          %2832 = vmatprep.subr.bf16.mxu0 0
          %2833 = vmatpush1.bf16.msra.mxu0 0
          %2834 = vmatprep.subr.bf16.mxu0 0
          %2835 = vmatpush1.bf16.msra.mxu0 0
          %2836 = vmatprep.subr.bf16.mxu0 0
          %2837 = vmatpush1.bf16.msra.mxu0 0
          %2838 = vmatprep.subr.bf16.mxu0 0
          %2839 = vmatpush1.bf16.msra.mxu0 0
          %2840 = vmatprep.subr.bf16.mxu0 0
          %2841 = vmatpush1.bf16.msra.mxu0 0
          %2842 = vmatprep.subr.bf16.mxu0 0
          %2843 = vmatpush1.bf16.msra.mxu0 0
          %2844 = vmatprep.mubr.bf16.mxu0 0
          %2845 = vmatmul.mubr.bf16.gmra.mrb[0].mxu0 %v2300
          %v2846 = vpop.f32.mrb[0].mxu0
          %v2847 = vadd.f32 %v2755, %v2846
          %v2848 = vpop.f32.mrb[0].mxu0
          %v2849 = vadd.f32 %v2759, %v2848
          %v2850 = vpop.f32.mrb[0].mxu0
          %v2851 = vadd.f32 %v2755, %v2850
          %v2852 = vpop.f32.mrb[0].mxu0
          %v2853 = vadd.f32 %v2759, %v2852
          %2854 = vdwg.mxu0
          %2855 = vmatprep.subr.bf16.mxu0 %v2799
          %2856 = vmatpush1.bf16.msra.mxu0 %v2798
          %2857 = vmatprep.subr.bf16.mxu0 %v2803
          %2858 = vmatpush1.bf16.msra.mxu0 %v2802
          %2859 = vmatprep.subr.bf16.mxu0 0
          %2860 = vmatpush1.bf16.msra.mxu0 0
          %2861 = vmatprep.subr.bf16.mxu0 0
          %2862 = vmatpush1.bf16.msra.mxu0 0
          %2863 = vmatprep.subr.bf16.mxu0 0
          %2864 = vmatpush1.bf16.msra.mxu0 0
          %2865 = vmatprep.subr.bf16.mxu0 0
          %2866 = vmatpush1.bf16.msra.mxu0 0
          %2867 = vmatprep.subr.bf16.mxu0 0
          %2868 = vmatpush1.bf16.msra.mxu0 0
          %2869 = vmatprep.subr.bf16.mxu0 0
          %2870 = vmatpush1.bf16.msra.mxu0 0
          %2871 = vmatprep.subr.bf16.mxu0 0
          %2872 = vmatpush1.bf16.msra.mxu0 0
          %2873 = vmatprep.subr.bf16.mxu0 0
          %2874 = vmatpush1.bf16.msra.mxu0 0
          %2875 = vmatprep.subr.bf16.mxu0 0
          %2876 = vmatpush1.bf16.msra.mxu0 0
          %2877 = vmatprep.subr.bf16.mxu0 0
          %2878 = vmatpush1.bf16.msra.mxu0 0
          %2879 = vmatprep.subr.bf16.mxu0 0
          %2880 = vmatpush1.bf16.msra.mxu0 0
          %2881 = vmatprep.subr.bf16.mxu0 0
          %2882 = vmatpush1.bf16.msra.mxu0 0
          %2883 = vmatprep.subr.bf16.mxu0 0
          %2884 = vmatpush1.bf16.msra.mxu0 0
          %2885 = vmatprep.subr.bf16.mxu0 0
          %2886 = vmatpush1.bf16.msra.mxu0 0
          %2887 = vmatprep.mubr.bf16.mxu0 0
          %2888 = vmatmul.mubr.bf16.gmra.mrb[0].mxu0 %v2300
          %v2889 = vpop.f32.mrb[0].mxu0
          %v2890 = vadd.f32 %v2763, %v2889
          %v2891 = vpop.f32.mrb[0].mxu0
          %v2892 = vadd.f32 %v2767, %v2891
          %v2893 = vpop.f32.mrb[0].mxu0
          %v2894 = vadd.f32 %v2763, %v2893
          %v2895 = vpop.f32.mrb[0].mxu0
          %v2896 = vadd.f32 %v2767, %v2895
          %2897 = vdwg.mxu0
          %v2898 = vmax.f32 %v2847, 0.0
          %v2899 = vmax.f32 %v2849, 0.0
          %v2900 = vmax.f32 %v2890, 0.0
          %v2901 = vmax.f32 %v2892, 0.0
          %v2902 = vmax.f32 %v2851, 0.0
          %v2903 = vmax.f32 %v2853, 0.0
          %v2904 = vmax.f32 %v2894, 0.0
          %v2905 = vmax.f32 %v2896, 0.0
          %s2906 = scalar_lea.vmem %s1324, 256
          %v2907 = vld [vmem:[%s2906] sm:$0xf]
          %v2908 = vld [vmem:[%s2906 + $0x4] sm:$0xf]
          %v2909 = vld [vmem:[%s2906 + $0x8] sm:$0xf]
          %v2910 = vld [vmem:[%s2906 + $0xc] sm:$0xf]
          %v2911 = vld [vmem:[%s2906 + $0x10] sm:$0xf]
          %v2912 = vld [vmem:[%s2906 + $0x14] sm:$0xf]
          %v2913 = vld [vmem:[%s2906 + $0x18] sm:$0xf]
          %v2914 = vld [vmem:[%s2906 + $0x1c] sm:$0xf]
          %v2915 = vld [vmem:[%s2906 + $0x20] sm:$0xf]
          %v2916 = vld [vmem:[%s2906 + $0x24] sm:$0xf]
          %v2917 = vld [vmem:[%s2906 + $0x28] sm:$0xf]
          %v2918 = vld [vmem:[%s2906 + $0x2c] sm:$0xf]
          %v2919 = vld [vmem:[%s2906 + $0x30] sm:$0xf]
          %v2920 = vld [vmem:[%s2906 + $0x34] sm:$0xf]
          %v2921 = vld [vmem:[%s2906 + $0x38] sm:$0xf]
          %v2922 = vld [vmem:[%s2906 + $0x3c] sm:$0xf]
          %v2923 = vld [vmem:[%s2906 + $0x40] sm:$0xf]
          %v2924 = vld [vmem:[%s2906 + $0x44] sm:$0xf]
          %v2925 = vld [vmem:[%s2906 + $0x48] sm:$0xf]
          %v2926 = vld [vmem:[%s2906 + $0x4c] sm:$0xf]
          %v2927 = vld [vmem:[%s2906 + $0x50] sm:$0xf]
          %v2928 = vld [vmem:[%s2906 + $0x54] sm:$0xf]
          %v2929 = vld [vmem:[%s2906 + $0x58] sm:$0xf]
          %v2930 = vld [vmem:[%s2906 + $0x5c] sm:$0xf]
          %v2931 = vld [vmem:[%s2906 + $0x60] sm:$0xf]
          %v2932 = vld [vmem:[%s2906 + $0x64] sm:$0xf]
          %v2933 = vld [vmem:[%s2906 + $0x68] sm:$0xf]
          %v2934 = vld [vmem:[%s2906 + $0x6c] sm:$0xf]
          %v2935 = vld [vmem:[%s2906 + $0x70] sm:$0xf]
          %v2936 = vld [vmem:[%s2906 + $0x74] sm:$0xf]
          %v2937 = vld [vmem:[%s2906 + $0x78] sm:$0xf]
          %v2938 = vld [vmem:[%s2906 + $0x7c] sm:$0xf]
          %v2939 = vld [vmem:[%s2906 + $0x80] sm:$0xf]
          %v2940 = vld [vmem:[%s2906 + $0x84] sm:$0xf]
          %v2941 = vld [vmem:[%s2906 + $0x88] sm:$0xf]
          %v2942 = vld [vmem:[%s2906 + $0x8c] sm:$0xf]
          %v2943 = vld [vmem:[%s2906 + $0x90] sm:$0xf]
          %v2944 = vld [vmem:[%s2906 + $0x94] sm:$0xf]
          %v2945 = vld [vmem:[%s2906 + $0x98] sm:$0xf]
          %v2946 = vld [vmem:[%s2906 + $0x9c] sm:$0xf]
          %v2947 = vld [vmem:[%s2906 + $0xa0] sm:$0xf]
          %v2948 = vld [vmem:[%s2906 + $0xa4] sm:$0xf]
          %v2949 = vld [vmem:[%s2906 + $0xa8] sm:$0xf]
          %v2950 = vld [vmem:[%s2906 + $0xac] sm:$0xf]
          %v2951 = vld [vmem:[%s2906 + $0xb0] sm:$0xf]
          %v2952 = vld [vmem:[%s2906 + $0xb4] sm:$0xf]
          %v2953 = vld [vmem:[%s2906 + $0xb8] sm:$0xf]
          %v2954 = vld [vmem:[%s2906 + $0xbc] sm:$0xf]
          %v2955 = vld [vmem:[%s2906 + $0xc0] sm:$0xf]
          %v2956 = vld [vmem:[%s2906 + $0xc4] sm:$0xf]
          %v2957 = vld [vmem:[%s2906 + $0xc8] sm:$0xf]
          %v2958 = vld [vmem:[%s2906 + $0xcc] sm:$0xf]
          %v2959 = vld [vmem:[%s2906 + $0xd0] sm:$0xf]
          %v2960 = vld [vmem:[%s2906 + $0xd4] sm:$0xf]
          %v2961 = vld [vmem:[%s2906 + $0xd8] sm:$0xf]
          %v2962 = vld [vmem:[%s2906 + $0xdc] sm:$0xf]
          %v2963 = vld [vmem:[%s2906 + $0xe0] sm:$0xf]
          %v2964 = vld [vmem:[%s2906 + $0xe4] sm:$0xf]
          %v2965 = vld [vmem:[%s2906 + $0xe8] sm:$0xf]
          %v2966 = vld [vmem:[%s2906 + $0xec] sm:$0xf]
          %v2967 = vld [vmem:[%s2906 + $0xf0] sm:$0xf]
          %v2968 = vld [vmem:[%s2906 + $0xf4] sm:$0xf]
          %v2969 = vld [vmem:[%s2906 + $0xf8] sm:$0xf]
          %v2970 = vld [vmem:[%s2906 + $0xfc] sm:$0xf]
          %v2971 = vpack.c.bf16 %v2902, %v2898
          %v2972 = vpack.c.bf16 %v2903, %v2899
          %v2973 = vpack.c.bf16 %v2904, %v2900
          %v2974 = vpack.c.bf16 %v2905, %v2901
          %v3039 = vunpack.c.l.b16 %v2907
          %v3040 = vunpack.c.l.b16 %v2908
          %v3041 = vunpack.c.l.b16 %v2909
          %v3042 = vunpack.c.l.b16 %v2910
          %v3043 = vunpack.c.l.b16 %v2911
          %v3044 = vunpack.c.l.b16 %v2912
          %v3045 = vunpack.c.l.b16 %v2913
          %v3046 = vunpack.c.l.b16 %v2914
          %v3047 = vunpack.c.l.b16 %v2915
          %v3048 = vunpack.c.l.b16 %v2916
          %v3049 = vunpack.c.l.b16 %v2917
          %v3050 = vunpack.c.l.b16 %v2918
          %v3051 = vunpack.c.l.b16 %v2919
          %v3052 = vunpack.c.l.b16 %v2920
          %v3053 = vunpack.c.l.b16 %v2921
          %v3054 = vunpack.c.l.b16 %v2922
          %v3055 = vunpack.c.l.b16 %v2923
          %v3056 = vunpack.c.l.b16 %v2924
          %v3057 = vunpack.c.l.b16 %v2925
          %v3058 = vunpack.c.l.b16 %v2926
          %v3059 = vunpack.c.l.b16 %v2927
          %v3060 = vunpack.c.l.b16 %v2928
          %v3061 = vunpack.c.l.b16 %v2929
          %v3062 = vunpack.c.l.b16 %v2930
          %v3063 = vunpack.c.l.b16 %v2931
          %v3064 = vunpack.c.l.b16 %v2932
          %v3065 = vunpack.c.l.b16 %v2933
          %v3066 = vunpack.c.l.b16 %v2934
          %v3067 = vunpack.c.l.b16 %v2935
          %v3068 = vunpack.c.l.b16 %v2936
          %v3069 = vunpack.c.l.b16 %v2937
          %v3070 = vunpack.c.l.b16 %v2938
          %v3071 = vunpack.c.l.b16 %v2939
          %v3072 = vunpack.c.l.b16 %v2940
          %v3073 = vunpack.c.l.b16 %v2941
          %v3074 = vunpack.c.l.b16 %v2942
          %v3075 = vunpack.c.l.b16 %v2943
          %v3076 = vunpack.c.l.b16 %v2944
          %v3077 = vunpack.c.l.b16 %v2945
          %v3078 = vunpack.c.l.b16 %v2946
          %v3079 = vunpack.c.l.b16 %v2947
          %v3080 = vunpack.c.l.b16 %v2948
          %v3081 = vunpack.c.l.b16 %v2949
          %v3082 = vunpack.c.l.b16 %v2950
          %v3083 = vunpack.c.l.b16 %v2951
          %v3084 = vunpack.c.l.b16 %v2952
          %v3085 = vunpack.c.l.b16 %v2953
          %v3086 = vunpack.c.l.b16 %v2954
          %v3087 = vunpack.c.l.b16 %v2955
          %v3088 = vunpack.c.l.b16 %v2956
          %v3089 = vunpack.c.l.b16 %v2957
          %v3090 = vunpack.c.l.b16 %v2958
          %v3091 = vunpack.c.l.b16 %v2959
          %v3092 = vunpack.c.l.b16 %v2960
          %v3093 = vunpack.c.l.b16 %v2961
          %v3094 = vunpack.c.l.b16 %v2962
          %v3095 = vunpack.c.l.b16 %v2963
          %v3096 = vunpack.c.l.b16 %v2964
          %v3097 = vunpack.c.l.b16 %v2965
          %v3098 = vunpack.c.l.b16 %v2966
          %v3099 = vunpack.c.l.b16 %v2967
          %v3100 = vunpack.c.l.b16 %v2968
          %v3101 = vunpack.c.l.b16 %v2969
          %v3102 = vunpack.c.l.b16 %v2970
          %v3103 = vpack.c.b16 %v3040, %v3039
          %v3104 = vpack.c.b16 %v3042, %v3041
          %v3105 = vpack.c.b16 %v3044, %v3043
          %v3106 = vpack.c.b16 %v3046, %v3045
          %v3107 = vpack.c.b16 %v3048, %v3047
          %v3108 = vpack.c.b16 %v3050, %v3049
          %v3109 = vpack.c.b16 %v3052, %v3051
          %v3110 = vpack.c.b16 %v3054, %v3053
          %v3111 = vpack.c.b16 %v3056, %v3055
          %v3112 = vpack.c.b16 %v3058, %v3057
          %v3113 = vpack.c.b16 %v3060, %v3059
          %v3114 = vpack.c.b16 %v3062, %v3061
          %v3115 = vpack.c.b16 %v3064, %v3063
          %v3116 = vpack.c.b16 %v3066, %v3065
          %v3117 = vpack.c.b16 %v3068, %v3067
          %v3118 = vpack.c.b16 %v3070, %v3069
          %v3119 = vpack.c.b16 %v3072, %v3071
          %v3120 = vpack.c.b16 %v3074, %v3073
          %v3121 = vpack.c.b16 %v3076, %v3075
          %v3122 = vpack.c.b16 %v3078, %v3077
          %v3123 = vpack.c.b16 %v3080, %v3079
          %v3124 = vpack.c.b16 %v3082, %v3081
          %v3125 = vpack.c.b16 %v3084, %v3083
          %v3126 = vpack.c.b16 %v3086, %v3085
          %v3127 = vpack.c.b16 %v3088, %v3087
          %v3128 = vpack.c.b16 %v3090, %v3089
          %v3129 = vpack.c.b16 %v3092, %v3091
          %v3130 = vpack.c.b16 %v3094, %v3093
          %v3131 = vpack.c.b16 %v3096, %v3095
          %v3132 = vpack.c.b16 %v3098, %v3097
          %v3133 = vpack.c.b16 %v3100, %v3099
          %v3134 = vpack.c.b16 %v3102, %v3101
          %3167 = vmatprep.subr.bf16.mxu0 0
          %3168 = vmatpush1.bf16.msra.mxu0 %v3103
          %3169 = vmatprep.subr.bf16.mxu0 0
          %3170 = vmatpush1.bf16.msra.mxu0 %v3104
          %3171 = vmatprep.subr.bf16.mxu0 0
          %3172 = vmatpush1.bf16.msra.mxu0 %v3105
          %3173 = vmatprep.subr.bf16.mxu0 0
          %3174 = vmatpush1.bf16.msra.mxu0 %v3106
          %3175 = vmatprep.subr.bf16.mxu0 0
          %3176 = vmatpush1.bf16.msra.mxu0 %v3107
          %3177 = vmatprep.subr.bf16.mxu0 0
          %3178 = vmatpush1.bf16.msra.mxu0 %v3108
          %3179 = vmatprep.subr.bf16.mxu0 0
          %3180 = vmatpush1.bf16.msra.mxu0 %v3109
          %3181 = vmatprep.subr.bf16.mxu0 0
          %3182 = vmatpush1.bf16.msra.mxu0 %v3110
          %3183 = vmatprep.subr.bf16.mxu0 0
          %3184 = vmatpush1.bf16.msra.mxu0 %v3111
          %3185 = vmatprep.subr.bf16.mxu0 0
          %3186 = vmatpush1.bf16.msra.mxu0 %v3112
          %3187 = vmatprep.subr.bf16.mxu0 0
          %3188 = vmatpush1.bf16.msra.mxu0 %v3113
          %3189 = vmatprep.subr.bf16.mxu0 0
          %3190 = vmatpush1.bf16.msra.mxu0 %v3114
          %3191 = vmatprep.subr.bf16.mxu0 0
          %3192 = vmatpush1.bf16.msra.mxu0 %v3115
          %3193 = vmatprep.subr.bf16.mxu0 0
          %3194 = vmatpush1.bf16.msra.mxu0 %v3116
          %3195 = vmatprep.subr.bf16.mxu0 0
          %3196 = vmatpush1.bf16.msra.mxu0 %v3117
          %3197 = vmatprep.subr.bf16.mxu0 0
          %3198 = vmatpush1.bf16.msra.mxu0 %v3118
          %3199 = vmatprep.mubr.bf16.mxu0 %v2972
          %3200 = vmatmul.mubr.bf16.gmra.mrb[0].mxu0 %v2971
          %v3201 = vpop.f32.mrb[0].mxu0
          %v3202 = vadd.f32 0.0, %v3201
          %v3203 = vpop.f32.mrb[0].mxu0
          %v3204 = vpop.f32.mrb[0].mxu0
          %v3205 = vadd.f32 0.0, %v3204
          %v3206 = vpop.f32.mrb[0].mxu0
          %3207 = vdwg.mxu0
          %3208 = vmatprep.subr.bf16.mxu0 0
          %3209 = vmatpush1.bf16.msra.mxu0 %v3119
          %3210 = vmatprep.subr.bf16.mxu0 0
          %3211 = vmatpush1.bf16.msra.mxu0 %v3120
          %3212 = vmatprep.subr.bf16.mxu0 0
          %3213 = vmatpush1.bf16.msra.mxu0 %v3121
          %3214 = vmatprep.subr.bf16.mxu0 0
          %3215 = vmatpush1.bf16.msra.mxu0 %v3122
          %3216 = vmatprep.subr.bf16.mxu0 0
          %3217 = vmatpush1.bf16.msra.mxu0 %v3123
          %3218 = vmatprep.subr.bf16.mxu0 0
          %3219 = vmatpush1.bf16.msra.mxu0 %v3124
          %3220 = vmatprep.subr.bf16.mxu0 0
          %3221 = vmatpush1.bf16.msra.mxu0 %v3125
          %3222 = vmatprep.subr.bf16.mxu0 0
          %3223 = vmatpush1.bf16.msra.mxu0 %v3126
          %3224 = vmatprep.subr.bf16.mxu0 0
          %3225 = vmatpush1.bf16.msra.mxu0 %v3127
          %3226 = vmatprep.subr.bf16.mxu0 0
          %3227 = vmatpush1.bf16.msra.mxu0 %v3128
          %3228 = vmatprep.subr.bf16.mxu0 0
          %3229 = vmatpush1.bf16.msra.mxu0 %v3129
          %3230 = vmatprep.subr.bf16.mxu0 0
          %3231 = vmatpush1.bf16.msra.mxu0 %v3130
          %3232 = vmatprep.subr.bf16.mxu0 0
          %3233 = vmatpush1.bf16.msra.mxu0 %v3131
          %3234 = vmatprep.subr.bf16.mxu0 0
          %3235 = vmatpush1.bf16.msra.mxu0 %v3132
          %3236 = vmatprep.subr.bf16.mxu0 0
          %3237 = vmatpush1.bf16.msra.mxu0 %v3133
          %3238 = vmatprep.subr.bf16.mxu0 0
          %3239 = vmatpush1.bf16.msra.mxu0 %v3134
          %3240 = vmatprep.mubr.bf16.mxu0 %v2974
          %3241 = vmatmul.mubr.bf16.gmra.mrb[0].mxu0 %v2973
          %v3242 = vpop.f32.mrb[0].mxu0
          %v3243 = vadd.f32 %v3202, %v3242
          %v3244 = vpop.f32.mrb[0].mxu0
          %v3245 = vpop.f32.mrb[0].mxu0
          %v3246 = vadd.f32 %v3205, %v3245
          %v3247 = vpop.f32.mrb[0].mxu0
          %3248 = vdwg.mxu0
          %v3249 = vadd.f32 %v2738, %v3243
          %v3250 = vadd.f32 %v2739, %v3246
          %s3251 = scalar_lea.vmem %s1307, 32
          %v3252 = vld [vmem:[%s3251] sm:$0xff]
          %v3253 = vld [vmem:[%s3251 + $0x8] sm:$0xff]
          %v3254 = vld [vmem:[%s3251 + $0x40] sm:$0xff]
          %v3255 = vld [vmem:[%s3251 + $0x48] sm:$0xff]
          %v3256 = vld [vmem:[%s3251 + $0x80] sm:$0xff]
          %v3257 = vld [vmem:[%s3251 + $0x88] sm:$0xff]
          %v3258 = vld [vmem:[%s3251 + $0xc0] sm:$0xff]
          %v3259 = vld [vmem:[%s3251 + $0xc8] sm:$0xff]
          %s3260 = scalar_lea.vmem %s1315, 8
          %v3261 = vld [vmem:[%s3260] sm:$0xf]
          %v3263 = vlaneseq
          %v3264 = vshrl.u32 %v3263, 7
          %v3265 = vsub.s32 0, %v3264
          %v3266 = vrot.slane %v3261, %v3265
          %v3267 = vlaneseq
          %v3268 = vshrl.u32 %v3267, 7
          %v3269 = vsub.s32 1, %v3268
          %v3270 = vrot.slane %v3261, %v3269
          %v3271 = vlaneseq
          %v3272 = vshrl.u32 %v3271, 7
          %v3273 = vsub.s32 2, %v3272
          %v3274 = vrot.slane %v3261, %v3273
          %v3275 = vlaneseq
          %v3276 = vshrl.u32 %v3275, 7
          %v3277 = vsub.s32 3, %v3276
          %v3278 = vrot.slane %v3261, %v3277
          %v3291 = vunpack.c.l.b16 %v3252
          %v3292 = vunpack.c.h.b16 %v3252
          %v3293 = vunpack.c.l.b16 %v3253
          %v3294 = vunpack.c.h.b16 %v3253
          %v3295 = vunpack.c.l.b16 %v3254
          %v3296 = vunpack.c.h.b16 %v3254
          %v3297 = vunpack.c.l.b16 %v3255
          %v3298 = vunpack.c.h.b16 %v3255
          %v3299 = vunpack.c.l.b16 %v3256
          %v3300 = vunpack.c.h.b16 %v3256
          %v3301 = vunpack.c.l.b16 %v3257
          %v3302 = vunpack.c.h.b16 %v3257
          %v3303 = vunpack.c.l.b16 %v3258
          %v3304 = vunpack.c.h.b16 %v3258
          %v3305 = vunpack.c.l.b16 %v3259
          %v3306 = vunpack.c.h.b16 %v3259
          %v3307 = vpack.c.b16 %v3295, %v3291
          %v3308 = vpack.c.b16 %v3296, %v3292
          %v3309 = vpack.c.b16 %v3297, %v3293
          %v3310 = vpack.c.b16 %v3298, %v3294
          %v3311 = vpack.c.b16 %v3303, %v3299
          %v3312 = vpack.c.b16 %v3304, %v3300
          %v3313 = vpack.c.b16 %v3305, %v3301
          %v3314 = vpack.c.b16 %v3306, %v3302
          %3323 = vmatprep.subr.bf16.mxu0 %v3308
          %3324 = vmatpush1.bf16.msra.mxu0 %v3307
          %3325 = vmatprep.subr.bf16.mxu0 %v3312
          %3326 = vmatpush1.bf16.msra.mxu0 %v3311
          %3327 = vmatprep.subr.bf16.mxu0 0
          %3328 = vmatpush1.bf16.msra.mxu0 0
          %3329 = vmatprep.subr.bf16.mxu0 0
          %3330 = vmatpush1.bf16.msra.mxu0 0
          %3331 = vmatprep.subr.bf16.mxu0 0
          %3332 = vmatpush1.bf16.msra.mxu0 0
          %3333 = vmatprep.subr.bf16.mxu0 0
          %3334 = vmatpush1.bf16.msra.mxu0 0
          %3335 = vmatprep.subr.bf16.mxu0 0
          %3336 = vmatpush1.bf16.msra.mxu0 0
          %3337 = vmatprep.subr.bf16.mxu0 0
          %3338 = vmatpush1.bf16.msra.mxu0 0
          %3339 = vmatprep.subr.bf16.mxu0 0
          %3340 = vmatpush1.bf16.msra.mxu0 0
          %3341 = vmatprep.subr.bf16.mxu0 0
          %3342 = vmatpush1.bf16.msra.mxu0 0
          %3343 = vmatprep.subr.bf16.mxu0 0
          %3344 = vmatpush1.bf16.msra.mxu0 0
          %3345 = vmatprep.subr.bf16.mxu0 0
          %3346 = vmatpush1.bf16.msra.mxu0 0
          %3347 = vmatprep.subr.bf16.mxu0 0
          %3348 = vmatpush1.bf16.msra.mxu0 0
          %3349 = vmatprep.subr.bf16.mxu0 0
          %3350 = vmatpush1.bf16.msra.mxu0 0
          %3351 = vmatprep.subr.bf16.mxu0 0
          %3352 = vmatpush1.bf16.msra.mxu0 0
          %3353 = vmatprep.subr.bf16.mxu0 0
          %3354 = vmatpush1.bf16.msra.mxu0 0
          %3355 = vmatprep.mubr.bf16.mxu0 0
          %3356 = vmatmul.mubr.bf16.gmra.mrb[0].mxu0 %v2300
          %v3357 = vpop.f32.mrb[0].mxu0
          %v3358 = vadd.f32 %v3266, %v3357
          %v3359 = vpop.f32.mrb[0].mxu0
          %v3360 = vadd.f32 %v3270, %v3359
          %v3361 = vpop.f32.mrb[0].mxu0
          %v3362 = vadd.f32 %v3266, %v3361
          %v3363 = vpop.f32.mrb[0].mxu0
          %v3364 = vadd.f32 %v3270, %v3363
          %3365 = vdwg.mxu0
          %3366 = vmatprep.subr.bf16.mxu0 %v3310
          %3367 = vmatpush1.bf16.msra.mxu0 %v3309
          %3368 = vmatprep.subr.bf16.mxu0 %v3314
          %3369 = vmatpush1.bf16.msra.mxu0 %v3313
          %3370 = vmatprep.subr.bf16.mxu0 0
          %3371 = vmatpush1.bf16.msra.mxu0 0
          %3372 = vmatprep.subr.bf16.mxu0 0
          %3373 = vmatpush1.bf16.msra.mxu0 0
          %3374 = vmatprep.subr.bf16.mxu0 0
          %3375 = vmatpush1.bf16.msra.mxu0 0
          %3376 = vmatprep.subr.bf16.mxu0 0
          %3377 = vmatpush1.bf16.msra.mxu0 0
          %3378 = vmatprep.subr.bf16.mxu0 0
          %3379 = vmatpush1.bf16.msra.mxu0 0
          %3380 = vmatprep.subr.bf16.mxu0 0
          %3381 = vmatpush1.bf16.msra.mxu0 0
          %3382 = vmatprep.subr.bf16.mxu0 0
          %3383 = vmatpush1.bf16.msra.mxu0 0
          %3384 = vmatprep.subr.bf16.mxu0 0
          %3385 = vmatpush1.bf16.msra.mxu0 0
          %3386 = vmatprep.subr.bf16.mxu0 0
          %3387 = vmatpush1.bf16.msra.mxu0 0
          %3388 = vmatprep.subr.bf16.mxu0 0
          %3389 = vmatpush1.bf16.msra.mxu0 0
          %3390 = vmatprep.subr.bf16.mxu0 0
          %3391 = vmatpush1.bf16.msra.mxu0 0
          %3392 = vmatprep.subr.bf16.mxu0 0
          %3393 = vmatpush1.bf16.msra.mxu0 0
          %3394 = vmatprep.subr.bf16.mxu0 0
          %3395 = vmatpush1.bf16.msra.mxu0 0
          %3396 = vmatprep.subr.bf16.mxu0 0
          %3397 = vmatpush1.bf16.msra.mxu0 0
          %3398 = vmatprep.mubr.bf16.mxu0 0
          %3399 = vmatmul.mubr.bf16.gmra.mrb[0].mxu0 %v2300
          %v3400 = vpop.f32.mrb[0].mxu0
          %v3401 = vadd.f32 %v3274, %v3400
          %v3402 = vpop.f32.mrb[0].mxu0
          %v3403 = vadd.f32 %v3278, %v3402
          %v3404 = vpop.f32.mrb[0].mxu0
          %v3405 = vadd.f32 %v3274, %v3404
          %v3406 = vpop.f32.mrb[0].mxu0
          %v3407 = vadd.f32 %v3278, %v3406
          %3408 = vdwg.mxu0
          %v3409 = vmax.f32 %v3358, 0.0
          %v3410 = vmax.f32 %v3360, 0.0
          %v3411 = vmax.f32 %v3401, 0.0
          %v3412 = vmax.f32 %v3403, 0.0
          %v3413 = vmax.f32 %v3362, 0.0
          %v3414 = vmax.f32 %v3364, 0.0
          %v3415 = vmax.f32 %v3405, 0.0
          %v3416 = vmax.f32 %v3407, 0.0
          %s3417 = scalar_lea.vmem %s1324, 512
          %v3418 = vld [vmem:[%s3417] sm:$0xf]
          %v3419 = vld [vmem:[%s3417 + $0x4] sm:$0xf]
          %v3420 = vld [vmem:[%s3417 + $0x8] sm:$0xf]
          %v3421 = vld [vmem:[%s3417 + $0xc] sm:$0xf]
          %v3422 = vld [vmem:[%s3417 + $0x10] sm:$0xf]
          %v3423 = vld [vmem:[%s3417 + $0x14] sm:$0xf]
          %v3424 = vld [vmem:[%s3417 + $0x18] sm:$0xf]
          %v3425 = vld [vmem:[%s3417 + $0x1c] sm:$0xf]
          %v3426 = vld [vmem:[%s3417 + $0x20] sm:$0xf]
          %v3427 = vld [vmem:[%s3417 + $0x24] sm:$0xf]
          %v3428 = vld [vmem:[%s3417 + $0x28] sm:$0xf]
          %v3429 = vld [vmem:[%s3417 + $0x2c] sm:$0xf]
          %v3430 = vld [vmem:[%s3417 + $0x30] sm:$0xf]
          %v3431 = vld [vmem:[%s3417 + $0x34] sm:$0xf]
          %v3432 = vld [vmem:[%s3417 + $0x38] sm:$0xf]
          %v3433 = vld [vmem:[%s3417 + $0x3c] sm:$0xf]
          %v3434 = vld [vmem:[%s3417 + $0x40] sm:$0xf]
          %v3435 = vld [vmem:[%s3417 + $0x44] sm:$0xf]
          %v3436 = vld [vmem:[%s3417 + $0x48] sm:$0xf]
          %v3437 = vld [vmem:[%s3417 + $0x4c] sm:$0xf]
          %v3438 = vld [vmem:[%s3417 + $0x50] sm:$0xf]
          %v3439 = vld [vmem:[%s3417 + $0x54] sm:$0xf]
          %v3440 = vld [vmem:[%s3417 + $0x58] sm:$0xf]
          %v3441 = vld [vmem:[%s3417 + $0x5c] sm:$0xf]
          %v3442 = vld [vmem:[%s3417 + $0x60] sm:$0xf]
          %v3443 = vld [vmem:[%s3417 + $0x64] sm:$0xf]
          %v3444 = vld [vmem:[%s3417 + $0x68] sm:$0xf]
          %v3445 = vld [vmem:[%s3417 + $0x6c] sm:$0xf]
          %v3446 = vld [vmem:[%s3417 + $0x70] sm:$0xf]
          %v3447 = vld [vmem:[%s3417 + $0x74] sm:$0xf]
          %v3448 = vld [vmem:[%s3417 + $0x78] sm:$0xf]
          %v3449 = vld [vmem:[%s3417 + $0x7c] sm:$0xf]
          %v3450 = vld [vmem:[%s3417 + $0x80] sm:$0xf]
          %v3451 = vld [vmem:[%s3417 + $0x84] sm:$0xf]
          %v3452 = vld [vmem:[%s3417 + $0x88] sm:$0xf]
          %v3453 = vld [vmem:[%s3417 + $0x8c] sm:$0xf]
          %v3454 = vld [vmem:[%s3417 + $0x90] sm:$0xf]
          %v3455 = vld [vmem:[%s3417 + $0x94] sm:$0xf]
          %v3456 = vld [vmem:[%s3417 + $0x98] sm:$0xf]
          %v3457 = vld [vmem:[%s3417 + $0x9c] sm:$0xf]
          %v3458 = vld [vmem:[%s3417 + $0xa0] sm:$0xf]
          %v3459 = vld [vmem:[%s3417 + $0xa4] sm:$0xf]
          %v3460 = vld [vmem:[%s3417 + $0xa8] sm:$0xf]
          %v3461 = vld [vmem:[%s3417 + $0xac] sm:$0xf]
          %v3462 = vld [vmem:[%s3417 + $0xb0] sm:$0xf]
          %v3463 = vld [vmem:[%s3417 + $0xb4] sm:$0xf]
          %v3464 = vld [vmem:[%s3417 + $0xb8] sm:$0xf]
          %v3465 = vld [vmem:[%s3417 + $0xbc] sm:$0xf]
          %v3466 = vld [vmem:[%s3417 + $0xc0] sm:$0xf]
          %v3467 = vld [vmem:[%s3417 + $0xc4] sm:$0xf]
          %v3468 = vld [vmem:[%s3417 + $0xc8] sm:$0xf]
          %v3469 = vld [vmem:[%s3417 + $0xcc] sm:$0xf]
          %v3470 = vld [vmem:[%s3417 + $0xd0] sm:$0xf]
          %v3471 = vld [vmem:[%s3417 + $0xd4] sm:$0xf]
          %v3472 = vld [vmem:[%s3417 + $0xd8] sm:$0xf]
          %v3473 = vld [vmem:[%s3417 + $0xdc] sm:$0xf]
          %v3474 = vld [vmem:[%s3417 + $0xe0] sm:$0xf]
          %v3475 = vld [vmem:[%s3417 + $0xe4] sm:$0xf]
          %v3476 = vld [vmem:[%s3417 + $0xe8] sm:$0xf]
          %v3477 = vld [vmem:[%s3417 + $0xec] sm:$0xf]
          %v3478 = vld [vmem:[%s3417 + $0xf0] sm:$0xf]
          %v3479 = vld [vmem:[%s3417 + $0xf4] sm:$0xf]
          %v3480 = vld [vmem:[%s3417 + $0xf8] sm:$0xf]
          %v3481 = vld [vmem:[%s3417 + $0xfc] sm:$0xf]
          %v3482 = vpack.c.bf16 %v3413, %v3409
          %v3483 = vpack.c.bf16 %v3414, %v3410
          %v3484 = vpack.c.bf16 %v3415, %v3411
          %v3485 = vpack.c.bf16 %v3416, %v3412
          %v3550 = vunpack.c.l.b16 %v3418
          %v3551 = vunpack.c.l.b16 %v3419
          %v3552 = vunpack.c.l.b16 %v3420
          %v3553 = vunpack.c.l.b16 %v3421
          %v3554 = vunpack.c.l.b16 %v3422
          %v3555 = vunpack.c.l.b16 %v3423
          %v3556 = vunpack.c.l.b16 %v3424
          %v3557 = vunpack.c.l.b16 %v3425
          %v3558 = vunpack.c.l.b16 %v3426
          %v3559 = vunpack.c.l.b16 %v3427
          %v3560 = vunpack.c.l.b16 %v3428
          %v3561 = vunpack.c.l.b16 %v3429
          %v3562 = vunpack.c.l.b16 %v3430
          %v3563 = vunpack.c.l.b16 %v3431
          %v3564 = vunpack.c.l.b16 %v3432
          %v3565 = vunpack.c.l.b16 %v3433
          %v3566 = vunpack.c.l.b16 %v3434
          %v3567 = vunpack.c.l.b16 %v3435
          %v3568 = vunpack.c.l.b16 %v3436
          %v3569 = vunpack.c.l.b16 %v3437
          %v3570 = vunpack.c.l.b16 %v3438
          %v3571 = vunpack.c.l.b16 %v3439
          %v3572 = vunpack.c.l.b16 %v3440
          %v3573 = vunpack.c.l.b16 %v3441
          %v3574 = vunpack.c.l.b16 %v3442
          %v3575 = vunpack.c.l.b16 %v3443
          %v3576 = vunpack.c.l.b16 %v3444
          %v3577 = vunpack.c.l.b16 %v3445
          %v3578 = vunpack.c.l.b16 %v3446
          %v3579 = vunpack.c.l.b16 %v3447
          %v3580 = vunpack.c.l.b16 %v3448
          %v3581 = vunpack.c.l.b16 %v3449
          %v3582 = vunpack.c.l.b16 %v3450
          %v3583 = vunpack.c.l.b16 %v3451
          %v3584 = vunpack.c.l.b16 %v3452
          %v3585 = vunpack.c.l.b16 %v3453
          %v3586 = vunpack.c.l.b16 %v3454
          %v3587 = vunpack.c.l.b16 %v3455
          %v3588 = vunpack.c.l.b16 %v3456
          %v3589 = vunpack.c.l.b16 %v3457
          %v3590 = vunpack.c.l.b16 %v3458
          %v3591 = vunpack.c.l.b16 %v3459
          %v3592 = vunpack.c.l.b16 %v3460
          %v3593 = vunpack.c.l.b16 %v3461
          %v3594 = vunpack.c.l.b16 %v3462
          %v3595 = vunpack.c.l.b16 %v3463
          %v3596 = vunpack.c.l.b16 %v3464
          %v3597 = vunpack.c.l.b16 %v3465
          %v3598 = vunpack.c.l.b16 %v3466
          %v3599 = vunpack.c.l.b16 %v3467
          %v3600 = vunpack.c.l.b16 %v3468
          %v3601 = vunpack.c.l.b16 %v3469
          %v3602 = vunpack.c.l.b16 %v3470
          %v3603 = vunpack.c.l.b16 %v3471
          %v3604 = vunpack.c.l.b16 %v3472
          %v3605 = vunpack.c.l.b16 %v3473
          %v3606 = vunpack.c.l.b16 %v3474
          %v3607 = vunpack.c.l.b16 %v3475
          %v3608 = vunpack.c.l.b16 %v3476
          %v3609 = vunpack.c.l.b16 %v3477
          %v3610 = vunpack.c.l.b16 %v3478
          %v3611 = vunpack.c.l.b16 %v3479
          %v3612 = vunpack.c.l.b16 %v3480
          %v3613 = vunpack.c.l.b16 %v3481
          %v3614 = vpack.c.b16 %v3551, %v3550
          %v3615 = vpack.c.b16 %v3553, %v3552
          %v3616 = vpack.c.b16 %v3555, %v3554
          %v3617 = vpack.c.b16 %v3557, %v3556
          %v3618 = vpack.c.b16 %v3559, %v3558
          %v3619 = vpack.c.b16 %v3561, %v3560
          %v3620 = vpack.c.b16 %v3563, %v3562
          %v3621 = vpack.c.b16 %v3565, %v3564
          %v3622 = vpack.c.b16 %v3567, %v3566
          %v3623 = vpack.c.b16 %v3569, %v3568
          %v3624 = vpack.c.b16 %v3571, %v3570
          %v3625 = vpack.c.b16 %v3573, %v3572
          %v3626 = vpack.c.b16 %v3575, %v3574
          %v3627 = vpack.c.b16 %v3577, %v3576
          %v3628 = vpack.c.b16 %v3579, %v3578
          %v3629 = vpack.c.b16 %v3581, %v3580
          %v3630 = vpack.c.b16 %v3583, %v3582
          %v3631 = vpack.c.b16 %v3585, %v3584
          %v3632 = vpack.c.b16 %v3587, %v3586
          %v3633 = vpack.c.b16 %v3589, %v3588
          %v3634 = vpack.c.b16 %v3591, %v3590
          %v3635 = vpack.c.b16 %v3593, %v3592
          %v3636 = vpack.c.b16 %v3595, %v3594
          %v3637 = vpack.c.b16 %v3597, %v3596
          %v3638 = vpack.c.b16 %v3599, %v3598
          %v3639 = vpack.c.b16 %v3601, %v3600
          %v3640 = vpack.c.b16 %v3603, %v3602
          %v3641 = vpack.c.b16 %v3605, %v3604
          %v3642 = vpack.c.b16 %v3607, %v3606
          %v3643 = vpack.c.b16 %v3609, %v3608
          %v3644 = vpack.c.b16 %v3611, %v3610
          %v3645 = vpack.c.b16 %v3613, %v3612
          %3678 = vmatprep.subr.bf16.mxu0 0
          %3679 = vmatpush1.bf16.msra.mxu0 %v3614
          %3680 = vmatprep.subr.bf16.mxu0 0
          %3681 = vmatpush1.bf16.msra.mxu0 %v3615
          %3682 = vmatprep.subr.bf16.mxu0 0
          %3683 = vmatpush1.bf16.msra.mxu0 %v3616
          %3684 = vmatprep.subr.bf16.mxu0 0
          %3685 = vmatpush1.bf16.msra.mxu0 %v3617
          %3686 = vmatprep.subr.bf16.mxu0 0
          %3687 = vmatpush1.bf16.msra.mxu0 %v3618
          %3688 = vmatprep.subr.bf16.mxu0 0
          %3689 = vmatpush1.bf16.msra.mxu0 %v3619
          %3690 = vmatprep.subr.bf16.mxu0 0
          %3691 = vmatpush1.bf16.msra.mxu0 %v3620
          %3692 = vmatprep.subr.bf16.mxu0 0
          %3693 = vmatpush1.bf16.msra.mxu0 %v3621
          %3694 = vmatprep.subr.bf16.mxu0 0
          %3695 = vmatpush1.bf16.msra.mxu0 %v3622
          %3696 = vmatprep.subr.bf16.mxu0 0
          %3697 = vmatpush1.bf16.msra.mxu0 %v3623
          %3698 = vmatprep.subr.bf16.mxu0 0
          %3699 = vmatpush1.bf16.msra.mxu0 %v3624
          %3700 = vmatprep.subr.bf16.mxu0 0
          %3701 = vmatpush1.bf16.msra.mxu0 %v3625
          %3702 = vmatprep.subr.bf16.mxu0 0
          %3703 = vmatpush1.bf16.msra.mxu0 %v3626
          %3704 = vmatprep.subr.bf16.mxu0 0
          %3705 = vmatpush1.bf16.msra.mxu0 %v3627
          %3706 = vmatprep.subr.bf16.mxu0 0
          %3707 = vmatpush1.bf16.msra.mxu0 %v3628
          %3708 = vmatprep.subr.bf16.mxu0 0
          %3709 = vmatpush1.bf16.msra.mxu0 %v3629
          %3710 = vmatprep.mubr.bf16.mxu0 %v3483
          %3711 = vmatmul.mubr.bf16.gmra.mrb[0].mxu0 %v3482
          %v3712 = vpop.f32.mrb[0].mxu0
          %v3713 = vadd.f32 0.0, %v3712
          %v3714 = vpop.f32.mrb[0].mxu0
          %v3715 = vpop.f32.mrb[0].mxu0
          %v3716 = vadd.f32 0.0, %v3715
          %v3717 = vpop.f32.mrb[0].mxu0
          %3718 = vdwg.mxu0
          %3719 = vmatprep.subr.bf16.mxu0 0
          %3720 = vmatpush1.bf16.msra.mxu0 %v3630
          %3721 = vmatprep.subr.bf16.mxu0 0
          %3722 = vmatpush1.bf16.msra.mxu0 %v3631
          %3723 = vmatprep.subr.bf16.mxu0 0
          %3724 = vmatpush1.bf16.msra.mxu0 %v3632
          %3725 = vmatprep.subr.bf16.mxu0 0
          %3726 = vmatpush1.bf16.msra.mxu0 %v3633
          %3727 = vmatprep.subr.bf16.mxu0 0
          %3728 = vmatpush1.bf16.msra.mxu0 %v3634
          %3729 = vmatprep.subr.bf16.mxu0 0
          %3730 = vmatpush1.bf16.msra.mxu0 %v3635
          %3731 = vmatprep.subr.bf16.mxu0 0
          %3732 = vmatpush1.bf16.msra.mxu0 %v3636
          %3733 = vmatprep.subr.bf16.mxu0 0
          %3734 = vmatpush1.bf16.msra.mxu0 %v3637
          %3735 = vmatprep.subr.bf16.mxu0 0
          %3736 = vmatpush1.bf16.msra.mxu0 %v3638
          %3737 = vmatprep.subr.bf16.mxu0 0
          %3738 = vmatpush1.bf16.msra.mxu0 %v3639
          %3739 = vmatprep.subr.bf16.mxu0 0
          %3740 = vmatpush1.bf16.msra.mxu0 %v3640
          %3741 = vmatprep.subr.bf16.mxu0 0
          %3742 = vmatpush1.bf16.msra.mxu0 %v3641
          %3743 = vmatprep.subr.bf16.mxu0 0
          %3744 = vmatpush1.bf16.msra.mxu0 %v3642
          %3745 = vmatprep.subr.bf16.mxu0 0
          %3746 = vmatpush1.bf16.msra.mxu0 %v3643
          %3747 = vmatprep.subr.bf16.mxu0 0
          %3748 = vmatpush1.bf16.msra.mxu0 %v3644
          %3749 = vmatprep.subr.bf16.mxu0 0
          %3750 = vmatpush1.bf16.msra.mxu0 %v3645
          %3751 = vmatprep.mubr.bf16.mxu0 %v3485
          %3752 = vmatmul.mubr.bf16.gmra.mrb[0].mxu0 %v3484
          %v3753 = vpop.f32.mrb[0].mxu0
          %v3754 = vadd.f32 %v3713, %v3753
          %v3755 = vpop.f32.mrb[0].mxu0
          %v3756 = vpop.f32.mrb[0].mxu0
          %v3757 = vadd.f32 %v3716, %v3756
          %v3758 = vpop.f32.mrb[0].mxu0
          %3759 = vdwg.mxu0
          %v3760 = vadd.f32 %v3249, %v3754
          %v3761 = vadd.f32 %v3250, %v3757
          %s3762 = scalar_lea.vmem %s1307, 48
          %v3763 = vld [vmem:[%s3762] sm:$0xff]
          %v3764 = vld [vmem:[%s3762 + $0x8] sm:$0xff]
          %v3765 = vld [vmem:[%s3762 + $0x40] sm:$0xff]
          %v3766 = vld [vmem:[%s3762 + $0x48] sm:$0xff]
          %v3767 = vld [vmem:[%s3762 + $0x80] sm:$0xff]
          %v3768 = vld [vmem:[%s3762 + $0x88] sm:$0xff]
          %v3769 = vld [vmem:[%s3762 + $0xc0] sm:$0xff]
          %v3770 = vld [vmem:[%s3762 + $0xc8] sm:$0xff]
          %s3771 = scalar_lea.vmem %s1315, 12
          %v3772 = vld [vmem:[%s3771] sm:$0xf]
          %v3774 = vlaneseq
          %v3775 = vshrl.u32 %v3774, 7
          %v3776 = vsub.s32 0, %v3775
          %v3777 = vrot.slane %v3772, %v3776
          %v3778 = vlaneseq
          %v3779 = vshrl.u32 %v3778, 7
          %v3780 = vsub.s32 1, %v3779
          %v3781 = vrot.slane %v3772, %v3780
          %v3782 = vlaneseq
          %v3783 = vshrl.u32 %v3782, 7
          %v3784 = vsub.s32 2, %v3783
          %v3785 = vrot.slane %v3772, %v3784
          %v3786 = vlaneseq
          %v3787 = vshrl.u32 %v3786, 7
          %v3788 = vsub.s32 3, %v3787
          %v3789 = vrot.slane %v3772, %v3788
          %v3802 = vunpack.c.l.b16 %v3763
          %v3803 = vunpack.c.h.b16 %v3763
          %v3804 = vunpack.c.l.b16 %v3764
          %v3805 = vunpack.c.h.b16 %v3764
          %v3806 = vunpack.c.l.b16 %v3765
          %v3807 = vunpack.c.h.b16 %v3765
          %v3808 = vunpack.c.l.b16 %v3766
          %v3809 = vunpack.c.h.b16 %v3766
          %v3810 = vunpack.c.l.b16 %v3767
          %v3811 = vunpack.c.h.b16 %v3767
          %v3812 = vunpack.c.l.b16 %v3768
          %v3813 = vunpack.c.h.b16 %v3768
          %v3814 = vunpack.c.l.b16 %v3769
          %v3815 = vunpack.c.h.b16 %v3769
          %v3816 = vunpack.c.l.b16 %v3770
          %v3817 = vunpack.c.h.b16 %v3770
          %v3818 = vpack.c.b16 %v3806, %v3802
          %v3819 = vpack.c.b16 %v3807, %v3803
          %v3820 = vpack.c.b16 %v3808, %v3804
          %v3821 = vpack.c.b16 %v3809, %v3805
          %v3822 = vpack.c.b16 %v3814, %v3810
          %v3823 = vpack.c.b16 %v3815, %v3811
          %v3824 = vpack.c.b16 %v3816, %v3812
          %v3825 = vpack.c.b16 %v3817, %v3813
          %3834 = vmatprep.subr.bf16.mxu0 %v3819
          %3835 = vmatpush1.bf16.msra.mxu0 %v3818
          %3836 = vmatprep.subr.bf16.mxu0 %v3823
          %3837 = vmatpush1.bf16.msra.mxu0 %v3822
          %3838 = vmatprep.subr.bf16.mxu0 0
          %3839 = vmatpush1.bf16.msra.mxu0 0
          %3840 = vmatprep.subr.bf16.mxu0 0
          %3841 = vmatpush1.bf16.msra.mxu0 0
          %3842 = vmatprep.subr.bf16.mxu0 0
          %3843 = vmatpush1.bf16.msra.mxu0 0
          %3844 = vmatprep.subr.bf16.mxu0 0
          %3845 = vmatpush1.bf16.msra.mxu0 0
          %3846 = vmatprep.subr.bf16.mxu0 0
          %3847 = vmatpush1.bf16.msra.mxu0 0
          %3848 = vmatprep.subr.bf16.mxu0 0
          %3849 = vmatpush1.bf16.msra.mxu0 0
          %3850 = vmatprep.subr.bf16.mxu0 0
          %3851 = vmatpush1.bf16.msra.mxu0 0
          %3852 = vmatprep.subr.bf16.mxu0 0
          %3853 = vmatpush1.bf16.msra.mxu0 0
          %3854 = vmatprep.subr.bf16.mxu0 0
          %3855 = vmatpush1.bf16.msra.mxu0 0
          %3856 = vmatprep.subr.bf16.mxu0 0
          %3857 = vmatpush1.bf16.msra.mxu0 0
          %3858 = vmatprep.subr.bf16.mxu0 0
          %3859 = vmatpush1.bf16.msra.mxu0 0
          %3860 = vmatprep.subr.bf16.mxu0 0
          %3861 = vmatpush1.bf16.msra.mxu0 0
          %3862 = vmatprep.subr.bf16.mxu0 0
          %3863 = vmatpush1.bf16.msra.mxu0 0
          %3864 = vmatprep.subr.bf16.mxu0 0
          %3865 = vmatpush1.bf16.msra.mxu0 0
          %3866 = vmatprep.mubr.bf16.mxu0 0
          %3867 = vmatmul.mubr.bf16.gmra.mrb[0].mxu0 %v2300
          %v3868 = vpop.f32.mrb[0].mxu0
          %v3869 = vadd.f32 %v3777, %v3868
          %v3870 = vpop.f32.mrb[0].mxu0
          %v3871 = vadd.f32 %v3781, %v3870
          %v3872 = vpop.f32.mrb[0].mxu0
          %v3873 = vadd.f32 %v3777, %v3872
          %v3874 = vpop.f32.mrb[0].mxu0
          %v3875 = vadd.f32 %v3781, %v3874
          %3876 = vdwg.mxu0
          %3877 = vmatprep.subr.bf16.mxu0 %v3821
          %3878 = vmatpush1.bf16.msra.mxu0 %v3820
          %3879 = vmatprep.subr.bf16.mxu0 %v3825
          %3880 = vmatpush1.bf16.msra.mxu0 %v3824
          %3881 = vmatprep.subr.bf16.mxu0 0
          %3882 = vmatpush1.bf16.msra.mxu0 0
          %3883 = vmatprep.subr.bf16.mxu0 0
          %3884 = vmatpush1.bf16.msra.mxu0 0
          %3885 = vmatprep.subr.bf16.mxu0 0
          %3886 = vmatpush1.bf16.msra.mxu0 0
          %3887 = vmatprep.subr.bf16.mxu0 0
          %3888 = vmatpush1.bf16.msra.mxu0 0
          %3889 = vmatprep.subr.bf16.mxu0 0
          %3890 = vmatpush1.bf16.msra.mxu0 0
          %3891 = vmatprep.subr.bf16.mxu0 0
          %3892 = vmatpush1.bf16.msra.mxu0 0
          %3893 = vmatprep.subr.bf16.mxu0 0
          %3894 = vmatpush1.bf16.msra.mxu0 0
          %3895 = vmatprep.subr.bf16.mxu0 0
          %3896 = vmatpush1.bf16.msra.mxu0 0
          %3897 = vmatprep.subr.bf16.mxu0 0
          %3898 = vmatpush1.bf16.msra.mxu0 0
          %3899 = vmatprep.subr.bf16.mxu0 0
          %3900 = vmatpush1.bf16.msra.mxu0 0
          %3901 = vmatprep.subr.bf16.mxu0 0
          %3902 = vmatpush1.bf16.msra.mxu0 0
          %3903 = vmatprep.subr.bf16.mxu0 0
          %3904 = vmatpush1.bf16.msra.mxu0 0
          %3905 = vmatprep.subr.bf16.mxu0 0
          %3906 = vmatpush1.bf16.msra.mxu0 0
          %3907 = vmatprep.subr.bf16.mxu0 0
          %3908 = vmatpush1.bf16.msra.mxu0 0
          %3909 = vmatprep.mubr.bf16.mxu0 0
          %3910 = vmatmul.mubr.bf16.gmra.mrb[0].mxu0 %v2300
          %v3911 = vpop.f32.mrb[0].mxu0
          %v3912 = vadd.f32 %v3785, %v3911
          %v3913 = vpop.f32.mrb[0].mxu0
          %v3914 = vadd.f32 %v3789, %v3913
          %v3915 = vpop.f32.mrb[0].mxu0
          %v3916 = vadd.f32 %v3785, %v3915
          %v3917 = vpop.f32.mrb[0].mxu0
          %v3918 = vadd.f32 %v3789, %v3917
          %3919 = vdwg.mxu0
          %v3920 = vmax.f32 %v3869, 0.0
          %v3921 = vmax.f32 %v3871, 0.0
          %v3922 = vmax.f32 %v3912, 0.0
          %v3923 = vmax.f32 %v3914, 0.0
          %v3924 = vmax.f32 %v3873, 0.0
          %v3925 = vmax.f32 %v3875, 0.0
          %v3926 = vmax.f32 %v3916, 0.0
          %v3927 = vmax.f32 %v3918, 0.0
          %s3928 = scalar_lea.vmem %s1324, 768
          %v3929 = vld [vmem:[%s3928] sm:$0xf]
          %v3930 = vld [vmem:[%s3928 + $0x4] sm:$0xf]
          %v3931 = vld [vmem:[%s3928 + $0x8] sm:$0xf]
          %v3932 = vld [vmem:[%s3928 + $0xc] sm:$0xf]
          %v3933 = vld [vmem:[%s3928 + $0x10] sm:$0xf]
          %v3934 = vld [vmem:[%s3928 + $0x14] sm:$0xf]
          %v3935 = vld [vmem:[%s3928 + $0x18] sm:$0xf]
          %v3936 = vld [vmem:[%s3928 + $0x1c] sm:$0xf]
          %v3937 = vld [vmem:[%s3928 + $0x20] sm:$0xf]
          %v3938 = vld [vmem:[%s3928 + $0x24] sm:$0xf]
          %v3939 = vld [vmem:[%s3928 + $0x28] sm:$0xf]
          %v3940 = vld [vmem:[%s3928 + $0x2c] sm:$0xf]
          %v3941 = vld [vmem:[%s3928 + $0x30] sm:$0xf]
          %v3942 = vld [vmem:[%s3928 + $0x34] sm:$0xf]
          %v3943 = vld [vmem:[%s3928 + $0x38] sm:$0xf]
          %v3944 = vld [vmem:[%s3928 + $0x3c] sm:$0xf]
          %v3945 = vld [vmem:[%s3928 + $0x40] sm:$0xf]
          %v3946 = vld [vmem:[%s3928 + $0x44] sm:$0xf]
          %v3947 = vld [vmem:[%s3928 + $0x48] sm:$0xf]
          %v3948 = vld [vmem:[%s3928 + $0x4c] sm:$0xf]
          %v3949 = vld [vmem:[%s3928 + $0x50] sm:$0xf]
          %v3950 = vld [vmem:[%s3928 + $0x54] sm:$0xf]
          %v3951 = vld [vmem:[%s3928 + $0x58] sm:$0xf]
          %v3952 = vld [vmem:[%s3928 + $0x5c] sm:$0xf]
          %v3953 = vld [vmem:[%s3928 + $0x60] sm:$0xf]
          %v3954 = vld [vmem:[%s3928 + $0x64] sm:$0xf]
          %v3955 = vld [vmem:[%s3928 + $0x68] sm:$0xf]
          %v3956 = vld [vmem:[%s3928 + $0x6c] sm:$0xf]
          %v3957 = vld [vmem:[%s3928 + $0x70] sm:$0xf]
          %v3958 = vld [vmem:[%s3928 + $0x74] sm:$0xf]
          %v3959 = vld [vmem:[%s3928 + $0x78] sm:$0xf]
          %v3960 = vld [vmem:[%s3928 + $0x7c] sm:$0xf]
          %v3961 = vld [vmem:[%s3928 + $0x80] sm:$0xf]
          %v3962 = vld [vmem:[%s3928 + $0x84] sm:$0xf]
          %v3963 = vld [vmem:[%s3928 + $0x88] sm:$0xf]
          %v3964 = vld [vmem:[%s3928 + $0x8c] sm:$0xf]
          %v3965 = vld [vmem:[%s3928 + $0x90] sm:$0xf]
          %v3966 = vld [vmem:[%s3928 + $0x94] sm:$0xf]
          %v3967 = vld [vmem:[%s3928 + $0x98] sm:$0xf]
          %v3968 = vld [vmem:[%s3928 + $0x9c] sm:$0xf]
          %v3969 = vld [vmem:[%s3928 + $0xa0] sm:$0xf]
          %v3970 = vld [vmem:[%s3928 + $0xa4] sm:$0xf]
          %v3971 = vld [vmem:[%s3928 + $0xa8] sm:$0xf]
          %v3972 = vld [vmem:[%s3928 + $0xac] sm:$0xf]
          %v3973 = vld [vmem:[%s3928 + $0xb0] sm:$0xf]
          %v3974 = vld [vmem:[%s3928 + $0xb4] sm:$0xf]
          %v3975 = vld [vmem:[%s3928 + $0xb8] sm:$0xf]
          %v3976 = vld [vmem:[%s3928 + $0xbc] sm:$0xf]
          %v3977 = vld [vmem:[%s3928 + $0xc0] sm:$0xf]
          %v3978 = vld [vmem:[%s3928 + $0xc4] sm:$0xf]
          %v3979 = vld [vmem:[%s3928 + $0xc8] sm:$0xf]
          %v3980 = vld [vmem:[%s3928 + $0xcc] sm:$0xf]
          %v3981 = vld [vmem:[%s3928 + $0xd0] sm:$0xf]
          %v3982 = vld [vmem:[%s3928 + $0xd4] sm:$0xf]
          %v3983 = vld [vmem:[%s3928 + $0xd8] sm:$0xf]
          %v3984 = vld [vmem:[%s3928 + $0xdc] sm:$0xf]
          %v3985 = vld [vmem:[%s3928 + $0xe0] sm:$0xf]
          %v3986 = vld [vmem:[%s3928 + $0xe4] sm:$0xf]
          %v3987 = vld [vmem:[%s3928 + $0xe8] sm:$0xf]
          %v3988 = vld [vmem:[%s3928 + $0xec] sm:$0xf]
          %v3989 = vld [vmem:[%s3928 + $0xf0] sm:$0xf]
          %v3990 = vld [vmem:[%s3928 + $0xf4] sm:$0xf]
          %v3991 = vld [vmem:[%s3928 + $0xf8] sm:$0xf]
          %v3992 = vld [vmem:[%s3928 + $0xfc] sm:$0xf]
          %v3993 = vpack.c.bf16 %v3924, %v3920
          %v3994 = vpack.c.bf16 %v3925, %v3921
          %v3995 = vpack.c.bf16 %v3926, %v3922
          %v3996 = vpack.c.bf16 %v3927, %v3923
          %v4061 = vunpack.c.l.b16 %v3929
          %v4062 = vunpack.c.l.b16 %v3930
          %v4063 = vunpack.c.l.b16 %v3931
          %v4064 = vunpack.c.l.b16 %v3932
          %v4065 = vunpack.c.l.b16 %v3933
          %v4066 = vunpack.c.l.b16 %v3934
          %v4067 = vunpack.c.l.b16 %v3935
          %v4068 = vunpack.c.l.b16 %v3936
          %v4069 = vunpack.c.l.b16 %v3937
          %v4070 = vunpack.c.l.b16 %v3938
          %v4071 = vunpack.c.l.b16 %v3939
          %v4072 = vunpack.c.l.b16 %v3940
          %v4073 = vunpack.c.l.b16 %v3941
          %v4074 = vunpack.c.l.b16 %v3942
          %v4075 = vunpack.c.l.b16 %v3943
          %v4076 = vunpack.c.l.b16 %v3944
          %v4077 = vunpack.c.l.b16 %v3945
          %v4078 = vunpack.c.l.b16 %v3946
          %v4079 = vunpack.c.l.b16 %v3947
          %v4080 = vunpack.c.l.b16 %v3948
          %v4081 = vunpack.c.l.b16 %v3949
          %v4082 = vunpack.c.l.b16 %v3950
          %v4083 = vunpack.c.l.b16 %v3951
          %v4084 = vunpack.c.l.b16 %v3952
          %v4085 = vunpack.c.l.b16 %v3953
          %v4086 = vunpack.c.l.b16 %v3954
          %v4087 = vunpack.c.l.b16 %v3955
          %v4088 = vunpack.c.l.b16 %v3956
          %v4089 = vunpack.c.l.b16 %v3957
          %v4090 = vunpack.c.l.b16 %v3958
          %v4091 = vunpack.c.l.b16 %v3959
          %v4092 = vunpack.c.l.b16 %v3960
          %v4093 = vunpack.c.l.b16 %v3961
          %v4094 = vunpack.c.l.b16 %v3962
          %v4095 = vunpack.c.l.b16 %v3963
          %v4096 = vunpack.c.l.b16 %v3964
          %v4097 = vunpack.c.l.b16 %v3965
          %v4098 = vunpack.c.l.b16 %v3966
          %v4099 = vunpack.c.l.b16 %v3967
          %v4100 = vunpack.c.l.b16 %v3968
          %v4101 = vunpack.c.l.b16 %v3969
          %v4102 = vunpack.c.l.b16 %v3970
          %v4103 = vunpack.c.l.b16 %v3971
          %v4104 = vunpack.c.l.b16 %v3972
          %v4105 = vunpack.c.l.b16 %v3973
          %v4106 = vunpack.c.l.b16 %v3974
          %v4107 = vunpack.c.l.b16 %v3975
          %v4108 = vunpack.c.l.b16 %v3976
          %v4109 = vunpack.c.l.b16 %v3977
          %v4110 = vunpack.c.l.b16 %v3978
          %v4111 = vunpack.c.l.b16 %v3979
          %v4112 = vunpack.c.l.b16 %v3980
          %v4113 = vunpack.c.l.b16 %v3981
          %v4114 = vunpack.c.l.b16 %v3982
          %v4115 = vunpack.c.l.b16 %v3983
          %v4116 = vunpack.c.l.b16 %v3984
          %v4117 = vunpack.c.l.b16 %v3985
          %v4118 = vunpack.c.l.b16 %v3986
          %v4119 = vunpack.c.l.b16 %v3987
          %v4120 = vunpack.c.l.b16 %v3988
          %v4121 = vunpack.c.l.b16 %v3989
          %v4122 = vunpack.c.l.b16 %v3990
          %v4123 = vunpack.c.l.b16 %v3991
          %v4124 = vunpack.c.l.b16 %v3992
          %v4125 = vpack.c.b16 %v4062, %v4061
          %v4126 = vpack.c.b16 %v4064, %v4063
          %v4127 = vpack.c.b16 %v4066, %v4065
          %v4128 = vpack.c.b16 %v4068, %v4067
          %v4129 = vpack.c.b16 %v4070, %v4069
          %v4130 = vpack.c.b16 %v4072, %v4071
          %v4131 = vpack.c.b16 %v4074, %v4073
          %v4132 = vpack.c.b16 %v4076, %v4075
          %v4133 = vpack.c.b16 %v4078, %v4077
          %v4134 = vpack.c.b16 %v4080, %v4079
          %v4135 = vpack.c.b16 %v4082, %v4081
          %v4136 = vpack.c.b16 %v4084, %v4083
          %v4137 = vpack.c.b16 %v4086, %v4085
          %v4138 = vpack.c.b16 %v4088, %v4087
          %v4139 = vpack.c.b16 %v4090, %v4089
          %v4140 = vpack.c.b16 %v4092, %v4091
          %v4141 = vpack.c.b16 %v4094, %v4093
          %v4142 = vpack.c.b16 %v4096, %v4095
          %v4143 = vpack.c.b16 %v4098, %v4097
          %v4144 = vpack.c.b16 %v4100, %v4099
          %v4145 = vpack.c.b16 %v4102, %v4101
          %v4146 = vpack.c.b16 %v4104, %v4103
          %v4147 = vpack.c.b16 %v4106, %v4105
          %v4148 = vpack.c.b16 %v4108, %v4107
          %v4149 = vpack.c.b16 %v4110, %v4109
          %v4150 = vpack.c.b16 %v4112, %v4111
          %v4151 = vpack.c.b16 %v4114, %v4113
          %v4152 = vpack.c.b16 %v4116, %v4115
          %v4153 = vpack.c.b16 %v4118, %v4117
          %v4154 = vpack.c.b16 %v4120, %v4119
          %v4155 = vpack.c.b16 %v4122, %v4121
          %v4156 = vpack.c.b16 %v4124, %v4123
          %4189 = vmatprep.subr.bf16.mxu0 0
          %4190 = vmatpush1.bf16.msra.mxu0 %v4125
          %4191 = vmatprep.subr.bf16.mxu0 0
          %4192 = vmatpush1.bf16.msra.mxu0 %v4126
          %4193 = vmatprep.subr.bf16.mxu0 0
          %4194 = vmatpush1.bf16.msra.mxu0 %v4127
          %4195 = vmatprep.subr.bf16.mxu0 0
          %4196 = vmatpush1.bf16.msra.mxu0 %v4128
          %4197 = vmatprep.subr.bf16.mxu0 0
          %4198 = vmatpush1.bf16.msra.mxu0 %v4129
          %4199 = vmatprep.subr.bf16.mxu0 0
          %4200 = vmatpush1.bf16.msra.mxu0 %v4130
          %4201 = vmatprep.subr.bf16.mxu0 0
          %4202 = vmatpush1.bf16.msra.mxu0 %v4131
          %4203 = vmatprep.subr.bf16.mxu0 0
          %4204 = vmatpush1.bf16.msra.mxu0 %v4132
          %4205 = vmatprep.subr.bf16.mxu0 0
          %4206 = vmatpush1.bf16.msra.mxu0 %v4133
          %4207 = vmatprep.subr.bf16.mxu0 0
          %4208 = vmatpush1.bf16.msra.mxu0 %v4134
          %4209 = vmatprep.subr.bf16.mxu0 0
          %4210 = vmatpush1.bf16.msra.mxu0 %v4135
          %4211 = vmatprep.subr.bf16.mxu0 0
          %4212 = vmatpush1.bf16.msra.mxu0 %v4136
          %4213 = vmatprep.subr.bf16.mxu0 0
          %4214 = vmatpush1.bf16.msra.mxu0 %v4137
          %4215 = vmatprep.subr.bf16.mxu0 0
          %4216 = vmatpush1.bf16.msra.mxu0 %v4138
          %4217 = vmatprep.subr.bf16.mxu0 0
          %4218 = vmatpush1.bf16.msra.mxu0 %v4139
          %4219 = vmatprep.subr.bf16.mxu0 0
          %4220 = vmatpush1.bf16.msra.mxu0 %v4140
          %4221 = vmatprep.mubr.bf16.mxu0 %v3994
          %4222 = vmatmul.mubr.bf16.gmra.mrb[0].mxu0 %v3993
          %v4223 = vpop.f32.mrb[0].mxu0
          %v4224 = vadd.f32 0.0, %v4223
          %v4225 = vpop.f32.mrb[0].mxu0
          %v4226 = vpop.f32.mrb[0].mxu0
          %v4227 = vadd.f32 0.0, %v4226
          %v4228 = vpop.f32.mrb[0].mxu0
          %4229 = vdwg.mxu0
          %4230 = vmatprep.subr.bf16.mxu0 0
          %4231 = vmatpush1.bf16.msra.mxu0 %v4141
          %4232 = vmatprep.subr.bf16.mxu0 0
          %4233 = vmatpush1.bf16.msra.mxu0 %v4142
          %4234 = vmatprep.subr.bf16.mxu0 0
          %4235 = vmatpush1.bf16.msra.mxu0 %v4143
          %4236 = vmatprep.subr.bf16.mxu0 0
          %4237 = vmatpush1.bf16.msra.mxu0 %v4144
          %4238 = vmatprep.subr.bf16.mxu0 0
          %4239 = vmatpush1.bf16.msra.mxu0 %v4145
          %4240 = vmatprep.subr.bf16.mxu0 0
          %4241 = vmatpush1.bf16.msra.mxu0 %v4146
          %4242 = vmatprep.subr.bf16.mxu0 0
          %4243 = vmatpush1.bf16.msra.mxu0 %v4147
          %4244 = vmatprep.subr.bf16.mxu0 0
          %4245 = vmatpush1.bf16.msra.mxu0 %v4148
          %4246 = vmatprep.subr.bf16.mxu0 0
          %4247 = vmatpush1.bf16.msra.mxu0 %v4149
          %4248 = vmatprep.subr.bf16.mxu0 0
          %4249 = vmatpush1.bf16.msra.mxu0 %v4150
          %4250 = vmatprep.subr.bf16.mxu0 0
          %4251 = vmatpush1.bf16.msra.mxu0 %v4151
          %4252 = vmatprep.subr.bf16.mxu0 0
          %4253 = vmatpush1.bf16.msra.mxu0 %v4152
          %4254 = vmatprep.subr.bf16.mxu0 0
          %4255 = vmatpush1.bf16.msra.mxu0 %v4153
          %4256 = vmatprep.subr.bf16.mxu0 0
          %4257 = vmatpush1.bf16.msra.mxu0 %v4154
          %4258 = vmatprep.subr.bf16.mxu0 0
          %4259 = vmatpush1.bf16.msra.mxu0 %v4155
          %4260 = vmatprep.subr.bf16.mxu0 0
          %4261 = vmatpush1.bf16.msra.mxu0 %v4156
          %4262 = vmatprep.mubr.bf16.mxu0 %v3996
          %4263 = vmatmul.mubr.bf16.gmra.mrb[0].mxu0 %v3995
          %v4264 = vpop.f32.mrb[0].mxu0
          %v4265 = vadd.f32 %v4224, %v4264
          %v4266 = vpop.f32.mrb[0].mxu0
          %v4267 = vpop.f32.mrb[0].mxu0
          %v4268 = vadd.f32 %v4227, %v4267
          %v4269 = vpop.f32.mrb[0].mxu0
          %4270 = vdwg.mxu0
          %v4271 = vadd.f32 %v3760, %v4265
          %v4272 = vadd.f32 %v3761, %v4268
          %v4273 = vadd.f32 %v2169, %v4271
          %v4274 = vadd.f32 %v2170, %v4272
          %4275 = vst.msk [vmem:[#allocation2] sm:$0xff] %vm1452, %v4273
          %4276 = vst.msk [vmem:[#allocation2 + $0x8] sm:$0xff] %vm1452, %v4274
        $region144: #{forward.1} parent=135 // pred_fallthru
          _
        %p4277 = scmp.eq.s32.totalorder %s71, 1
        // Predicated region
        $region145: #{forward.1} parent=135 // pred_check
          %p4278 = pneg %p4277
        $region146: #{forward.1} parent=135 // pred_check_branch
          %4280 = sbr.rel (%p4278) target = $region148
        $region147: #{forward.1} parent=135 // pred_region
          %v4281 = vld [vmem:[#allocation2] sm:$0xff]
          %v4282 = vld [vmem:[#allocation2 + $0x8] sm:$0xff]
          %v4283 = vld [vmem:[%s43] sm:$0x3]
          %vm4284 = vcmask 261120
          %v4285 = vsel %vm4284, %v4281, 0.0
          %4286 = vadd.xlane.f32.xlu0 %v4285
          %v4287 = vpop.xlane.xlu0 %4286
          %v4288 = vsel %vm4284, %v4282, 0.0
          %4289 = vadd.xlane.f32.xlu0 %v4288
          %v4290 = vpop.xlane.xlu0 %4289
          %v4291 = vrcp.pop 32.0
          %v4292 = vmul.f32 %v4287, %v4291
          %v4293 = vmul.f32 %v4290, %v4291
          %v4294 = vsub.f32 %v4281, %v4292
          %v4295 = vsub.f32 %v4282, %v4293
          %v4296 = vmul.f32 %v4294, %v4294
          %v4297 = vmul.f32 %v4295, %v4295
          %v4298 = vsel %vm4284, %v4296, 0.0
          %4299 = vadd.xlane.f32.xlu0 %v4298
          %v4300 = vpop.xlane.xlu0 %4299
          %v4301 = vsel %vm4284, %v4297, 0.0
          %4302 = vadd.xlane.f32.xlu0 %v4301
          %v4303 = vpop.xlane.xlu0 %4302
          %v4304 = vmul.f32 %v4300, 0.032258064
          %v4305 = vmul.f32 %v4303, 0.032258064
          %v4306 = vrsqrt.pop %v4304
          %v4307 = vmul.f32 %v4304, %v4306
          %vm4308 = vcmp.eq.f32.partialorder %v4304, inf
          %v4309 = vsel %vm4308, %v4304, %v4307
          %vm4310 = vcmp.eq.f32.partialorder %v4304, 0.0
          %v4311 = vand.u32 %v4304, 2147483648
          %v4312 = vsel %vm4310, %v4311, %v4309
          %v4313 = vrsqrt.pop %v4305
          %v4314 = vmul.f32 %v4305, %v4313
          %vm4315 = vcmp.eq.f32.partialorder %v4305, inf
          %v4316 = vsel %vm4315, %v4305, %v4314
          %vm4317 = vcmp.eq.f32.partialorder %v4305, 0.0
          %v4318 = vand.u32 %v4305, 2147483648
          %v4319 = vsel %vm4317, %v4318, %v4316
          %v4320 = vadd.f32 %v4312, 1e-06
          %v4321 = vadd.f32 %v4319, 1e-06
          %v4322 = vrcp.pop %v4320
          %v4323 = vrcp.pop %v4321
          %v4324 = vmul.f32 %v4294, %v4322
          %v4325 = vmul.f32 %v4295, %v4323
          %v4326 = vlaneseq
          %v4327 = vshrl.u32 %v4326, 7
          %v4328 = vsub.s32 0, %v4327
          %v4329 = vrot.slane %v4283, %v4328
          %v4330 = vmul.f32 %v4329, %v4324
          %v4331 = vmul.f32 %v4329, %v4325
          %v4332 = vlaneseq
          %v4333 = vshrl.u32 %v4332, 7
          %v4334 = vsub.s32 1, %v4333
          %v4335 = vrot.slane %v4283, %v4334
          %v4336 = vadd.f32 %v4330, %v4335
          %v4337 = vadd.f32 %v4331, %v4335
          %v4338 = vsel %vm4284, %v4336, 0.0
          %v4339 = vrot.slane %v4338, 4
          %v4340 = vadd.f32 %v4338, %v4339
          %v4341 = vrot.slane %v4340, 2
          %v4342 = vadd.f32 %v4340, %v4341
          %v4343 = vrot.slane %v4342, 1
          %v4344 = vadd.f32 %v4342, %v4343
          %v4345 = vrcp.pop 8.0
          %v4346 = vmul.f32 %v4344, %v4345
          %v4347 = vsel %vm4284, %v4337, 0.0
          %v4348 = vrot.slane %v4347, 4
          %v4349 = vadd.f32 %v4347, %v4348
          %v4350 = vrot.slane %v4349, 2
          %v4351 = vadd.f32 %v4349, %v4350
          %v4352 = vrot.slane %v4351, 1
          %v4353 = vadd.f32 %v4351, %v4352
          %v4354 = vmul.f32 %v4353, %v4345
          %vm4355 = vcmask 1040384
          %v4356 = vsel %vm4355, %v4346, %v4354
          %v4357 = vld [vmem:[%s47] sm:$0xff]
          %v4358 = vld [vmem:[%s47 + $0x8] sm:$0xff]
          %v4359 = vld [vmem:[%s47 + $0x10] sm:$0xff]
          %v4360 = vld [vmem:[%s47 + $0x18] sm:$0xff]
          %v4361 = vld [vmem:[%s49] sm:$0x1]
          %v4363 = vlaneseq
          %v4364 = vshrl.u32 %v4363, 7
          %v4365 = vsub.s32 0, %v4364
          %v4366 = vrot.slane %v4361, %v4365
          %v4369 = vsel %vm4284, %v4356, 0
          %4371 = vmatprep.subr.mxu0 0.0
          %4372 = vmatpush1.msra.mxu0 %v4357
          %4373 = vmatprep.subr.mxu0 0.0
          %4374 = vmatpush1.msra.mxu0 %v4358
          %4375 = vmatprep.subr.mxu0 0.0
          %4376 = vmatpush1.msra.mxu0 %v4359
          %4377 = vmatprep.subr.mxu0 0.0
          %4378 = vmatpush1.msra.mxu0 %v4360
          %4379 = vmatprep.subr.mxu0 0.0
          %4380 = vmatpush1.msra.mxu0 0.0
          %4381 = vmatprep.subr.mxu0 0.0
          %4382 = vmatpush1.msra.mxu0 0.0
          %4383 = vmatprep.subr.mxu0 0.0
          %4384 = vmatpush1.msra.mxu0 0.0
          %4385 = vmatprep.subr.mxu0 0.0
          %4386 = vmatpush1.msra.mxu0 0.0
          %4387 = vmatprep.subr.mxu0 0.0
          %4388 = vmatpush1.msra.mxu0 0.0
          %4389 = vmatprep.subr.mxu0 0.0
          %4390 = vmatpush1.msra.mxu0 0.0
          %4391 = vmatprep.subr.mxu0 0.0
          %4392 = vmatpush1.msra.mxu0 0.0
          %4393 = vmatprep.subr.mxu0 0.0
          %4394 = vmatpush1.msra.mxu0 0.0
          %4395 = vmatprep.subr.mxu0 0.0
          %4396 = vmatpush1.msra.mxu0 0.0
          %4397 = vmatprep.subr.mxu0 0.0
          %4398 = vmatpush1.msra.mxu0 0.0
          %4399 = vmatprep.subr.mxu0 0.0
          %4400 = vmatpush1.msra.mxu0 0.0
          %4401 = vmatprep.subr.mxu0 0.0
          %4402 = vmatpush1.msra.mxu0 0.0
          %4403 = vmatprep.subr.mxu0 0.0
          %4404 = vmatpush1.msra.mxu0 0.0
          %4405 = vmatprep.subr.mxu0 0.0
          %4406 = vmatpush1.msra.mxu0 0.0
          %4407 = vmatprep.subr.mxu0 0.0
          %4408 = vmatpush1.msra.mxu0 0.0
          %4409 = vmatprep.subr.mxu0 0.0
          %4410 = vmatpush1.msra.mxu0 0.0
          %4411 = vmatprep.subr.mxu0 0.0
          %4412 = vmatpush1.msra.mxu0 0.0
          %4413 = vmatprep.subr.mxu0 0.0
          %4414 = vmatpush1.msra.mxu0 0.0
          %4415 = vmatprep.subr.mxu0 0.0
          %4416 = vmatpush1.msra.mxu0 0.0
          %4417 = vmatprep.subr.mxu0 0.0
          %4418 = vmatpush1.msra.mxu0 0.0
          %4419 = vmatprep.subr.mxu0 0.0
          %4420 = vmatpush1.msra.mxu0 0.0
          %4421 = vmatprep.subr.mxu0 0.0
          %4422 = vmatpush1.msra.mxu0 0.0
          %4423 = vmatprep.subr.mxu0 0.0
          %4424 = vmatpush1.msra.mxu0 0.0
          %4425 = vmatprep.subr.mxu0 0.0
          %4426 = vmatpush1.msra.mxu0 0.0
          %4427 = vmatprep.subr.mxu0 0.0
          %4428 = vmatpush1.msra.mxu0 0.0
          %4429 = vmatprep.subr.mxu0 0.0
          %4430 = vmatpush1.msra.mxu0 0.0
          %4431 = vmatprep.subr.mxu0 0.0
          %4432 = vmatpush1.msra.mxu0 0.0
          %4433 = vmatprep.subr.mxu0 0.0
          %4434 = vmatpush1.msra.mxu0 0.0
          %4435 = vmatprep.mubr.f32.mxu0 0.0
          %4436 = vmatmul.mubr.f32.gmra.mrb[0].mxu0 %v4369
          %v4437 = vpop.f32.mrb[0].mxu0
          %v4438 = vadd.f32 %v4366, %v4437
          %v4439 = vpop.f32.mrb[0].mxu0
          %4440 = vdwg.mxu0
          %v4441 = vld [vmem:[%s11] sm:$0x3]
          %v4442 = vmul.f32 %v4438, 0.5
          %v4443 = vmul.f32 %v4442, 1.442695
          %v4444 = vpow.pop %v4443
          %4446 = vrot.lane.b32.xlu0 %v4444, 112
          %v4447 = vpop.permute.xlu0 %4446
          %v4449 = vmul.f32 %v4441, %v4447
          %v4450 = vadd.f32 %v4449, %v4438
          %v4451 = vld [vmem:[%s51] sm:$0xff]
          %v4452 = vld [vmem:[%s51 + $0x8] sm:$0xff]
          %v4453 = vld [vmem:[%s53] sm:$0x1]
          %v4455 = vlaneseq
          %v4456 = vshrl.u32 %v4455, 7
          %v4457 = vsub.s32 0, %v4456
          %v4458 = vrot.slane %v4453, %v4457
          %vm4460 = vcmask 130048
          %v4462 = vsel %vm4460, %v4450, 0
          %4464 = vmatprep.subr.mxu0 0.0
          %4465 = vmatpush1.msra.mxu0 %v4451
          %4466 = vmatprep.subr.mxu0 0.0
          %4467 = vmatpush1.msra.mxu0 %v4452
          %4468 = vmatprep.subr.mxu0 0.0
          %4469 = vmatpush1.msra.mxu0 0.0
          %4470 = vmatprep.subr.mxu0 0.0
          %4471 = vmatpush1.msra.mxu0 0.0
          %4472 = vmatprep.subr.mxu0 0.0
          %4473 = vmatpush1.msra.mxu0 0.0
          %4474 = vmatprep.subr.mxu0 0.0
          %4475 = vmatpush1.msra.mxu0 0.0
          %4476 = vmatprep.subr.mxu0 0.0
          %4477 = vmatpush1.msra.mxu0 0.0
          %4478 = vmatprep.subr.mxu0 0.0
          %4479 = vmatpush1.msra.mxu0 0.0
          %4480 = vmatprep.subr.mxu0 0.0
          %4481 = vmatpush1.msra.mxu0 0.0
          %4482 = vmatprep.subr.mxu0 0.0
          %4483 = vmatpush1.msra.mxu0 0.0
          %4484 = vmatprep.subr.mxu0 0.0
          %4485 = vmatpush1.msra.mxu0 0.0
          %4486 = vmatprep.subr.mxu0 0.0
          %4487 = vmatpush1.msra.mxu0 0.0
          %4488 = vmatprep.subr.mxu0 0.0
          %4489 = vmatpush1.msra.mxu0 0.0
          %4490 = vmatprep.subr.mxu0 0.0
          %4491 = vmatpush1.msra.mxu0 0.0
          %4492 = vmatprep.subr.mxu0 0.0
          %4493 = vmatpush1.msra.mxu0 0.0
          %4494 = vmatprep.subr.mxu0 0.0
          %4495 = vmatpush1.msra.mxu0 0.0
          %4496 = vmatprep.subr.mxu0 0.0
          %4497 = vmatpush1.msra.mxu0 0.0
          %4498 = vmatprep.subr.mxu0 0.0
          %4499 = vmatpush1.msra.mxu0 0.0
          %4500 = vmatprep.subr.mxu0 0.0
          %4501 = vmatpush1.msra.mxu0 0.0
          %4502 = vmatprep.subr.mxu0 0.0
          %4503 = vmatpush1.msra.mxu0 0.0
          %4504 = vmatprep.subr.mxu0 0.0
          %4505 = vmatpush1.msra.mxu0 0.0
          %4506 = vmatprep.subr.mxu0 0.0
          %4507 = vmatpush1.msra.mxu0 0.0
          %4508 = vmatprep.subr.mxu0 0.0
          %4509 = vmatpush1.msra.mxu0 0.0
          %4510 = vmatprep.subr.mxu0 0.0
          %4511 = vmatpush1.msra.mxu0 0.0
          %4512 = vmatprep.subr.mxu0 0.0
          %4513 = vmatpush1.msra.mxu0 0.0
          %4514 = vmatprep.subr.mxu0 0.0
          %4515 = vmatpush1.msra.mxu0 0.0
          %4516 = vmatprep.subr.mxu0 0.0
          %4517 = vmatpush1.msra.mxu0 0.0
          %4518 = vmatprep.subr.mxu0 0.0
          %4519 = vmatpush1.msra.mxu0 0.0
          %4520 = vmatprep.subr.mxu0 0.0
          %4521 = vmatpush1.msra.mxu0 0.0
          %4522 = vmatprep.subr.mxu0 0.0
          %4523 = vmatpush1.msra.mxu0 0.0
          %4524 = vmatprep.subr.mxu0 0.0
          %4525 = vmatpush1.msra.mxu0 0.0
          %4526 = vmatprep.subr.mxu0 0.0
          %4527 = vmatpush1.msra.mxu0 0.0
          %4528 = vmatprep.mubr.f32.mxu0 0.0
          %4529 = vmatmul.mubr.f32.gmra.mrb[0].mxu0 %v4462
          %v4530 = vpop.f32.mrb[0].mxu0
          %v4531 = vadd.f32 %v4458, %v4530
          %v4532 = vpop.f32.mrb[0].mxu0
          %4533 = vdwg.mxu0
          %v4534 = vlaneseq
          %v4535 = vshrl.u32 %v4534, 7
          %v4536 = vsub.s32 0, %v4535
          %v4537 = vrot.slane %v4531, %v4536
          %4538 = vst.msk [vmem:[#allocation4] sm:$0xff] %vm4284, %v4537
          %v4539 = vlaneseq
          %v4540 = vshrl.u32 %v4539, 7
          %v4541 = vsub.s32 1, %v4540
          %v4542 = vrot.slane %v4531, %v4541
          %4543 = vst.msk [vmem:[#allocation4 + $0x8] sm:$0xff] %vm4284, %v4542
          %v4544 = vld [vmem:[%s3] sm:$0xff]
          %v4545 = vld [vmem:[%s3 + $0x8] sm:$0xff]
          %4546 = vst.msk [vmem:[#allocation3] sm:$0xff] %vm4284, %v4544
          %4547 = vst.msk [vmem:[#allocation3 + $0x8] sm:$0xff] %vm4284, %v4545
        $region148: #{forward.1} parent=135 // pred_fallthru
          _
        %p4548 = scmp.ge.s32.totalorder %s71, 2
        // Predicated region
        $region149: #{forward.1} parent=135 // pred_check
          %p4549 = pneg %p4548
        $region150: #{forward.1} parent=135 // pred_check_branch
          %4551 = sbr.rel (%p4549) target = $region152
        $region151: #{forward.1} parent=135 // pred_region
          %v4552 = vld [vmem:[#allocation3] sm:$0xff]
          %v4553 = vld [vmem:[#allocation3 + $0x8] sm:$0xff]
          %v4554 = vld [vmem:[#allocation4] sm:$0xff]
          %v4555 = vld [vmem:[#allocation4 + $0x8] sm:$0xff]
          %v4556 = vld [vmem:[%s7] sm:$0xff]
          %v4557 = vld [vmem:[%s7 + $0x8] sm:$0xff]
          %v4558 = vld [vmem:[%s9] sm:$0xff]
          %v4559 = vld [vmem:[%s9 + $0x8] sm:$0xff]
          %v4560 = vld [vmem:[%s1429] sm:$0xff]
          %v4561 = vld [vmem:[%s1429 + $0x8] sm:$0xff]
          %vm4562 = vcmask 261120
          %v4563 = vsel %vm4562, %v4552, 0.0
          %4564 = vadd.xlane.f32.xlu0 %v4563
          %v4565 = vpop.xlane.xlu0 %4564
          %v4566 = vsel %vm4562, %v4553, 0.0
          %4567 = vadd.xlane.f32.xlu0 %v4566
          %v4568 = vpop.xlane.xlu0 %4567
          %v4569 = vrcp.pop 32.0
          %v4570 = vmul.f32 %v4565, %v4569
          %v4571 = vmul.f32 %v4568, %v4569
          %v4572 = vsub.f32 %v4552, %v4570
          %v4573 = vsub.f32 %v4553, %v4571
          %v4574 = vmul.f32 %v4572, %v4572
          %v4575 = vmul.f32 %v4573, %v4573
          %v4576 = vsel %vm4562, %v4574, 0.0
          %4577 = vadd.xlane.f32.xlu0 %v4576
          %v4578 = vpop.xlane.xlu0 %4577
          %v4579 = vsel %vm4562, %v4575, 0.0
          %4580 = vadd.xlane.f32.xlu0 %v4579
          %v4581 = vpop.xlane.xlu0 %4580
          %v4582 = vmul.f32 %v4578, 0.032258064
          %v4583 = vmul.f32 %v4581, 0.032258064
          %v4584 = vrsqrt.pop %v4582
          %v4585 = vmul.f32 %v4582, %v4584
          %vm4586 = vcmp.eq.f32.partialorder %v4582, inf
          %v4587 = vsel %vm4586, %v4582, %v4585
          %vm4588 = vcmp.eq.f32.partialorder %v4582, 0.0
          %v4589 = vand.u32 %v4582, 2147483648
          %v4590 = vsel %vm4588, %v4589, %v4587
          %v4591 = vrsqrt.pop %v4583
          %v4592 = vmul.f32 %v4583, %v4591
          %vm4593 = vcmp.eq.f32.partialorder %v4583, inf
          %v4594 = vsel %vm4593, %v4583, %v4592
          %vm4595 = vcmp.eq.f32.partialorder %v4583, 0.0
          %v4596 = vand.u32 %v4583, 2147483648
          %v4597 = vsel %vm4595, %v4596, %v4594
          %v4598 = vadd.f32 %v4590, 1e-06
          %v4599 = vadd.f32 %v4597, 1e-06
          %v4600 = vrcp.pop %v4598
          %v4601 = vrcp.pop %v4599
          %v4602 = vmul.f32 %v4572, %v4600
          %v4603 = vmul.f32 %v4573, %v4601
          %v4604 = vlaneseq
          %v4605 = vshrl.u32 %v4604, 7
          %v4606 = vsub.s32 0, %v4605
          %v4607 = vrot.slane %v4560, %v4606
          %v4608 = vmul.f32 %v4607, %v4602
          %v4609 = vmul.f32 %v4607, %v4603
          %v4610 = vlaneseq
          %v4611 = vshrl.u32 %v4610, 7
          %v4612 = vsub.s32 1, %v4611
          %v4613 = vrot.slane %v4560, %v4612
          %v4614 = vadd.f32 %v4608, %v4613
          %v4615 = vadd.f32 %v4609, %v4613
          %v4616 = vld [vmem:[%s1342] sm:$0xf]
          %v4617 = vld [vmem:[%s1342 + $0x4] sm:$0xf]
          %v4618 = vld [vmem:[%s1342 + $0x8] sm:$0xf]
          %v4619 = vld [vmem:[%s1342 + $0xc] sm:$0xf]
          %v4620 = vpack.c.bf16 %v4615, %v4614
          %v4621 = vlaneseq
          %v4622 = vshrl.u32 %v4621, 7
          %v4623 = vsub.s32 6, %v4622
          %v4624 = vrot.slane %v4560, %v4623
          %v4629 = vunpack.c.l.b16 %v4616
          %v4630 = vunpack.c.l.b16 %v4617
          %v4631 = vunpack.c.l.b16 %v4618
          %v4632 = vunpack.c.l.b16 %v4619
          %v4633 = vpack.c.b16 %v4630, %v4629
          %v4634 = vpack.c.b16 %v4632, %v4631
          %v4638 = vsel %vm4562, %v4620, 0
          %4640 = vmatprep.subr.bf16.mxu0 0
          %4641 = vmatpush1.bf16.msra.mxu0 %v4633
          %4642 = vmatprep.subr.bf16.mxu0 0
          %4643 = vmatpush1.bf16.msra.mxu0 %v4634
          %4644 = vmatprep.subr.bf16.mxu0 0
          %4645 = vmatpush1.bf16.msra.mxu0 0
          %4646 = vmatprep.subr.bf16.mxu0 0
          %4647 = vmatpush1.bf16.msra.mxu0 0
          %4648 = vmatprep.subr.bf16.mxu0 0
          %4649 = vmatpush1.bf16.msra.mxu0 0
          %4650 = vmatprep.subr.bf16.mxu0 0
          %4651 = vmatpush1.bf16.msra.mxu0 0
          %4652 = vmatprep.subr.bf16.mxu0 0
          %4653 = vmatpush1.bf16.msra.mxu0 0
          %4654 = vmatprep.subr.bf16.mxu0 0
          %4655 = vmatpush1.bf16.msra.mxu0 0
          %4656 = vmatprep.subr.bf16.mxu0 0
          %4657 = vmatpush1.bf16.msra.mxu0 0
          %4658 = vmatprep.subr.bf16.mxu0 0
          %4659 = vmatpush1.bf16.msra.mxu0 0
          %4660 = vmatprep.subr.bf16.mxu0 0
          %4661 = vmatpush1.bf16.msra.mxu0 0
          %4662 = vmatprep.subr.bf16.mxu0 0
          %4663 = vmatpush1.bf16.msra.mxu0 0
          %4664 = vmatprep.subr.bf16.mxu0 0
          %4665 = vmatpush1.bf16.msra.mxu0 0
          %4666 = vmatprep.subr.bf16.mxu0 0
          %4667 = vmatpush1.bf16.msra.mxu0 0
          %4668 = vmatprep.subr.bf16.mxu0 0
          %4669 = vmatpush1.bf16.msra.mxu0 0
          %4670 = vmatprep.subr.bf16.mxu0 0
          %4671 = vmatpush1.bf16.msra.mxu0 0
          %4672 = vmatprep.mubr.bf16.mxu0 0
          %4673 = vmatmul.mubr.bf16.gmra.mrb[0].mxu0 %v4638
          %v4674 = vpop.f32.mrb[0].mxu0
          %v4675 = vadd.f32 %v4624, %v4674
          %v4676 = vpop.f32.mrb[0].mxu0
          %v4677 = vpop.f32.mrb[0].mxu0
          %v4678 = vadd.f32 %v4624, %v4677
          %v4679 = vpop.f32.mrb[0].mxu0
          %4680 = vdwg.mxu0
          %v4681 = vld [vmem:[%s1353] sm:$0xf]
          %v4682 = vld [vmem:[%s1353 + $0x4] sm:$0xf]
          %v4683 = vld [vmem:[%s1353 + $0x8] sm:$0xf]
          %v4684 = vld [vmem:[%s1353 + $0xc] sm:$0xf]
          %v4685 = vpack.c.bf16 %v4678, %v4675
          %4687 = vrot.lane.b32.xlu0 %v4685, 96
          %v4688 = vpop.permute.xlu0 %4687
          %vm4689 = vcmask 64512
          %v4691 = vsel %vm4689, %v4685, 0
          %v4694 = vsel %vm4689, %v4688, 0
          %4696 = vmatprep.subr.bf16.mxu0 0
          %4697 = vmatpush1.bf16.xpose.msra.mxu0 %v4694
          %4698 = vmatprep.subr.bf16.mxu0 0
          %4699 = vmatpush1.bf16.xpose.msra.mxu0 0
          %4700 = vmatprep.subr.bf16.mxu0 0
          %4701 = vmatpush1.bf16.xpose.msra.mxu0 0
          %4702 = vmatprep.subr.bf16.mxu0 0
          %4703 = vmatpush1.bf16.xpose.msra.mxu0 0
          %4704 = vmatprep.subr.bf16.mxu0 0
          %4705 = vmatpush1.bf16.xpose.msra.mxu0 0
          %4706 = vmatprep.subr.bf16.mxu0 0
          %4707 = vmatpush1.bf16.xpose.msra.mxu0 0
          %4708 = vmatprep.subr.bf16.mxu0 0
          %4709 = vmatpush1.bf16.xpose.msra.mxu0 0
          %4710 = vmatprep.subr.bf16.mxu0 0
          %4711 = vmatpush1.bf16.xpose.msra.mxu0 0
          %4712 = vmatprep.subr.bf16.mxu0 0
          %4713 = vmatpush1.bf16.xpose.msra.mxu0 0
          %4714 = vmatprep.subr.bf16.mxu0 0
          %4715 = vmatpush1.bf16.xpose.msra.mxu0 0
          %4716 = vmatprep.subr.bf16.mxu0 0
          %4717 = vmatpush1.bf16.xpose.msra.mxu0 0
          %4718 = vmatprep.subr.bf16.mxu0 0
          %4719 = vmatpush1.bf16.xpose.msra.mxu0 0
          %4720 = vmatprep.subr.bf16.mxu0 0
          %4721 = vmatpush1.bf16.xpose.msra.mxu0 0
          %4722 = vmatprep.subr.bf16.mxu0 0
          %4723 = vmatpush1.bf16.xpose.msra.mxu0 0
          %4724 = vmatprep.subr.bf16.mxu0 0
          %4725 = vmatpush1.bf16.xpose.msra.mxu0 0
          %4726 = vmatprep.subr.bf16.mxu0 0
          %4727 = vmatpush1.bf16.xpose.msra.mxu0 0
          %4728 = vmatprep.mubr.bf16.mxu0 0
          %4729 = vmatmul.mubr.bf16.gmra.mrb[0].mxu0 %v4691
          %v4730 = vpop.f32.mrb[0].mxu0
          %v4731 = vadd.f32 0.0, %v4730
          %v4732 = vpop.f32.mrb[0].mxu0
          %v4733 = vpop.f32.mrb[0].mxu0
          %v4734 = vadd.f32 0.0, %v4733
          %v4735 = vpop.f32.mrb[0].mxu0
          %4736 = vdwg.mxu0
          %v4737 = vmul.f32 %v4731, 0.35355338
          %v4738 = vmul.f32 %v4734, 0.35355338
          %v4739 = vadd.f32 %v4737, %v4556
          %v4740 = vadd.f32 %v4738, %v4557
          %vm4741 = vcmask 130048
          %v4742 = vsel %vm4741, %v4739, -inf
          %4743 = vmax.xlane.f32.xlu0 %v4742
          %v4744 = vpop.xlane.xlu0 %4743
          %v4745 = vsel %vm4741, %v4740, -inf
          %4746 = vmax.xlane.f32.xlu0 %v4745
          %v4747 = vpop.xlane.xlu0 %4746
          %v4748 = vsub.f32 %v4739, %v4744
          %v4749 = vsub.f32 %v4740, %v4747
          %v4750 = vmul.f32 %v4748, 1.442695
          %v4751 = vpow.pop %v4750
          %v4752 = vmul.f32 %v4749, 1.442695
          %v4753 = vpow.pop %v4752
          %v4754 = vsel %vm4741, %v4751, 0.0
          %4755 = vadd.xlane.f32.xlu0 %v4754
          %v4756 = vpop.xlane.xlu0 %4755
          %v4757 = vsel %vm4741, %v4753, 0.0
          %4758 = vadd.xlane.f32.xlu0 %v4757
          %v4759 = vpop.xlane.xlu0 %4758
          %v4760 = vrcp.pop %v4756
          %v4761 = vrcp.pop %v4759
          %v4762 = vmul.f32 %v4751, %v4760
          %v4763 = vmul.f32 %v4753, %v4761
          %v4764 = vpack.c.bf16 %v4763, %v4762
          %4765 = vrot.lane.b32.xlu0 %v4685, 64
          %v4766 = vpop.permute.xlu0 %4765
          %v4769 = vsel %vm4741, %v4764, 0
          %4771 = vmatprep.subr.bf16.mxu0 0
          %4772 = vmatpush1.bf16.msra.mxu0 %v4766
          %4773 = vmatprep.subr.bf16.mxu0 0
          %4774 = vmatpush1.bf16.msra.mxu0 0
          %4775 = vmatprep.subr.bf16.mxu0 0
          %4776 = vmatpush1.bf16.msra.mxu0 0
          %4777 = vmatprep.subr.bf16.mxu0 0
          %4778 = vmatpush1.bf16.msra.mxu0 0
          %4779 = vmatprep.subr.bf16.mxu0 0
          %4780 = vmatpush1.bf16.msra.mxu0 0
          %4781 = vmatprep.subr.bf16.mxu0 0
          %4782 = vmatpush1.bf16.msra.mxu0 0
          %4783 = vmatprep.subr.bf16.mxu0 0
          %4784 = vmatpush1.bf16.msra.mxu0 0
          %4785 = vmatprep.subr.bf16.mxu0 0
          %4786 = vmatpush1.bf16.msra.mxu0 0
          %4787 = vmatprep.subr.bf16.mxu0 0
          %4788 = vmatpush1.bf16.msra.mxu0 0
          %4789 = vmatprep.subr.bf16.mxu0 0
          %4790 = vmatpush1.bf16.msra.mxu0 0
          %4791 = vmatprep.subr.bf16.mxu0 0
          %4792 = vmatpush1.bf16.msra.mxu0 0
          %4793 = vmatprep.subr.bf16.mxu0 0
          %4794 = vmatpush1.bf16.msra.mxu0 0
          %4795 = vmatprep.subr.bf16.mxu0 0
          %4796 = vmatpush1.bf16.msra.mxu0 0
          %4797 = vmatprep.subr.bf16.mxu0 0
          %4798 = vmatpush1.bf16.msra.mxu0 0
          %4799 = vmatprep.subr.bf16.mxu0 0
          %4800 = vmatpush1.bf16.msra.mxu0 0
          %4801 = vmatprep.subr.bf16.mxu0 0
          %4802 = vmatpush1.bf16.msra.mxu0 0
          %4803 = vmatprep.mubr.bf16.mxu0 0
          %4804 = vmatmul.mubr.bf16.gmra.mrb[0].mxu0 %v4769
          %v4805 = vpop.f32.mrb[0].mxu0
          %v4806 = vadd.f32 0.0, %v4805
          %v4807 = vpop.f32.mrb[0].mxu0
          %v4808 = vpop.f32.mrb[0].mxu0
          %v4809 = vadd.f32 0.0, %v4808
          %v4810 = vpop.f32.mrb[0].mxu0
          %4811 = vdwg.mxu0
          %4812 = vrot.lane.b32.xlu0 %v4685, 120
          %v4813 = vpop.permute.xlu0 %4812
          %4814 = vrot.lane.b32.xlu0 %v4685, 88
          %v4815 = vpop.permute.xlu0 %4814
          %v4817 = vsel %vm4689, %v4813, 0
          %v4820 = vsel %vm4689, %v4815, 0
          %4822 = vmatprep.subr.bf16.mxu0 0
          %4823 = vmatpush1.bf16.xpose.msra.mxu0 %v4820
          %4824 = vmatprep.subr.bf16.mxu0 0
          %4825 = vmatpush1.bf16.xpose.msra.mxu0 0
          %4826 = vmatprep.subr.bf16.mxu0 0
          %4827 = vmatpush1.bf16.xpose.msra.mxu0 0
          %4828 = vmatprep.subr.bf16.mxu0 0
          %4829 = vmatpush1.bf16.xpose.msra.mxu0 0
          %4830 = vmatprep.subr.bf16.mxu0 0
          %4831 = vmatpush1.bf16.xpose.msra.mxu0 0
          %4832 = vmatprep.subr.bf16.mxu0 0
          %4833 = vmatpush1.bf16.xpose.msra.mxu0 0
          %4834 = vmatprep.subr.bf16.mxu0 0
          %4835 = vmatpush1.bf16.xpose.msra.mxu0 0
          %4836 = vmatprep.subr.bf16.mxu0 0
          %4837 = vmatpush1.bf16.xpose.msra.mxu0 0
          %4838 = vmatprep.subr.bf16.mxu0 0
          %4839 = vmatpush1.bf16.xpose.msra.mxu0 0
          %4840 = vmatprep.subr.bf16.mxu0 0
          %4841 = vmatpush1.bf16.xpose.msra.mxu0 0
          %4842 = vmatprep.subr.bf16.mxu0 0
          %4843 = vmatpush1.bf16.xpose.msra.mxu0 0
          %4844 = vmatprep.subr.bf16.mxu0 0
          %4845 = vmatpush1.bf16.xpose.msra.mxu0 0
          %4846 = vmatprep.subr.bf16.mxu0 0
          %4847 = vmatpush1.bf16.xpose.msra.mxu0 0
          %4848 = vmatprep.subr.bf16.mxu0 0
          %4849 = vmatpush1.bf16.xpose.msra.mxu0 0
          %4850 = vmatprep.subr.bf16.mxu0 0
          %4851 = vmatpush1.bf16.xpose.msra.mxu0 0
          %4852 = vmatprep.subr.bf16.mxu0 0
          %4853 = vmatpush1.bf16.xpose.msra.mxu0 0
          %4854 = vmatprep.mubr.bf16.mxu0 0
          %4855 = vmatmul.mubr.bf16.gmra.mrb[0].mxu0 %v4817
          %v4856 = vpop.f32.mrb[0].mxu0
          %v4857 = vadd.f32 0.0, %v4856
          %v4858 = vpop.f32.mrb[0].mxu0
          %v4859 = vpop.f32.mrb[0].mxu0
          %v4860 = vadd.f32 0.0, %v4859
          %v4861 = vpop.f32.mrb[0].mxu0
          %4862 = vdwg.mxu0
          %v4863 = vmul.f32 %v4857, 0.35355338
          %v4864 = vmul.f32 %v4860, 0.35355338
          %v4865 = vadd.f32 %v4863, %v4556
          %v4866 = vadd.f32 %v4864, %v4557
          %v4867 = vsel %vm4741, %v4865, -inf
          %4868 = vmax.xlane.f32.xlu0 %v4867
          %v4869 = vpop.xlane.xlu0 %4868
          %v4870 = vsel %vm4741, %v4866, -inf
          %4871 = vmax.xlane.f32.xlu0 %v4870
          %v4872 = vpop.xlane.xlu0 %4871
          %v4873 = vsub.f32 %v4865, %v4869
          %v4874 = vsub.f32 %v4866, %v4872
          %v4875 = vmul.f32 %v4873, 1.442695
          %v4876 = vpow.pop %v4875
          %v4877 = vmul.f32 %v4874, 1.442695
          %v4878 = vpow.pop %v4877
          %v4879 = vsel %vm4741, %v4876, 0.0
          %4880 = vadd.xlane.f32.xlu0 %v4879
          %v4881 = vpop.xlane.xlu0 %4880
          %v4882 = vsel %vm4741, %v4878, 0.0
          %4883 = vadd.xlane.f32.xlu0 %v4882
          %v4884 = vpop.xlane.xlu0 %4883
          %v4885 = vrcp.pop %v4881
          %v4886 = vrcp.pop %v4884
          %v4887 = vmul.f32 %v4876, %v4885
          %v4888 = vmul.f32 %v4878, %v4886
          %v4889 = vpack.c.bf16 %v4888, %v4887
          %4890 = vrot.lane.b32.xlu0 %v4685, 56
          %v4891 = vpop.permute.xlu0 %4890
          %v4894 = vsel %vm4741, %v4889, 0
          %4896 = vmatprep.subr.bf16.mxu0 0
          %4897 = vmatpush1.bf16.msra.mxu0 %v4891
          %4898 = vmatprep.subr.bf16.mxu0 0
          %4899 = vmatpush1.bf16.msra.mxu0 0
          %4900 = vmatprep.subr.bf16.mxu0 0
          %4901 = vmatpush1.bf16.msra.mxu0 0
          %4902 = vmatprep.subr.bf16.mxu0 0
          %4903 = vmatpush1.bf16.msra.mxu0 0
          %4904 = vmatprep.subr.bf16.mxu0 0
          %4905 = vmatpush1.bf16.msra.mxu0 0
          %4906 = vmatprep.subr.bf16.mxu0 0
          %4907 = vmatpush1.bf16.msra.mxu0 0
          %4908 = vmatprep.subr.bf16.mxu0 0
          %4909 = vmatpush1.bf16.msra.mxu0 0
          %4910 = vmatprep.subr.bf16.mxu0 0
          %4911 = vmatpush1.bf16.msra.mxu0 0
          %4912 = vmatprep.subr.bf16.mxu0 0
          %4913 = vmatpush1.bf16.msra.mxu0 0
          %4914 = vmatprep.subr.bf16.mxu0 0
          %4915 = vmatpush1.bf16.msra.mxu0 0
          %4916 = vmatprep.subr.bf16.mxu0 0
          %4917 = vmatpush1.bf16.msra.mxu0 0
          %4918 = vmatprep.subr.bf16.mxu0 0
          %4919 = vmatpush1.bf16.msra.mxu0 0
          %4920 = vmatprep.subr.bf16.mxu0 0
          %4921 = vmatpush1.bf16.msra.mxu0 0
          %4922 = vmatprep.subr.bf16.mxu0 0
          %4923 = vmatpush1.bf16.msra.mxu0 0
          %4924 = vmatprep.subr.bf16.mxu0 0
          %4925 = vmatpush1.bf16.msra.mxu0 0
          %4926 = vmatprep.subr.bf16.mxu0 0
          %4927 = vmatpush1.bf16.msra.mxu0 0
          %4928 = vmatprep.mubr.bf16.mxu0 0
          %4929 = vmatmul.mubr.bf16.gmra.mrb[0].mxu0 %v4894
          %v4930 = vpop.f32.mrb[0].mxu0
          %v4931 = vadd.f32 0.0, %v4930
          %v4932 = vpop.f32.mrb[0].mxu0
          %v4933 = vpop.f32.mrb[0].mxu0
          %v4934 = vadd.f32 0.0, %v4933
          %v4935 = vpop.f32.mrb[0].mxu0
          %4936 = vdwg.mxu0
          %4937 = vrot.lane.b32.xlu0 %v4685, 112
          %v4938 = vpop.permute.xlu0 %4937
          %4939 = vrot.lane.b32.xlu0 %v4685, 80
          %v4940 = vpop.permute.xlu0 %4939
          %v4942 = vsel %vm4689, %v4938, 0
          %v4945 = vsel %vm4689, %v4940, 0
          %4947 = vmatprep.subr.bf16.mxu0 0
          %4948 = vmatpush1.bf16.xpose.msra.mxu0 %v4945
          %4949 = vmatprep.subr.bf16.mxu0 0
          %4950 = vmatpush1.bf16.xpose.msra.mxu0 0
          %4951 = vmatprep.subr.bf16.mxu0 0
          %4952 = vmatpush1.bf16.xpose.msra.mxu0 0
          %4953 = vmatprep.subr.bf16.mxu0 0
          %4954 = vmatpush1.bf16.xpose.msra.mxu0 0
          %4955 = vmatprep.subr.bf16.mxu0 0
          %4956 = vmatpush1.bf16.xpose.msra.mxu0 0
          %4957 = vmatprep.subr.bf16.mxu0 0
          %4958 = vmatpush1.bf16.xpose.msra.mxu0 0
          %4959 = vmatprep.subr.bf16.mxu0 0
          %4960 = vmatpush1.bf16.xpose.msra.mxu0 0
          %4961 = vmatprep.subr.bf16.mxu0 0
          %4962 = vmatpush1.bf16.xpose.msra.mxu0 0
          %4963 = vmatprep.subr.bf16.mxu0 0
          %4964 = vmatpush1.bf16.xpose.msra.mxu0 0
          %4965 = vmatprep.subr.bf16.mxu0 0
          %4966 = vmatpush1.bf16.xpose.msra.mxu0 0
          %4967 = vmatprep.subr.bf16.mxu0 0
          %4968 = vmatpush1.bf16.xpose.msra.mxu0 0
          %4969 = vmatprep.subr.bf16.mxu0 0
          %4970 = vmatpush1.bf16.xpose.msra.mxu0 0
          %4971 = vmatprep.subr.bf16.mxu0 0
          %4972 = vmatpush1.bf16.xpose.msra.mxu0 0
          %4973 = vmatprep.subr.bf16.mxu0 0
          %4974 = vmatpush1.bf16.xpose.msra.mxu0 0
          %4975 = vmatprep.subr.bf16.mxu0 0
          %4976 = vmatpush1.bf16.xpose.msra.mxu0 0
          %4977 = vmatprep.subr.bf16.mxu0 0
          %4978 = vmatpush1.bf16.xpose.msra.mxu0 0
          %4979 = vmatprep.mubr.bf16.mxu0 0
          %4980 = vmatmul.mubr.bf16.gmra.mrb[0].mxu0 %v4942
          %v4981 = vpop.f32.mrb[0].mxu0
          %v4982 = vadd.f32 0.0, %v4981
          %v4983 = vpop.f32.mrb[0].mxu0
          %v4984 = vpop.f32.mrb[0].mxu0
          %v4985 = vadd.f32 0.0, %v4984
          %v4986 = vpop.f32.mrb[0].mxu0
          %4987 = vdwg.mxu0
          %v4988 = vmul.f32 %v4982, 0.35355338
          %v4989 = vmul.f32 %v4985, 0.35355338
          %v4990 = vadd.f32 %v4988, %v4556
          %v4991 = vadd.f32 %v4989, %v4557
          %v4992 = vsel %vm4741, %v4990, -inf
          %4993 = vmax.xlane.f32.xlu0 %v4992
          %v4994 = vpop.xlane.xlu0 %4993
          %v4995 = vsel %vm4741, %v4991, -inf
          %4996 = vmax.xlane.f32.xlu0 %v4995
          %v4997 = vpop.xlane.xlu0 %4996
          %v4998 = vsub.f32 %v4990, %v4994
          %v4999 = vsub.f32 %v4991, %v4997
          %v5000 = vmul.f32 %v4998, 1.442695
          %v5001 = vpow.pop %v5000
          %v5002 = vmul.f32 %v4999, 1.442695
          %v5003 = vpow.pop %v5002
          %v5004 = vsel %vm4741, %v5001, 0.0
          %5005 = vadd.xlane.f32.xlu0 %v5004
          %v5006 = vpop.xlane.xlu0 %5005
          %v5007 = vsel %vm4741, %v5003, 0.0
          %5008 = vadd.xlane.f32.xlu0 %v5007
          %v5009 = vpop.xlane.xlu0 %5008
          %v5010 = vrcp.pop %v5006
          %v5011 = vrcp.pop %v5009
          %v5012 = vmul.f32 %v5001, %v5010
          %v5013 = vmul.f32 %v5003, %v5011
          %v5014 = vpack.c.bf16 %v5013, %v5012
          %5015 = vrot.lane.b32.xlu0 %v4685, 48
          %v5016 = vpop.permute.xlu0 %5015
          %v5019 = vsel %vm4741, %v5014, 0
          %5021 = vmatprep.subr.bf16.mxu0 0
          %5022 = vmatpush1.bf16.msra.mxu0 %v5016
          %5023 = vmatprep.subr.bf16.mxu0 0
          %5024 = vmatpush1.bf16.msra.mxu0 0
          %5025 = vmatprep.subr.bf16.mxu0 0
          %5026 = vmatpush1.bf16.msra.mxu0 0
          %5027 = vmatprep.subr.bf16.mxu0 0
          %5028 = vmatpush1.bf16.msra.mxu0 0
          %5029 = vmatprep.subr.bf16.mxu0 0
          %5030 = vmatpush1.bf16.msra.mxu0 0
          %5031 = vmatprep.subr.bf16.mxu0 0
          %5032 = vmatpush1.bf16.msra.mxu0 0
          %5033 = vmatprep.subr.bf16.mxu0 0
          %5034 = vmatpush1.bf16.msra.mxu0 0
          %5035 = vmatprep.subr.bf16.mxu0 0
          %5036 = vmatpush1.bf16.msra.mxu0 0
          %5037 = vmatprep.subr.bf16.mxu0 0
          %5038 = vmatpush1.bf16.msra.mxu0 0
          %5039 = vmatprep.subr.bf16.mxu0 0
          %5040 = vmatpush1.bf16.msra.mxu0 0
          %5041 = vmatprep.subr.bf16.mxu0 0
          %5042 = vmatpush1.bf16.msra.mxu0 0
          %5043 = vmatprep.subr.bf16.mxu0 0
          %5044 = vmatpush1.bf16.msra.mxu0 0
          %5045 = vmatprep.subr.bf16.mxu0 0
          %5046 = vmatpush1.bf16.msra.mxu0 0
          %5047 = vmatprep.subr.bf16.mxu0 0
          %5048 = vmatpush1.bf16.msra.mxu0 0
          %5049 = vmatprep.subr.bf16.mxu0 0
          %5050 = vmatpush1.bf16.msra.mxu0 0
          %5051 = vmatprep.subr.bf16.mxu0 0
          %5052 = vmatpush1.bf16.msra.mxu0 0
          %5053 = vmatprep.mubr.bf16.mxu0 0
          %5054 = vmatmul.mubr.bf16.gmra.mrb[0].mxu0 %v5019
          %v5055 = vpop.f32.mrb[0].mxu0
          %v5056 = vadd.f32 0.0, %v5055
          %v5057 = vpop.f32.mrb[0].mxu0
          %v5058 = vpop.f32.mrb[0].mxu0
          %v5059 = vadd.f32 0.0, %v5058
          %v5060 = vpop.f32.mrb[0].mxu0
          %5061 = vdwg.mxu0
          %5062 = vrot.lane.b32.xlu0 %v4685, 104
          %v5063 = vpop.permute.xlu0 %5062
          %5064 = vrot.lane.b32.xlu0 %v4685, 72
          %v5065 = vpop.permute.xlu0 %5064
          %v5067 = vsel %vm4689, %v5063, 0
          %v5070 = vsel %vm4689, %v5065, 0
          %5072 = vmatprep.subr.bf16.mxu0 0
          %5073 = vmatpush1.bf16.xpose.msra.mxu0 %v5070
          %5074 = vmatprep.subr.bf16.mxu0 0
          %5075 = vmatpush1.bf16.xpose.msra.mxu0 0
          %5076 = vmatprep.subr.bf16.mxu0 0
          %5077 = vmatpush1.bf16.xpose.msra.mxu0 0
          %5078 = vmatprep.subr.bf16.mxu0 0
          %5079 = vmatpush1.bf16.xpose.msra.mxu0 0
          %5080 = vmatprep.subr.bf16.mxu0 0
          %5081 = vmatpush1.bf16.xpose.msra.mxu0 0
          %5082 = vmatprep.subr.bf16.mxu0 0
          %5083 = vmatpush1.bf16.xpose.msra.mxu0 0
          %5084 = vmatprep.subr.bf16.mxu0 0
          %5085 = vmatpush1.bf16.xpose.msra.mxu0 0
          %5086 = vmatprep.subr.bf16.mxu0 0
          %5087 = vmatpush1.bf16.xpose.msra.mxu0 0
          %5088 = vmatprep.subr.bf16.mxu0 0
          %5089 = vmatpush1.bf16.xpose.msra.mxu0 0
          %5090 = vmatprep.subr.bf16.mxu0 0
          %5091 = vmatpush1.bf16.xpose.msra.mxu0 0
          %5092 = vmatprep.subr.bf16.mxu0 0
          %5093 = vmatpush1.bf16.xpose.msra.mxu0 0
          %5094 = vmatprep.subr.bf16.mxu0 0
          %5095 = vmatpush1.bf16.xpose.msra.mxu0 0
          %5096 = vmatprep.subr.bf16.mxu0 0
          %5097 = vmatpush1.bf16.xpose.msra.mxu0 0
          %5098 = vmatprep.subr.bf16.mxu0 0
          %5099 = vmatpush1.bf16.xpose.msra.mxu0 0
          %5100 = vmatprep.subr.bf16.mxu0 0
          %5101 = vmatpush1.bf16.xpose.msra.mxu0 0
          %5102 = vmatprep.subr.bf16.mxu0 0
          %5103 = vmatpush1.bf16.xpose.msra.mxu0 0
          %5104 = vmatprep.mubr.bf16.mxu0 0
          %5105 = vmatmul.mubr.bf16.gmra.mrb[0].mxu0 %v5067
          %v5106 = vpop.f32.mrb[0].mxu0
          %v5107 = vadd.f32 0.0, %v5106
          %v5108 = vpop.f32.mrb[0].mxu0
          %v5109 = vpop.f32.mrb[0].mxu0
          %v5110 = vadd.f32 0.0, %v5109
          %v5111 = vpop.f32.mrb[0].mxu0
          %5112 = vdwg.mxu0
          %v5113 = vmul.f32 %v5107, 0.35355338
          %v5114 = vmul.f32 %v5110, 0.35355338
          %v5115 = vadd.f32 %v5113, %v4556
          %v5116 = vadd.f32 %v5114, %v4557
          %v5117 = vsel %vm4741, %v5115, -inf
          %5118 = vmax.xlane.f32.xlu0 %v5117
          %v5119 = vpop.xlane.xlu0 %5118
          %v5120 = vsel %vm4741, %v5116, -inf
          %5121 = vmax.xlane.f32.xlu0 %v5120
          %v5122 = vpop.xlane.xlu0 %5121
          %v5123 = vsub.f32 %v5115, %v5119
          %v5124 = vsub.f32 %v5116, %v5122
          %v5125 = vmul.f32 %v5123, 1.442695
          %v5126 = vpow.pop %v5125
          %v5127 = vmul.f32 %v5124, 1.442695
          %v5128 = vpow.pop %v5127
          %v5129 = vsel %vm4741, %v5126, 0.0
          %5130 = vadd.xlane.f32.xlu0 %v5129
          %v5131 = vpop.xlane.xlu0 %5130
          %v5132 = vsel %vm4741, %v5128, 0.0
          %5133 = vadd.xlane.f32.xlu0 %v5132
          %v5134 = vpop.xlane.xlu0 %5133
          %v5135 = vrcp.pop %v5131
          %v5136 = vrcp.pop %v5134
          %v5137 = vmul.f32 %v5126, %v5135
          %v5138 = vmul.f32 %v5128, %v5136
          %v5139 = vpack.c.bf16 %v5138, %v5137
          %5140 = vrot.lane.b32.xlu0 %v4685, 40
          %v5141 = vpop.permute.xlu0 %5140
          %v5144 = vsel %vm4741, %v5139, 0
          %5146 = vmatprep.subr.bf16.mxu0 0
          %5147 = vmatpush1.bf16.msra.mxu0 %v5141
          %5148 = vmatprep.subr.bf16.mxu0 0
          %5149 = vmatpush1.bf16.msra.mxu0 0
          %5150 = vmatprep.subr.bf16.mxu0 0
          %5151 = vmatpush1.bf16.msra.mxu0 0
          %5152 = vmatprep.subr.bf16.mxu0 0
          %5153 = vmatpush1.bf16.msra.mxu0 0
          %5154 = vmatprep.subr.bf16.mxu0 0
          %5155 = vmatpush1.bf16.msra.mxu0 0
          %5156 = vmatprep.subr.bf16.mxu0 0
          %5157 = vmatpush1.bf16.msra.mxu0 0
          %5158 = vmatprep.subr.bf16.mxu0 0
          %5159 = vmatpush1.bf16.msra.mxu0 0
          %5160 = vmatprep.subr.bf16.mxu0 0
          %5161 = vmatpush1.bf16.msra.mxu0 0
          %5162 = vmatprep.subr.bf16.mxu0 0
          %5163 = vmatpush1.bf16.msra.mxu0 0
          %5164 = vmatprep.subr.bf16.mxu0 0
          %5165 = vmatpush1.bf16.msra.mxu0 0
          %5166 = vmatprep.subr.bf16.mxu0 0
          %5167 = vmatpush1.bf16.msra.mxu0 0
          %5168 = vmatprep.subr.bf16.mxu0 0
          %5169 = vmatpush1.bf16.msra.mxu0 0
          %5170 = vmatprep.subr.bf16.mxu0 0
          %5171 = vmatpush1.bf16.msra.mxu0 0
          %5172 = vmatprep.subr.bf16.mxu0 0
          %5173 = vmatpush1.bf16.msra.mxu0 0
          %5174 = vmatprep.subr.bf16.mxu0 0
          %5175 = vmatpush1.bf16.msra.mxu0 0
          %5176 = vmatprep.subr.bf16.mxu0 0
          %5177 = vmatpush1.bf16.msra.mxu0 0
          %5178 = vmatprep.mubr.bf16.mxu0 0
          %5179 = vmatmul.mubr.bf16.gmra.mrb[0].mxu0 %v5144
          %v5180 = vpop.f32.mrb[0].mxu0
          %v5181 = vadd.f32 0.0, %v5180
          %v5182 = vpop.f32.mrb[0].mxu0
          %v5183 = vpop.f32.mrb[0].mxu0
          %v5184 = vadd.f32 0.0, %v5183
          %v5185 = vpop.f32.mrb[0].mxu0
          %5186 = vdwg.mxu0
          %5189 = vrot.lane.b32.xlu0 %v4931, 8
          %v5190 = vpop.permute.xlu0 %5189
          %5191 = vrot.lane.b32.xlu0 %v4934, 8
          %v5192 = vpop.permute.xlu0 %5191
          %5197 = vrot.lane.b32.xlu0 %v5056, 16
          %v5198 = vpop.permute.xlu0 %5197
          %5199 = vrot.lane.b32.xlu0 %v5059, 16
          %v5200 = vpop.permute.xlu0 %5199
          %5205 = vrot.lane.b32.xlu0 %v5181, 24
          %v5206 = vpop.permute.xlu0 %5205
          %5207 = vrot.lane.b32.xlu0 %v5184, 24
          %v5208 = vpop.permute.xlu0 %5207
          %v5211 = vsel %vm4689, %v4806, %v5190
          %v5212 = vsel %vm4689, %v4809, %v5192
          %v5213 = vsel %vm4741, %v5211, %v5198
          %v5214 = vsel %vm4741, %v5212, %v5200
          %vm5215 = vcmask 195584
          %v5216 = vsel %vm5215, %v5213, %v5206
          %v5217 = vsel %vm5215, %v5214, %v5208
          %v5218 = vpack.c.bf16 %v5217, %v5216
          %v5219 = vlaneseq
          %v5220 = vshrl.u32 %v5219, 7
          %v5221 = vsub.s32 7, %v5220
          %v5222 = vrot.slane %v4560, %v5221
          %v5227 = vunpack.c.l.b16 %v4681
          %v5228 = vunpack.c.l.b16 %v4682
          %v5229 = vunpack.c.l.b16 %v4683
          %v5230 = vunpack.c.l.b16 %v4684
          %v5231 = vpack.c.b16 %v5228, %v5227
          %v5232 = vpack.c.b16 %v5230, %v5229
          %v5236 = vsel %vm4562, %v5218, 0
          %5238 = vmatprep.subr.bf16.mxu0 0
          %5239 = vmatpush1.bf16.msra.mxu0 %v5231
          %5240 = vmatprep.subr.bf16.mxu0 0
          %5241 = vmatpush1.bf16.msra.mxu0 %v5232
          %5242 = vmatprep.subr.bf16.mxu0 0
          %5243 = vmatpush1.bf16.msra.mxu0 0
          %5244 = vmatprep.subr.bf16.mxu0 0
          %5245 = vmatpush1.bf16.msra.mxu0 0
          %5246 = vmatprep.subr.bf16.mxu0 0
          %5247 = vmatpush1.bf16.msra.mxu0 0
          %5248 = vmatprep.subr.bf16.mxu0 0
          %5249 = vmatpush1.bf16.msra.mxu0 0
          %5250 = vmatprep.subr.bf16.mxu0 0
          %5251 = vmatpush1.bf16.msra.mxu0 0
          %5252 = vmatprep.subr.bf16.mxu0 0
          %5253 = vmatpush1.bf16.msra.mxu0 0
          %5254 = vmatprep.subr.bf16.mxu0 0
          %5255 = vmatpush1.bf16.msra.mxu0 0
          %5256 = vmatprep.subr.bf16.mxu0 0
          %5257 = vmatpush1.bf16.msra.mxu0 0
          %5258 = vmatprep.subr.bf16.mxu0 0
          %5259 = vmatpush1.bf16.msra.mxu0 0
          %5260 = vmatprep.subr.bf16.mxu0 0
          %5261 = vmatpush1.bf16.msra.mxu0 0
          %5262 = vmatprep.subr.bf16.mxu0 0
          %5263 = vmatpush1.bf16.msra.mxu0 0
          %5264 = vmatprep.subr.bf16.mxu0 0
          %5265 = vmatpush1.bf16.msra.mxu0 0
          %5266 = vmatprep.subr.bf16.mxu0 0
          %5267 = vmatpush1.bf16.msra.mxu0 0
          %5268 = vmatprep.subr.bf16.mxu0 0
          %5269 = vmatpush1.bf16.msra.mxu0 0
          %5270 = vmatprep.mubr.bf16.mxu0 0
          %5271 = vmatmul.mubr.bf16.gmra.mrb[0].mxu0 %v5236
          %v5272 = vpop.f32.mrb[0].mxu0
          %v5273 = vadd.f32 %v5222, %v5272
          %v5274 = vpop.f32.mrb[0].mxu0
          %v5275 = vpop.f32.mrb[0].mxu0
          %v5276 = vadd.f32 %v5222, %v5275
          %v5277 = vpop.f32.mrb[0].mxu0
          %5278 = vdwg.mxu0
          %v5279 = vadd.f32 %v4552, %v5273
          %v5280 = vadd.f32 %v4553, %v5276
          %v5281 = vsel %vm4562, %v5279, 0.0
          %5282 = vadd.xlane.f32.xlu0 %v5281
          %v5283 = vpop.xlane.xlu0 %5282
          %v5284 = vsel %vm4562, %v5280, 0.0
          %5285 = vadd.xlane.f32.xlu0 %v5284
          %v5286 = vpop.xlane.xlu0 %5285
          %v5287 = vmul.f32 %v5283, %v4569
          %v5288 = vmul.f32 %v5286, %v4569
          %v5289 = vsub.f32 %v5279, %v5287
          %v5290 = vsub.f32 %v5280, %v5288
          %v5291 = vmul.f32 %v5289, %v5289
          %v5292 = vmul.f32 %v5290, %v5290
          %v5293 = vsel %vm4562, %v5291, 0.0
          %5294 = vadd.xlane.f32.xlu0 %v5293
          %v5295 = vpop.xlane.xlu0 %5294
          %v5296 = vsel %vm4562, %v5292, 0.0
          %5297 = vadd.xlane.f32.xlu0 %v5296
          %v5298 = vpop.xlane.xlu0 %5297
          %v5299 = vmul.f32 %v5295, 0.032258064
          %v5300 = vmul.f32 %v5298, 0.032258064
          %v5301 = vrsqrt.pop %v5299
          %v5302 = vmul.f32 %v5299, %v5301
          %vm5303 = vcmp.eq.f32.partialorder %v5299, inf
          %v5304 = vsel %vm5303, %v5299, %v5302
          %vm5305 = vcmp.eq.f32.partialorder %v5299, 0.0
          %v5306 = vand.u32 %v5299, 2147483648
          %v5307 = vsel %vm5305, %v5306, %v5304
          %v5308 = vrsqrt.pop %v5300
          %v5309 = vmul.f32 %v5300, %v5308
          %vm5310 = vcmp.eq.f32.partialorder %v5300, inf
          %v5311 = vsel %vm5310, %v5300, %v5309
          %vm5312 = vcmp.eq.f32.partialorder %v5300, 0.0
          %v5313 = vand.u32 %v5300, 2147483648
          %v5314 = vsel %vm5312, %v5313, %v5311
          %v5315 = vadd.f32 %v5307, 1e-06
          %v5316 = vadd.f32 %v5314, 1e-06
          %v5317 = vrcp.pop %v5315
          %v5318 = vrcp.pop %v5316
          %v5319 = vmul.f32 %v5289, %v5317
          %v5320 = vmul.f32 %v5290, %v5318
          %v5321 = vlaneseq
          %v5322 = vshrl.u32 %v5321, 7
          %v5323 = vsub.s32 2, %v5322
          %v5324 = vrot.slane %v4560, %v5323
          %v5325 = vmul.f32 %v5324, %v5319
          %v5326 = vmul.f32 %v5324, %v5320
          %v5327 = vlaneseq
          %v5328 = vshrl.u32 %v5327, 7
          %v5329 = vsub.s32 3, %v5328
          %v5330 = vrot.slane %v4560, %v5329
          %v5331 = vadd.f32 %v5325, %v5330
          %v5332 = vadd.f32 %v5326, %v5330
          %v5333 = vld [vmem:[%s1364] sm:$0xf]
          %v5334 = vld [vmem:[%s1364 + $0x4] sm:$0xf]
          %v5335 = vld [vmem:[%s1364 + $0x8] sm:$0xf]
          %v5336 = vld [vmem:[%s1364 + $0xc] sm:$0xf]
          %v5337 = vpack.c.bf16 %v5332, %v5331
          %v5338 = vlaneseq
          %v5339 = vshrl.u32 %v5338, 7
          %v5340 = vsub.s32 0, %v5339
          %v5341 = vrot.slane %v4561, %v5340
          %v5346 = vunpack.c.l.b16 %v5333
          %v5347 = vunpack.c.l.b16 %v5334
          %v5348 = vunpack.c.l.b16 %v5335
          %v5349 = vunpack.c.l.b16 %v5336
          %v5350 = vpack.c.b16 %v5347, %v5346
          %v5351 = vpack.c.b16 %v5349, %v5348
          %v5355 = vsel %vm4562, %v5337, 0
          %5357 = vmatprep.subr.bf16.mxu0 0
          %5358 = vmatpush1.bf16.msra.mxu0 %v5350
          %5359 = vmatprep.subr.bf16.mxu0 0
          %5360 = vmatpush1.bf16.msra.mxu0 %v5351
          %5361 = vmatprep.subr.bf16.mxu0 0
          %5362 = vmatpush1.bf16.msra.mxu0 0
          %5363 = vmatprep.subr.bf16.mxu0 0
          %5364 = vmatpush1.bf16.msra.mxu0 0
          %5365 = vmatprep.subr.bf16.mxu0 0
          %5366 = vmatpush1.bf16.msra.mxu0 0
          %5367 = vmatprep.subr.bf16.mxu0 0
          %5368 = vmatpush1.bf16.msra.mxu0 0
          %5369 = vmatprep.subr.bf16.mxu0 0
          %5370 = vmatpush1.bf16.msra.mxu0 0
          %5371 = vmatprep.subr.bf16.mxu0 0
          %5372 = vmatpush1.bf16.msra.mxu0 0
          %5373 = vmatprep.subr.bf16.mxu0 0
          %5374 = vmatpush1.bf16.msra.mxu0 0
          %5375 = vmatprep.subr.bf16.mxu0 0
          %5376 = vmatpush1.bf16.msra.mxu0 0
          %5377 = vmatprep.subr.bf16.mxu0 0
          %5378 = vmatpush1.bf16.msra.mxu0 0
          %5379 = vmatprep.subr.bf16.mxu0 0
          %5380 = vmatpush1.bf16.msra.mxu0 0
          %5381 = vmatprep.subr.bf16.mxu0 0
          %5382 = vmatpush1.bf16.msra.mxu0 0
          %5383 = vmatprep.subr.bf16.mxu0 0
          %5384 = vmatpush1.bf16.msra.mxu0 0
          %5385 = vmatprep.subr.bf16.mxu0 0
          %5386 = vmatpush1.bf16.msra.mxu0 0
          %5387 = vmatprep.subr.bf16.mxu0 0
          %5388 = vmatpush1.bf16.msra.mxu0 0
          %5389 = vmatprep.mubr.bf16.mxu0 0
          %5390 = vmatmul.mubr.bf16.gmra.mrb[0].mxu0 %v5355
          %v5391 = vpop.f32.mrb[0].mxu0
          %v5392 = vadd.f32 %v5341, %v5391
          %v5393 = vpop.f32.mrb[0].mxu0
          %v5394 = vpop.f32.mrb[0].mxu0
          %v5395 = vadd.f32 %v5341, %v5394
          %v5396 = vpop.f32.mrb[0].mxu0
          %5397 = vdwg.mxu0
          %v5398 = vld [vmem:[%s1375] sm:$0xf]
          %v5399 = vld [vmem:[%s1375 + $0x4] sm:$0xf]
          %v5400 = vld [vmem:[%s1375 + $0x8] sm:$0xf]
          %v5401 = vld [vmem:[%s1375 + $0xc] sm:$0xf]
          %v5402 = vpack.c.bf16 %v4555, %v4554
          %v5403 = vlaneseq
          %v5404 = vshrl.u32 %v5403, 7
          %v5405 = vsub.s32 1, %v5404
          %v5406 = vrot.slane %v4561, %v5405
          %v5411 = vunpack.c.l.b16 %v5398
          %v5412 = vunpack.c.l.b16 %v5399
          %v5413 = vunpack.c.l.b16 %v5400
          %v5414 = vunpack.c.l.b16 %v5401
          %v5415 = vpack.c.b16 %v5412, %v5411
          %v5416 = vpack.c.b16 %v5414, %v5413
          %v5420 = vsel %vm4562, %v5402, 0
          %5422 = vmatprep.subr.bf16.mxu0 0
          %5423 = vmatpush1.bf16.msra.mxu0 %v5415
          %5424 = vmatprep.subr.bf16.mxu0 0
          %5425 = vmatpush1.bf16.msra.mxu0 %v5416
          %5426 = vmatprep.subr.bf16.mxu0 0
          %5427 = vmatpush1.bf16.msra.mxu0 0
          %5428 = vmatprep.subr.bf16.mxu0 0
          %5429 = vmatpush1.bf16.msra.mxu0 0
          %5430 = vmatprep.subr.bf16.mxu0 0
          %5431 = vmatpush1.bf16.msra.mxu0 0
          %5432 = vmatprep.subr.bf16.mxu0 0
          %5433 = vmatpush1.bf16.msra.mxu0 0
          %5434 = vmatprep.subr.bf16.mxu0 0
          %5435 = vmatpush1.bf16.msra.mxu0 0
          %5436 = vmatprep.subr.bf16.mxu0 0
          %5437 = vmatpush1.bf16.msra.mxu0 0
          %5438 = vmatprep.subr.bf16.mxu0 0
          %5439 = vmatpush1.bf16.msra.mxu0 0
          %5440 = vmatprep.subr.bf16.mxu0 0
          %5441 = vmatpush1.bf16.msra.mxu0 0
          %5442 = vmatprep.subr.bf16.mxu0 0
          %5443 = vmatpush1.bf16.msra.mxu0 0
          %5444 = vmatprep.subr.bf16.mxu0 0
          %5445 = vmatpush1.bf16.msra.mxu0 0
          %5446 = vmatprep.subr.bf16.mxu0 0
          %5447 = vmatpush1.bf16.msra.mxu0 0
          %5448 = vmatprep.subr.bf16.mxu0 0
          %5449 = vmatpush1.bf16.msra.mxu0 0
          %5450 = vmatprep.subr.bf16.mxu0 0
          %5451 = vmatpush1.bf16.msra.mxu0 0
          %5452 = vmatprep.subr.bf16.mxu0 0
          %5453 = vmatpush1.bf16.msra.mxu0 0
          %5454 = vmatprep.mubr.bf16.mxu0 0
          %5455 = vmatmul.mubr.bf16.gmra.mrb[0].mxu0 %v5420
          %v5456 = vpop.f32.mrb[0].mxu0
          %v5457 = vadd.f32 %v5406, %v5456
          %v5458 = vpop.f32.mrb[0].mxu0
          %v5459 = vpop.f32.mrb[0].mxu0
          %v5460 = vadd.f32 %v5406, %v5459
          %v5461 = vpop.f32.mrb[0].mxu0
          %5462 = vdwg.mxu0
          %v5463 = vld [vmem:[%s1386] sm:$0xf]
          %v5464 = vld [vmem:[%s1386 + $0x4] sm:$0xf]
          %v5465 = vld [vmem:[%s1386 + $0x8] sm:$0xf]
          %v5466 = vld [vmem:[%s1386 + $0xc] sm:$0xf]
          %v5467 = vpack.c.bf16 %v5395, %v5392
          %v5468 = vpack.c.bf16 %v5460, %v5457
          %v5470 = vsel %vm4689, %v5467, 0
          %v5473 = vsel %vm4689, %v5468, 0
          %5475 = vmatprep.subr.bf16.mxu0 0
          %5476 = vmatpush1.bf16.xpose.msra.mxu0 %v5473
          %5477 = vmatprep.subr.bf16.mxu0 0
          %5478 = vmatpush1.bf16.xpose.msra.mxu0 0
          %5479 = vmatprep.subr.bf16.mxu0 0
          %5480 = vmatpush1.bf16.xpose.msra.mxu0 0
          %5481 = vmatprep.subr.bf16.mxu0 0
          %5482 = vmatpush1.bf16.xpose.msra.mxu0 0
          %5483 = vmatprep.subr.bf16.mxu0 0
          %5484 = vmatpush1.bf16.xpose.msra.mxu0 0
          %5485 = vmatprep.subr.bf16.mxu0 0
          %5486 = vmatpush1.bf16.xpose.msra.mxu0 0
          %5487 = vmatprep.subr.bf16.mxu0 0
          %5488 = vmatpush1.bf16.xpose.msra.mxu0 0
          %5489 = vmatprep.subr.bf16.mxu0 0
          %5490 = vmatpush1.bf16.xpose.msra.mxu0 0
          %5491 = vmatprep.subr.bf16.mxu0 0
          %5492 = vmatpush1.bf16.xpose.msra.mxu0 0
          %5493 = vmatprep.subr.bf16.mxu0 0
          %5494 = vmatpush1.bf16.xpose.msra.mxu0 0
          %5495 = vmatprep.subr.bf16.mxu0 0
          %5496 = vmatpush1.bf16.xpose.msra.mxu0 0
          %5497 = vmatprep.subr.bf16.mxu0 0
          %5498 = vmatpush1.bf16.xpose.msra.mxu0 0
          %5499 = vmatprep.subr.bf16.mxu0 0
          %5500 = vmatpush1.bf16.xpose.msra.mxu0 0
          %5501 = vmatprep.subr.bf16.mxu0 0
          %5502 = vmatpush1.bf16.xpose.msra.mxu0 0
          %5503 = vmatprep.subr.bf16.mxu0 0
          %5504 = vmatpush1.bf16.xpose.msra.mxu0 0
          %5505 = vmatprep.subr.bf16.mxu0 0
          %5506 = vmatpush1.bf16.xpose.msra.mxu0 0
          %5507 = vmatprep.mubr.bf16.mxu0 0
          %5508 = vmatmul.mubr.bf16.gmra.mrb[0].mxu0 %v5470
          %v5509 = vpop.f32.mrb[0].mxu0
          %v5510 = vadd.f32 0.0, %v5509
          %v5511 = vpop.f32.mrb[0].mxu0
          %v5512 = vpop.f32.mrb[0].mxu0
          %v5513 = vadd.f32 0.0, %v5512
          %v5514 = vpop.f32.mrb[0].mxu0
          %5515 = vdwg.mxu0
          %v5516 = vmul.f32 %v5510, 0.35355338
          %v5517 = vmul.f32 %v5513, 0.35355338
          %v5518 = vadd.f32 %v5516, %v4558
          %v5519 = vadd.f32 %v5517, %v4559
          %v5520 = vsel %vm4741, %v5518, -inf
          %5521 = vmax.xlane.f32.xlu0 %v5520
          %v5522 = vpop.xlane.xlu0 %5521
          %v5523 = vsel %vm4741, %v5519, -inf
          %5524 = vmax.xlane.f32.xlu0 %v5523
          %v5525 = vpop.xlane.xlu0 %5524
          %v5526 = vsub.f32 %v5518, %v5522
          %v5527 = vsub.f32 %v5519, %v5525
          %v5528 = vmul.f32 %v5526, 1.442695
          %v5529 = vpow.pop %v5528
          %v5530 = vmul.f32 %v5527, 1.442695
          %v5531 = vpow.pop %v5530
          %v5532 = vsel %vm4741, %v5529, 0.0
          %5533 = vadd.xlane.f32.xlu0 %v5532
          %v5534 = vpop.xlane.xlu0 %5533
          %v5535 = vsel %vm4741, %v5531, 0.0
          %5536 = vadd.xlane.f32.xlu0 %v5535
          %v5537 = vpop.xlane.xlu0 %5536
          %v5538 = vrcp.pop %v5534
          %v5539 = vrcp.pop %v5537
          %v5540 = vmul.f32 %v5529, %v5538
          %v5541 = vmul.f32 %v5531, %v5539
          %v5542 = vpack.c.bf16 %v5541, %v5540
          %5544 = vrot.lane.b32.xlu0 %v5468, 96
          %v5545 = vpop.permute.xlu0 %5544
          %v5548 = vsel %vm4741, %v5542, 0
          %5550 = vmatprep.subr.bf16.mxu0 0
          %5551 = vmatpush1.bf16.msra.mxu0 %v5545
          %5552 = vmatprep.subr.bf16.mxu0 0
          %5553 = vmatpush1.bf16.msra.mxu0 0
          %5554 = vmatprep.subr.bf16.mxu0 0
          %5555 = vmatpush1.bf16.msra.mxu0 0
          %5556 = vmatprep.subr.bf16.mxu0 0
          %5557 = vmatpush1.bf16.msra.mxu0 0
          %5558 = vmatprep.subr.bf16.mxu0 0
          %5559 = vmatpush1.bf16.msra.mxu0 0
          %5560 = vmatprep.subr.bf16.mxu0 0
          %5561 = vmatpush1.bf16.msra.mxu0 0
          %5562 = vmatprep.subr.bf16.mxu0 0
          %5563 = vmatpush1.bf16.msra.mxu0 0
          %5564 = vmatprep.subr.bf16.mxu0 0
          %5565 = vmatpush1.bf16.msra.mxu0 0
          %5566 = vmatprep.subr.bf16.mxu0 0
          %5567 = vmatpush1.bf16.msra.mxu0 0
          %5568 = vmatprep.subr.bf16.mxu0 0
          %5569 = vmatpush1.bf16.msra.mxu0 0
          %5570 = vmatprep.subr.bf16.mxu0 0
          %5571 = vmatpush1.bf16.msra.mxu0 0
          %5572 = vmatprep.subr.bf16.mxu0 0
          %5573 = vmatpush1.bf16.msra.mxu0 0
          %5574 = vmatprep.subr.bf16.mxu0 0
          %5575 = vmatpush1.bf16.msra.mxu0 0
          %5576 = vmatprep.subr.bf16.mxu0 0
          %5577 = vmatpush1.bf16.msra.mxu0 0
          %5578 = vmatprep.subr.bf16.mxu0 0
          %5579 = vmatpush1.bf16.msra.mxu0 0
          %5580 = vmatprep.subr.bf16.mxu0 0
          %5581 = vmatpush1.bf16.msra.mxu0 0
          %5582 = vmatprep.mubr.bf16.mxu0 0
          %5583 = vmatmul.mubr.bf16.gmra.mrb[0].mxu0 %v5548
          %v5584 = vpop.f32.mrb[0].mxu0
          %v5585 = vadd.f32 0.0, %v5584
          %v5586 = vpop.f32.mrb[0].mxu0
          %v5587 = vpop.f32.mrb[0].mxu0
          %v5588 = vadd.f32 0.0, %v5587
          %v5589 = vpop.f32.mrb[0].mxu0
          %5590 = vdwg.mxu0
          %5592 = vrot.lane.b32.xlu0 %v5467, 120
          %v5593 = vpop.permute.xlu0 %5592
          %5594 = vrot.lane.b32.xlu0 %v5468, 120
          %v5595 = vpop.permute.xlu0 %5594
          %v5597 = vsel %vm4689, %v5593, 0
          %v5600 = vsel %vm4689, %v5595, 0
          %5602 = vmatprep.subr.bf16.mxu0 0
          %5603 = vmatpush1.bf16.xpose.msra.mxu0 %v5600
          %5604 = vmatprep.subr.bf16.mxu0 0
          %5605 = vmatpush1.bf16.xpose.msra.mxu0 0
          %5606 = vmatprep.subr.bf16.mxu0 0
          %5607 = vmatpush1.bf16.xpose.msra.mxu0 0
          %5608 = vmatprep.subr.bf16.mxu0 0
          %5609 = vmatpush1.bf16.xpose.msra.mxu0 0
          %5610 = vmatprep.subr.bf16.mxu0 0
          %5611 = vmatpush1.bf16.xpose.msra.mxu0 0
          %5612 = vmatprep.subr.bf16.mxu0 0
          %5613 = vmatpush1.bf16.xpose.msra.mxu0 0
          %5614 = vmatprep.subr.bf16.mxu0 0
          %5615 = vmatpush1.bf16.xpose.msra.mxu0 0
          %5616 = vmatprep.subr.bf16.mxu0 0
          %5617 = vmatpush1.bf16.xpose.msra.mxu0 0
          %5618 = vmatprep.subr.bf16.mxu0 0
          %5619 = vmatpush1.bf16.xpose.msra.mxu0 0
          %5620 = vmatprep.subr.bf16.mxu0 0
          %5621 = vmatpush1.bf16.xpose.msra.mxu0 0
          %5622 = vmatprep.subr.bf16.mxu0 0
          %5623 = vmatpush1.bf16.xpose.msra.mxu0 0
          %5624 = vmatprep.subr.bf16.mxu0 0
          %5625 = vmatpush1.bf16.xpose.msra.mxu0 0
          %5626 = vmatprep.subr.bf16.mxu0 0
          %5627 = vmatpush1.bf16.xpose.msra.mxu0 0
          %5628 = vmatprep.subr.bf16.mxu0 0
          %5629 = vmatpush1.bf16.xpose.msra.mxu0 0
          %5630 = vmatprep.subr.bf16.mxu0 0
          %5631 = vmatpush1.bf16.xpose.msra.mxu0 0
          %5632 = vmatprep.subr.bf16.mxu0 0
          %5633 = vmatpush1.bf16.xpose.msra.mxu0 0
          %5634 = vmatprep.mubr.bf16.mxu0 0
          %5635 = vmatmul.mubr.bf16.gmra.mrb[0].mxu0 %v5597
          %v5636 = vpop.f32.mrb[0].mxu0
          %v5637 = vadd.f32 0.0, %v5636
          %v5638 = vpop.f32.mrb[0].mxu0
          %v5639 = vpop.f32.mrb[0].mxu0
          %v5640 = vadd.f32 0.0, %v5639
          %v5641 = vpop.f32.mrb[0].mxu0
          %5642 = vdwg.mxu0
          %v5643 = vmul.f32 %v5637, 0.35355338
          %v5644 = vmul.f32 %v5640, 0.35355338
          %v5645 = vadd.f32 %v5643, %v4558
          %v5646 = vadd.f32 %v5644, %v4559
          %v5647 = vsel %vm4741, %v5645, -inf
          %5648 = vmax.xlane.f32.xlu0 %v5647
          %v5649 = vpop.xlane.xlu0 %5648
          %v5650 = vsel %vm4741, %v5646, -inf
          %5651 = vmax.xlane.f32.xlu0 %v5650
          %v5652 = vpop.xlane.xlu0 %5651
          %v5653 = vsub.f32 %v5645, %v5649
          %v5654 = vsub.f32 %v5646, %v5652
          %v5655 = vmul.f32 %v5653, 1.442695
          %v5656 = vpow.pop %v5655
          %v5657 = vmul.f32 %v5654, 1.442695
          %v5658 = vpow.pop %v5657
          %v5659 = vsel %vm4741, %v5656, 0.0
          %5660 = vadd.xlane.f32.xlu0 %v5659
          %v5661 = vpop.xlane.xlu0 %5660
          %v5662 = vsel %vm4741, %v5658, 0.0
          %5663 = vadd.xlane.f32.xlu0 %v5662
          %v5664 = vpop.xlane.xlu0 %5663
          %v5665 = vrcp.pop %v5661
          %v5666 = vrcp.pop %v5664
          %v5667 = vmul.f32 %v5656, %v5665
          %v5668 = vmul.f32 %v5658, %v5666
          %v5669 = vpack.c.bf16 %v5668, %v5667
          %5670 = vrot.lane.b32.xlu0 %v5468, 88
          %v5671 = vpop.permute.xlu0 %5670
          %v5674 = vsel %vm4741, %v5669, 0
          %5676 = vmatprep.subr.bf16.mxu0 0
          %5677 = vmatpush1.bf16.msra.mxu0 %v5671
          %5678 = vmatprep.subr.bf16.mxu0 0
          %5679 = vmatpush1.bf16.msra.mxu0 0
          %5680 = vmatprep.subr.bf16.mxu0 0
          %5681 = vmatpush1.bf16.msra.mxu0 0
          %5682 = vmatprep.subr.bf16.mxu0 0
          %5683 = vmatpush1.bf16.msra.mxu0 0
          %5684 = vmatprep.subr.bf16.mxu0 0
          %5685 = vmatpush1.bf16.msra.mxu0 0
          %5686 = vmatprep.subr.bf16.mxu0 0
          %5687 = vmatpush1.bf16.msra.mxu0 0
          %5688 = vmatprep.subr.bf16.mxu0 0
          %5689 = vmatpush1.bf16.msra.mxu0 0
          %5690 = vmatprep.subr.bf16.mxu0 0
          %5691 = vmatpush1.bf16.msra.mxu0 0
          %5692 = vmatprep.subr.bf16.mxu0 0
          %5693 = vmatpush1.bf16.msra.mxu0 0
          %5694 = vmatprep.subr.bf16.mxu0 0
          %5695 = vmatpush1.bf16.msra.mxu0 0
          %5696 = vmatprep.subr.bf16.mxu0 0
          %5697 = vmatpush1.bf16.msra.mxu0 0
          %5698 = vmatprep.subr.bf16.mxu0 0
          %5699 = vmatpush1.bf16.msra.mxu0 0
          %5700 = vmatprep.subr.bf16.mxu0 0
          %5701 = vmatpush1.bf16.msra.mxu0 0
          %5702 = vmatprep.subr.bf16.mxu0 0
          %5703 = vmatpush1.bf16.msra.mxu0 0
          %5704 = vmatprep.subr.bf16.mxu0 0
          %5705 = vmatpush1.bf16.msra.mxu0 0
          %5706 = vmatprep.subr.bf16.mxu0 0
          %5707 = vmatpush1.bf16.msra.mxu0 0
          %5708 = vmatprep.mubr.bf16.mxu0 0
          %5709 = vmatmul.mubr.bf16.gmra.mrb[0].mxu0 %v5674
          %v5710 = vpop.f32.mrb[0].mxu0
          %v5711 = vadd.f32 0.0, %v5710
          %v5712 = vpop.f32.mrb[0].mxu0
          %v5713 = vpop.f32.mrb[0].mxu0
          %v5714 = vadd.f32 0.0, %v5713
          %v5715 = vpop.f32.mrb[0].mxu0
          %5716 = vdwg.mxu0
          %5717 = vrot.lane.b32.xlu0 %v5467, 112
          %v5718 = vpop.permute.xlu0 %5717
          %5719 = vrot.lane.b32.xlu0 %v5468, 112
          %v5720 = vpop.permute.xlu0 %5719
          %v5722 = vsel %vm4689, %v5718, 0
          %v5725 = vsel %vm4689, %v5720, 0
          %5727 = vmatprep.subr.bf16.mxu0 0
          %5728 = vmatpush1.bf16.xpose.msra.mxu0 %v5725
          %5729 = vmatprep.subr.bf16.mxu0 0
          %5730 = vmatpush1.bf16.xpose.msra.mxu0 0
          %5731 = vmatprep.subr.bf16.mxu0 0
          %5732 = vmatpush1.bf16.xpose.msra.mxu0 0
          %5733 = vmatprep.subr.bf16.mxu0 0
          %5734 = vmatpush1.bf16.xpose.msra.mxu0 0
          %5735 = vmatprep.subr.bf16.mxu0 0
          %5736 = vmatpush1.bf16.xpose.msra.mxu0 0
          %5737 = vmatprep.subr.bf16.mxu0 0
          %5738 = vmatpush1.bf16.xpose.msra.mxu0 0
          %5739 = vmatprep.subr.bf16.mxu0 0
          %5740 = vmatpush1.bf16.xpose.msra.mxu0 0
          %5741 = vmatprep.subr.bf16.mxu0 0
          %5742 = vmatpush1.bf16.xpose.msra.mxu0 0
          %5743 = vmatprep.subr.bf16.mxu0 0
          %5744 = vmatpush1.bf16.xpose.msra.mxu0 0
          %5745 = vmatprep.subr.bf16.mxu0 0
          %5746 = vmatpush1.bf16.xpose.msra.mxu0 0
          %5747 = vmatprep.subr.bf16.mxu0 0
          %5748 = vmatpush1.bf16.xpose.msra.mxu0 0
          %5749 = vmatprep.subr.bf16.mxu0 0
          %5750 = vmatpush1.bf16.xpose.msra.mxu0 0
          %5751 = vmatprep.subr.bf16.mxu0 0
          %5752 = vmatpush1.bf16.xpose.msra.mxu0 0
          %5753 = vmatprep.subr.bf16.mxu0 0
          %5754 = vmatpush1.bf16.xpose.msra.mxu0 0
          %5755 = vmatprep.subr.bf16.mxu0 0
          %5756 = vmatpush1.bf16.xpose.msra.mxu0 0
          %5757 = vmatprep.subr.bf16.mxu0 0
          %5758 = vmatpush1.bf16.xpose.msra.mxu0 0
          %5759 = vmatprep.mubr.bf16.mxu0 0
          %5760 = vmatmul.mubr.bf16.gmra.mrb[0].mxu0 %v5722
          %v5761 = vpop.f32.mrb[0].mxu0
          %v5762 = vadd.f32 0.0, %v5761
          %v5763 = vpop.f32.mrb[0].mxu0
          %v5764 = vpop.f32.mrb[0].mxu0
          %v5765 = vadd.f32 0.0, %v5764
          %v5766 = vpop.f32.mrb[0].mxu0
          %5767 = vdwg.mxu0
          %v5768 = vmul.f32 %v5762, 0.35355338
          %v5769 = vmul.f32 %v5765, 0.35355338
          %v5770 = vadd.f32 %v5768, %v4558
          %v5771 = vadd.f32 %v5769, %v4559
          %v5772 = vsel %vm4741, %v5770, -inf
          %5773 = vmax.xlane.f32.xlu0 %v5772
          %v5774 = vpop.xlane.xlu0 %5773
          %v5775 = vsel %vm4741, %v5771, -inf
          %5776 = vmax.xlane.f32.xlu0 %v5775
          %v5777 = vpop.xlane.xlu0 %5776
          %v5778 = vsub.f32 %v5770, %v5774
          %v5779 = vsub.f32 %v5771, %v5777
          %v5780 = vmul.f32 %v5778, 1.442695
          %v5781 = vpow.pop %v5780
          %v5782 = vmul.f32 %v5779, 1.442695
          %v5783 = vpow.pop %v5782
          %v5784 = vsel %vm4741, %v5781, 0.0
          %5785 = vadd.xlane.f32.xlu0 %v5784
          %v5786 = vpop.xlane.xlu0 %5785
          %v5787 = vsel %vm4741, %v5783, 0.0
          %5788 = vadd.xlane.f32.xlu0 %v5787
          %v5789 = vpop.xlane.xlu0 %5788
          %v5790 = vrcp.pop %v5786
          %v5791 = vrcp.pop %v5789
          %v5792 = vmul.f32 %v5781, %v5790
          %v5793 = vmul.f32 %v5783, %v5791
          %v5794 = vpack.c.bf16 %v5793, %v5792
          %5795 = vrot.lane.b32.xlu0 %v5468, 80
          %v5796 = vpop.permute.xlu0 %5795
          %v5799 = vsel %vm4741, %v5794, 0
          %5801 = vmatprep.subr.bf16.mxu0 0
          %5802 = vmatpush1.bf16.msra.mxu0 %v5796
          %5803 = vmatprep.subr.bf16.mxu0 0
          %5804 = vmatpush1.bf16.msra.mxu0 0
          %5805 = vmatprep.subr.bf16.mxu0 0
          %5806 = vmatpush1.bf16.msra.mxu0 0
          %5807 = vmatprep.subr.bf16.mxu0 0
          %5808 = vmatpush1.bf16.msra.mxu0 0
          %5809 = vmatprep.subr.bf16.mxu0 0
          %5810 = vmatpush1.bf16.msra.mxu0 0
          %5811 = vmatprep.subr.bf16.mxu0 0
          %5812 = vmatpush1.bf16.msra.mxu0 0
          %5813 = vmatprep.subr.bf16.mxu0 0
          %5814 = vmatpush1.bf16.msra.mxu0 0
          %5815 = vmatprep.subr.bf16.mxu0 0
          %5816 = vmatpush1.bf16.msra.mxu0 0
          %5817 = vmatprep.subr.bf16.mxu0 0
          %5818 = vmatpush1.bf16.msra.mxu0 0
          %5819 = vmatprep.subr.bf16.mxu0 0
          %5820 = vmatpush1.bf16.msra.mxu0 0
          %5821 = vmatprep.subr.bf16.mxu0 0
          %5822 = vmatpush1.bf16.msra.mxu0 0
          %5823 = vmatprep.subr.bf16.mxu0 0
          %5824 = vmatpush1.bf16.msra.mxu0 0
          %5825 = vmatprep.subr.bf16.mxu0 0
          %5826 = vmatpush1.bf16.msra.mxu0 0
          %5827 = vmatprep.subr.bf16.mxu0 0
          %5828 = vmatpush1.bf16.msra.mxu0 0
          %5829 = vmatprep.subr.bf16.mxu0 0
          %5830 = vmatpush1.bf16.msra.mxu0 0
          %5831 = vmatprep.subr.bf16.mxu0 0
          %5832 = vmatpush1.bf16.msra.mxu0 0
          %5833 = vmatprep.mubr.bf16.mxu0 0
          %5834 = vmatmul.mubr.bf16.gmra.mrb[0].mxu0 %v5799
          %v5835 = vpop.f32.mrb[0].mxu0
          %v5836 = vadd.f32 0.0, %v5835
          %v5837 = vpop.f32.mrb[0].mxu0
          %v5838 = vpop.f32.mrb[0].mxu0
          %v5839 = vadd.f32 0.0, %v5838
          %v5840 = vpop.f32.mrb[0].mxu0
          %5841 = vdwg.mxu0
          %5842 = vrot.lane.b32.xlu0 %v5467, 104
          %v5843 = vpop.permute.xlu0 %5842
          %5844 = vrot.lane.b32.xlu0 %v5468, 104
          %v5845 = vpop.permute.xlu0 %5844
          %v5847 = vsel %vm4689, %v5843, 0
          %v5850 = vsel %vm4689, %v5845, 0
          %5852 = vmatprep.subr.bf16.mxu0 0
          %5853 = vmatpush1.bf16.xpose.msra.mxu0 %v5850
          %5854 = vmatprep.subr.bf16.mxu0 0
          %5855 = vmatpush1.bf16.xpose.msra.mxu0 0
          %5856 = vmatprep.subr.bf16.mxu0 0
          %5857 = vmatpush1.bf16.xpose.msra.mxu0 0
          %5858 = vmatprep.subr.bf16.mxu0 0
          %5859 = vmatpush1.bf16.xpose.msra.mxu0 0
          %5860 = vmatprep.subr.bf16.mxu0 0
          %5861 = vmatpush1.bf16.xpose.msra.mxu0 0
          %5862 = vmatprep.subr.bf16.mxu0 0
          %5863 = vmatpush1.bf16.xpose.msra.mxu0 0
          %5864 = vmatprep.subr.bf16.mxu0 0
          %5865 = vmatpush1.bf16.xpose.msra.mxu0 0
          %5866 = vmatprep.subr.bf16.mxu0 0
          %5867 = vmatpush1.bf16.xpose.msra.mxu0 0
          %5868 = vmatprep.subr.bf16.mxu0 0
          %5869 = vmatpush1.bf16.xpose.msra.mxu0 0
          %5870 = vmatprep.subr.bf16.mxu0 0
          %5871 = vmatpush1.bf16.xpose.msra.mxu0 0
          %5872 = vmatprep.subr.bf16.mxu0 0
          %5873 = vmatpush1.bf16.xpose.msra.mxu0 0
          %5874 = vmatprep.subr.bf16.mxu0 0
          %5875 = vmatpush1.bf16.xpose.msra.mxu0 0
          %5876 = vmatprep.subr.bf16.mxu0 0
          %5877 = vmatpush1.bf16.xpose.msra.mxu0 0
          %5878 = vmatprep.subr.bf16.mxu0 0
          %5879 = vmatpush1.bf16.xpose.msra.mxu0 0
          %5880 = vmatprep.subr.bf16.mxu0 0
          %5881 = vmatpush1.bf16.xpose.msra.mxu0 0
          %5882 = vmatprep.subr.bf16.mxu0 0
          %5883 = vmatpush1.bf16.xpose.msra.mxu0 0
          %5884 = vmatprep.mubr.bf16.mxu0 0
          %5885 = vmatmul.mubr.bf16.gmra.mrb[0].mxu0 %v5847
          %v5886 = vpop.f32.mrb[0].mxu0
          %v5887 = vadd.f32 0.0, %v5886
          %v5888 = vpop.f32.mrb[0].mxu0
          %v5889 = vpop.f32.mrb[0].mxu0
          %v5890 = vadd.f32 0.0, %v5889
          %v5891 = vpop.f32.mrb[0].mxu0
          %5892 = vdwg.mxu0
          %v5893 = vmul.f32 %v5887, 0.35355338
          %v5894 = vmul.f32 %v5890, 0.35355338
          %v5895 = vadd.f32 %v5893, %v4558
          %v5896 = vadd.f32 %v5894, %v4559
          %v5897 = vsel %vm4741, %v5895, -inf
          %5898 = vmax.xlane.f32.xlu0 %v5897
          %v5899 = vpop.xlane.xlu0 %5898
          %v5900 = vsel %vm4741, %v5896, -inf
          %5901 = vmax.xlane.f32.xlu0 %v5900
          %v5902 = vpop.xlane.xlu0 %5901
          %v5903 = vsub.f32 %v5895, %v5899
          %v5904 = vsub.f32 %v5896, %v5902
          %v5905 = vmul.f32 %v5903, 1.442695
          %v5906 = vpow.pop %v5905
          %v5907 = vmul.f32 %v5904, 1.442695
          %v5908 = vpow.pop %v5907
          %v5909 = vsel %vm4741, %v5906, 0.0
          %5910 = vadd.xlane.f32.xlu0 %v5909
          %v5911 = vpop.xlane.xlu0 %5910
          %v5912 = vsel %vm4741, %v5908, 0.0
          %5913 = vadd.xlane.f32.xlu0 %v5912
          %v5914 = vpop.xlane.xlu0 %5913
          %v5915 = vrcp.pop %v5911
          %v5916 = vrcp.pop %v5914
          %v5917 = vmul.f32 %v5906, %v5915
          %v5918 = vmul.f32 %v5908, %v5916
          %v5919 = vpack.c.bf16 %v5918, %v5917
          %5920 = vrot.lane.b32.xlu0 %v5468, 72
          %v5921 = vpop.permute.xlu0 %5920
          %v5924 = vsel %vm4741, %v5919, 0
          %5926 = vmatprep.subr.bf16.mxu0 0
          %5927 = vmatpush1.bf16.msra.mxu0 %v5921
          %5928 = vmatprep.subr.bf16.mxu0 0
          %5929 = vmatpush1.bf16.msra.mxu0 0
          %5930 = vmatprep.subr.bf16.mxu0 0
          %5931 = vmatpush1.bf16.msra.mxu0 0
          %5932 = vmatprep.subr.bf16.mxu0 0
          %5933 = vmatpush1.bf16.msra.mxu0 0
          %5934 = vmatprep.subr.bf16.mxu0 0
          %5935 = vmatpush1.bf16.msra.mxu0 0
          %5936 = vmatprep.subr.bf16.mxu0 0
          %5937 = vmatpush1.bf16.msra.mxu0 0
          %5938 = vmatprep.subr.bf16.mxu0 0
          %5939 = vmatpush1.bf16.msra.mxu0 0
          %5940 = vmatprep.subr.bf16.mxu0 0
          %5941 = vmatpush1.bf16.msra.mxu0 0
          %5942 = vmatprep.subr.bf16.mxu0 0
          %5943 = vmatpush1.bf16.msra.mxu0 0
          %5944 = vmatprep.subr.bf16.mxu0 0
          %5945 = vmatpush1.bf16.msra.mxu0 0
          %5946 = vmatprep.subr.bf16.mxu0 0
          %5947 = vmatpush1.bf16.msra.mxu0 0
          %5948 = vmatprep.subr.bf16.mxu0 0
          %5949 = vmatpush1.bf16.msra.mxu0 0
          %5950 = vmatprep.subr.bf16.mxu0 0
          %5951 = vmatpush1.bf16.msra.mxu0 0
          %5952 = vmatprep.subr.bf16.mxu0 0
          %5953 = vmatpush1.bf16.msra.mxu0 0
          %5954 = vmatprep.subr.bf16.mxu0 0
          %5955 = vmatpush1.bf16.msra.mxu0 0
          %5956 = vmatprep.subr.bf16.mxu0 0
          %5957 = vmatpush1.bf16.msra.mxu0 0
          %5958 = vmatprep.mubr.bf16.mxu0 0
          %5959 = vmatmul.mubr.bf16.gmra.mrb[0].mxu0 %v5924
          %v5960 = vpop.f32.mrb[0].mxu0
          %v5961 = vadd.f32 0.0, %v5960
          %v5962 = vpop.f32.mrb[0].mxu0
          %v5963 = vpop.f32.mrb[0].mxu0
          %v5964 = vadd.f32 0.0, %v5963
          %v5965 = vpop.f32.mrb[0].mxu0
          %5966 = vdwg.mxu0
          %5969 = vrot.lane.b32.xlu0 %v5711, 8
          %v5970 = vpop.permute.xlu0 %5969
          %5971 = vrot.lane.b32.xlu0 %v5714, 8
          %v5972 = vpop.permute.xlu0 %5971
          %5977 = vrot.lane.b32.xlu0 %v5836, 16
          %v5978 = vpop.permute.xlu0 %5977
          %5979 = vrot.lane.b32.xlu0 %v5839, 16
          %v5980 = vpop.permute.xlu0 %5979
          %5985 = vrot.lane.b32.xlu0 %v5961, 24
          %v5986 = vpop.permute.xlu0 %5985
          %5987 = vrot.lane.b32.xlu0 %v5964, 24
          %v5988 = vpop.permute.xlu0 %5987
          %v5991 = vsel %vm4689, %v5585, %v5970
          %v5992 = vsel %vm4689, %v5588, %v5972
          %v5993 = vsel %vm4741, %v5991, %v5978
          %v5994 = vsel %vm4741, %v5992, %v5980
          %v5995 = vsel %vm5215, %v5993, %v5986
          %v5996 = vsel %vm5215, %v5994, %v5988
          %v5997 = vpack.c.bf16 %v5996, %v5995
          %v5998 = vlaneseq
          %v5999 = vshrl.u32 %v5998, 7
          %v6000 = vsub.s32 2, %v5999
          %v6001 = vrot.slane %v4561, %v6000
          %v6006 = vunpack.c.l.b16 %v5463
          %v6007 = vunpack.c.l.b16 %v5464
          %v6008 = vunpack.c.l.b16 %v5465
          %v6009 = vunpack.c.l.b16 %v5466
          %v6010 = vpack.c.b16 %v6007, %v6006
          %v6011 = vpack.c.b16 %v6009, %v6008
          %v6015 = vsel %vm4562, %v5997, 0
          %6017 = vmatprep.subr.bf16.mxu0 0
          %6018 = vmatpush1.bf16.msra.mxu0 %v6010
          %6019 = vmatprep.subr.bf16.mxu0 0
          %6020 = vmatpush1.bf16.msra.mxu0 %v6011
          %6021 = vmatprep.subr.bf16.mxu0 0
          %6022 = vmatpush1.bf16.msra.mxu0 0
          %6023 = vmatprep.subr.bf16.mxu0 0
          %6024 = vmatpush1.bf16.msra.mxu0 0
          %6025 = vmatprep.subr.bf16.mxu0 0
          %6026 = vmatpush1.bf16.msra.mxu0 0
          %6027 = vmatprep.subr.bf16.mxu0 0
          %6028 = vmatpush1.bf16.msra.mxu0 0
          %6029 = vmatprep.subr.bf16.mxu0 0
          %6030 = vmatpush1.bf16.msra.mxu0 0
          %6031 = vmatprep.subr.bf16.mxu0 0
          %6032 = vmatpush1.bf16.msra.mxu0 0
          %6033 = vmatprep.subr.bf16.mxu0 0
          %6034 = vmatpush1.bf16.msra.mxu0 0
          %6035 = vmatprep.subr.bf16.mxu0 0
          %6036 = vmatpush1.bf16.msra.mxu0 0
          %6037 = vmatprep.subr.bf16.mxu0 0
          %6038 = vmatpush1.bf16.msra.mxu0 0
          %6039 = vmatprep.subr.bf16.mxu0 0
          %6040 = vmatpush1.bf16.msra.mxu0 0
          %6041 = vmatprep.subr.bf16.mxu0 0
          %6042 = vmatpush1.bf16.msra.mxu0 0
          %6043 = vmatprep.subr.bf16.mxu0 0
          %6044 = vmatpush1.bf16.msra.mxu0 0
          %6045 = vmatprep.subr.bf16.mxu0 0
          %6046 = vmatpush1.bf16.msra.mxu0 0
          %6047 = vmatprep.subr.bf16.mxu0 0
          %6048 = vmatpush1.bf16.msra.mxu0 0
          %6049 = vmatprep.mubr.bf16.mxu0 0
          %6050 = vmatmul.mubr.bf16.gmra.mrb[0].mxu0 %v6015
          %v6051 = vpop.f32.mrb[0].mxu0
          %v6052 = vadd.f32 %v6001, %v6051
          %v6053 = vpop.f32.mrb[0].mxu0
          %v6054 = vpop.f32.mrb[0].mxu0
          %v6055 = vadd.f32 %v6001, %v6054
          %v6056 = vpop.f32.mrb[0].mxu0
          %6057 = vdwg.mxu0
          %v6058 = vadd.f32 %v5279, %v6052
          %v6059 = vadd.f32 %v5280, %v6055
          %v6060 = vsel %vm4562, %v6058, 0.0
          %6061 = vadd.xlane.f32.xlu0 %v6060
          %v6062 = vpop.xlane.xlu0 %6061
          %v6063 = vsel %vm4562, %v6059, 0.0
          %6064 = vadd.xlane.f32.xlu0 %v6063
          %v6065 = vpop.xlane.xlu0 %6064
          %v6066 = vmul.f32 %v6062, %v4569
          %v6067 = vmul.f32 %v6065, %v4569
          %v6068 = vsub.f32 %v6058, %v6066
          %v6069 = vsub.f32 %v6059, %v6067
          %v6070 = vmul.f32 %v6068, %v6068
          %v6071 = vmul.f32 %v6069, %v6069
          %v6072 = vsel %vm4562, %v6070, 0.0
          %6073 = vadd.xlane.f32.xlu0 %v6072
          %v6074 = vpop.xlane.xlu0 %6073
          %v6075 = vsel %vm4562, %v6071, 0.0
          %6076 = vadd.xlane.f32.xlu0 %v6075
          %v6077 = vpop.xlane.xlu0 %6076
          %v6078 = vmul.f32 %v6074, 0.032258064
          %v6079 = vmul.f32 %v6077, 0.032258064
          %v6080 = vrsqrt.pop %v6078
          %v6081 = vmul.f32 %v6078, %v6080
          %vm6082 = vcmp.eq.f32.partialorder %v6078, inf
          %v6083 = vsel %vm6082, %v6078, %v6081
          %vm6084 = vcmp.eq.f32.partialorder %v6078, 0.0
          %v6085 = vand.u32 %v6078, 2147483648
          %v6086 = vsel %vm6084, %v6085, %v6083
          %v6087 = vrsqrt.pop %v6079
          %v6088 = vmul.f32 %v6079, %v6087
          %vm6089 = vcmp.eq.f32.partialorder %v6079, inf
          %v6090 = vsel %vm6089, %v6079, %v6088
          %vm6091 = vcmp.eq.f32.partialorder %v6079, 0.0
          %v6092 = vand.u32 %v6079, 2147483648
          %v6093 = vsel %vm6091, %v6092, %v6090
          %v6094 = vadd.f32 %v6086, 1e-06
          %v6095 = vadd.f32 %v6093, 1e-06
          %v6096 = vrcp.pop %v6094
          %v6097 = vrcp.pop %v6095
          %v6098 = vmul.f32 %v6068, %v6096
          %v6099 = vmul.f32 %v6069, %v6097
          %v6100 = vlaneseq
          %v6101 = vshrl.u32 %v6100, 7
          %v6102 = vsub.s32 4, %v6101
          %v6103 = vrot.slane %v4560, %v6102
          %v6104 = vmul.f32 %v6103, %v6098
          %v6105 = vmul.f32 %v6103, %v6099
          %v6106 = vlaneseq
          %v6107 = vshrl.u32 %v6106, 7
          %v6108 = vsub.s32 5, %v6107
          %v6109 = vrot.slane %v4560, %v6108
          %v6110 = vadd.f32 %v6104, %v6109
          %v6111 = vadd.f32 %v6105, %v6109
          %v6112 = vpack.c.bf16 %v6111, %v6110
          %v6113 = vlaneseq
          %v6114 = vshrl.u32 %v6113, 7
          %v6115 = vsub.s32 3, %v6114
          %v6116 = vrot.slane %v4561, %v6115
          %v6117 = vadd.f32 %v6116, 0.0
          %v6118 = vld [vmem:[%s1397] sm:$0xff]
          %v6119 = vld [vmem:[%s1397 + $0x8] sm:$0xff]
          %v6120 = vld [vmem:[%s1397 + $0x40] sm:$0xff]
          %v6121 = vld [vmem:[%s1397 + $0x48] sm:$0xff]
          %v6122 = vld [vmem:[%s1397 + $0x80] sm:$0xff]
          %v6123 = vld [vmem:[%s1397 + $0x88] sm:$0xff]
          %v6124 = vld [vmem:[%s1397 + $0xc0] sm:$0xff]
          %v6125 = vld [vmem:[%s1397 + $0xc8] sm:$0xff]
          %v6126 = vld [vmem:[%s1407] sm:$0xf]
          %v6128 = vlaneseq
          %v6129 = vshrl.u32 %v6128, 7
          %v6130 = vsub.s32 0, %v6129
          %v6131 = vrot.slane %v6126, %v6130
          %v6132 = vlaneseq
          %v6133 = vshrl.u32 %v6132, 7
          %v6134 = vsub.s32 1, %v6133
          %v6135 = vrot.slane %v6126, %v6134
          %v6136 = vlaneseq
          %v6137 = vshrl.u32 %v6136, 7
          %v6138 = vsub.s32 2, %v6137
          %v6139 = vrot.slane %v6126, %v6138
          %v6140 = vlaneseq
          %v6141 = vshrl.u32 %v6140, 7
          %v6142 = vsub.s32 3, %v6141
          %v6143 = vrot.slane %v6126, %v6142
          %v6156 = vunpack.c.l.b16 %v6118
          %v6157 = vunpack.c.h.b16 %v6118
          %v6158 = vunpack.c.l.b16 %v6119
          %v6159 = vunpack.c.h.b16 %v6119
          %v6160 = vunpack.c.l.b16 %v6120
          %v6161 = vunpack.c.h.b16 %v6120
          %v6162 = vunpack.c.l.b16 %v6121
          %v6163 = vunpack.c.h.b16 %v6121
          %v6164 = vunpack.c.l.b16 %v6122
          %v6165 = vunpack.c.h.b16 %v6122
          %v6166 = vunpack.c.l.b16 %v6123
          %v6167 = vunpack.c.h.b16 %v6123
          %v6168 = vunpack.c.l.b16 %v6124
          %v6169 = vunpack.c.h.b16 %v6124
          %v6170 = vunpack.c.l.b16 %v6125
          %v6171 = vunpack.c.h.b16 %v6125
          %v6172 = vpack.c.b16 %v6160, %v6156
          %v6173 = vpack.c.b16 %v6161, %v6157
          %v6174 = vpack.c.b16 %v6162, %v6158
          %v6175 = vpack.c.b16 %v6163, %v6159
          %v6176 = vpack.c.b16 %v6168, %v6164
          %v6177 = vpack.c.b16 %v6169, %v6165
          %v6178 = vpack.c.b16 %v6170, %v6166
          %v6179 = vpack.c.b16 %v6171, %v6167
          %v6189 = vsel %vm4562, %v6112, 0
          %6191 = vmatprep.subr.bf16.mxu0 %v6173
          %6192 = vmatpush1.bf16.msra.mxu0 %v6172
          %6193 = vmatprep.subr.bf16.mxu0 %v6177
          %6194 = vmatpush1.bf16.msra.mxu0 %v6176
          %6195 = vmatprep.subr.bf16.mxu0 0
          %6196 = vmatpush1.bf16.msra.mxu0 0
          %6197 = vmatprep.subr.bf16.mxu0 0
          %6198 = vmatpush1.bf16.msra.mxu0 0
          %6199 = vmatprep.subr.bf16.mxu0 0
          %6200 = vmatpush1.bf16.msra.mxu0 0
          %6201 = vmatprep.subr.bf16.mxu0 0
          %6202 = vmatpush1.bf16.msra.mxu0 0
          %6203 = vmatprep.subr.bf16.mxu0 0
          %6204 = vmatpush1.bf16.msra.mxu0 0
          %6205 = vmatprep.subr.bf16.mxu0 0
          %6206 = vmatpush1.bf16.msra.mxu0 0
          %6207 = vmatprep.subr.bf16.mxu0 0
          %6208 = vmatpush1.bf16.msra.mxu0 0
          %6209 = vmatprep.subr.bf16.mxu0 0
          %6210 = vmatpush1.bf16.msra.mxu0 0
          %6211 = vmatprep.subr.bf16.mxu0 0
          %6212 = vmatpush1.bf16.msra.mxu0 0
          %6213 = vmatprep.subr.bf16.mxu0 0
          %6214 = vmatpush1.bf16.msra.mxu0 0
          %6215 = vmatprep.subr.bf16.mxu0 0
          %6216 = vmatpush1.bf16.msra.mxu0 0
          %6217 = vmatprep.subr.bf16.mxu0 0
          %6218 = vmatpush1.bf16.msra.mxu0 0
          %6219 = vmatprep.subr.bf16.mxu0 0
          %6220 = vmatpush1.bf16.msra.mxu0 0
          %6221 = vmatprep.subr.bf16.mxu0 0
          %6222 = vmatpush1.bf16.msra.mxu0 0
          %6223 = vmatprep.mubr.bf16.mxu0 0
          %6224 = vmatmul.mubr.bf16.gmra.mrb[0].mxu0 %v6189
          %v6225 = vpop.f32.mrb[0].mxu0
          %v6226 = vadd.f32 %v6131, %v6225
          %v6227 = vpop.f32.mrb[0].mxu0
          %v6228 = vadd.f32 %v6135, %v6227
          %v6229 = vpop.f32.mrb[0].mxu0
          %v6230 = vadd.f32 %v6131, %v6229
          %v6231 = vpop.f32.mrb[0].mxu0
          %v6232 = vadd.f32 %v6135, %v6231
          %6233 = vdwg.mxu0
          %6234 = vmatprep.subr.bf16.mxu0 %v6175
          %6235 = vmatpush1.bf16.msra.mxu0 %v6174
          %6236 = vmatprep.subr.bf16.mxu0 %v6179
          %6237 = vmatpush1.bf16.msra.mxu0 %v6178
          %6238 = vmatprep.subr.bf16.mxu0 0
          %6239 = vmatpush1.bf16.msra.mxu0 0
          %6240 = vmatprep.subr.bf16.mxu0 0
          %6241 = vmatpush1.bf16.msra.mxu0 0
          %6242 = vmatprep.subr.bf16.mxu0 0
          %6243 = vmatpush1.bf16.msra.mxu0 0
          %6244 = vmatprep.subr.bf16.mxu0 0
          %6245 = vmatpush1.bf16.msra.mxu0 0
          %6246 = vmatprep.subr.bf16.mxu0 0
          %6247 = vmatpush1.bf16.msra.mxu0 0
          %6248 = vmatprep.subr.bf16.mxu0 0
          %6249 = vmatpush1.bf16.msra.mxu0 0
          %6250 = vmatprep.subr.bf16.mxu0 0
          %6251 = vmatpush1.bf16.msra.mxu0 0
          %6252 = vmatprep.subr.bf16.mxu0 0
          %6253 = vmatpush1.bf16.msra.mxu0 0
          %6254 = vmatprep.subr.bf16.mxu0 0
          %6255 = vmatpush1.bf16.msra.mxu0 0
          %6256 = vmatprep.subr.bf16.mxu0 0
          %6257 = vmatpush1.bf16.msra.mxu0 0
          %6258 = vmatprep.subr.bf16.mxu0 0
          %6259 = vmatpush1.bf16.msra.mxu0 0
          %6260 = vmatprep.subr.bf16.mxu0 0
          %6261 = vmatpush1.bf16.msra.mxu0 0
          %6262 = vmatprep.subr.bf16.mxu0 0
          %6263 = vmatpush1.bf16.msra.mxu0 0
          %6264 = vmatprep.subr.bf16.mxu0 0
          %6265 = vmatpush1.bf16.msra.mxu0 0
          %6266 = vmatprep.mubr.bf16.mxu0 0
          %6267 = vmatmul.mubr.bf16.gmra.mrb[0].mxu0 %v6189
          %v6268 = vpop.f32.mrb[0].mxu0
          %v6269 = vadd.f32 %v6139, %v6268
          %v6270 = vpop.f32.mrb[0].mxu0
          %v6271 = vadd.f32 %v6143, %v6270
          %v6272 = vpop.f32.mrb[0].mxu0
          %v6273 = vadd.f32 %v6139, %v6272
          %v6274 = vpop.f32.mrb[0].mxu0
          %v6275 = vadd.f32 %v6143, %v6274
          %6276 = vdwg.mxu0
          %v6277 = vmax.f32 %v6226, 0.0
          %v6278 = vmax.f32 %v6228, 0.0
          %v6279 = vmax.f32 %v6269, 0.0
          %v6280 = vmax.f32 %v6271, 0.0
          %v6281 = vmax.f32 %v6230, 0.0
          %v6282 = vmax.f32 %v6232, 0.0
          %v6283 = vmax.f32 %v6273, 0.0
          %v6284 = vmax.f32 %v6275, 0.0
          %v6285 = vld [vmem:[%s1418] sm:$0xf]
          %v6286 = vld [vmem:[%s1418 + $0x4] sm:$0xf]
          %v6287 = vld [vmem:[%s1418 + $0x8] sm:$0xf]
          %v6288 = vld [vmem:[%s1418 + $0xc] sm:$0xf]
          %v6289 = vld [vmem:[%s1418 + $0x10] sm:$0xf]
          %v6290 = vld [vmem:[%s1418 + $0x14] sm:$0xf]
          %v6291 = vld [vmem:[%s1418 + $0x18] sm:$0xf]
          %v6292 = vld [vmem:[%s1418 + $0x1c] sm:$0xf]
          %v6293 = vld [vmem:[%s1418 + $0x20] sm:$0xf]
          %v6294 = vld [vmem:[%s1418 + $0x24] sm:$0xf]
          %v6295 = vld [vmem:[%s1418 + $0x28] sm:$0xf]
          %v6296 = vld [vmem:[%s1418 + $0x2c] sm:$0xf]
          %v6297 = vld [vmem:[%s1418 + $0x30] sm:$0xf]
          %v6298 = vld [vmem:[%s1418 + $0x34] sm:$0xf]
          %v6299 = vld [vmem:[%s1418 + $0x38] sm:$0xf]
          %v6300 = vld [vmem:[%s1418 + $0x3c] sm:$0xf]
          %v6301 = vld [vmem:[%s1418 + $0x40] sm:$0xf]
          %v6302 = vld [vmem:[%s1418 + $0x44] sm:$0xf]
          %v6303 = vld [vmem:[%s1418 + $0x48] sm:$0xf]
          %v6304 = vld [vmem:[%s1418 + $0x4c] sm:$0xf]
          %v6305 = vld [vmem:[%s1418 + $0x50] sm:$0xf]
          %v6306 = vld [vmem:[%s1418 + $0x54] sm:$0xf]
          %v6307 = vld [vmem:[%s1418 + $0x58] sm:$0xf]
          %v6308 = vld [vmem:[%s1418 + $0x5c] sm:$0xf]
          %v6309 = vld [vmem:[%s1418 + $0x60] sm:$0xf]
          %v6310 = vld [vmem:[%s1418 + $0x64] sm:$0xf]
          %v6311 = vld [vmem:[%s1418 + $0x68] sm:$0xf]
          %v6312 = vld [vmem:[%s1418 + $0x6c] sm:$0xf]
          %v6313 = vld [vmem:[%s1418 + $0x70] sm:$0xf]
          %v6314 = vld [vmem:[%s1418 + $0x74] sm:$0xf]
          %v6315 = vld [vmem:[%s1418 + $0x78] sm:$0xf]
          %v6316 = vld [vmem:[%s1418 + $0x7c] sm:$0xf]
          %v6317 = vld [vmem:[%s1418 + $0x80] sm:$0xf]
          %v6318 = vld [vmem:[%s1418 + $0x84] sm:$0xf]
          %v6319 = vld [vmem:[%s1418 + $0x88] sm:$0xf]
          %v6320 = vld [vmem:[%s1418 + $0x8c] sm:$0xf]
          %v6321 = vld [vmem:[%s1418 + $0x90] sm:$0xf]
          %v6322 = vld [vmem:[%s1418 + $0x94] sm:$0xf]
          %v6323 = vld [vmem:[%s1418 + $0x98] sm:$0xf]
          %v6324 = vld [vmem:[%s1418 + $0x9c] sm:$0xf]
          %v6325 = vld [vmem:[%s1418 + $0xa0] sm:$0xf]
          %v6326 = vld [vmem:[%s1418 + $0xa4] sm:$0xf]
          %v6327 = vld [vmem:[%s1418 + $0xa8] sm:$0xf]
          %v6328 = vld [vmem:[%s1418 + $0xac] sm:$0xf]
          %v6329 = vld [vmem:[%s1418 + $0xb0] sm:$0xf]
          %v6330 = vld [vmem:[%s1418 + $0xb4] sm:$0xf]
          %v6331 = vld [vmem:[%s1418 + $0xb8] sm:$0xf]
          %v6332 = vld [vmem:[%s1418 + $0xbc] sm:$0xf]
          %v6333 = vld [vmem:[%s1418 + $0xc0] sm:$0xf]
          %v6334 = vld [vmem:[%s1418 + $0xc4] sm:$0xf]
          %v6335 = vld [vmem:[%s1418 + $0xc8] sm:$0xf]
          %v6336 = vld [vmem:[%s1418 + $0xcc] sm:$0xf]
          %v6337 = vld [vmem:[%s1418 + $0xd0] sm:$0xf]
          %v6338 = vld [vmem:[%s1418 + $0xd4] sm:$0xf]
          %v6339 = vld [vmem:[%s1418 + $0xd8] sm:$0xf]
          %v6340 = vld [vmem:[%s1418 + $0xdc] sm:$0xf]
          %v6341 = vld [vmem:[%s1418 + $0xe0] sm:$0xf]
          %v6342 = vld [vmem:[%s1418 + $0xe4] sm:$0xf]
          %v6343 = vld [vmem:[%s1418 + $0xe8] sm:$0xf]
          %v6344 = vld [vmem:[%s1418 + $0xec] sm:$0xf]
          %v6345 = vld [vmem:[%s1418 + $0xf0] sm:$0xf]
          %v6346 = vld [vmem:[%s1418 + $0xf4] sm:$0xf]
          %v6347 = vld [vmem:[%s1418 + $0xf8] sm:$0xf]
          %v6348 = vld [vmem:[%s1418 + $0xfc] sm:$0xf]
          %v6349 = vpack.c.bf16 %v6281, %v6277
          %v6350 = vpack.c.bf16 %v6282, %v6278
          %v6351 = vpack.c.bf16 %v6283, %v6279
          %v6352 = vpack.c.bf16 %v6284, %v6280
          %v6417 = vunpack.c.l.b16 %v6285
          %v6418 = vunpack.c.l.b16 %v6286
          %v6419 = vunpack.c.l.b16 %v6287
          %v6420 = vunpack.c.l.b16 %v6288
          %v6421 = vunpack.c.l.b16 %v6289
          %v6422 = vunpack.c.l.b16 %v6290
          %v6423 = vunpack.c.l.b16 %v6291
          %v6424 = vunpack.c.l.b16 %v6292
          %v6425 = vunpack.c.l.b16 %v6293
          %v6426 = vunpack.c.l.b16 %v6294
          %v6427 = vunpack.c.l.b16 %v6295
          %v6428 = vunpack.c.l.b16 %v6296
          %v6429 = vunpack.c.l.b16 %v6297
          %v6430 = vunpack.c.l.b16 %v6298
          %v6431 = vunpack.c.l.b16 %v6299
          %v6432 = vunpack.c.l.b16 %v6300
          %v6433 = vunpack.c.l.b16 %v6301
          %v6434 = vunpack.c.l.b16 %v6302
          %v6435 = vunpack.c.l.b16 %v6303
          %v6436 = vunpack.c.l.b16 %v6304
          %v6437 = vunpack.c.l.b16 %v6305
          %v6438 = vunpack.c.l.b16 %v6306
          %v6439 = vunpack.c.l.b16 %v6307
          %v6440 = vunpack.c.l.b16 %v6308
          %v6441 = vunpack.c.l.b16 %v6309
          %v6442 = vunpack.c.l.b16 %v6310
          %v6443 = vunpack.c.l.b16 %v6311
          %v6444 = vunpack.c.l.b16 %v6312
          %v6445 = vunpack.c.l.b16 %v6313
          %v6446 = vunpack.c.l.b16 %v6314
          %v6447 = vunpack.c.l.b16 %v6315
          %v6448 = vunpack.c.l.b16 %v6316
          %v6449 = vunpack.c.l.b16 %v6317
          %v6450 = vunpack.c.l.b16 %v6318
          %v6451 = vunpack.c.l.b16 %v6319
          %v6452 = vunpack.c.l.b16 %v6320
          %v6453 = vunpack.c.l.b16 %v6321
          %v6454 = vunpack.c.l.b16 %v6322
          %v6455 = vunpack.c.l.b16 %v6323
          %v6456 = vunpack.c.l.b16 %v6324
          %v6457 = vunpack.c.l.b16 %v6325
          %v6458 = vunpack.c.l.b16 %v6326
          %v6459 = vunpack.c.l.b16 %v6327
          %v6460 = vunpack.c.l.b16 %v6328
          %v6461 = vunpack.c.l.b16 %v6329
          %v6462 = vunpack.c.l.b16 %v6330
          %v6463 = vunpack.c.l.b16 %v6331
          %v6464 = vunpack.c.l.b16 %v6332
          %v6465 = vunpack.c.l.b16 %v6333
          %v6466 = vunpack.c.l.b16 %v6334
          %v6467 = vunpack.c.l.b16 %v6335
          %v6468 = vunpack.c.l.b16 %v6336
          %v6469 = vunpack.c.l.b16 %v6337
          %v6470 = vunpack.c.l.b16 %v6338
          %v6471 = vunpack.c.l.b16 %v6339
          %v6472 = vunpack.c.l.b16 %v6340
          %v6473 = vunpack.c.l.b16 %v6341
          %v6474 = vunpack.c.l.b16 %v6342
          %v6475 = vunpack.c.l.b16 %v6343
          %v6476 = vunpack.c.l.b16 %v6344
          %v6477 = vunpack.c.l.b16 %v6345
          %v6478 = vunpack.c.l.b16 %v6346
          %v6479 = vunpack.c.l.b16 %v6347
          %v6480 = vunpack.c.l.b16 %v6348
          %v6481 = vpack.c.b16 %v6418, %v6417
          %v6482 = vpack.c.b16 %v6420, %v6419
          %v6483 = vpack.c.b16 %v6422, %v6421
          %v6484 = vpack.c.b16 %v6424, %v6423
          %v6485 = vpack.c.b16 %v6426, %v6425
          %v6486 = vpack.c.b16 %v6428, %v6427
          %v6487 = vpack.c.b16 %v6430, %v6429
          %v6488 = vpack.c.b16 %v6432, %v6431
          %v6489 = vpack.c.b16 %v6434, %v6433
          %v6490 = vpack.c.b16 %v6436, %v6435
          %v6491 = vpack.c.b16 %v6438, %v6437
          %v6492 = vpack.c.b16 %v6440, %v6439
          %v6493 = vpack.c.b16 %v6442, %v6441
          %v6494 = vpack.c.b16 %v6444, %v6443
          %v6495 = vpack.c.b16 %v6446, %v6445
          %v6496 = vpack.c.b16 %v6448, %v6447
          %v6497 = vpack.c.b16 %v6450, %v6449
          %v6498 = vpack.c.b16 %v6452, %v6451
          %v6499 = vpack.c.b16 %v6454, %v6453
          %v6500 = vpack.c.b16 %v6456, %v6455
          %v6501 = vpack.c.b16 %v6458, %v6457
          %v6502 = vpack.c.b16 %v6460, %v6459
          %v6503 = vpack.c.b16 %v6462, %v6461
          %v6504 = vpack.c.b16 %v6464, %v6463
          %v6505 = vpack.c.b16 %v6466, %v6465
          %v6506 = vpack.c.b16 %v6468, %v6467
          %v6507 = vpack.c.b16 %v6470, %v6469
          %v6508 = vpack.c.b16 %v6472, %v6471
          %v6509 = vpack.c.b16 %v6474, %v6473
          %v6510 = vpack.c.b16 %v6476, %v6475
          %v6511 = vpack.c.b16 %v6478, %v6477
          %v6512 = vpack.c.b16 %v6480, %v6479
          %6545 = vmatprep.subr.bf16.mxu0 0
          %6546 = vmatpush1.bf16.msra.mxu0 %v6481
          %6547 = vmatprep.subr.bf16.mxu0 0
          %6548 = vmatpush1.bf16.msra.mxu0 %v6482
          %6549 = vmatprep.subr.bf16.mxu0 0
          %6550 = vmatpush1.bf16.msra.mxu0 %v6483
          %6551 = vmatprep.subr.bf16.mxu0 0
          %6552 = vmatpush1.bf16.msra.mxu0 %v6484
          %6553 = vmatprep.subr.bf16.mxu0 0
          %6554 = vmatpush1.bf16.msra.mxu0 %v6485
          %6555 = vmatprep.subr.bf16.mxu0 0
          %6556 = vmatpush1.bf16.msra.mxu0 %v6486
          %6557 = vmatprep.subr.bf16.mxu0 0
          %6558 = vmatpush1.bf16.msra.mxu0 %v6487
          %6559 = vmatprep.subr.bf16.mxu0 0
          %6560 = vmatpush1.bf16.msra.mxu0 %v6488
          %6561 = vmatprep.subr.bf16.mxu0 0
          %6562 = vmatpush1.bf16.msra.mxu0 %v6489
          %6563 = vmatprep.subr.bf16.mxu0 0
          %6564 = vmatpush1.bf16.msra.mxu0 %v6490
          %6565 = vmatprep.subr.bf16.mxu0 0
          %6566 = vmatpush1.bf16.msra.mxu0 %v6491
          %6567 = vmatprep.subr.bf16.mxu0 0
          %6568 = vmatpush1.bf16.msra.mxu0 %v6492
          %6569 = vmatprep.subr.bf16.mxu0 0
          %6570 = vmatpush1.bf16.msra.mxu0 %v6493
          %6571 = vmatprep.subr.bf16.mxu0 0
          %6572 = vmatpush1.bf16.msra.mxu0 %v6494
          %6573 = vmatprep.subr.bf16.mxu0 0
          %6574 = vmatpush1.bf16.msra.mxu0 %v6495
          %6575 = vmatprep.subr.bf16.mxu0 0
          %6576 = vmatpush1.bf16.msra.mxu0 %v6496
          %6577 = vmatprep.mubr.bf16.mxu0 %v6350
          %6578 = vmatmul.mubr.bf16.gmra.mrb[0].mxu0 %v6349
          %v6579 = vpop.f32.mrb[0].mxu0
          %v6580 = vadd.f32 0.0, %v6579
          %v6581 = vpop.f32.mrb[0].mxu0
          %v6582 = vpop.f32.mrb[0].mxu0
          %v6583 = vadd.f32 0.0, %v6582
          %v6584 = vpop.f32.mrb[0].mxu0
          %6585 = vdwg.mxu0
          %6586 = vmatprep.subr.bf16.mxu0 0
          %6587 = vmatpush1.bf16.msra.mxu0 %v6497
          %6588 = vmatprep.subr.bf16.mxu0 0
          %6589 = vmatpush1.bf16.msra.mxu0 %v6498
          %6590 = vmatprep.subr.bf16.mxu0 0
          %6591 = vmatpush1.bf16.msra.mxu0 %v6499
          %6592 = vmatprep.subr.bf16.mxu0 0
          %6593 = vmatpush1.bf16.msra.mxu0 %v6500
          %6594 = vmatprep.subr.bf16.mxu0 0
          %6595 = vmatpush1.bf16.msra.mxu0 %v6501
          %6596 = vmatprep.subr.bf16.mxu0 0
          %6597 = vmatpush1.bf16.msra.mxu0 %v6502
          %6598 = vmatprep.subr.bf16.mxu0 0
          %6599 = vmatpush1.bf16.msra.mxu0 %v6503
          %6600 = vmatprep.subr.bf16.mxu0 0
          %6601 = vmatpush1.bf16.msra.mxu0 %v6504
          %6602 = vmatprep.subr.bf16.mxu0 0
          %6603 = vmatpush1.bf16.msra.mxu0 %v6505
          %6604 = vmatprep.subr.bf16.mxu0 0
          %6605 = vmatpush1.bf16.msra.mxu0 %v6506
          %6606 = vmatprep.subr.bf16.mxu0 0
          %6607 = vmatpush1.bf16.msra.mxu0 %v6507
          %6608 = vmatprep.subr.bf16.mxu0 0
          %6609 = vmatpush1.bf16.msra.mxu0 %v6508
          %6610 = vmatprep.subr.bf16.mxu0 0
          %6611 = vmatpush1.bf16.msra.mxu0 %v6509
          %6612 = vmatprep.subr.bf16.mxu0 0
          %6613 = vmatpush1.bf16.msra.mxu0 %v6510
          %6614 = vmatprep.subr.bf16.mxu0 0
          %6615 = vmatpush1.bf16.msra.mxu0 %v6511
          %6616 = vmatprep.subr.bf16.mxu0 0
          %6617 = vmatpush1.bf16.msra.mxu0 %v6512
          %6618 = vmatprep.mubr.bf16.mxu0 %v6352
          %6619 = vmatmul.mubr.bf16.gmra.mrb[0].mxu0 %v6351
          %v6620 = vpop.f32.mrb[0].mxu0
          %v6621 = vadd.f32 %v6580, %v6620
          %v6622 = vpop.f32.mrb[0].mxu0
          %v6623 = vpop.f32.mrb[0].mxu0
          %v6624 = vadd.f32 %v6583, %v6623
          %v6625 = vpop.f32.mrb[0].mxu0
          %6626 = vdwg.mxu0
          %v6627 = vadd.f32 %v6117, %v6621
          %v6628 = vadd.f32 %v6117, %v6624
          %s6629 = scalar_lea.vmem %s1397, 16
          %v6630 = vld [vmem:[%s6629] sm:$0xff]
          %v6631 = vld [vmem:[%s6629 + $0x8] sm:$0xff]
          %v6632 = vld [vmem:[%s6629 + $0x40] sm:$0xff]
          %v6633 = vld [vmem:[%s6629 + $0x48] sm:$0xff]
          %v6634 = vld [vmem:[%s6629 + $0x80] sm:$0xff]
          %v6635 = vld [vmem:[%s6629 + $0x88] sm:$0xff]
          %v6636 = vld [vmem:[%s6629 + $0xc0] sm:$0xff]
          %v6637 = vld [vmem:[%s6629 + $0xc8] sm:$0xff]
          %s6638 = scalar_lea.vmem %s1407, 4
          %v6639 = vld [vmem:[%s6638] sm:$0xf]
          %v6641 = vlaneseq
          %v6642 = vshrl.u32 %v6641, 7
          %v6643 = vsub.s32 0, %v6642
          %v6644 = vrot.slane %v6639, %v6643
          %v6645 = vlaneseq
          %v6646 = vshrl.u32 %v6645, 7
          %v6647 = vsub.s32 1, %v6646
          %v6648 = vrot.slane %v6639, %v6647
          %v6649 = vlaneseq
          %v6650 = vshrl.u32 %v6649, 7
          %v6651 = vsub.s32 2, %v6650
          %v6652 = vrot.slane %v6639, %v6651
          %v6653 = vlaneseq
          %v6654 = vshrl.u32 %v6653, 7
          %v6655 = vsub.s32 3, %v6654
          %v6656 = vrot.slane %v6639, %v6655
          %v6669 = vunpack.c.l.b16 %v6630
          %v6670 = vunpack.c.h.b16 %v6630
          %v6671 = vunpack.c.l.b16 %v6631
          %v6672 = vunpack.c.h.b16 %v6631
          %v6673 = vunpack.c.l.b16 %v6632
          %v6674 = vunpack.c.h.b16 %v6632
          %v6675 = vunpack.c.l.b16 %v6633
          %v6676 = vunpack.c.h.b16 %v6633
          %v6677 = vunpack.c.l.b16 %v6634
          %v6678 = vunpack.c.h.b16 %v6634
          %v6679 = vunpack.c.l.b16 %v6635
          %v6680 = vunpack.c.h.b16 %v6635
          %v6681 = vunpack.c.l.b16 %v6636
          %v6682 = vunpack.c.h.b16 %v6636
          %v6683 = vunpack.c.l.b16 %v6637
          %v6684 = vunpack.c.h.b16 %v6637
          %v6685 = vpack.c.b16 %v6673, %v6669
          %v6686 = vpack.c.b16 %v6674, %v6670
          %v6687 = vpack.c.b16 %v6675, %v6671
          %v6688 = vpack.c.b16 %v6676, %v6672
          %v6689 = vpack.c.b16 %v6681, %v6677
          %v6690 = vpack.c.b16 %v6682, %v6678
          %v6691 = vpack.c.b16 %v6683, %v6679
          %v6692 = vpack.c.b16 %v6684, %v6680
          %6701 = vmatprep.subr.bf16.mxu0 %v6686
          %6702 = vmatpush1.bf16.msra.mxu0 %v6685
          %6703 = vmatprep.subr.bf16.mxu0 %v6690
          %6704 = vmatpush1.bf16.msra.mxu0 %v6689
          %6705 = vmatprep.subr.bf16.mxu0 0
          %6706 = vmatpush1.bf16.msra.mxu0 0
          %6707 = vmatprep.subr.bf16.mxu0 0
          %6708 = vmatpush1.bf16.msra.mxu0 0
          %6709 = vmatprep.subr.bf16.mxu0 0
          %6710 = vmatpush1.bf16.msra.mxu0 0
          %6711 = vmatprep.subr.bf16.mxu0 0
          %6712 = vmatpush1.bf16.msra.mxu0 0
          %6713 = vmatprep.subr.bf16.mxu0 0
          %6714 = vmatpush1.bf16.msra.mxu0 0
          %6715 = vmatprep.subr.bf16.mxu0 0
          %6716 = vmatpush1.bf16.msra.mxu0 0
          %6717 = vmatprep.subr.bf16.mxu0 0
          %6718 = vmatpush1.bf16.msra.mxu0 0
          %6719 = vmatprep.subr.bf16.mxu0 0
          %6720 = vmatpush1.bf16.msra.mxu0 0
          %6721 = vmatprep.subr.bf16.mxu0 0
          %6722 = vmatpush1.bf16.msra.mxu0 0
          %6723 = vmatprep.subr.bf16.mxu0 0
          %6724 = vmatpush1.bf16.msra.mxu0 0
          %6725 = vmatprep.subr.bf16.mxu0 0
          %6726 = vmatpush1.bf16.msra.mxu0 0
          %6727 = vmatprep.subr.bf16.mxu0 0
          %6728 = vmatpush1.bf16.msra.mxu0 0
          %6729 = vmatprep.subr.bf16.mxu0 0
          %6730 = vmatpush1.bf16.msra.mxu0 0
          %6731 = vmatprep.subr.bf16.mxu0 0
          %6732 = vmatpush1.bf16.msra.mxu0 0
          %6733 = vmatprep.mubr.bf16.mxu0 0
          %6734 = vmatmul.mubr.bf16.gmra.mrb[0].mxu0 %v6189
          %v6735 = vpop.f32.mrb[0].mxu0
          %v6736 = vadd.f32 %v6644, %v6735
          %v6737 = vpop.f32.mrb[0].mxu0
          %v6738 = vadd.f32 %v6648, %v6737
          %v6739 = vpop.f32.mrb[0].mxu0
          %v6740 = vadd.f32 %v6644, %v6739
          %v6741 = vpop.f32.mrb[0].mxu0
          %v6742 = vadd.f32 %v6648, %v6741
          %6743 = vdwg.mxu0
          %6744 = vmatprep.subr.bf16.mxu0 %v6688
          %6745 = vmatpush1.bf16.msra.mxu0 %v6687
          %6746 = vmatprep.subr.bf16.mxu0 %v6692
          %6747 = vmatpush1.bf16.msra.mxu0 %v6691
          %6748 = vmatprep.subr.bf16.mxu0 0
          %6749 = vmatpush1.bf16.msra.mxu0 0
          %6750 = vmatprep.subr.bf16.mxu0 0
          %6751 = vmatpush1.bf16.msra.mxu0 0
          %6752 = vmatprep.subr.bf16.mxu0 0
          %6753 = vmatpush1.bf16.msra.mxu0 0
          %6754 = vmatprep.subr.bf16.mxu0 0
          %6755 = vmatpush1.bf16.msra.mxu0 0
          %6756 = vmatprep.subr.bf16.mxu0 0
          %6757 = vmatpush1.bf16.msra.mxu0 0
          %6758 = vmatprep.subr.bf16.mxu0 0
          %6759 = vmatpush1.bf16.msra.mxu0 0
          %6760 = vmatprep.subr.bf16.mxu0 0
          %6761 = vmatpush1.bf16.msra.mxu0 0
          %6762 = vmatprep.subr.bf16.mxu0 0
          %6763 = vmatpush1.bf16.msra.mxu0 0
          %6764 = vmatprep.subr.bf16.mxu0 0
          %6765 = vmatpush1.bf16.msra.mxu0 0
          %6766 = vmatprep.subr.bf16.mxu0 0
          %6767 = vmatpush1.bf16.msra.mxu0 0
          %6768 = vmatprep.subr.bf16.mxu0 0
          %6769 = vmatpush1.bf16.msra.mxu0 0
          %6770 = vmatprep.subr.bf16.mxu0 0
          %6771 = vmatpush1.bf16.msra.mxu0 0
          %6772 = vmatprep.subr.bf16.mxu0 0
          %6773 = vmatpush1.bf16.msra.mxu0 0
          %6774 = vmatprep.subr.bf16.mxu0 0
          %6775 = vmatpush1.bf16.msra.mxu0 0
          %6776 = vmatprep.mubr.bf16.mxu0 0
          %6777 = vmatmul.mubr.bf16.gmra.mrb[0].mxu0 %v6189
          %v6778 = vpop.f32.mrb[0].mxu0
          %v6779 = vadd.f32 %v6652, %v6778
          %v6780 = vpop.f32.mrb[0].mxu0
          %v6781 = vadd.f32 %v6656, %v6780
          %v6782 = vpop.f32.mrb[0].mxu0
          %v6783 = vadd.f32 %v6652, %v6782
          %v6784 = vpop.f32.mrb[0].mxu0
          %v6785 = vadd.f32 %v6656, %v6784
          %6786 = vdwg.mxu0
          %v6787 = vmax.f32 %v6736, 0.0
          %v6788 = vmax.f32 %v6738, 0.0
          %v6789 = vmax.f32 %v6779, 0.0
          %v6790 = vmax.f32 %v6781, 0.0
          %v6791 = vmax.f32 %v6740, 0.0
          %v6792 = vmax.f32 %v6742, 0.0
          %v6793 = vmax.f32 %v6783, 0.0
          %v6794 = vmax.f32 %v6785, 0.0
          %s6795 = scalar_lea.vmem %s1418, 256
          %v6796 = vld [vmem:[%s6795] sm:$0xf]
          %v6797 = vld [vmem:[%s6795 + $0x4] sm:$0xf]
          %v6798 = vld [vmem:[%s6795 + $0x8] sm:$0xf]
          %v6799 = vld [vmem:[%s6795 + $0xc] sm:$0xf]
          %v6800 = vld [vmem:[%s6795 + $0x10] sm:$0xf]
          %v6801 = vld [vmem:[%s6795 + $0x14] sm:$0xf]
          %v6802 = vld [vmem:[%s6795 + $0x18] sm:$0xf]
          %v6803 = vld [vmem:[%s6795 + $0x1c] sm:$0xf]
          %v6804 = vld [vmem:[%s6795 + $0x20] sm:$0xf]
          %v6805 = vld [vmem:[%s6795 + $0x24] sm:$0xf]
          %v6806 = vld [vmem:[%s6795 + $0x28] sm:$0xf]
          %v6807 = vld [vmem:[%s6795 + $0x2c] sm:$0xf]
          %v6808 = vld [vmem:[%s6795 + $0x30] sm:$0xf]
          %v6809 = vld [vmem:[%s6795 + $0x34] sm:$0xf]
          %v6810 = vld [vmem:[%s6795 + $0x38] sm:$0xf]
          %v6811 = vld [vmem:[%s6795 + $0x3c] sm:$0xf]
          %v6812 = vld [vmem:[%s6795 + $0x40] sm:$0xf]
          %v6813 = vld [vmem:[%s6795 + $0x44] sm:$0xf]
          %v6814 = vld [vmem:[%s6795 + $0x48] sm:$0xf]
          %v6815 = vld [vmem:[%s6795 + $0x4c] sm:$0xf]
          %v6816 = vld [vmem:[%s6795 + $0x50] sm:$0xf]
          %v6817 = vld [vmem:[%s6795 + $0x54] sm:$0xf]
          %v6818 = vld [vmem:[%s6795 + $0x58] sm:$0xf]
          %v6819 = vld [vmem:[%s6795 + $0x5c] sm:$0xf]
          %v6820 = vld [vmem:[%s6795 + $0x60] sm:$0xf]
          %v6821 = vld [vmem:[%s6795 + $0x64] sm:$0xf]
          %v6822 = vld [vmem:[%s6795 + $0x68] sm:$0xf]
          %v6823 = vld [vmem:[%s6795 + $0x6c] sm:$0xf]
          %v6824 = vld [vmem:[%s6795 + $0x70] sm:$0xf]
          %v6825 = vld [vmem:[%s6795 + $0x74] sm:$0xf]
          %v6826 = vld [vmem:[%s6795 + $0x78] sm:$0xf]
          %v6827 = vld [vmem:[%s6795 + $0x7c] sm:$0xf]
          %v6828 = vld [vmem:[%s6795 + $0x80] sm:$0xf]
          %v6829 = vld [vmem:[%s6795 + $0x84] sm:$0xf]
          %v6830 = vld [vmem:[%s6795 + $0x88] sm:$0xf]
          %v6831 = vld [vmem:[%s6795 + $0x8c] sm:$0xf]
          %v6832 = vld [vmem:[%s6795 + $0x90] sm:$0xf]
          %v6833 = vld [vmem:[%s6795 + $0x94] sm:$0xf]
          %v6834 = vld [vmem:[%s6795 + $0x98] sm:$0xf]
          %v6835 = vld [vmem:[%s6795 + $0x9c] sm:$0xf]
          %v6836 = vld [vmem:[%s6795 + $0xa0] sm:$0xf]
          %v6837 = vld [vmem:[%s6795 + $0xa4] sm:$0xf]
          %v6838 = vld [vmem:[%s6795 + $0xa8] sm:$0xf]
          %v6839 = vld [vmem:[%s6795 + $0xac] sm:$0xf]
          %v6840 = vld [vmem:[%s6795 + $0xb0] sm:$0xf]
          %v6841 = vld [vmem:[%s6795 + $0xb4] sm:$0xf]
          %v6842 = vld [vmem:[%s6795 + $0xb8] sm:$0xf]
          %v6843 = vld [vmem:[%s6795 + $0xbc] sm:$0xf]
          %v6844 = vld [vmem:[%s6795 + $0xc0] sm:$0xf]
          %v6845 = vld [vmem:[%s6795 + $0xc4] sm:$0xf]
          %v6846 = vld [vmem:[%s6795 + $0xc8] sm:$0xf]
          %v6847 = vld [vmem:[%s6795 + $0xcc] sm:$0xf]
          %v6848 = vld [vmem:[%s6795 + $0xd0] sm:$0xf]
          %v6849 = vld [vmem:[%s6795 + $0xd4] sm:$0xf]
          %v6850 = vld [vmem:[%s6795 + $0xd8] sm:$0xf]
          %v6851 = vld [vmem:[%s6795 + $0xdc] sm:$0xf]
          %v6852 = vld [vmem:[%s6795 + $0xe0] sm:$0xf]
          %v6853 = vld [vmem:[%s6795 + $0xe4] sm:$0xf]
          %v6854 = vld [vmem:[%s6795 + $0xe8] sm:$0xf]
          %v6855 = vld [vmem:[%s6795 + $0xec] sm:$0xf]
          %v6856 = vld [vmem:[%s6795 + $0xf0] sm:$0xf]
          %v6857 = vld [vmem:[%s6795 + $0xf4] sm:$0xf]
          %v6858 = vld [vmem:[%s6795 + $0xf8] sm:$0xf]
          %v6859 = vld [vmem:[%s6795 + $0xfc] sm:$0xf]
          %v6860 = vpack.c.bf16 %v6791, %v6787
          %v6861 = vpack.c.bf16 %v6792, %v6788
          %v6862 = vpack.c.bf16 %v6793, %v6789
          %v6863 = vpack.c.bf16 %v6794, %v6790
          %v6928 = vunpack.c.l.b16 %v6796
          %v6929 = vunpack.c.l.b16 %v6797
          %v6930 = vunpack.c.l.b16 %v6798
          %v6931 = vunpack.c.l.b16 %v6799
          %v6932 = vunpack.c.l.b16 %v6800
          %v6933 = vunpack.c.l.b16 %v6801
          %v6934 = vunpack.c.l.b16 %v6802
          %v6935 = vunpack.c.l.b16 %v6803
          %v6936 = vunpack.c.l.b16 %v6804
          %v6937 = vunpack.c.l.b16 %v6805
          %v6938 = vunpack.c.l.b16 %v6806
          %v6939 = vunpack.c.l.b16 %v6807
          %v6940 = vunpack.c.l.b16 %v6808
          %v6941 = vunpack.c.l.b16 %v6809
          %v6942 = vunpack.c.l.b16 %v6810
          %v6943 = vunpack.c.l.b16 %v6811
          %v6944 = vunpack.c.l.b16 %v6812
          %v6945 = vunpack.c.l.b16 %v6813
          %v6946 = vunpack.c.l.b16 %v6814
          %v6947 = vunpack.c.l.b16 %v6815
          %v6948 = vunpack.c.l.b16 %v6816
          %v6949 = vunpack.c.l.b16 %v6817
          %v6950 = vunpack.c.l.b16 %v6818
          %v6951 = vunpack.c.l.b16 %v6819
          %v6952 = vunpack.c.l.b16 %v6820
          %v6953 = vunpack.c.l.b16 %v6821
          %v6954 = vunpack.c.l.b16 %v6822
          %v6955 = vunpack.c.l.b16 %v6823
          %v6956 = vunpack.c.l.b16 %v6824
          %v6957 = vunpack.c.l.b16 %v6825
          %v6958 = vunpack.c.l.b16 %v6826
          %v6959 = vunpack.c.l.b16 %v6827
          %v6960 = vunpack.c.l.b16 %v6828
          %v6961 = vunpack.c.l.b16 %v6829
          %v6962 = vunpack.c.l.b16 %v6830
          %v6963 = vunpack.c.l.b16 %v6831
          %v6964 = vunpack.c.l.b16 %v6832
          %v6965 = vunpack.c.l.b16 %v6833
          %v6966 = vunpack.c.l.b16 %v6834
          %v6967 = vunpack.c.l.b16 %v6835
          %v6968 = vunpack.c.l.b16 %v6836
          %v6969 = vunpack.c.l.b16 %v6837
          %v6970 = vunpack.c.l.b16 %v6838
          %v6971 = vunpack.c.l.b16 %v6839
          %v6972 = vunpack.c.l.b16 %v6840
          %v6973 = vunpack.c.l.b16 %v6841
          %v6974 = vunpack.c.l.b16 %v6842
          %v6975 = vunpack.c.l.b16 %v6843
          %v6976 = vunpack.c.l.b16 %v6844
          %v6977 = vunpack.c.l.b16 %v6845
          %v6978 = vunpack.c.l.b16 %v6846
          %v6979 = vunpack.c.l.b16 %v6847
          %v6980 = vunpack.c.l.b16 %v6848
          %v6981 = vunpack.c.l.b16 %v6849
          %v6982 = vunpack.c.l.b16 %v6850
          %v6983 = vunpack.c.l.b16 %v6851
          %v6984 = vunpack.c.l.b16 %v6852
          %v6985 = vunpack.c.l.b16 %v6853
          %v6986 = vunpack.c.l.b16 %v6854
          %v6987 = vunpack.c.l.b16 %v6855
          %v6988 = vunpack.c.l.b16 %v6856
          %v6989 = vunpack.c.l.b16 %v6857
          %v6990 = vunpack.c.l.b16 %v6858
          %v6991 = vunpack.c.l.b16 %v6859
          %v6992 = vpack.c.b16 %v6929, %v6928
          %v6993 = vpack.c.b16 %v6931, %v6930
          %v6994 = vpack.c.b16 %v6933, %v6932
          %v6995 = vpack.c.b16 %v6935, %v6934
          %v6996 = vpack.c.b16 %v6937, %v6936
          %v6997 = vpack.c.b16 %v6939, %v6938
          %v6998 = vpack.c.b16 %v6941, %v6940
          %v6999 = vpack.c.b16 %v6943, %v6942
          %v7000 = vpack.c.b16 %v6945, %v6944
          %v7001 = vpack.c.b16 %v6947, %v6946
          %v7002 = vpack.c.b16 %v6949, %v6948
          %v7003 = vpack.c.b16 %v6951, %v6950
          %v7004 = vpack.c.b16 %v6953, %v6952
          %v7005 = vpack.c.b16 %v6955, %v6954
          %v7006 = vpack.c.b16 %v6957, %v6956
          %v7007 = vpack.c.b16 %v6959, %v6958
          %v7008 = vpack.c.b16 %v6961, %v6960
          %v7009 = vpack.c.b16 %v6963, %v6962
          %v7010 = vpack.c.b16 %v6965, %v6964
          %v7011 = vpack.c.b16 %v6967, %v6966
          %v7012 = vpack.c.b16 %v6969, %v6968
          %v7013 = vpack.c.b16 %v6971, %v6970
          %v7014 = vpack.c.b16 %v6973, %v6972
          %v7015 = vpack.c.b16 %v6975, %v6974
          %v7016 = vpack.c.b16 %v6977, %v6976
          %v7017 = vpack.c.b16 %v6979, %v6978
          %v7018 = vpack.c.b16 %v6981, %v6980
          %v7019 = vpack.c.b16 %v6983, %v6982
          %v7020 = vpack.c.b16 %v6985, %v6984
          %v7021 = vpack.c.b16 %v6987, %v6986
          %v7022 = vpack.c.b16 %v6989, %v6988
          %v7023 = vpack.c.b16 %v6991, %v6990
          %7056 = vmatprep.subr.bf16.mxu0 0
          %7057 = vmatpush1.bf16.msra.mxu0 %v6992
          %7058 = vmatprep.subr.bf16.mxu0 0
          %7059 = vmatpush1.bf16.msra.mxu0 %v6993
          %7060 = vmatprep.subr.bf16.mxu0 0
          %7061 = vmatpush1.bf16.msra.mxu0 %v6994
          %7062 = vmatprep.subr.bf16.mxu0 0
          %7063 = vmatpush1.bf16.msra.mxu0 %v6995
          %7064 = vmatprep.subr.bf16.mxu0 0
          %7065 = vmatpush1.bf16.msra.mxu0 %v6996
          %7066 = vmatprep.subr.bf16.mxu0 0
          %7067 = vmatpush1.bf16.msra.mxu0 %v6997
          %7068 = vmatprep.subr.bf16.mxu0 0
          %7069 = vmatpush1.bf16.msra.mxu0 %v6998
          %7070 = vmatprep.subr.bf16.mxu0 0
          %7071 = vmatpush1.bf16.msra.mxu0 %v6999
          %7072 = vmatprep.subr.bf16.mxu0 0
          %7073 = vmatpush1.bf16.msra.mxu0 %v7000
          %7074 = vmatprep.subr.bf16.mxu0 0
          %7075 = vmatpush1.bf16.msra.mxu0 %v7001
          %7076 = vmatprep.subr.bf16.mxu0 0
          %7077 = vmatpush1.bf16.msra.mxu0 %v7002
          %7078 = vmatprep.subr.bf16.mxu0 0
          %7079 = vmatpush1.bf16.msra.mxu0 %v7003
          %7080 = vmatprep.subr.bf16.mxu0 0
          %7081 = vmatpush1.bf16.msra.mxu0 %v7004
          %7082 = vmatprep.subr.bf16.mxu0 0
          %7083 = vmatpush1.bf16.msra.mxu0 %v7005
          %7084 = vmatprep.subr.bf16.mxu0 0
          %7085 = vmatpush1.bf16.msra.mxu0 %v7006
          %7086 = vmatprep.subr.bf16.mxu0 0
          %7087 = vmatpush1.bf16.msra.mxu0 %v7007
          %7088 = vmatprep.mubr.bf16.mxu0 %v6861
          %7089 = vmatmul.mubr.bf16.gmra.mrb[0].mxu0 %v6860
          %v7090 = vpop.f32.mrb[0].mxu0
          %v7091 = vadd.f32 0.0, %v7090
          %v7092 = vpop.f32.mrb[0].mxu0
          %v7093 = vpop.f32.mrb[0].mxu0
          %v7094 = vadd.f32 0.0, %v7093
          %v7095 = vpop.f32.mrb[0].mxu0
          %7096 = vdwg.mxu0
          %7097 = vmatprep.subr.bf16.mxu0 0
          %7098 = vmatpush1.bf16.msra.mxu0 %v7008
          %7099 = vmatprep.subr.bf16.mxu0 0
          %7100 = vmatpush1.bf16.msra.mxu0 %v7009
          %7101 = vmatprep.subr.bf16.mxu0 0
          %7102 = vmatpush1.bf16.msra.mxu0 %v7010
          %7103 = vmatprep.subr.bf16.mxu0 0
          %7104 = vmatpush1.bf16.msra.mxu0 %v7011
          %7105 = vmatprep.subr.bf16.mxu0 0
          %7106 = vmatpush1.bf16.msra.mxu0 %v7012
          %7107 = vmatprep.subr.bf16.mxu0 0
          %7108 = vmatpush1.bf16.msra.mxu0 %v7013
          %7109 = vmatprep.subr.bf16.mxu0 0
          %7110 = vmatpush1.bf16.msra.mxu0 %v7014
          %7111 = vmatprep.subr.bf16.mxu0 0
          %7112 = vmatpush1.bf16.msra.mxu0 %v7015
          %7113 = vmatprep.subr.bf16.mxu0 0
          %7114 = vmatpush1.bf16.msra.mxu0 %v7016
          %7115 = vmatprep.subr.bf16.mxu0 0
          %7116 = vmatpush1.bf16.msra.mxu0 %v7017
          %7117 = vmatprep.subr.bf16.mxu0 0
          %7118 = vmatpush1.bf16.msra.mxu0 %v7018
          %7119 = vmatprep.subr.bf16.mxu0 0
          %7120 = vmatpush1.bf16.msra.mxu0 %v7019
          %7121 = vmatprep.subr.bf16.mxu0 0
          %7122 = vmatpush1.bf16.msra.mxu0 %v7020
          %7123 = vmatprep.subr.bf16.mxu0 0
          %7124 = vmatpush1.bf16.msra.mxu0 %v7021
          %7125 = vmatprep.subr.bf16.mxu0 0
          %7126 = vmatpush1.bf16.msra.mxu0 %v7022
          %7127 = vmatprep.subr.bf16.mxu0 0
          %7128 = vmatpush1.bf16.msra.mxu0 %v7023
          %7129 = vmatprep.mubr.bf16.mxu0 %v6863
          %7130 = vmatmul.mubr.bf16.gmra.mrb[0].mxu0 %v6862
          %v7131 = vpop.f32.mrb[0].mxu0
          %v7132 = vadd.f32 %v7091, %v7131
          %v7133 = vpop.f32.mrb[0].mxu0
          %v7134 = vpop.f32.mrb[0].mxu0
          %v7135 = vadd.f32 %v7094, %v7134
          %v7136 = vpop.f32.mrb[0].mxu0
          %7137 = vdwg.mxu0
          %v7138 = vadd.f32 %v6627, %v7132
          %v7139 = vadd.f32 %v6628, %v7135
          %s7140 = scalar_lea.vmem %s1397, 32
          %v7141 = vld [vmem:[%s7140] sm:$0xff]
          %v7142 = vld [vmem:[%s7140 + $0x8] sm:$0xff]
          %v7143 = vld [vmem:[%s7140 + $0x40] sm:$0xff]
          %v7144 = vld [vmem:[%s7140 + $0x48] sm:$0xff]
          %v7145 = vld [vmem:[%s7140 + $0x80] sm:$0xff]
          %v7146 = vld [vmem:[%s7140 + $0x88] sm:$0xff]
          %v7147 = vld [vmem:[%s7140 + $0xc0] sm:$0xff]
          %v7148 = vld [vmem:[%s7140 + $0xc8] sm:$0xff]
          %s7149 = scalar_lea.vmem %s1407, 8
          %v7150 = vld [vmem:[%s7149] sm:$0xf]
          %v7152 = vlaneseq
          %v7153 = vshrl.u32 %v7152, 7
          %v7154 = vsub.s32 0, %v7153
          %v7155 = vrot.slane %v7150, %v7154
          %v7156 = vlaneseq
          %v7157 = vshrl.u32 %v7156, 7
          %v7158 = vsub.s32 1, %v7157
          %v7159 = vrot.slane %v7150, %v7158
          %v7160 = vlaneseq
          %v7161 = vshrl.u32 %v7160, 7
          %v7162 = vsub.s32 2, %v7161
          %v7163 = vrot.slane %v7150, %v7162
          %v7164 = vlaneseq
          %v7165 = vshrl.u32 %v7164, 7
          %v7166 = vsub.s32 3, %v7165
          %v7167 = vrot.slane %v7150, %v7166
          %v7180 = vunpack.c.l.b16 %v7141
          %v7181 = vunpack.c.h.b16 %v7141
          %v7182 = vunpack.c.l.b16 %v7142
          %v7183 = vunpack.c.h.b16 %v7142
          %v7184 = vunpack.c.l.b16 %v7143
          %v7185 = vunpack.c.h.b16 %v7143
          %v7186 = vunpack.c.l.b16 %v7144
          %v7187 = vunpack.c.h.b16 %v7144
          %v7188 = vunpack.c.l.b16 %v7145
          %v7189 = vunpack.c.h.b16 %v7145
          %v7190 = vunpack.c.l.b16 %v7146
          %v7191 = vunpack.c.h.b16 %v7146
          %v7192 = vunpack.c.l.b16 %v7147
          %v7193 = vunpack.c.h.b16 %v7147
          %v7194 = vunpack.c.l.b16 %v7148
          %v7195 = vunpack.c.h.b16 %v7148
          %v7196 = vpack.c.b16 %v7184, %v7180
          %v7197 = vpack.c.b16 %v7185, %v7181
          %v7198 = vpack.c.b16 %v7186, %v7182
          %v7199 = vpack.c.b16 %v7187, %v7183
          %v7200 = vpack.c.b16 %v7192, %v7188
          %v7201 = vpack.c.b16 %v7193, %v7189
          %v7202 = vpack.c.b16 %v7194, %v7190
          %v7203 = vpack.c.b16 %v7195, %v7191
          %7212 = vmatprep.subr.bf16.mxu0 %v7197
          %7213 = vmatpush1.bf16.msra.mxu0 %v7196
          %7214 = vmatprep.subr.bf16.mxu0 %v7201
          %7215 = vmatpush1.bf16.msra.mxu0 %v7200
          %7216 = vmatprep.subr.bf16.mxu0 0
          %7217 = vmatpush1.bf16.msra.mxu0 0
          %7218 = vmatprep.subr.bf16.mxu0 0
          %7219 = vmatpush1.bf16.msra.mxu0 0
          %7220 = vmatprep.subr.bf16.mxu0 0
          %7221 = vmatpush1.bf16.msra.mxu0 0
          %7222 = vmatprep.subr.bf16.mxu0 0
          %7223 = vmatpush1.bf16.msra.mxu0 0
          %7224 = vmatprep.subr.bf16.mxu0 0
          %7225 = vmatpush1.bf16.msra.mxu0 0
          %7226 = vmatprep.subr.bf16.mxu0 0
          %7227 = vmatpush1.bf16.msra.mxu0 0
          %7228 = vmatprep.subr.bf16.mxu0 0
          %7229 = vmatpush1.bf16.msra.mxu0 0
          %7230 = vmatprep.subr.bf16.mxu0 0
          %7231 = vmatpush1.bf16.msra.mxu0 0
          %7232 = vmatprep.subr.bf16.mxu0 0
          %7233 = vmatpush1.bf16.msra.mxu0 0
          %7234 = vmatprep.subr.bf16.mxu0 0
          %7235 = vmatpush1.bf16.msra.mxu0 0
          %7236 = vmatprep.subr.bf16.mxu0 0
          %7237 = vmatpush1.bf16.msra.mxu0 0
          %7238 = vmatprep.subr.bf16.mxu0 0
          %7239 = vmatpush1.bf16.msra.mxu0 0
          %7240 = vmatprep.subr.bf16.mxu0 0
          %7241 = vmatpush1.bf16.msra.mxu0 0
          %7242 = vmatprep.subr.bf16.mxu0 0
          %7243 = vmatpush1.bf16.msra.mxu0 0
          %7244 = vmatprep.mubr.bf16.mxu0 0
          %7245 = vmatmul.mubr.bf16.gmra.mrb[0].mxu0 %v6189
          %v7246 = vpop.f32.mrb[0].mxu0
          %v7247 = vadd.f32 %v7155, %v7246
          %v7248 = vpop.f32.mrb[0].mxu0
          %v7249 = vadd.f32 %v7159, %v7248
          %v7250 = vpop.f32.mrb[0].mxu0
          %v7251 = vadd.f32 %v7155, %v7250
          %v7252 = vpop.f32.mrb[0].mxu0
          %v7253 = vadd.f32 %v7159, %v7252
          %7254 = vdwg.mxu0
          %7255 = vmatprep.subr.bf16.mxu0 %v7199
          %7256 = vmatpush1.bf16.msra.mxu0 %v7198
          %7257 = vmatprep.subr.bf16.mxu0 %v7203
          %7258 = vmatpush1.bf16.msra.mxu0 %v7202
          %7259 = vmatprep.subr.bf16.mxu0 0
          %7260 = vmatpush1.bf16.msra.mxu0 0
          %7261 = vmatprep.subr.bf16.mxu0 0
          %7262 = vmatpush1.bf16.msra.mxu0 0
          %7263 = vmatprep.subr.bf16.mxu0 0
          %7264 = vmatpush1.bf16.msra.mxu0 0
          %7265 = vmatprep.subr.bf16.mxu0 0
          %7266 = vmatpush1.bf16.msra.mxu0 0
          %7267 = vmatprep.subr.bf16.mxu0 0
          %7268 = vmatpush1.bf16.msra.mxu0 0
          %7269 = vmatprep.subr.bf16.mxu0 0
          %7270 = vmatpush1.bf16.msra.mxu0 0
          %7271 = vmatprep.subr.bf16.mxu0 0
          %7272 = vmatpush1.bf16.msra.mxu0 0
          %7273 = vmatprep.subr.bf16.mxu0 0
          %7274 = vmatpush1.bf16.msra.mxu0 0
          %7275 = vmatprep.subr.bf16.mxu0 0
          %7276 = vmatpush1.bf16.msra.mxu0 0
          %7277 = vmatprep.subr.bf16.mxu0 0
          %7278 = vmatpush1.bf16.msra.mxu0 0
          %7279 = vmatprep.subr.bf16.mxu0 0
          %7280 = vmatpush1.bf16.msra.mxu0 0
          %7281 = vmatprep.subr.bf16.mxu0 0
          %7282 = vmatpush1.bf16.msra.mxu0 0
          %7283 = vmatprep.subr.bf16.mxu0 0
          %7284 = vmatpush1.bf16.msra.mxu0 0
          %7285 = vmatprep.subr.bf16.mxu0 0
          %7286 = vmatpush1.bf16.msra.mxu0 0
          %7287 = vmatprep.mubr.bf16.mxu0 0
          %7288 = vmatmul.mubr.bf16.gmra.mrb[0].mxu0 %v6189
          %v7289 = vpop.f32.mrb[0].mxu0
          %v7290 = vadd.f32 %v7163, %v7289
          %v7291 = vpop.f32.mrb[0].mxu0
          %v7292 = vadd.f32 %v7167, %v7291
          %v7293 = vpop.f32.mrb[0].mxu0
          %v7294 = vadd.f32 %v7163, %v7293
          %v7295 = vpop.f32.mrb[0].mxu0
          %v7296 = vadd.f32 %v7167, %v7295
          %7297 = vdwg.mxu0
          %v7298 = vmax.f32 %v7247, 0.0
          %v7299 = vmax.f32 %v7249, 0.0
          %v7300 = vmax.f32 %v7290, 0.0
          %v7301 = vmax.f32 %v7292, 0.0
          %v7302 = vmax.f32 %v7251, 0.0
          %v7303 = vmax.f32 %v7253, 0.0
          %v7304 = vmax.f32 %v7294, 0.0
          %v7305 = vmax.f32 %v7296, 0.0
          %s7306 = scalar_lea.vmem %s1418, 512
          %v7307 = vld [vmem:[%s7306] sm:$0xf]
          %v7308 = vld [vmem:[%s7306 + $0x4] sm:$0xf]
          %v7309 = vld [vmem:[%s7306 + $0x8] sm:$0xf]
          %v7310 = vld [vmem:[%s7306 + $0xc] sm:$0xf]
          %v7311 = vld [vmem:[%s7306 + $0x10] sm:$0xf]
          %v7312 = vld [vmem:[%s7306 + $0x14] sm:$0xf]
          %v7313 = vld [vmem:[%s7306 + $0x18] sm:$0xf]
          %v7314 = vld [vmem:[%s7306 + $0x1c] sm:$0xf]
          %v7315 = vld [vmem:[%s7306 + $0x20] sm:$0xf]
          %v7316 = vld [vmem:[%s7306 + $0x24] sm:$0xf]
          %v7317 = vld [vmem:[%s7306 + $0x28] sm:$0xf]
          %v7318 = vld [vmem:[%s7306 + $0x2c] sm:$0xf]
          %v7319 = vld [vmem:[%s7306 + $0x30] sm:$0xf]
          %v7320 = vld [vmem:[%s7306 + $0x34] sm:$0xf]
          %v7321 = vld [vmem:[%s7306 + $0x38] sm:$0xf]
          %v7322 = vld [vmem:[%s7306 + $0x3c] sm:$0xf]
          %v7323 = vld [vmem:[%s7306 + $0x40] sm:$0xf]
          %v7324 = vld [vmem:[%s7306 + $0x44] sm:$0xf]
          %v7325 = vld [vmem:[%s7306 + $0x48] sm:$0xf]
          %v7326 = vld [vmem:[%s7306 + $0x4c] sm:$0xf]
          %v7327 = vld [vmem:[%s7306 + $0x50] sm:$0xf]
          %v7328 = vld [vmem:[%s7306 + $0x54] sm:$0xf]
          %v7329 = vld [vmem:[%s7306 + $0x58] sm:$0xf]
          %v7330 = vld [vmem:[%s7306 + $0x5c] sm:$0xf]
          %v7331 = vld [vmem:[%s7306 + $0x60] sm:$0xf]
          %v7332 = vld [vmem:[%s7306 + $0x64] sm:$0xf]
          %v7333 = vld [vmem:[%s7306 + $0x68] sm:$0xf]
          %v7334 = vld [vmem:[%s7306 + $0x6c] sm:$0xf]
          %v7335 = vld [vmem:[%s7306 + $0x70] sm:$0xf]
          %v7336 = vld [vmem:[%s7306 + $0x74] sm:$0xf]
          %v7337 = vld [vmem:[%s7306 + $0x78] sm:$0xf]
          %v7338 = vld [vmem:[%s7306 + $0x7c] sm:$0xf]
          %v7339 = vld [vmem:[%s7306 + $0x80] sm:$0xf]
          %v7340 = vld [vmem:[%s7306 + $0x84] sm:$0xf]
          %v7341 = vld [vmem:[%s7306 + $0x88] sm:$0xf]
          %v7342 = vld [vmem:[%s7306 + $0x8c] sm:$0xf]
          %v7343 = vld [vmem:[%s7306 + $0x90] sm:$0xf]
          %v7344 = vld [vmem:[%s7306 + $0x94] sm:$0xf]
          %v7345 = vld [vmem:[%s7306 + $0x98] sm:$0xf]
          %v7346 = vld [vmem:[%s7306 + $0x9c] sm:$0xf]
          %v7347 = vld [vmem:[%s7306 + $0xa0] sm:$0xf]
          %v7348 = vld [vmem:[%s7306 + $0xa4] sm:$0xf]
          %v7349 = vld [vmem:[%s7306 + $0xa8] sm:$0xf]
          %v7350 = vld [vmem:[%s7306 + $0xac] sm:$0xf]
          %v7351 = vld [vmem:[%s7306 + $0xb0] sm:$0xf]
          %v7352 = vld [vmem:[%s7306 + $0xb4] sm:$0xf]
          %v7353 = vld [vmem:[%s7306 + $0xb8] sm:$0xf]
          %v7354 = vld [vmem:[%s7306 + $0xbc] sm:$0xf]
          %v7355 = vld [vmem:[%s7306 + $0xc0] sm:$0xf]
          %v7356 = vld [vmem:[%s7306 + $0xc4] sm:$0xf]
          %v7357 = vld [vmem:[%s7306 + $0xc8] sm:$0xf]
          %v7358 = vld [vmem:[%s7306 + $0xcc] sm:$0xf]
          %v7359 = vld [vmem:[%s7306 + $0xd0] sm:$0xf]
          %v7360 = vld [vmem:[%s7306 + $0xd4] sm:$0xf]
          %v7361 = vld [vmem:[%s7306 + $0xd8] sm:$0xf]
          %v7362 = vld [vmem:[%s7306 + $0xdc] sm:$0xf]
          %v7363 = vld [vmem:[%s7306 + $0xe0] sm:$0xf]
          %v7364 = vld [vmem:[%s7306 + $0xe4] sm:$0xf]
          %v7365 = vld [vmem:[%s7306 + $0xe8] sm:$0xf]
          %v7366 = vld [vmem:[%s7306 + $0xec] sm:$0xf]
          %v7367 = vld [vmem:[%s7306 + $0xf0] sm:$0xf]
          %v7368 = vld [vmem:[%s7306 + $0xf4] sm:$0xf]
          %v7369 = vld [vmem:[%s7306 + $0xf8] sm:$0xf]
          %v7370 = vld [vmem:[%s7306 + $0xfc] sm:$0xf]
          %v7371 = vpack.c.bf16 %v7302, %v7298
          %v7372 = vpack.c.bf16 %v7303, %v7299
          %v7373 = vpack.c.bf16 %v7304, %v7300
          %v7374 = vpack.c.bf16 %v7305, %v7301
          %v7439 = vunpack.c.l.b16 %v7307
          %v7440 = vunpack.c.l.b16 %v7308
          %v7441 = vunpack.c.l.b16 %v7309
          %v7442 = vunpack.c.l.b16 %v7310
          %v7443 = vunpack.c.l.b16 %v7311
          %v7444 = vunpack.c.l.b16 %v7312
          %v7445 = vunpack.c.l.b16 %v7313
          %v7446 = vunpack.c.l.b16 %v7314
          %v7447 = vunpack.c.l.b16 %v7315
          %v7448 = vunpack.c.l.b16 %v7316
          %v7449 = vunpack.c.l.b16 %v7317
          %v7450 = vunpack.c.l.b16 %v7318
          %v7451 = vunpack.c.l.b16 %v7319
          %v7452 = vunpack.c.l.b16 %v7320
          %v7453 = vunpack.c.l.b16 %v7321
          %v7454 = vunpack.c.l.b16 %v7322
          %v7455 = vunpack.c.l.b16 %v7323
          %v7456 = vunpack.c.l.b16 %v7324
          %v7457 = vunpack.c.l.b16 %v7325
          %v7458 = vunpack.c.l.b16 %v7326
          %v7459 = vunpack.c.l.b16 %v7327
          %v7460 = vunpack.c.l.b16 %v7328
          %v7461 = vunpack.c.l.b16 %v7329
          %v7462 = vunpack.c.l.b16 %v7330
          %v7463 = vunpack.c.l.b16 %v7331
          %v7464 = vunpack.c.l.b16 %v7332
          %v7465 = vunpack.c.l.b16 %v7333
          %v7466 = vunpack.c.l.b16 %v7334
          %v7467 = vunpack.c.l.b16 %v7335
          %v7468 = vunpack.c.l.b16 %v7336
          %v7469 = vunpack.c.l.b16 %v7337
          %v7470 = vunpack.c.l.b16 %v7338
          %v7471 = vunpack.c.l.b16 %v7339
          %v7472 = vunpack.c.l.b16 %v7340
          %v7473 = vunpack.c.l.b16 %v7341
          %v7474 = vunpack.c.l.b16 %v7342
          %v7475 = vunpack.c.l.b16 %v7343
          %v7476 = vunpack.c.l.b16 %v7344
          %v7477 = vunpack.c.l.b16 %v7345
          %v7478 = vunpack.c.l.b16 %v7346
          %v7479 = vunpack.c.l.b16 %v7347
          %v7480 = vunpack.c.l.b16 %v7348
          %v7481 = vunpack.c.l.b16 %v7349
          %v7482 = vunpack.c.l.b16 %v7350
          %v7483 = vunpack.c.l.b16 %v7351
          %v7484 = vunpack.c.l.b16 %v7352
          %v7485 = vunpack.c.l.b16 %v7353
          %v7486 = vunpack.c.l.b16 %v7354
          %v7487 = vunpack.c.l.b16 %v7355
          %v7488 = vunpack.c.l.b16 %v7356
          %v7489 = vunpack.c.l.b16 %v7357
          %v7490 = vunpack.c.l.b16 %v7358
          %v7491 = vunpack.c.l.b16 %v7359
          %v7492 = vunpack.c.l.b16 %v7360
          %v7493 = vunpack.c.l.b16 %v7361
          %v7494 = vunpack.c.l.b16 %v7362
          %v7495 = vunpack.c.l.b16 %v7363
          %v7496 = vunpack.c.l.b16 %v7364
          %v7497 = vunpack.c.l.b16 %v7365
          %v7498 = vunpack.c.l.b16 %v7366
          %v7499 = vunpack.c.l.b16 %v7367
          %v7500 = vunpack.c.l.b16 %v7368
          %v7501 = vunpack.c.l.b16 %v7369
          %v7502 = vunpack.c.l.b16 %v7370
          %v7503 = vpack.c.b16 %v7440, %v7439
          %v7504 = vpack.c.b16 %v7442, %v7441
          %v7505 = vpack.c.b16 %v7444, %v7443
          %v7506 = vpack.c.b16 %v7446, %v7445
          %v7507 = vpack.c.b16 %v7448, %v7447
          %v7508 = vpack.c.b16 %v7450, %v7449
          %v7509 = vpack.c.b16 %v7452, %v7451
          %v7510 = vpack.c.b16 %v7454, %v7453
          %v7511 = vpack.c.b16 %v7456, %v7455
          %v7512 = vpack.c.b16 %v7458, %v7457
          %v7513 = vpack.c.b16 %v7460, %v7459
          %v7514 = vpack.c.b16 %v7462, %v7461
          %v7515 = vpack.c.b16 %v7464, %v7463
          %v7516 = vpack.c.b16 %v7466, %v7465
          %v7517 = vpack.c.b16 %v7468, %v7467
          %v7518 = vpack.c.b16 %v7470, %v7469
          %v7519 = vpack.c.b16 %v7472, %v7471
          %v7520 = vpack.c.b16 %v7474, %v7473
          %v7521 = vpack.c.b16 %v7476, %v7475
          %v7522 = vpack.c.b16 %v7478, %v7477
          %v7523 = vpack.c.b16 %v7480, %v7479
          %v7524 = vpack.c.b16 %v7482, %v7481
          %v7525 = vpack.c.b16 %v7484, %v7483
          %v7526 = vpack.c.b16 %v7486, %v7485
          %v7527 = vpack.c.b16 %v7488, %v7487
          %v7528 = vpack.c.b16 %v7490, %v7489
          %v7529 = vpack.c.b16 %v7492, %v7491
          %v7530 = vpack.c.b16 %v7494, %v7493
          %v7531 = vpack.c.b16 %v7496, %v7495
          %v7532 = vpack.c.b16 %v7498, %v7497
          %v7533 = vpack.c.b16 %v7500, %v7499
          %v7534 = vpack.c.b16 %v7502, %v7501
          %7567 = vmatprep.subr.bf16.mxu0 0
          %7568 = vmatpush1.bf16.msra.mxu0 %v7503
          %7569 = vmatprep.subr.bf16.mxu0 0
          %7570 = vmatpush1.bf16.msra.mxu0 %v7504
          %7571 = vmatprep.subr.bf16.mxu0 0
          %7572 = vmatpush1.bf16.msra.mxu0 %v7505
          %7573 = vmatprep.subr.bf16.mxu0 0
          %7574 = vmatpush1.bf16.msra.mxu0 %v7506
          %7575 = vmatprep.subr.bf16.mxu0 0
          %7576 = vmatpush1.bf16.msra.mxu0 %v7507
          %7577 = vmatprep.subr.bf16.mxu0 0
          %7578 = vmatpush1.bf16.msra.mxu0 %v7508
          %7579 = vmatprep.subr.bf16.mxu0 0
          %7580 = vmatpush1.bf16.msra.mxu0 %v7509
          %7581 = vmatprep.subr.bf16.mxu0 0
          %7582 = vmatpush1.bf16.msra.mxu0 %v7510
          %7583 = vmatprep.subr.bf16.mxu0 0
          %7584 = vmatpush1.bf16.msra.mxu0 %v7511
          %7585 = vmatprep.subr.bf16.mxu0 0
          %7586 = vmatpush1.bf16.msra.mxu0 %v7512
          %7587 = vmatprep.subr.bf16.mxu0 0
          %7588 = vmatpush1.bf16.msra.mxu0 %v7513
          %7589 = vmatprep.subr.bf16.mxu0 0
          %7590 = vmatpush1.bf16.msra.mxu0 %v7514
          %7591 = vmatprep.subr.bf16.mxu0 0
          %7592 = vmatpush1.bf16.msra.mxu0 %v7515
          %7593 = vmatprep.subr.bf16.mxu0 0
          %7594 = vmatpush1.bf16.msra.mxu0 %v7516
          %7595 = vmatprep.subr.bf16.mxu0 0
          %7596 = vmatpush1.bf16.msra.mxu0 %v7517
          %7597 = vmatprep.subr.bf16.mxu0 0
          %7598 = vmatpush1.bf16.msra.mxu0 %v7518
          %7599 = vmatprep.mubr.bf16.mxu0 %v7372
          %7600 = vmatmul.mubr.bf16.gmra.mrb[0].mxu0 %v7371
          %v7601 = vpop.f32.mrb[0].mxu0
          %v7602 = vadd.f32 0.0, %v7601
          %v7603 = vpop.f32.mrb[0].mxu0
          %v7604 = vpop.f32.mrb[0].mxu0
          %v7605 = vadd.f32 0.0, %v7604
          %v7606 = vpop.f32.mrb[0].mxu0
          %7607 = vdwg.mxu0
          %7608 = vmatprep.subr.bf16.mxu0 0
          %7609 = vmatpush1.bf16.msra.mxu0 %v7519
          %7610 = vmatprep.subr.bf16.mxu0 0
          %7611 = vmatpush1.bf16.msra.mxu0 %v7520
          %7612 = vmatprep.subr.bf16.mxu0 0
          %7613 = vmatpush1.bf16.msra.mxu0 %v7521
          %7614 = vmatprep.subr.bf16.mxu0 0
          %7615 = vmatpush1.bf16.msra.mxu0 %v7522
          %7616 = vmatprep.subr.bf16.mxu0 0
          %7617 = vmatpush1.bf16.msra.mxu0 %v7523
          %7618 = vmatprep.subr.bf16.mxu0 0
          %7619 = vmatpush1.bf16.msra.mxu0 %v7524
          %7620 = vmatprep.subr.bf16.mxu0 0
          %7621 = vmatpush1.bf16.msra.mxu0 %v7525
          %7622 = vmatprep.subr.bf16.mxu0 0
          %7623 = vmatpush1.bf16.msra.mxu0 %v7526
          %7624 = vmatprep.subr.bf16.mxu0 0
          %7625 = vmatpush1.bf16.msra.mxu0 %v7527
          %7626 = vmatprep.subr.bf16.mxu0 0
          %7627 = vmatpush1.bf16.msra.mxu0 %v7528
          %7628 = vmatprep.subr.bf16.mxu0 0
          %7629 = vmatpush1.bf16.msra.mxu0 %v7529
          %7630 = vmatprep.subr.bf16.mxu0 0
          %7631 = vmatpush1.bf16.msra.mxu0 %v7530
          %7632 = vmatprep.subr.bf16.mxu0 0
          %7633 = vmatpush1.bf16.msra.mxu0 %v7531
          %7634 = vmatprep.subr.bf16.mxu0 0
          %7635 = vmatpush1.bf16.msra.mxu0 %v7532
          %7636 = vmatprep.subr.bf16.mxu0 0
          %7637 = vmatpush1.bf16.msra.mxu0 %v7533
          %7638 = vmatprep.subr.bf16.mxu0 0
          %7639 = vmatpush1.bf16.msra.mxu0 %v7534
          %7640 = vmatprep.mubr.bf16.mxu0 %v7374
          %7641 = vmatmul.mubr.bf16.gmra.mrb[0].mxu0 %v7373
          %v7642 = vpop.f32.mrb[0].mxu0
          %v7643 = vadd.f32 %v7602, %v7642
          %v7644 = vpop.f32.mrb[0].mxu0
          %v7645 = vpop.f32.mrb[0].mxu0
          %v7646 = vadd.f32 %v7605, %v7645
          %v7647 = vpop.f32.mrb[0].mxu0
          %7648 = vdwg.mxu0
          %v7649 = vadd.f32 %v7138, %v7643
          %v7650 = vadd.f32 %v7139, %v7646
          %s7651 = scalar_lea.vmem %s1397, 48
          %v7652 = vld [vmem:[%s7651] sm:$0xff]
          %v7653 = vld [vmem:[%s7651 + $0x8] sm:$0xff]
          %v7654 = vld [vmem:[%s7651 + $0x40] sm:$0xff]
          %v7655 = vld [vmem:[%s7651 + $0x48] sm:$0xff]
          %v7656 = vld [vmem:[%s7651 + $0x80] sm:$0xff]
          %v7657 = vld [vmem:[%s7651 + $0x88] sm:$0xff]
          %v7658 = vld [vmem:[%s7651 + $0xc0] sm:$0xff]
          %v7659 = vld [vmem:[%s7651 + $0xc8] sm:$0xff]
          %s7660 = scalar_lea.vmem %s1407, 12
          %v7661 = vld [vmem:[%s7660] sm:$0xf]
          %v7663 = vlaneseq
          %v7664 = vshrl.u32 %v7663, 7
          %v7665 = vsub.s32 0, %v7664
          %v7666 = vrot.slane %v7661, %v7665
          %v7667 = vlaneseq
          %v7668 = vshrl.u32 %v7667, 7
          %v7669 = vsub.s32 1, %v7668
          %v7670 = vrot.slane %v7661, %v7669
          %v7671 = vlaneseq
          %v7672 = vshrl.u32 %v7671, 7
          %v7673 = vsub.s32 2, %v7672
          %v7674 = vrot.slane %v7661, %v7673
          %v7675 = vlaneseq
          %v7676 = vshrl.u32 %v7675, 7
          %v7677 = vsub.s32 3, %v7676
          %v7678 = vrot.slane %v7661, %v7677
          %v7691 = vunpack.c.l.b16 %v7652
          %v7692 = vunpack.c.h.b16 %v7652
          %v7693 = vunpack.c.l.b16 %v7653
          %v7694 = vunpack.c.h.b16 %v7653
          %v7695 = vunpack.c.l.b16 %v7654
          %v7696 = vunpack.c.h.b16 %v7654
          %v7697 = vunpack.c.l.b16 %v7655
          %v7698 = vunpack.c.h.b16 %v7655
          %v7699 = vunpack.c.l.b16 %v7656
          %v7700 = vunpack.c.h.b16 %v7656
          %v7701 = vunpack.c.l.b16 %v7657
          %v7702 = vunpack.c.h.b16 %v7657
          %v7703 = vunpack.c.l.b16 %v7658
          %v7704 = vunpack.c.h.b16 %v7658
          %v7705 = vunpack.c.l.b16 %v7659
          %v7706 = vunpack.c.h.b16 %v7659
          %v7707 = vpack.c.b16 %v7695, %v7691
          %v7708 = vpack.c.b16 %v7696, %v7692
          %v7709 = vpack.c.b16 %v7697, %v7693
          %v7710 = vpack.c.b16 %v7698, %v7694
          %v7711 = vpack.c.b16 %v7703, %v7699
          %v7712 = vpack.c.b16 %v7704, %v7700
          %v7713 = vpack.c.b16 %v7705, %v7701
          %v7714 = vpack.c.b16 %v7706, %v7702
          %7723 = vmatprep.subr.bf16.mxu0 %v7708
          %7724 = vmatpush1.bf16.msra.mxu0 %v7707
          %7725 = vmatprep.subr.bf16.mxu0 %v7712
          %7726 = vmatpush1.bf16.msra.mxu0 %v7711
          %7727 = vmatprep.subr.bf16.mxu0 0
          %7728 = vmatpush1.bf16.msra.mxu0 0
          %7729 = vmatprep.subr.bf16.mxu0 0
          %7730 = vmatpush1.bf16.msra.mxu0 0
          %7731 = vmatprep.subr.bf16.mxu0 0
          %7732 = vmatpush1.bf16.msra.mxu0 0
          %7733 = vmatprep.subr.bf16.mxu0 0
          %7734 = vmatpush1.bf16.msra.mxu0 0
          %7735 = vmatprep.subr.bf16.mxu0 0
          %7736 = vmatpush1.bf16.msra.mxu0 0
          %7737 = vmatprep.subr.bf16.mxu0 0
          %7738 = vmatpush1.bf16.msra.mxu0 0
          %7739 = vmatprep.subr.bf16.mxu0 0
          %7740 = vmatpush1.bf16.msra.mxu0 0
          %7741 = vmatprep.subr.bf16.mxu0 0
          %7742 = vmatpush1.bf16.msra.mxu0 0
          %7743 = vmatprep.subr.bf16.mxu0 0
          %7744 = vmatpush1.bf16.msra.mxu0 0
          %7745 = vmatprep.subr.bf16.mxu0 0
          %7746 = vmatpush1.bf16.msra.mxu0 0
          %7747 = vmatprep.subr.bf16.mxu0 0
          %7748 = vmatpush1.bf16.msra.mxu0 0
          %7749 = vmatprep.subr.bf16.mxu0 0
          %7750 = vmatpush1.bf16.msra.mxu0 0
          %7751 = vmatprep.subr.bf16.mxu0 0
          %7752 = vmatpush1.bf16.msra.mxu0 0
          %7753 = vmatprep.subr.bf16.mxu0 0
          %7754 = vmatpush1.bf16.msra.mxu0 0
          %7755 = vmatprep.mubr.bf16.mxu0 0
          %7756 = vmatmul.mubr.bf16.gmra.mrb[0].mxu0 %v6189
          %v7757 = vpop.f32.mrb[0].mxu0
          %v7758 = vadd.f32 %v7666, %v7757
          %v7759 = vpop.f32.mrb[0].mxu0
          %v7760 = vadd.f32 %v7670, %v7759
          %v7761 = vpop.f32.mrb[0].mxu0
          %v7762 = vadd.f32 %v7666, %v7761
          %v7763 = vpop.f32.mrb[0].mxu0
          %v7764 = vadd.f32 %v7670, %v7763
          %7765 = vdwg.mxu0
          %7766 = vmatprep.subr.bf16.mxu0 %v7710
          %7767 = vmatpush1.bf16.msra.mxu0 %v7709
          %7768 = vmatprep.subr.bf16.mxu0 %v7714
          %7769 = vmatpush1.bf16.msra.mxu0 %v7713
          %7770 = vmatprep.subr.bf16.mxu0 0
          %7771 = vmatpush1.bf16.msra.mxu0 0
          %7772 = vmatprep.subr.bf16.mxu0 0
          %7773 = vmatpush1.bf16.msra.mxu0 0
          %7774 = vmatprep.subr.bf16.mxu0 0
          %7775 = vmatpush1.bf16.msra.mxu0 0
          %7776 = vmatprep.subr.bf16.mxu0 0
          %7777 = vmatpush1.bf16.msra.mxu0 0
          %7778 = vmatprep.subr.bf16.mxu0 0
          %7779 = vmatpush1.bf16.msra.mxu0 0
          %7780 = vmatprep.subr.bf16.mxu0 0
          %7781 = vmatpush1.bf16.msra.mxu0 0
          %7782 = vmatprep.subr.bf16.mxu0 0
          %7783 = vmatpush1.bf16.msra.mxu0 0
          %7784 = vmatprep.subr.bf16.mxu0 0
          %7785 = vmatpush1.bf16.msra.mxu0 0
          %7786 = vmatprep.subr.bf16.mxu0 0
          %7787 = vmatpush1.bf16.msra.mxu0 0
          %7788 = vmatprep.subr.bf16.mxu0 0
          %7789 = vmatpush1.bf16.msra.mxu0 0
          %7790 = vmatprep.subr.bf16.mxu0 0
          %7791 = vmatpush1.bf16.msra.mxu0 0
          %7792 = vmatprep.subr.bf16.mxu0 0
          %7793 = vmatpush1.bf16.msra.mxu0 0
          %7794 = vmatprep.subr.bf16.mxu0 0
          %7795 = vmatpush1.bf16.msra.mxu0 0
          %7796 = vmatprep.subr.bf16.mxu0 0
          %7797 = vmatpush1.bf16.msra.mxu0 0
          %7798 = vmatprep.mubr.bf16.mxu0 0
          %7799 = vmatmul.mubr.bf16.gmra.mrb[0].mxu0 %v6189
          %v7800 = vpop.f32.mrb[0].mxu0
          %v7801 = vadd.f32 %v7674, %v7800
          %v7802 = vpop.f32.mrb[0].mxu0
          %v7803 = vadd.f32 %v7678, %v7802
          %v7804 = vpop.f32.mrb[0].mxu0
          %v7805 = vadd.f32 %v7674, %v7804
          %v7806 = vpop.f32.mrb[0].mxu0
          %v7807 = vadd.f32 %v7678, %v7806
          %7808 = vdwg.mxu0
          %v7809 = vmax.f32 %v7758, 0.0
          %v7810 = vmax.f32 %v7760, 0.0
          %v7811 = vmax.f32 %v7801, 0.0
          %v7812 = vmax.f32 %v7803, 0.0
          %v7813 = vmax.f32 %v7762, 0.0
          %v7814 = vmax.f32 %v7764, 0.0
          %v7815 = vmax.f32 %v7805, 0.0
          %v7816 = vmax.f32 %v7807, 0.0
          %s7817 = scalar_lea.vmem %s1418, 768
          %v7818 = vld [vmem:[%s7817] sm:$0xf]
          %v7819 = vld [vmem:[%s7817 + $0x4] sm:$0xf]
          %v7820 = vld [vmem:[%s7817 + $0x8] sm:$0xf]
          %v7821 = vld [vmem:[%s7817 + $0xc] sm:$0xf]
          %v7822 = vld [vmem:[%s7817 + $0x10] sm:$0xf]
          %v7823 = vld [vmem:[%s7817 + $0x14] sm:$0xf]
          %v7824 = vld [vmem:[%s7817 + $0x18] sm:$0xf]
          %v7825 = vld [vmem:[%s7817 + $0x1c] sm:$0xf]
          %v7826 = vld [vmem:[%s7817 + $0x20] sm:$0xf]
          %v7827 = vld [vmem:[%s7817 + $0x24] sm:$0xf]
          %v7828 = vld [vmem:[%s7817 + $0x28] sm:$0xf]
          %v7829 = vld [vmem:[%s7817 + $0x2c] sm:$0xf]
          %v7830 = vld [vmem:[%s7817 + $0x30] sm:$0xf]
          %v7831 = vld [vmem:[%s7817 + $0x34] sm:$0xf]
          %v7832 = vld [vmem:[%s7817 + $0x38] sm:$0xf]
          %v7833 = vld [vmem:[%s7817 + $0x3c] sm:$0xf]
          %v7834 = vld [vmem:[%s7817 + $0x40] sm:$0xf]
          %v7835 = vld [vmem:[%s7817 + $0x44] sm:$0xf]
          %v7836 = vld [vmem:[%s7817 + $0x48] sm:$0xf]
          %v7837 = vld [vmem:[%s7817 + $0x4c] sm:$0xf]
          %v7838 = vld [vmem:[%s7817 + $0x50] sm:$0xf]
          %v7839 = vld [vmem:[%s7817 + $0x54] sm:$0xf]
          %v7840 = vld [vmem:[%s7817 + $0x58] sm:$0xf]
          %v7841 = vld [vmem:[%s7817 + $0x5c] sm:$0xf]
          %v7842 = vld [vmem:[%s7817 + $0x60] sm:$0xf]
          %v7843 = vld [vmem:[%s7817 + $0x64] sm:$0xf]
          %v7844 = vld [vmem:[%s7817 + $0x68] sm:$0xf]
          %v7845 = vld [vmem:[%s7817 + $0x6c] sm:$0xf]
          %v7846 = vld [vmem:[%s7817 + $0x70] sm:$0xf]
          %v7847 = vld [vmem:[%s7817 + $0x74] sm:$0xf]
          %v7848 = vld [vmem:[%s7817 + $0x78] sm:$0xf]
          %v7849 = vld [vmem:[%s7817 + $0x7c] sm:$0xf]
          %v7850 = vld [vmem:[%s7817 + $0x80] sm:$0xf]
          %v7851 = vld [vmem:[%s7817 + $0x84] sm:$0xf]
          %v7852 = vld [vmem:[%s7817 + $0x88] sm:$0xf]
          %v7853 = vld [vmem:[%s7817 + $0x8c] sm:$0xf]
          %v7854 = vld [vmem:[%s7817 + $0x90] sm:$0xf]
          %v7855 = vld [vmem:[%s7817 + $0x94] sm:$0xf]
          %v7856 = vld [vmem:[%s7817 + $0x98] sm:$0xf]
          %v7857 = vld [vmem:[%s7817 + $0x9c] sm:$0xf]
          %v7858 = vld [vmem:[%s7817 + $0xa0] sm:$0xf]
          %v7859 = vld [vmem:[%s7817 + $0xa4] sm:$0xf]
          %v7860 = vld [vmem:[%s7817 + $0xa8] sm:$0xf]
          %v7861 = vld [vmem:[%s7817 + $0xac] sm:$0xf]
          %v7862 = vld [vmem:[%s7817 + $0xb0] sm:$0xf]
          %v7863 = vld [vmem:[%s7817 + $0xb4] sm:$0xf]
          %v7864 = vld [vmem:[%s7817 + $0xb8] sm:$0xf]
          %v7865 = vld [vmem:[%s7817 + $0xbc] sm:$0xf]
          %v7866 = vld [vmem:[%s7817 + $0xc0] sm:$0xf]
          %v7867 = vld [vmem:[%s7817 + $0xc4] sm:$0xf]
          %v7868 = vld [vmem:[%s7817 + $0xc8] sm:$0xf]
          %v7869 = vld [vmem:[%s7817 + $0xcc] sm:$0xf]
          %v7870 = vld [vmem:[%s7817 + $0xd0] sm:$0xf]
          %v7871 = vld [vmem:[%s7817 + $0xd4] sm:$0xf]
          %v7872 = vld [vmem:[%s7817 + $0xd8] sm:$0xf]
          %v7873 = vld [vmem:[%s7817 + $0xdc] sm:$0xf]
          %v7874 = vld [vmem:[%s7817 + $0xe0] sm:$0xf]
          %v7875 = vld [vmem:[%s7817 + $0xe4] sm:$0xf]
          %v7876 = vld [vmem:[%s7817 + $0xe8] sm:$0xf]
          %v7877 = vld [vmem:[%s7817 + $0xec] sm:$0xf]
          %v7878 = vld [vmem:[%s7817 + $0xf0] sm:$0xf]
          %v7879 = vld [vmem:[%s7817 + $0xf4] sm:$0xf]
          %v7880 = vld [vmem:[%s7817 + $0xf8] sm:$0xf]
          %v7881 = vld [vmem:[%s7817 + $0xfc] sm:$0xf]
          %v7882 = vpack.c.bf16 %v7813, %v7809
          %v7883 = vpack.c.bf16 %v7814, %v7810
          %v7884 = vpack.c.bf16 %v7815, %v7811
          %v7885 = vpack.c.bf16 %v7816, %v7812
          %v7950 = vunpack.c.l.b16 %v7818
          %v7951 = vunpack.c.l.b16 %v7819
          %v7952 = vunpack.c.l.b16 %v7820
          %v7953 = vunpack.c.l.b16 %v7821
          %v7954 = vunpack.c.l.b16 %v7822
          %v7955 = vunpack.c.l.b16 %v7823
          %v7956 = vunpack.c.l.b16 %v7824
          %v7957 = vunpack.c.l.b16 %v7825
          %v7958 = vunpack.c.l.b16 %v7826
          %v7959 = vunpack.c.l.b16 %v7827
          %v7960 = vunpack.c.l.b16 %v7828
          %v7961 = vunpack.c.l.b16 %v7829
          %v7962 = vunpack.c.l.b16 %v7830
          %v7963 = vunpack.c.l.b16 %v7831
          %v7964 = vunpack.c.l.b16 %v7832
          %v7965 = vunpack.c.l.b16 %v7833
          %v7966 = vunpack.c.l.b16 %v7834
          %v7967 = vunpack.c.l.b16 %v7835
          %v7968 = vunpack.c.l.b16 %v7836
          %v7969 = vunpack.c.l.b16 %v7837
          %v7970 = vunpack.c.l.b16 %v7838
          %v7971 = vunpack.c.l.b16 %v7839
          %v7972 = vunpack.c.l.b16 %v7840
          %v7973 = vunpack.c.l.b16 %v7841
          %v7974 = vunpack.c.l.b16 %v7842
          %v7975 = vunpack.c.l.b16 %v7843
          %v7976 = vunpack.c.l.b16 %v7844
          %v7977 = vunpack.c.l.b16 %v7845
          %v7978 = vunpack.c.l.b16 %v7846
          %v7979 = vunpack.c.l.b16 %v7847
          %v7980 = vunpack.c.l.b16 %v7848
          %v7981 = vunpack.c.l.b16 %v7849
          %v7982 = vunpack.c.l.b16 %v7850
          %v7983 = vunpack.c.l.b16 %v7851
          %v7984 = vunpack.c.l.b16 %v7852
          %v7985 = vunpack.c.l.b16 %v7853
          %v7986 = vunpack.c.l.b16 %v7854
          %v7987 = vunpack.c.l.b16 %v7855
          %v7988 = vunpack.c.l.b16 %v7856
          %v7989 = vunpack.c.l.b16 %v7857
          %v7990 = vunpack.c.l.b16 %v7858
          %v7991 = vunpack.c.l.b16 %v7859
          %v7992 = vunpack.c.l.b16 %v7860
          %v7993 = vunpack.c.l.b16 %v7861
          %v7994 = vunpack.c.l.b16 %v7862
          %v7995 = vunpack.c.l.b16 %v7863
          %v7996 = vunpack.c.l.b16 %v7864
          %v7997 = vunpack.c.l.b16 %v7865
          %v7998 = vunpack.c.l.b16 %v7866
          %v7999 = vunpack.c.l.b16 %v7867
          %v8000 = vunpack.c.l.b16 %v7868
          %v8001 = vunpack.c.l.b16 %v7869
          %v8002 = vunpack.c.l.b16 %v7870
          %v8003 = vunpack.c.l.b16 %v7871
          %v8004 = vunpack.c.l.b16 %v7872
          %v8005 = vunpack.c.l.b16 %v7873
          %v8006 = vunpack.c.l.b16 %v7874
          %v8007 = vunpack.c.l.b16 %v7875
          %v8008 = vunpack.c.l.b16 %v7876
          %v8009 = vunpack.c.l.b16 %v7877
          %v8010 = vunpack.c.l.b16 %v7878
          %v8011 = vunpack.c.l.b16 %v7879
          %v8012 = vunpack.c.l.b16 %v7880
          %v8013 = vunpack.c.l.b16 %v7881
          %v8014 = vpack.c.b16 %v7951, %v7950
          %v8015 = vpack.c.b16 %v7953, %v7952
          %v8016 = vpack.c.b16 %v7955, %v7954
          %v8017 = vpack.c.b16 %v7957, %v7956
          %v8018 = vpack.c.b16 %v7959, %v7958
          %v8019 = vpack.c.b16 %v7961, %v7960
          %v8020 = vpack.c.b16 %v7963, %v7962
          %v8021 = vpack.c.b16 %v7965, %v7964
          %v8022 = vpack.c.b16 %v7967, %v7966
          %v8023 = vpack.c.b16 %v7969, %v7968
          %v8024 = vpack.c.b16 %v7971, %v7970
          %v8025 = vpack.c.b16 %v7973, %v7972
          %v8026 = vpack.c.b16 %v7975, %v7974
          %v8027 = vpack.c.b16 %v7977, %v7976
          %v8028 = vpack.c.b16 %v7979, %v7978
          %v8029 = vpack.c.b16 %v7981, %v7980
          %v8030 = vpack.c.b16 %v7983, %v7982
          %v8031 = vpack.c.b16 %v7985, %v7984
          %v8032 = vpack.c.b16 %v7987, %v7986
          %v8033 = vpack.c.b16 %v7989, %v7988
          %v8034 = vpack.c.b16 %v7991, %v7990
          %v8035 = vpack.c.b16 %v7993, %v7992
          %v8036 = vpack.c.b16 %v7995, %v7994
          %v8037 = vpack.c.b16 %v7997, %v7996
          %v8038 = vpack.c.b16 %v7999, %v7998
          %v8039 = vpack.c.b16 %v8001, %v8000
          %v8040 = vpack.c.b16 %v8003, %v8002
          %v8041 = vpack.c.b16 %v8005, %v8004
          %v8042 = vpack.c.b16 %v8007, %v8006
          %v8043 = vpack.c.b16 %v8009, %v8008
          %v8044 = vpack.c.b16 %v8011, %v8010
          %v8045 = vpack.c.b16 %v8013, %v8012
          %8078 = vmatprep.subr.bf16.mxu0 0
          %8079 = vmatpush1.bf16.msra.mxu0 %v8014
          %8080 = vmatprep.subr.bf16.mxu0 0
          %8081 = vmatpush1.bf16.msra.mxu0 %v8015
          %8082 = vmatprep.subr.bf16.mxu0 0
          %8083 = vmatpush1.bf16.msra.mxu0 %v8016
          %8084 = vmatprep.subr.bf16.mxu0 0
          %8085 = vmatpush1.bf16.msra.mxu0 %v8017
          %8086 = vmatprep.subr.bf16.mxu0 0
          %8087 = vmatpush1.bf16.msra.mxu0 %v8018
          %8088 = vmatprep.subr.bf16.mxu0 0
          %8089 = vmatpush1.bf16.msra.mxu0 %v8019
          %8090 = vmatprep.subr.bf16.mxu0 0
          %8091 = vmatpush1.bf16.msra.mxu0 %v8020
          %8092 = vmatprep.subr.bf16.mxu0 0
          %8093 = vmatpush1.bf16.msra.mxu0 %v8021
          %8094 = vmatprep.subr.bf16.mxu0 0
          %8095 = vmatpush1.bf16.msra.mxu0 %v8022
          %8096 = vmatprep.subr.bf16.mxu0 0
          %8097 = vmatpush1.bf16.msra.mxu0 %v8023
          %8098 = vmatprep.subr.bf16.mxu0 0
          %8099 = vmatpush1.bf16.msra.mxu0 %v8024
          %8100 = vmatprep.subr.bf16.mxu0 0
          %8101 = vmatpush1.bf16.msra.mxu0 %v8025
          %8102 = vmatprep.subr.bf16.mxu0 0
          %8103 = vmatpush1.bf16.msra.mxu0 %v8026
          %8104 = vmatprep.subr.bf16.mxu0 0
          %8105 = vmatpush1.bf16.msra.mxu0 %v8027
          %8106 = vmatprep.subr.bf16.mxu0 0
          %8107 = vmatpush1.bf16.msra.mxu0 %v8028
          %8108 = vmatprep.subr.bf16.mxu0 0
          %8109 = vmatpush1.bf16.msra.mxu0 %v8029
          %8110 = vmatprep.mubr.bf16.mxu0 %v7883
          %8111 = vmatmul.mubr.bf16.gmra.mrb[0].mxu0 %v7882
          %v8112 = vpop.f32.mrb[0].mxu0
          %v8113 = vadd.f32 0.0, %v8112
          %v8114 = vpop.f32.mrb[0].mxu0
          %v8115 = vpop.f32.mrb[0].mxu0
          %v8116 = vadd.f32 0.0, %v8115
          %v8117 = vpop.f32.mrb[0].mxu0
          %8118 = vdwg.mxu0
          %8119 = vmatprep.subr.bf16.mxu0 0
          %8120 = vmatpush1.bf16.msra.mxu0 %v8030
          %8121 = vmatprep.subr.bf16.mxu0 0
          %8122 = vmatpush1.bf16.msra.mxu0 %v8031
          %8123 = vmatprep.subr.bf16.mxu0 0
          %8124 = vmatpush1.bf16.msra.mxu0 %v8032
          %8125 = vmatprep.subr.bf16.mxu0 0
          %8126 = vmatpush1.bf16.msra.mxu0 %v8033
          %8127 = vmatprep.subr.bf16.mxu0 0
          %8128 = vmatpush1.bf16.msra.mxu0 %v8034
          %8129 = vmatprep.subr.bf16.mxu0 0
          %8130 = vmatpush1.bf16.msra.mxu0 %v8035
          %8131 = vmatprep.subr.bf16.mxu0 0
          %8132 = vmatpush1.bf16.msra.mxu0 %v8036
          %8133 = vmatprep.subr.bf16.mxu0 0
          %8134 = vmatpush1.bf16.msra.mxu0 %v8037
          %8135 = vmatprep.subr.bf16.mxu0 0
          %8136 = vmatpush1.bf16.msra.mxu0 %v8038
          %8137 = vmatprep.subr.bf16.mxu0 0
          %8138 = vmatpush1.bf16.msra.mxu0 %v8039
          %8139 = vmatprep.subr.bf16.mxu0 0
          %8140 = vmatpush1.bf16.msra.mxu0 %v8040
          %8141 = vmatprep.subr.bf16.mxu0 0
          %8142 = vmatpush1.bf16.msra.mxu0 %v8041
          %8143 = vmatprep.subr.bf16.mxu0 0
          %8144 = vmatpush1.bf16.msra.mxu0 %v8042
          %8145 = vmatprep.subr.bf16.mxu0 0
          %8146 = vmatpush1.bf16.msra.mxu0 %v8043
          %8147 = vmatprep.subr.bf16.mxu0 0
          %8148 = vmatpush1.bf16.msra.mxu0 %v8044
          %8149 = vmatprep.subr.bf16.mxu0 0
          %8150 = vmatpush1.bf16.msra.mxu0 %v8045
          %8151 = vmatprep.mubr.bf16.mxu0 %v7885
          %8152 = vmatmul.mubr.bf16.gmra.mrb[0].mxu0 %v7884
          %v8153 = vpop.f32.mrb[0].mxu0
          %v8154 = vadd.f32 %v8113, %v8153
          %v8155 = vpop.f32.mrb[0].mxu0
          %v8156 = vpop.f32.mrb[0].mxu0
          %v8157 = vadd.f32 %v8116, %v8156
          %v8158 = vpop.f32.mrb[0].mxu0
          %8159 = vdwg.mxu0
          %v8160 = vadd.f32 %v7649, %v8154
          %v8161 = vadd.f32 %v7650, %v8157
          %v8162 = vadd.f32 %v6058, %v8160
          %v8163 = vadd.f32 %v6059, %v8161
          %8164 = vst.msk [vmem:[#allocation3] sm:$0xff] %vm4562, %v8162
          %8165 = vst.msk [vmem:[#allocation3 + $0x8] sm:$0xff] %vm4562, %v8163
        $region152: #{forward.1} parent=135 // pred_fallthru
          _
        %p8166 = scmp.eq.s32.totalorder %s71, 3
        // Predicated region
        $region153: #{forward.1} parent=135 // pred_check
          %p8167 = pneg %p8166
        $region154: #{forward.1} parent=135 // pred_check_branch
          %8169 = sbr.rel (%p8167) target = $region156
        $region155: #{forward.1} parent=135 // pred_region
          %v8170 = vld [vmem:[#allocation3] sm:$0xff]
          %v8171 = vld [vmem:[#allocation3 + $0x8] sm:$0xff]
          %v8172 = vld [vmem:[%s45] sm:$0x3]
          %vm8173 = vcmask 261120
          %v8174 = vsel %vm8173, %v8170, 0.0
          %8175 = vadd.xlane.f32.xlu0 %v8174
          %v8176 = vpop.xlane.xlu0 %8175
          %v8177 = vsel %vm8173, %v8171, 0.0
          %8178 = vadd.xlane.f32.xlu0 %v8177
          %v8179 = vpop.xlane.xlu0 %8178
          %v8180 = vrcp.pop 32.0
          %v8181 = vmul.f32 %v8176, %v8180
          %v8182 = vmul.f32 %v8179, %v8180
          %v8183 = vsub.f32 %v8170, %v8181
          %v8184 = vsub.f32 %v8171, %v8182
          %v8185 = vmul.f32 %v8183, %v8183
          %v8186 = vmul.f32 %v8184, %v8184
          %v8187 = vsel %vm8173, %v8185, 0.0
          %8188 = vadd.xlane.f32.xlu0 %v8187
          %v8189 = vpop.xlane.xlu0 %8188
          %v8190 = vsel %vm8173, %v8186, 0.0
          %8191 = vadd.xlane.f32.xlu0 %v8190
          %v8192 = vpop.xlane.xlu0 %8191
          %v8193 = vmul.f32 %v8189, 0.032258064
          %v8194 = vmul.f32 %v8192, 0.032258064
          %v8195 = vrsqrt.pop %v8193
          %v8196 = vmul.f32 %v8193, %v8195
          %vm8197 = vcmp.eq.f32.partialorder %v8193, inf
          %v8198 = vsel %vm8197, %v8193, %v8196
          %vm8199 = vcmp.eq.f32.partialorder %v8193, 0.0
          %v8200 = vand.u32 %v8193, 2147483648
          %v8201 = vsel %vm8199, %v8200, %v8198
          %v8202 = vrsqrt.pop %v8194
          %v8203 = vmul.f32 %v8194, %v8202
          %vm8204 = vcmp.eq.f32.partialorder %v8194, inf
          %v8205 = vsel %vm8204, %v8194, %v8203
          %vm8206 = vcmp.eq.f32.partialorder %v8194, 0.0
          %v8207 = vand.u32 %v8194, 2147483648
          %v8208 = vsel %vm8206, %v8207, %v8205
          %v8209 = vadd.f32 %v8201, 1e-06
          %v8210 = vadd.f32 %v8208, 1e-06
          %v8211 = vrcp.pop %v8209
          %v8212 = vrcp.pop %v8210
          %v8213 = vmul.f32 %v8183, %v8211
          %v8214 = vmul.f32 %v8184, %v8212
          %v8215 = vlaneseq
          %v8216 = vshrl.u32 %v8215, 7
          %v8217 = vsub.s32 0, %v8216
          %v8218 = vrot.slane %v8172, %v8217
          %v8219 = vmul.f32 %v8218, %v8213
          %v8220 = vmul.f32 %v8218, %v8214
          %v8221 = vlaneseq
          %v8222 = vshrl.u32 %v8221, 7
          %v8223 = vsub.s32 1, %v8222
          %v8224 = vrot.slane %v8172, %v8223
          %v8225 = vadd.f32 %v8219, %v8224
          %v8226 = vadd.f32 %v8220, %v8224
          %v8227 = vld [vmem:[%s55] sm:$0xf]
          %v8228 = vld [vmem:[%s55 + $0x4] sm:$0xf]
          %v8229 = vld [vmem:[%s55 + $0x8] sm:$0xf]
          %v8230 = vld [vmem:[%s55 + $0xc] sm:$0xf]
          %v8231 = vld [vmem:[%s57] sm:$0x1]
          %v8232 = vpack.c.bf16 %v8226, %v8225
          %v8234 = vlaneseq
          %v8235 = vshrl.u32 %v8234, 7
          %v8236 = vsub.s32 0, %v8235
          %v8237 = vrot.slane %v8231, %v8236
          %v8243 = vunpack.c.l.b16 %v8227
          %v8244 = vunpack.c.l.b16 %v8228
          %v8245 = vunpack.c.l.b16 %v8229
          %v8246 = vunpack.c.l.b16 %v8230
          %v8247 = vpack.c.b16 %v8244, %v8243
          %v8248 = vpack.c.b16 %v8246, %v8245
          %v8252 = vsel %vm8173, %v8232, 0
          %8254 = vmatprep.subr.bf16.mxu0 0
          %8255 = vmatpush1.bf16.msra.mxu0 %v8247
          %8256 = vmatprep.subr.bf16.mxu0 0
          %8257 = vmatpush1.bf16.msra.mxu0 %v8248
          %8258 = vmatprep.subr.bf16.mxu0 0
          %8259 = vmatpush1.bf16.msra.mxu0 0
          %8260 = vmatprep.subr.bf16.mxu0 0
          %8261 = vmatpush1.bf16.msra.mxu0 0
          %8262 = vmatprep.subr.bf16.mxu0 0
          %8263 = vmatpush1.bf16.msra.mxu0 0
          %8264 = vmatprep.subr.bf16.mxu0 0
          %8265 = vmatpush1.bf16.msra.mxu0 0
          %8266 = vmatprep.subr.bf16.mxu0 0
          %8267 = vmatpush1.bf16.msra.mxu0 0
          %8268 = vmatprep.subr.bf16.mxu0 0
          %8269 = vmatpush1.bf16.msra.mxu0 0
          %8270 = vmatprep.subr.bf16.mxu0 0
          %8271 = vmatpush1.bf16.msra.mxu0 0
          %8272 = vmatprep.subr.bf16.mxu0 0
          %8273 = vmatpush1.bf16.msra.mxu0 0
          %8274 = vmatprep.subr.bf16.mxu0 0
          %8275 = vmatpush1.bf16.msra.mxu0 0
          %8276 = vmatprep.subr.bf16.mxu0 0
          %8277 = vmatpush1.bf16.msra.mxu0 0
          %8278 = vmatprep.subr.bf16.mxu0 0
          %8279 = vmatpush1.bf16.msra.mxu0 0
          %8280 = vmatprep.subr.bf16.mxu0 0
          %8281 = vmatpush1.bf16.msra.mxu0 0
          %8282 = vmatprep.subr.bf16.mxu0 0
          %8283 = vmatpush1.bf16.msra.mxu0 0
          %8284 = vmatprep.subr.bf16.mxu0 0
          %8285 = vmatpush1.bf16.msra.mxu0 0
          %8286 = vmatprep.mubr.bf16.mxu0 0
          %8287 = vmatmul.mubr.bf16.gmra.mrb[0].mxu0 %v8252
          %v8288 = vpop.f32.mrb[0].mxu0
          %v8289 = vadd.f32 %v8237, %v8288
          %v8290 = vpop.f32.mrb[0].mxu0
          %v8291 = vpop.f32.mrb[0].mxu0
          %v8292 = vadd.f32 %v8237, %v8291
          %v8293 = vpop.f32.mrb[0].mxu0
          %8294 = vdwg.mxu0
          %8295 = vst [vmem:[#allocation5] sm:$0xff] %v8289
          %8296 = vst [vmem:[#allocation5 + $0x8] sm:$0xff] %v8292
        $region156: #{forward.1} parent=135 // pred_fallthru
          _
        // Predicated region
        $region157: #{forward.1} parent=135 // pred_check
          %p8297 = pneg %p846
        $region158: #{forward.1} parent=135 // pred_check_branch
          %8299 = sbr.rel (%p8297) target = $region160
        $region159: #{forward.1} parent=135 // pred_region
          %s8301 = ssub.s32 256, 256
          %8302 = vsyncadd [#allocation6], %s8301
          %s8303 = sshll.u32 [#allocation5], 4
          %s8304 = int_to_ptr.vmem [resolvable:$true] %s8303
          %8309 = dma.vmem_to_hbm [thread:$0]  %s8304, 256, %s59, [#allocation6], 128, 128, 8
        $region160: #{forward.1} parent=135 // pred_fallthru
          _
        // Predicated region
        $region161: #{forward.1} parent=135 // pred_check
          %p8310 = pneg %p846
        $region162: #{forward.1} parent=135 // pred_check_branch
          %8312 = sbr.rel (%p8310) target = $region164
        $region163: #{forward.1} parent=135 // pred_region
          %8313 = dma.done [#allocation6], 256
        $region164: #{forward.1} parent=135 // pred_fallthru
          _
      $region136: #{forward.1} parent=5 // pred_fallthru
        _
      %p8314 = scmp.le.s32.totalorder 2, %s66
      // Predicated region
      $region165: #{forward.1} parent=5 // pred_check
        %p8315 = pneg %p8314
      $region166: #{forward.1} parent=5 // pred_check_branch
        %8317 = sbr.rel (%p8315) target = $region168
      $region167: #{forward.1} parent=5 // pred_region
        %s8318 = ssub.s32 %s66, 2
      $region168: #{forward.1} parent=5 // pred_fallthru
        _
    $region6: #{forward.1} parent=1 // loop_footer
      %s70 = sadd.s32 1, %s66
    $region7: #{forward.1} parent=1 // loop_footer_branch
      %65 = sbr.rel target = $region3
    $region8: #{forward.1} parent=1 // loop_exit
      _
    %8319 = vsyncpa [#allocation6], 1
    %s8320 = scalar_lea.sflag [#allocation6], 1
    %8321 = vsyncpa %s8320, 1

</llo_original>
